<compile_context>
chip_gen: v5e
topology: v5e:2x2
jax: 0.10.0
libtpu: 0.0.40
codegen_flags: <defaults>
</compile_context>

<pallas_src>
import functools

import jax
import jax.numpy as jnp
from jax.experimental import pallas as pl
from jax.experimental.pallas import tpu as pltpu


# ---------------------------------------------------------------------------
# Fused whole-network kernel
# ---------------------------------------------------------------------------

def _convnet_kernel(x_ref, w1_ref, w234_ref, g_ref, be_ref, wc_ref, bc_ref,
                    o_ref,
                    y2s1, buf2, y2s2, buf3, y2s3, buf4,
                    *, N, H0, eps):
    """Conv-4 + linear classifier forward in one invocation.

    Per-block layout (square spatial H=W, Cin channels):
      input buffer : (N*(H+2)*(W+2) + 2*(W+2) + 2, Cin) "flat padded NHWC" rows; zeros on the
                     1-pixel ring and the tail rows.
      conv output  : row r = n*S + h*(W+2) + w  <->  output pixel (n, h, w).  Rows with h >= H
                     or w >= W are wrap-around garbage; they are excluded from BN statistics and
                     never selected by the pooling gather.
    """
    inputs = [x_ref, buf2, buf3, buf4]       # block b reads inputs[b]
    y2_scratch = [y2s1, y2s2, y2s3]          # blocks 0..2 stage the 4-way max here

    H = H0
    for b in range(4):
        Wrow = H + 2
        S = (H + 2) * Wrow
        Mp = N * S
        inp = inputs[b]

        # ---- Conv3x3(pad=1): ONE packed MXU matmul (Mp, 9*Cin) @ (9*Cin, Cout) ------------
        # 9 row-shifted reads of the flat padded input, lane-concatenated so K = 9*Cin.
        pieces = [inp[kh * Wrow + kw: kh * Wrow + kw + Mp, :]
                  for kh in range(3) for kw in range(3)]
        z = jnp.concatenate(pieces, axis=-1).astype(jnp.bfloat16)   # single down-cast per block
        w = w1_ref[...] if b == 0 else w234_ref[b - 1]
        acc = jnp.dot(z, w, preferred_element_type=jnp.float32)     # (Mp, Cout) f32
        Cout = acc.shape[-1]
        # NOTE: conv bias omitted on purpose -- train-mode BN mean subtraction cancels a
        # per-channel constant bias exactly (reference below keeps it and still matches).

        # ---- BatchNorm (train-mode biased stats over the N*H*W valid rows) + ReLU ---------
        # Valid-row mask from an in-kernel iota; the float divisions are exact for these
        # small integer ranges, so no div/mod on the (unsupported) integer vector path.
        r = jax.lax.broadcasted_iota(jnp.int32, (Mp, 1), 0).astype(jnp.float32)
        img = jnp.floor(r / float(S))
        rem = r - img * float(S)
        ph = jnp.floor(rem / float(Wrow))
        pw = rem - ph * float(Wrow)
        mask = ((ph < float(H)) & (pw < float(H))).astype(jnp.float32)   # (Mp, 1)

        count = float(N * H * H)
        masked = acc * mask
        # Fused sum / sum-of-squares: one cross-sublane reduction over 2*Cout lanes.
        sums = jnp.sum(jnp.concatenate([masked, masked * acc], axis=-1),
                       axis=0, keepdims=True)                            # (1, 2*Cout)
        mean = sums[:, :Cout] / count
        var = sums[:, Cout:] / count - mean * mean
        gamma = g_ref[b:b + 1, :]
        beta = be_ref[b:b + 1, :]
        y = (acc - mean) * (jax.lax.rsqrt(var + eps) * gamma) + beta
        y = jnp.maximum(y, 0.0)

        # ---- MaxPool 2x2: 4-way shifted max; valid pooled pixels at r = n*S + 2hp*Wrow + 2wp
        L = Mp - Wrow - 1
        y2 = jnp.maximum(jnp.maximum(y[0:L], y[1:L + 1]),
                         jnp.maximum(y[Wrow:Wrow + L], y[Wrow + 1:Wrow + 1 + L]))
        Hp = H // 2    # = Wp (square)

        if b < 3:
            # Scatter the pooled rows straight into the next block's zero-padded flat input
            # buffer: stride-2 sublane reads from VMEM scratch, contiguous row stores.
            # (Replaces the old one-hot selector matmul + per-block XLA pad/reshape glue.)
            y2s = y2_scratch[b]
            y2s[0:L, :] = y2
            nxt = inputs[b + 1]
            nxt[...] = jnp.zeros(nxt.shape, nxt.dtype)
            Wn = Hp + 2
            Sn = (Hp + 2) * Wn
            for n in range(N):
                for hp in range(Hp):
                    src = n * S + 2 * hp * Wrow            # pooled row (n, 2hp, 0)
                    dst = n * Sn + (hp + 1) * Wn + 1       # padded row (n, hp+1, 1)
                    nxt[dst:dst + Hp, :] = y2s[pl.ds(src, Hp, 2), :]
            H = Hp
        else:
            # Final block: spatial is 1x1, so image n's feature vector is pooled row n*S.
            feat = jnp.concatenate([y2[n * S:n * S + 1, :] for n in range(N)], axis=0)
            scores = jnp.dot(feat, wc_ref[...],
                             preferred_element_type=jnp.float32) + bc_ref[...]
            o_ref[...] = scores


# ---------------------------------------------------------------------------
# Wrapper (== BaselineTrain.forward)
# ---------------------------------------------------------------------------

def baseline_train_forward(params, x_nchw):
    N, Cin, H0, W0 = x_nchw.shape
    assert H0 == W0 and H0 % 16 == 0, "Conv-4 backbone here assumes square input, 4 pools"
    hidden = params["gammas"].shape[-1]
    num_class = params["cls_wT"].shape[-1]

    # One-time network-input glue (no per-block XLA glue anymore): NCHW -> NHWC, zero-pad the
    # spatial ring, flatten to (rows, C), add tail rows so the in-kernel shifted reads never
    # run off the end.
    Wrow = W0 + 2
    Mp = N * (H0 + 2) * Wrow
    xh = jnp.transpose(x_nchw, (0, 2, 3, 1)).astype(jnp.float32)
    xp = jnp.pad(xh, ((0, 0), (1, 1), (1, 1), (0, 0)))
    x_flat = jnp.pad(xp.reshape(Mp, Cin), ((0, 2 * Wrow + 2), (0, 0)))

    # VMEM scratch: per block a staging buffer for the 4-way max (strided-gather source) and
    # the next block's zero-padded flat input buffer.  ~80 KiB total at these shapes.
    scratch = []
    H = H0
    for _ in range(3):
        Wr = H + 2
        MpB = N * (H + 2) * Wr
        scratch.append(pltpu.VMEM((MpB - Wr - 1, hidden), jnp.float32))        # y2 staging
        Hn = H // 2
        Wrn = Hn + 2
        MpN = N * (Hn + 2) * Wrn
        scratch.append(pltpu.VMEM((MpN + 2 * Wrn + 2, hidden), jnp.float32))   # next input buf
        H = Hn

    kernel = functools.partial(_convnet_kernel, N=N, H0=H0, eps=1e-5)
    return pl.pallas_call(
        kernel,
        out_shape=jax.ShapeDtypeStruct((N, num_class), jnp.float32),
        scratch_shapes=scratch,
    )(x_flat, params["w1"], params["w234"], params["gammas"], params["betas"],
      params["cls_wT"], params["cls_b"])


# ---------------------------------------------------------------------------
# Parameters (conv weights pre-packed for the kernel at init time)
# ---------------------------------------------------------------------------

def init_params(key, in_ch=3, hidden=16, num_class=5, feat_dim=16):
    ws, bs = [], []
    c_in = in_ch
    for _ in range(4):
        key, k1, k2 = jax.random.split(key, 3)
        fan_in = c_in * 9
        ws.append(jax.random.normal(k1, (hidden, c_in, 3, 3), jnp.float32) * (2.0 / fan_in) ** 0.5)
        bs.append(jax.random.normal(k2, (hidden,), jnp.float32) * 0.01)
        c_in = hidden

    # (Cout, Cin, kh, kw) -> (kh, kw, Cin, Cout) -> (9*Cin, Cout); matches the kernel's
    # kh-major / kw / ci lane-concat ordering.  Done once at init.
    def pack(w):
        co, ci, _, _ = w.shape
        return jnp.transpose(w, (2, 3, 1, 0)).reshape(9 * ci, co).astype(jnp.bfloat16)

    key, k3 = jax.random.split(key)
    bound = 1.0 / (feat_dim ** 0.5)
    cls_w = jax.random.uniform(k3, (num_class, feat_dim), jnp.float32, -bound, bound)
    return {
        "w1": pack(ws[0]),                                   # (27, hidden) bf16
        "w234": jnp.stack([pack(w) for w in ws[1:]]),        # (3, 144, hidden) bf16
        "gammas": jnp.ones((4, hidden), jnp.float32),        # BatchNorm2d weight init
        "betas": jnp.zeros((4, hidden), jnp.float32),        # BatchNorm2d bias init
        "cls_wT": cls_w.T,                                   # (feat_dim, num_class)
        "cls_b": jnp.zeros((1, num_class), jnp.float32),     # classifier.bias.data.fill_(0)
        "conv_b": bs,                                        # reference only (BN cancels it)
    }


# ---------------------------------------------------------------------------
# Pure-JAX reference (f32 activations, conv bias included) for the sanity check
# ---------------------------------------------------------------------------

def reference_forward(params, x_nchw, eps=1e-5):
    x = jnp.transpose(x_nchw, (0, 2, 3, 1)).astype(jnp.float32)
    hidden = params["gammas"].shape[-1]
    for b in range(4):
        wp = params["w1"] if b == 0 else params["w234"][b - 1]
        ci = wp.shape[0] // 9
        w_hwio = wp.astype(jnp.float32).reshape(3, 3, ci, hidden)
        y = jax.lax.conv_general_dilated(x, w_hwio, (1, 1), ((1, 1), (1, 1)),
                                         dimension_numbers=("NHWC", "HWIO", "NHWC"))
        y = y + params["conv_b"][b][None, None, None, :]
        mean = jnp.mean(y, axis=(0, 1, 2), keepdims=True)
        var = jnp.mean(jnp.square(y - mean), axis=(0, 1, 2), keepdims=True)
        y = (y - mean) * jax.lax.rsqrt(var + eps) * params["gammas"][b] + params["betas"][b]
        y = jnp.maximum(y, 0.0)
        n, h, w, c = y.shape
        x = y.reshape(n, h // 2, 2, w // 2, 2, c).max(axis=(2, 4))
    feat = x.reshape(x.shape[0], -1)
    return jnp.dot(feat, params["cls_wT"]) + params["cls_b"]


# ---------------------------------------------------------------------------
# Main
# ---------------------------------------------------------------------------

if __name__ == "__main__":
    key = jax.random.PRNGKey(0)
    k_param, k_x = jax.random.split(key)

    batch, in_ch, spatial = 2, 3, 16
    hidden, num_class = 16, 5                      # spatial 16->8->4->2->1, final_feat_dim = 16
    feat_dim = hidden * (spatial // 16) ** 2

    params = init_params(k_param, in_ch=in_ch, hidden=hidden,
                         num_class=num_class, feat_dim=feat_dim)
    x = jax.random.normal(k_x, (batch, in_ch, spatial, spatial), jnp.float32)   # NCHW

    fwd = jax.jit(baseline_train_forward)
    scores = jax.block_until_ready(fwd(params, x))
    assert scores.shape == (batch, num_class), scores.shape

    ref = jax.block_until_ready(reference_forward(params, x))
    err = float(jnp.max(jnp.abs(scores - ref)))
    assert err < 0.2, f"max |kernel - reference| too large: {err}"

    print("KERNEL_OK")
</pallas_src>

<mosaic_0001>
module attributes {stable_mosaic.version = 11 : i64} {
  func.func @_convnet_kernel(%arg0: memref<686x3xf32, #tpu.memory_space<vmem>>, %arg1: memref<27x16xbf16, #tpu.memory_space<vmem>>, %arg2: memref<3x144x16xbf16, #tpu.memory_space<vmem>>, %arg3: memref<4x16xf32, #tpu.memory_space<vmem>>, %arg4: memref<4x16xf32, #tpu.memory_space<vmem>>, %arg5: memref<16x5xf32, #tpu.memory_space<vmem>>, %arg6: memref<1x5xf32, #tpu.memory_space<vmem>>, %arg7: memref<2x5xf32, #tpu.memory_space<vmem>>, %arg8: memref<629x16xf32, #tpu.memory_space<vmem>>, %arg9: memref<222x16xf32, #tpu.memory_space<vmem>>, %arg10: memref<189x16xf32, #tpu.memory_space<vmem>>, %arg11: memref<86x16xf32, #tpu.memory_space<vmem>>, %arg12: memref<65x16xf32, #tpu.memory_space<vmem>>, %arg13: memref<42x16xf32, #tpu.memory_space<vmem>>) attributes {dimension_semantics = [], scalar_prefetch = 0 : i64, scratch_operands = 6 : i64, tpu.core_type = #tpu.core_type<tc>} {
    %c0 = arith.constant 0 : index
    %c0_0 = arith.constant 0 : index
    %0 = vector.load %arg0[%c0, %c0_0] : memref<686x3xf32, #tpu.memory_space<vmem>>, vector<648x3xf32>
    %c1 = arith.constant 1 : index
    %c0_1 = arith.constant 0 : index
    %1 = vector.load %arg0[%c1, %c0_1] : memref<686x3xf32, #tpu.memory_space<vmem>>, vector<648x3xf32>
    %c2 = arith.constant 2 : index
    %c0_2 = arith.constant 0 : index
    %2 = vector.load %arg0[%c2, %c0_2] : memref<686x3xf32, #tpu.memory_space<vmem>>, vector<648x3xf32>
    %c18 = arith.constant 18 : index
    %c0_3 = arith.constant 0 : index
    %3 = vector.load %arg0[%c18, %c0_3] : memref<686x3xf32, #tpu.memory_space<vmem>>, vector<648x3xf32>
    %c19 = arith.constant 19 : index
    %c0_4 = arith.constant 0 : index
    %4 = vector.load %arg0[%c19, %c0_4] : memref<686x3xf32, #tpu.memory_space<vmem>>, vector<648x3xf32>
    %c20 = arith.constant 20 : index
    %c0_5 = arith.constant 0 : index
    %5 = vector.load %arg0[%c20, %c0_5] : memref<686x3xf32, #tpu.memory_space<vmem>>, vector<648x3xf32>
    %c36 = arith.constant 36 : index
    %c0_6 = arith.constant 0 : index
    %6 = vector.load %arg0[%c36, %c0_6] : memref<686x3xf32, #tpu.memory_space<vmem>>, vector<648x3xf32>
    %c37 = arith.constant 37 : index
    %c0_7 = arith.constant 0 : index
    %7 = vector.load %arg0[%c37, %c0_7] : memref<686x3xf32, #tpu.memory_space<vmem>>, vector<648x3xf32>
    %c38 = arith.constant 38 : index
    %c0_8 = arith.constant 0 : index
    %8 = vector.load %arg0[%c38, %c0_8] : memref<686x3xf32, #tpu.memory_space<vmem>>, vector<648x3xf32>
    %9 = tpu.concatenate %0, %1, %2, %3, %4, %5, %6, %7, %8 in 1 : vector<648x3xf32>, vector<648x3xf32>, vector<648x3xf32>, vector<648x3xf32>, vector<648x3xf32>, vector<648x3xf32>, vector<648x3xf32>, vector<648x3xf32>, vector<648x3xf32> -> vector<648x27xf32>
    %10 = arith.truncf %9 : vector<648x27xf32> to vector<648x27xbf16>
    %c0_9 = arith.constant 0 : index
    %c0_10 = arith.constant 0 : index
    %11 = vector.load %arg1[%c0_9, %c0_10] : memref<27x16xbf16, #tpu.memory_space<vmem>>, vector<27x16xbf16>
    %cst = arith.constant dense<0.000000e+00> : vector<648x16xf32>
    %12 = tpu.matmul %10, %11, %cst {dimension_numbers = #tpu.dot_dimension_numbers<[1], [0], [0], [1], [0, 0, 1, 1], [], []>} : vector<648x27xbf16>, vector<27x16xbf16>, vector<648x16xf32> -> vector<648x16xf32>
    %13 = tpu.iota {dimensions = array<i32: 0>} : vector<648x1xi32>
    %14 = arith.sitofp %13 : vector<648x1xi32> to vector<648x1xf32>
    %cst_11 = arith.constant 3.240000e+02 : f32
    %15 = vector.broadcast %cst_11 : f32 to vector<648x1xf32>
    %16 = arith.divf %14, %15 : vector<648x1xf32>
    %17 = math.floor %16 : vector<648x1xf32>
    %cst_12 = arith.constant 3.240000e+02 : f32
    %18 = vector.broadcast %cst_12 : f32 to vector<648x1xf32>
    %19 = arith.mulf %17, %18 : vector<648x1xf32>
    %20 = arith.subf %14, %19 : vector<648x1xf32>
    %cst_13 = arith.constant 1.800000e+01 : f32
    %21 = vector.broadcast %cst_13 : f32 to vector<648x1xf32>
    %22 = arith.divf %20, %21 : vector<648x1xf32>
    %23 = math.floor %22 : vector<648x1xf32>
    %cst_14 = arith.constant 1.800000e+01 : f32
    %24 = vector.broadcast %cst_14 : f32 to vector<648x1xf32>
    %25 = arith.mulf %23, %24 : vector<648x1xf32>
    %26 = arith.subf %20, %25 : vector<648x1xf32>
    %cst_15 = arith.constant 1.600000e+01 : f32
    %27 = vector.broadcast %cst_15 : f32 to vector<648x1xf32>
    %28 = arith.cmpf olt, %23, %27 : vector<648x1xf32>
    %cst_16 = arith.constant 1.600000e+01 : f32
    %29 = vector.broadcast %cst_16 : f32 to vector<648x1xf32>
    %30 = arith.cmpf olt, %26, %29 : vector<648x1xf32>
    %31 = arith.andi %28, %30 : vector<648x1xi1>
    %32 = arith.extui %31 : vector<648x1xi1> to vector<648x1xi32>
    %33 = arith.sitofp %32 : vector<648x1xi32> to vector<648x1xf32>
    %34 = vector.broadcast %33 : vector<648x1xf32> to vector<648x16xf32>
    %35 = arith.mulf %12, %34 : vector<648x16xf32>
    %36 = arith.mulf %35, %12 : vector<648x16xf32>
    %37 = tpu.concatenate %35, %36 in 1 : vector<648x16xf32>, vector<648x16xf32> -> vector<648x32xf32>
    %cst_17 = arith.constant dense<0.000000e+00> : vector<32xf32>
    %38 = vector.multi_reduction <add>, %37, %cst_17 [0] : vector<648x32xf32> to vector<32xf32>
    %39 = vector.shape_cast %38 : vector<32xf32> to vector<1x32xf32>
    %40 = vector.extract_strided_slice %39 {offsets = [0, 0], sizes = [1, 16], strides = [1, 1]} : vector<1x32xf32> to vector<1x16xf32>
    %cst_18 = arith.constant 5.120000e+02 : f32
    %41 = vector.broadcast %cst_18 : f32 to vector<1x16xf32>
    %42 = arith.divf %40, %41 : vector<1x16xf32>
    %43 = vector.extract_strided_slice %39 {offsets = [0, 16], sizes = [1, 16], strides = [1, 1]} : vector<1x32xf32> to vector<1x16xf32>
    %cst_19 = arith.constant 5.120000e+02 : f32
    %44 = vector.broadcast %cst_19 : f32 to vector<1x16xf32>
    %45 = arith.divf %43, %44 : vector<1x16xf32>
    %46 = arith.mulf %42, %42 : vector<1x16xf32>
    %47 = arith.subf %45, %46 : vector<1x16xf32>
    %c0_20 = arith.constant 0 : index
    %c0_21 = arith.constant 0 : index
    %48 = vector.load %arg3[%c0_20, %c0_21] : memref<4x16xf32, #tpu.memory_space<vmem>>, vector<1x16xf32>
    %c0_22 = arith.constant 0 : index
    %c0_23 = arith.constant 0 : index
    %49 = vector.load %arg4[%c0_22, %c0_23] : memref<4x16xf32, #tpu.memory_space<vmem>>, vector<1x16xf32>
    %50 = vector.broadcast %42 : vector<1x16xf32> to vector<648x16xf32>
    %51 = arith.subf %12, %50 : vector<648x16xf32>
    %cst_24 = arith.constant 9.99999974E-6 : f32
    %52 = vector.broadcast %cst_24 : f32 to vector<1x16xf32>
    %53 = arith.addf %47, %52 : vector<1x16xf32>
    %54 = math.rsqrt %53 : vector<1x16xf32>
    %55 = arith.mulf %54, %48 : vector<1x16xf32>
    %56 = vector.broadcast %55 : vector<1x16xf32> to vector<648x16xf32>
    %57 = arith.mulf %51, %56 : vector<648x16xf32>
    %58 = vector.broadcast %49 : vector<1x16xf32> to vector<648x16xf32>
    %59 = arith.addf %57, %58 : vector<648x16xf32>
    %cst_25 = arith.constant 0.000000e+00 : f32
    %60 = vector.broadcast %cst_25 : f32 to vector<648x16xf32>
    %61 = arith.maximumf %59, %60 : vector<648x16xf32>
    %62 = vector.extract_strided_slice %61 {offsets = [0, 0], sizes = [629, 16], strides = [1, 1]} : vector<648x16xf32> to vector<629x16xf32>
    %63 = vector.extract_strided_slice %61 {offsets = [1, 0], sizes = [629, 16], strides = [1, 1]} : vector<648x16xf32> to vector<629x16xf32>
    %64 = arith.maximumf %62, %63 : vector<629x16xf32>
    %65 = vector.extract_strided_slice %61 {offsets = [18, 0], sizes = [629, 16], strides = [1, 1]} : vector<648x16xf32> to vector<629x16xf32>
    %66 = vector.extract_strided_slice %61 {offsets = [19, 0], sizes = [629, 16], strides = [1, 1]} : vector<648x16xf32> to vector<629x16xf32>
    %67 = arith.maximumf %65, %66 : vector<629x16xf32>
    %68 = arith.maximumf %64, %67 : vector<629x16xf32>
    %c0_26 = arith.constant 0 : index
    %c0_27 = arith.constant 0 : index
    %69 = vector.load %arg8[%c0_26, %c0_27] : memref<629x16xf32, #tpu.memory_space<vmem>>, vector<629x16xf32>
    tpu.vector_store %arg8[%c0_26, %c0_27], %68 {strides = array<i32>} : memref<629x16xf32, #tpu.memory_space<vmem>>, vector<629x16xf32>,
    %cst_28 = arith.constant 0.000000e+00 : f32
    %70 = vector.broadcast %cst_28 : f32 to vector<222x16xf32>
    %c0_29 = arith.constant 0 : index
    %c0_30 = arith.constant 0 : index
    %71 = vector.load %arg9[%c0_29, %c0_30] : memref<222x16xf32, #tpu.memory_space<vmem>>, vector<222x16xf32>
    tpu.vector_store %arg9[%c0_29, %c0_30], %70 {strides = array<i32>} : memref<222x16xf32, #tpu.memory_space<vmem>>, vector<222x16xf32>,
    %c0_31 = arith.constant 0 : index
    %c0_32 = arith.constant 0 : index
    %72 = tpu.strided_load %arg8[%c0_31, %c0_32] {strides = array<i32: 2, 1>} : memref<629x16xf32, #tpu.memory_space<vmem>>, vector<8x16xf32>
    %c11 = arith.constant 11 : index
    %c0_33 = arith.constant 0 : index
    %73 = vector.load %arg9[%c11, %c0_33] : memref<222x16xf32, #tpu.memory_space<vmem>>, vector<8x16xf32>
    tpu.vector_store %arg9[%c11, %c0_33], %72 {strides = array<i32>} : memref<222x16xf32, #tpu.memory_space<vmem>>, vector<8x16xf32>,
    %c36_34 = arith.constant 36 : index
    %c0_35 = arith.constant 0 : index
    %74 = tpu.strided_load %arg8[%c36_34, %c0_35] {strides = array<i32: 2, 1>} : memref<629x16xf32, #tpu.memory_space<vmem>>, vector<8x16xf32>
    %c21 = arith.constant 21 : index
    %c0_36 = arith.constant 0 : index
    %75 = vector.load %arg9[%c21, %c0_36] : memref<222x16xf32, #tpu.memory_space<vmem>>, vector<8x16xf32>
    tpu.vector_store %arg9[%c21, %c0_36], %74 {strides = array<i32>} : memref<222x16xf32, #tpu.memory_space<vmem>>, vector<8x16xf32>,
    %c72 = arith.constant 72 : index
    %c0_37 = arith.constant 0 : index
    %76 = tpu.strided_load %arg8[%c72, %c0_37] {strides = array<i32: 2, 1>} : memref<629x16xf32, #tpu.memory_space<vmem>>, vector<8x16xf32>
    %c31 = arith.constant 31 : index
    %c0_38 = arith.constant 0 : index
    %77 = vector.load %arg9[%c31, %c0_38] : memref<222x16xf32, #tpu.memory_space<vmem>>, vector<8x16xf32>
    tpu.vector_store %arg9[%c31, %c0_38], %76 {strides = array<i32>} : memref<222x16xf32, #tpu.memory_space<vmem>>, vector<8x16xf32>,
    %c108 = arith.constant 108 : index
    %c0_39 = arith.constant 0 : index
    %78 = tpu.strided_load %arg8[%c108, %c0_39] {strides = array<i32: 2, 1>} : memref<629x16xf32, #tpu.memory_space<vmem>>, vector<8x16xf32>
    %c41 = arith.constant 41 : index
    %c0_40 = arith.constant 0 : index
    %79 = vector.load %arg9[%c41, %c0_40] : memref<222x16xf32, #tpu.memory_space<vmem>>, vector<8x16xf32>
    tpu.vector_store %arg9[%c41, %c0_40], %78 {strides = array<i32>} : memref<222x16xf32, #tpu.memory_space<vmem>>, vector<8x16xf32>,
    %c144 = arith.constant 144 : index
    %c0_41 = arith.constant 0 : index
    %80 = tpu.strided_load %arg8[%c144, %c0_41] {strides = array<i32: 2, 1>} : memref<629x16xf32, #tpu.memory_space<vmem>>, vector<8x16xf32>
    %c51 = arith.constant 51 : index
    %c0_42 = arith.constant 0 : index
    %81 = vector.load %arg9[%c51, %c0_42] : memref<222x16xf32, #tpu.memory_space<vmem>>, vector<8x16xf32>
    tpu.vector_store %arg9[%c51, %c0_42], %80 {strides = array<i32>} : memref<222x16xf32, #tpu.memory_space<vmem>>, vector<8x16xf32>,
    %c180 = arith.constant 180 : index
    %c0_43 = arith.constant 0 : index
    %82 = tpu.strided_load %arg8[%c180, %c0_43] {strides = array<i32: 2, 1>} : memref<629x16xf32, #tpu.memory_space<vmem>>, vector<8x16xf32>
    %c61 = arith.constant 61 : index
    %c0_44 = arith.constant 0 : index
    %83 = vector.load %arg9[%c61, %c0_44] : memref<222x16xf32, #tpu.memory_space<vmem>>, vector<8x16xf32>
    tpu.vector_store %arg9[%c61, %c0_44], %82 {strides = array<i32>} : memref<222x16xf32, #tpu.memory_space<vmem>>, vector<8x16xf32>,
    %c216 = arith.constant 216 : index
    %c0_45 = arith.constant 0 : index
    %84 = tpu.strided_load %arg8[%c216, %c0_45] {strides = array<i32: 2, 1>} : memref<629x16xf32, #tpu.memory_space<vmem>>, vector<8x16xf32>
    %c71 = arith.constant 71 : index
    %c0_46 = arith.constant 0 : index
    %85 = vector.load %arg9[%c71, %c0_46] : memref<222x16xf32, #tpu.memory_space<vmem>>, vector<8x16xf32>
    tpu.vector_store %arg9[%c71, %c0_46], %84 {strides = array<i32>} : memref<222x16xf32, #tpu.memory_space<vmem>>, vector<8x16xf32>,
    %c252 = arith.constant 252 : index
    %c0_47 = arith.constant 0 : index
    %86 = tpu.strided_load %arg8[%c252, %c0_47] {strides = array<i32: 2, 1>} : memref<629x16xf32, #tpu.memory_space<vmem>>, vector<8x16xf32>
    %c81 = arith.constant 81 : index
    %c0_48 = arith.constant 0 : index
    %87 = vector.load %arg9[%c81, %c0_48] : memref<222x16xf32, #tpu.memory_space<vmem>>, vector<8x16xf32>
    tpu.vector_store %arg9[%c81, %c0_48], %86 {strides = array<i32>} : memref<222x16xf32, #tpu.memory_space<vmem>>, vector<8x16xf32>,
    %c324 = arith.constant 324 : index
    %c0_49 = arith.constant 0 : index
    %88 = tpu.strided_load %arg8[%c324, %c0_49] {strides = array<i32: 2, 1>} : memref<629x16xf32, #tpu.memory_space<vmem>>, vector<8x16xf32>
    %c111 = arith.constant 111 : index
    %c0_50 = arith.constant 0 : index
    %89 = vector.load %arg9[%c111, %c0_50] : memref<222x16xf32, #tpu.memory_space<vmem>>, vector<8x16xf32>
    tpu.vector_store %arg9[%c111, %c0_50], %88 {strides = array<i32>} : memref<222x16xf32, #tpu.memory_space<vmem>>, vector<8x16xf32>,
    %c360 = arith.constant 360 : index
    %c0_51 = arith.constant 0 : index
    %90 = tpu.strided_load %arg8[%c360, %c0_51] {strides = array<i32: 2, 1>} : memref<629x16xf32, #tpu.memory_space<vmem>>, vector<8x16xf32>
    %c121 = arith.constant 121 : index
    %c0_52 = arith.constant 0 : index
    %91 = vector.load %arg9[%c121, %c0_52] : memref<222x16xf32, #tpu.memory_space<vmem>>, vector<8x16xf32>
    tpu.vector_store %arg9[%c121, %c0_52], %90 {strides = array<i32>} : memref<222x16xf32, #tpu.memory_space<vmem>>, vector<8x16xf32>,
    %c396 = arith.constant 396 : index
    %c0_53 = arith.constant 0 : index
    %92 = tpu.strided_load %arg8[%c396, %c0_53] {strides = array<i32: 2, 1>} : memref<629x16xf32, #tpu.memory_space<vmem>>, vector<8x16xf32>
    %c131 = arith.constant 131 : index
    %c0_54 = arith.constant 0 : index
    %93 = vector.load %arg9[%c131, %c0_54] : memref<222x16xf32, #tpu.memory_space<vmem>>, vector<8x16xf32>
    tpu.vector_store %arg9[%c131, %c0_54], %92 {strides = array<i32>} : memref<222x16xf32, #tpu.memory_space<vmem>>, vector<8x16xf32>,
    %c432 = arith.constant 432 : index
    %c0_55 = arith.constant 0 : index
    %94 = tpu.strided_load %arg8[%c432, %c0_55] {strides = array<i32: 2, 1>} : memref<629x16xf32, #tpu.memory_space<vmem>>, vector<8x16xf32>
    %c141 = arith.constant 141 : index
    %c0_56 = arith.constant 0 : index
    %95 = vector.load %arg9[%c141, %c0_56] : memref<222x16xf32, #tpu.memory_space<vmem>>, vector<8x16xf32>
    tpu.vector_store %arg9[%c141, %c0_56], %94 {strides = array<i32>} : memref<222x16xf32, #tpu.memory_space<vmem>>, vector<8x16xf32>,
    %c468 = arith.constant 468 : index
    %c0_57 = arith.constant 0 : index
    %96 = tpu.strided_load %arg8[%c468, %c0_57] {strides = array<i32: 2, 1>} : memref<629x16xf32, #tpu.memory_space<vmem>>, vector<8x16xf32>
    %c151 = arith.constant 151 : index
    %c0_58 = arith.constant 0 : index
    %97 = vector.load %arg9[%c151, %c0_58] : memref<222x16xf32, #tpu.memory_space<vmem>>, vector<8x16xf32>
    tpu.vector_store %arg9[%c151, %c0_58], %96 {strides = array<i32>} : memref<222x16xf32, #tpu.memory_space<vmem>>, vector<8x16xf32>,
    %c504 = arith.constant 504 : index
    %c0_59 = arith.constant 0 : index
    %98 = tpu.strided_load %arg8[%c504, %c0_59] {strides = array<i32: 2, 1>} : memref<629x16xf32, #tpu.memory_space<vmem>>, vector<8x16xf32>
    %c161 = arith.constant 161 : index
    %c0_60 = arith.constant 0 : index
    %99 = vector.load %arg9[%c161, %c0_60] : memref<222x16xf32, #tpu.memory_space<vmem>>, vector<8x16xf32>
    tpu.vector_store %arg9[%c161, %c0_60], %98 {strides = array<i32>} : memref<222x16xf32, #tpu.memory_space<vmem>>, vector<8x16xf32>,
    %c540 = arith.constant 540 : index
    %c0_61 = arith.constant 0 : index
    %100 = tpu.strided_load %arg8[%c540, %c0_61] {strides = array<i32: 2, 1>} : memref<629x16xf32, #tpu.memory_space<vmem>>, vector<8x16xf32>
    %c171 = arith.constant 171 : index
    %c0_62 = arith.constant 0 : index
    %101 = vector.load %arg9[%c171, %c0_62] : memref<222x16xf32, #tpu.memory_space<vmem>>, vector<8x16xf32>
    tpu.vector_store %arg9[%c171, %c0_62], %100 {strides = array<i32>} : memref<222x16xf32, #tpu.memory_space<vmem>>, vector<8x16xf32>,
    %c576 = arith.constant 576 : index
    %c0_63 = arith.constant 0 : index
    %102 = tpu.strided_load %arg8[%c576, %c0_63] {strides = array<i32: 2, 1>} : memref<629x16xf32, #tpu.memory_space<vmem>>, vector<8x16xf32>
    %c181 = arith.constant 181 : index
    %c0_64 = arith.constant 0 : index
    %103 = vector.load %arg9[%c181, %c0_64] : memref<222x16xf32, #tpu.memory_space<vmem>>, vector<8x16xf32>
    tpu.vector_store %arg9[%c181, %c0_64], %102 {strides = array<i32>} : memref<222x16xf32, #tpu.memory_space<vmem>>, vector<8x16xf32>,
    %c0_65 = arith.constant 0 : index
    %c0_66 = arith.constant 0 : index
    %104 = vector.load %arg9[%c0_65, %c0_66] : memref<222x16xf32, #tpu.memory_space<vmem>>, vector<200x16xf32>
    %c1_67 = arith.constant 1 : index
    %c0_68 = arith.constant 0 : index
    %105 = vector.load %arg9[%c1_67, %c0_68] : memref<222x16xf32, #tpu.memory_space<vmem>>, vector<200x16xf32>
    %c2_69 = arith.constant 2 : index
    %c0_70 = arith.constant 0 : index
    %106 = vector.load %arg9[%c2_69, %c0_70] : memref<222x16xf32, #tpu.memory_space<vmem>>, vector<200x16xf32>
    %c10 = arith.constant 10 : index
    %c0_71 = arith.constant 0 : index
    %107 = vector.load %arg9[%c10, %c0_71] : memref<222x16xf32, #tpu.memory_space<vmem>>, vector<200x16xf32>
    %c11_72 = arith.constant 11 : index
    %c0_73 = arith.constant 0 : index
    %108 = vector.load %arg9[%c11_72, %c0_73] : memref<222x16xf32, #tpu.memory_space<vmem>>, vector<200x16xf32>
    %c12 = arith.constant 12 : index
    %c0_74 = arith.constant 0 : index
    %109 = vector.load %arg9[%c12, %c0_74] : memref<222x16xf32, #tpu.memory_space<vmem>>, vector<200x16xf32>
    %c20_75 = arith.constant 20 : index
    %c0_76 = arith.constant 0 : index
    %110 = vector.load %arg9[%c20_75, %c0_76] : memref<222x16xf32, #tpu.memory_space<vmem>>, vector<200x16xf32>
    %c21_77 = arith.constant 21 : index
    %c0_78 = arith.constant 0 : index
    %111 = vector.load %arg9[%c21_77, %c0_78] : memref<222x16xf32, #tpu.memory_space<vmem>>, vector<200x16xf32>
    %c22 = arith.constant 22 : index
    %c0_79 = arith.constant 0 : index
    %112 = vector.load %arg9[%c22, %c0_79] : memref<222x16xf32, #tpu.memory_space<vmem>>, vector<200x16xf32>
    %113 = tpu.concatenate %104, %105, %106, %107, %108, %109, %110, %111, %112 in 1 : vector<200x16xf32>, vector<200x16xf32>, vector<200x16xf32>, vector<200x16xf32>, vector<200x16xf32>, vector<200x16xf32>, vector<200x16xf32>, vector<200x16xf32>, vector<200x16xf32> -> vector<200x144xf32>
    %114 = arith.truncf %113 : vector<200x144xf32> to vector<200x144xbf16>
    %c0_80 = arith.constant 0 : index
    %c0_81 = arith.constant 0 : index
    %c0_82 = arith.constant 0 : index
    %115 = vector.load %arg2[%c0_80, %c0_81, %c0_82] : memref<3x144x16xbf16, #tpu.memory_space<vmem>>, vector<1x144x16xbf16>
    %116 = vector.shape_cast %115 : vector<1x144x16xbf16> to vector<144x16xbf16>
    %cst_83 = arith.constant dense<0.000000e+00> : vector<200x16xf32>
    %117 = tpu.matmul %114, %116, %cst_83 {dimension_numbers = #tpu.dot_dimension_numbers<[1], [0], [0], [1], [0, 0, 1, 1], [], []>} : vector<200x144xbf16>, vector<144x16xbf16>, vector<200x16xf32> -> vector<200x16xf32>
    %118 = tpu.iota {dimensions = array<i32: 0>} : vector<200x1xi32>
    %119 = arith.sitofp %118 : vector<200x1xi32> to vector<200x1xf32>
    %cst_84 = arith.constant 1.000000e+02 : f32
    %120 = vector.broadcast %cst_84 : f32 to vector<200x1xf32>
    %121 = arith.divf %119, %120 : vector<200x1xf32>
    %122 = math.floor %121 : vector<200x1xf32>
    %cst_85 = arith.constant 1.000000e+02 : f32
    %123 = vector.broadcast %cst_85 : f32 to vector<200x1xf32>
    %124 = arith.mulf %122, %123 : vector<200x1xf32>
    %125 = arith.subf %119, %124 : vector<200x1xf32>
    %cst_86 = arith.constant 1.000000e+01 : f32
    %126 = vector.broadcast %cst_86 : f32 to vector<200x1xf32>
    %127 = arith.divf %125, %126 : vector<200x1xf32>
    %128 = math.floor %127 : vector<200x1xf32>
    %cst_87 = arith.constant 1.000000e+01 : f32
    %129 = vector.broadcast %cst_87 : f32 to vector<200x1xf32>
    %130 = arith.mulf %128, %129 : vector<200x1xf32>
    %131 = arith.subf %125, %130 : vector<200x1xf32>
    %cst_88 = arith.constant 8.000000e+00 : f32
    %132 = vector.broadcast %cst_88 : f32 to vector<200x1xf32>
    %133 = arith.cmpf olt, %128, %132 : vector<200x1xf32>
    %cst_89 = arith.constant 8.000000e+00 : f32
    %134 = vector.broadcast %cst_89 : f32 to vector<200x1xf32>
    %135 = arith.cmpf olt, %131, %134 : vector<200x1xf32>
    %136 = arith.andi %133, %135 : vector<200x1xi1>
    %137 = arith.extui %136 : vector<200x1xi1> to vector<200x1xi32>
    %138 = arith.sitofp %137 : vector<200x1xi32> to vector<200x1xf32>
    %139 = vector.broadcast %138 : vector<200x1xf32> to vector<200x16xf32>
    %140 = arith.mulf %117, %139 : vector<200x16xf32>
    %141 = arith.mulf %140, %117 : vector<200x16xf32>
    %142 = tpu.concatenate %140, %141 in 1 : vector<200x16xf32>, vector<200x16xf32> -> vector<200x32xf32>
    %cst_90 = arith.constant dense<0.000000e+00> : vector<32xf32>
    %143 = vector.multi_reduction <add>, %142, %cst_90 [0] : vector<200x32xf32> to vector<32xf32>
    %144 = vector.shape_cast %143 : vector<32xf32> to vector<1x32xf32>
    %145 = vector.extract_strided_slice %144 {offsets = [0, 0], sizes = [1, 16], strides = [1, 1]} : vector<1x32xf32> to vector<1x16xf32>
    %cst_91 = arith.constant 1.280000e+02 : f32
    %146 = vector.broadcast %cst_91 : f32 to vector<1x16xf32>
    %147 = arith.divf %145, %146 : vector<1x16xf32>
    %148 = vector.extract_strided_slice %144 {offsets = [0, 16], sizes = [1, 16], strides = [1, 1]} : vector<1x32xf32> to vector<1x16xf32>
    %cst_92 = arith.constant 1.280000e+02 : f32
    %149 = vector.broadcast %cst_92 : f32 to vector<1x16xf32>
    %150 = arith.divf %148, %149 : vector<1x16xf32>
    %151 = arith.mulf %147, %147 : vector<1x16xf32>
    %152 = arith.subf %150, %151 : vector<1x16xf32>
    %c1_93 = arith.constant 1 : index
    %c0_94 = arith.constant 0 : index
    %153 = vector.load %arg3[%c1_93, %c0_94] : memref<4x16xf32, #tpu.memory_space<vmem>>, vector<1x16xf32>
    %c1_95 = arith.constant 1 : index
    %c0_96 = arith.constant 0 : index
    %154 = vector.load %arg4[%c1_95, %c0_96] : memref<4x16xf32, #tpu.memory_space<vmem>>, vector<1x16xf32>
    %155 = vector.broadcast %147 : vector<1x16xf32> to vector<200x16xf32>
    %156 = arith.subf %117, %155 : vector<200x16xf32>
    %cst_97 = arith.constant 9.99999974E-6 : f32
    %157 = vector.broadcast %cst_97 : f32 to vector<1x16xf32>
    %158 = arith.addf %152, %157 : vector<1x16xf32>
    %159 = math.rsqrt %158 : vector<1x16xf32>
    %160 = arith.mulf %159, %153 : vector<1x16xf32>
    %161 = vector.broadcast %160 : vector<1x16xf32> to vector<200x16xf32>
    %162 = arith.mulf %156, %161 : vector<200x16xf32>
    %163 = vector.broadcast %154 : vector<1x16xf32> to vector<200x16xf32>
    %164 = arith.addf %162, %163 : vector<200x16xf32>
    %cst_98 = arith.constant 0.000000e+00 : f32
    %165 = vector.broadcast %cst_98 : f32 to vector<200x16xf32>
    %166 = arith.maximumf %164, %165 : vector<200x16xf32>
    %167 = vector.extract_strided_slice %166 {offsets = [0, 0], sizes = [189, 16], strides = [1, 1]} : vector<200x16xf32> to vector<189x16xf32>
    %168 = vector.extract_strided_slice %166 {offsets = [1, 0], sizes = [189, 16], strides = [1, 1]} : vector<200x16xf32> to vector<189x16xf32>
    %169 = arith.maximumf %167, %168 : vector<189x16xf32>
    %170 = vector.extract_strided_slice %166 {offsets = [10, 0], sizes = [189, 16], strides = [1, 1]} : vector<200x16xf32> to vector<189x16xf32>
    %171 = vector.extract_strided_slice %166 {offsets = [11, 0], sizes = [189, 16], strides = [1, 1]} : vector<200x16xf32> to vector<189x16xf32>
    %172 = arith.maximumf %170, %171 : vector<189x16xf32>
    %173 = arith.maximumf %169, %172 : vector<189x16xf32>
    %c0_99 = arith.constant 0 : index
    %c0_100 = arith.constant 0 : index
    %174 = vector.load %arg10[%c0_99, %c0_100] : memref<189x16xf32, #tpu.memory_space<vmem>>, vector<189x16xf32>
    tpu.vector_store %arg10[%c0_99, %c0_100], %173 {strides = array<i32>} : memref<189x16xf32, #tpu.memory_space<vmem>>, vector<189x16xf32>,
    %cst_101 = arith.constant 0.000000e+00 : f32
    %175 = vector.broadcast %cst_101 : f32 to vector<86x16xf32>
    %c0_102 = arith.constant 0 : index
    %c0_103 = arith.constant 0 : index
    %176 = vector.load %arg11[%c0_102, %c0_103] : memref<86x16xf32, #tpu.memory_space<vmem>>, vector<86x16xf32>
    tpu.vector_store %arg11[%c0_102, %c0_103], %175 {strides = array<i32>} : memref<86x16xf32, #tpu.memory_space<vmem>>, vector<86x16xf32>,
    %c0_104 = arith.constant 0 : index
    %c0_105 = arith.constant 0 : index
    %177 = tpu.strided_load %arg10[%c0_104, %c0_105] {strides = array<i32: 2, 1>} : memref<189x16xf32, #tpu.memory_space<vmem>>, vector<4x16xf32>
    %c7 = arith.constant 7 : index
    %c0_106 = arith.constant 0 : index
    %178 = vector.load %arg11[%c7, %c0_106] : memref<86x16xf32, #tpu.memory_space<vmem>>, vector<4x16xf32>
    tpu.vector_store %arg11[%c7, %c0_106], %177 {strides = array<i32>} : memref<86x16xf32, #tpu.memory_space<vmem>>, vector<4x16xf32>,
    %c20_107 = arith.constant 20 : index
    %c0_108 = arith.constant 0 : index
    %179 = tpu.strided_load %arg10[%c20_107, %c0_108] {strides = array<i32: 2, 1>} : memref<189x16xf32, #tpu.memory_space<vmem>>, vector<4x16xf32>
    %c13 = arith.constant 13 : index
    %c0_109 = arith.constant 0 : index
    %180 = vector.load %arg11[%c13, %c0_109] : memref<86x16xf32, #tpu.memory_space<vmem>>, vector<4x16xf32>
    tpu.vector_store %arg11[%c13, %c0_109], %179 {strides = array<i32>} : memref<86x16xf32, #tpu.memory_space<vmem>>, vector<4x16xf32>,
    %c40 = arith.constant 40 : index
    %c0_110 = arith.constant 0 : index
    %181 = tpu.strided_load %arg10[%c40, %c0_110] {strides = array<i32: 2, 1>} : memref<189x16xf32, #tpu.memory_space<vmem>>, vector<4x16xf32>
    %c19_111 = arith.constant 19 : index
    %c0_112 = arith.constant 0 : index
    %182 = vector.load %arg11[%c19_111, %c0_112] : memref<86x16xf32, #tpu.memory_space<vmem>>, vector<4x16xf32>
    tpu.vector_store %arg11[%c19_111, %c0_112], %181 {strides = array<i32>} : memref<86x16xf32, #tpu.memory_space<vmem>>, vector<4x16xf32>,
    %c60 = arith.constant 60 : index
    %c0_113 = arith.constant 0 : index
    %183 = tpu.strided_load %arg10[%c60, %c0_113] {strides = array<i32: 2, 1>} : memref<189x16xf32, #tpu.memory_space<vmem>>, vector<4x16xf32>
    %c25 = arith.constant 25 : index
    %c0_114 = arith.constant 0 : index
    %184 = vector.load %arg11[%c25, %c0_114] : memref<86x16xf32, #tpu.memory_space<vmem>>, vector<4x16xf32>
    tpu.vector_store %arg11[%c25, %c0_114], %183 {strides = array<i32>} : memref<86x16xf32, #tpu.memory_space<vmem>>, vector<4x16xf32>,
    %c100 = arith.constant 100 : index
    %c0_115 = arith.constant 0 : index
    %185 = tpu.strided_load %arg10[%c100, %c0_115] {strides = array<i32: 2, 1>} : memref<189x16xf32, #tpu.memory_space<vmem>>, vector<4x16xf32>
    %c43 = arith.constant 43 : index
    %c0_116 = arith.constant 0 : index
    %186 = vector.load %arg11[%c43, %c0_116] : memref<86x16xf32, #tpu.memory_space<vmem>>, vector<4x16xf32>
    tpu.vector_store %arg11[%c43, %c0_116], %185 {strides = array<i32>} : memref<86x16xf32, #tpu.memory_space<vmem>>, vector<4x16xf32>,
    %c120 = arith.constant 120 : index
    %c0_117 = arith.constant 0 : index
    %187 = tpu.strided_load %arg10[%c120, %c0_117] {strides = array<i32: 2, 1>} : memref<189x16xf32, #tpu.memory_space<vmem>>, vector<4x16xf32>
    %c49 = arith.constant 49 : index
    %c0_118 = arith.constant 0 : index
    %188 = vector.load %arg11[%c49, %c0_118] : memref<86x16xf32, #tpu.memory_space<vmem>>, vector<4x16xf32>
    tpu.vector_store %arg11[%c49, %c0_118], %187 {strides = array<i32>} : memref<86x16xf32, #tpu.memory_space<vmem>>, vector<4x16xf32>,
    %c140 = arith.constant 140 : index
    %c0_119 = arith.constant 0 : index
    %189 = tpu.strided_load %arg10[%c140, %c0_119] {strides = array<i32: 2, 1>} : memref<189x16xf32, #tpu.memory_space<vmem>>, vector<4x16xf32>
    %c55 = arith.constant 55 : index
    %c0_120 = arith.constant 0 : index
    %190 = vector.load %arg11[%c55, %c0_120] : memref<86x16xf32, #tpu.memory_space<vmem>>, vector<4x16xf32>
    tpu.vector_store %arg11[%c55, %c0_120], %189 {strides = array<i32>} : memref<86x16xf32, #tpu.memory_space<vmem>>, vector<4x16xf32>,
    %c160 = arith.constant 160 : index
    %c0_121 = arith.constant 0 : index
    %191 = tpu.strided_load %arg10[%c160, %c0_121] {strides = array<i32: 2, 1>} : memref<189x16xf32, #tpu.memory_space<vmem>>, vector<4x16xf32>
    %c61_122 = arith.constant 61 : index
    %c0_123 = arith.constant 0 : index
    %192 = vector.load %arg11[%c61_122, %c0_123] : memref<86x16xf32, #tpu.memory_space<vmem>>, vector<4x16xf32>
    tpu.vector_store %arg11[%c61_122, %c0_123], %191 {strides = array<i32>} : memref<86x16xf32, #tpu.memory_space<vmem>>, vector<4x16xf32>,
    %c0_124 = arith.constant 0 : index
    %c0_125 = arith.constant 0 : index
    %193 = vector.load %arg11[%c0_124, %c0_125] : memref<86x16xf32, #tpu.memory_space<vmem>>, vector<72x16xf32>
    %c1_126 = arith.constant 1 : index
    %c0_127 = arith.constant 0 : index
    %194 = vector.load %arg11[%c1_126, %c0_127] : memref<86x16xf32, #tpu.memory_space<vmem>>, vector<72x16xf32>
    %c2_128 = arith.constant 2 : index
    %c0_129 = arith.constant 0 : index
    %195 = vector.load %arg11[%c2_128, %c0_129] : memref<86x16xf32, #tpu.memory_space<vmem>>, vector<72x16xf32>
    %c6 = arith.constant 6 : index
    %c0_130 = arith.constant 0 : index
    %196 = vector.load %arg11[%c6, %c0_130] : memref<86x16xf32, #tpu.memory_space<vmem>>, vector<72x16xf32>
    %c7_131 = arith.constant 7 : index
    %c0_132 = arith.constant 0 : index
    %197 = vector.load %arg11[%c7_131, %c0_132] : memref<86x16xf32, #tpu.memory_space<vmem>>, vector<72x16xf32>
    %c8 = arith.constant 8 : index
    %c0_133 = arith.constant 0 : index
    %198 = vector.load %arg11[%c8, %c0_133] : memref<86x16xf32, #tpu.memory_space<vmem>>, vector<72x16xf32>
    %c12_134 = arith.constant 12 : index
    %c0_135 = arith.constant 0 : index
    %199 = vector.load %arg11[%c12_134, %c0_135] : memref<86x16xf32, #tpu.memory_space<vmem>>, vector<72x16xf32>
    %c13_136 = arith.constant 13 : index
    %c0_137 = arith.constant 0 : index
    %200 = vector.load %arg11[%c13_136, %c0_137] : memref<86x16xf32, #tpu.memory_space<vmem>>, vector<72x16xf32>
    %c14 = arith.constant 14 : index
    %c0_138 = arith.constant 0 : index
    %201 = vector.load %arg11[%c14, %c0_138] : memref<86x16xf32, #tpu.memory_space<vmem>>, vector<72x16xf32>
    %202 = tpu.concatenate %193, %194, %195, %196, %197, %198, %199, %200, %201 in 1 : vector<72x16xf32>, vector<72x16xf32>, vector<72x16xf32>, vector<72x16xf32>, vector<72x16xf32>, vector<72x16xf32>, vector<72x16xf32>, vector<72x16xf32>, vector<72x16xf32> -> vector<72x144xf32>
    %203 = arith.truncf %202 : vector<72x144xf32> to vector<72x144xbf16>
    %c1_139 = arith.constant 1 : index
    %c0_140 = arith.constant 0 : index
    %c0_141 = arith.constant 0 : index
    %204 = vector.load %arg2[%c1_139, %c0_140, %c0_141] : memref<3x144x16xbf16, #tpu.memory_space<vmem>>, vector<1x144x16xbf16>
    %205 = vector.shape_cast %204 : vector<1x144x16xbf16> to vector<144x16xbf16>
    %cst_142 = arith.constant dense<0.000000e+00> : vector<72x16xf32>
    %206 = tpu.matmul %203, %205, %cst_142 {dimension_numbers = #tpu.dot_dimension_numbers<[1], [0], [0], [1], [0, 0, 1, 1], [], []>} : vector<72x144xbf16>, vector<144x16xbf16>, vector<72x16xf32> -> vector<72x16xf32>
    %207 = tpu.iota {dimensions = array<i32: 0>} : vector<72x1xi32>
    %208 = arith.sitofp %207 : vector<72x1xi32> to vector<72x1xf32>
    %cst_143 = arith.constant 3.600000e+01 : f32
    %209 = vector.broadcast %cst_143 : f32 to vector<72x1xf32>
    %210 = arith.divf %208, %209 : vector<72x1xf32>
    %211 = math.floor %210 : vector<72x1xf32>
    %cst_144 = arith.constant 3.600000e+01 : f32
    %212 = vector.broadcast %cst_144 : f32 to vector<72x1xf32>
    %213 = arith.mulf %211, %212 : vector<72x1xf32>
    %214 = arith.subf %208, %213 : vector<72x1xf32>
    %cst_145 = arith.constant 6.000000e+00 : f32
    %215 = vector.broadcast %cst_145 : f32 to vector<72x1xf32>
    %216 = arith.divf %214, %215 : vector<72x1xf32>
    %217 = math.floor %216 : vector<72x1xf32>
    %cst_146 = arith.constant 6.000000e+00 : f32
    %218 = vector.broadcast %cst_146 : f32 to vector<72x1xf32>
    %219 = arith.mulf %217, %218 : vector<72x1xf32>
    %220 = arith.subf %214, %219 : vector<72x1xf32>
    %cst_147 = arith.constant 4.000000e+00 : f32
    %221 = vector.broadcast %cst_147 : f32 to vector<72x1xf32>
    %222 = arith.cmpf olt, %217, %221 : vector<72x1xf32>
    %cst_148 = arith.constant 4.000000e+00 : f32
    %223 = vector.broadcast %cst_148 : f32 to vector<72x1xf32>
    %224 = arith.cmpf olt, %220, %223 : vector<72x1xf32>
    %225 = arith.andi %222, %224 : vector<72x1xi1>
    %226 = arith.extui %225 : vector<72x1xi1> to vector<72x1xi32>
    %227 = arith.sitofp %226 : vector<72x1xi32> to vector<72x1xf32>
    %228 = vector.broadcast %227 : vector<72x1xf32> to vector<72x16xf32>
    %229 = arith.mulf %206, %228 : vector<72x16xf32>
    %230 = arith.mulf %229, %206 : vector<72x16xf32>
    %231 = tpu.concatenate %229, %230 in 1 : vector<72x16xf32>, vector<72x16xf32> -> vector<72x32xf32>
    %cst_149 = arith.constant dense<0.000000e+00> : vector<32xf32>
    %232 = vector.multi_reduction <add>, %231, %cst_149 [0] : vector<72x32xf32> to vector<32xf32>
    %233 = vector.shape_cast %232 : vector<32xf32> to vector<1x32xf32>
    %234 = vector.extract_strided_slice %233 {offsets = [0, 0], sizes = [1, 16], strides = [1, 1]} : vector<1x32xf32> to vector<1x16xf32>
    %cst_150 = arith.constant 3.200000e+01 : f32
    %235 = vector.broadcast %cst_150 : f32 to vector<1x16xf32>
    %236 = arith.divf %234, %235 : vector<1x16xf32>
    %237 = vector.extract_strided_slice %233 {offsets = [0, 16], sizes = [1, 16], strides = [1, 1]} : vector<1x32xf32> to vector<1x16xf32>
    %cst_151 = arith.constant 3.200000e+01 : f32
    %238 = vector.broadcast %cst_151 : f32 to vector<1x16xf32>
    %239 = arith.divf %237, %238 : vector<1x16xf32>
    %240 = arith.mulf %236, %236 : vector<1x16xf32>
    %241 = arith.subf %239, %240 : vector<1x16xf32>
    %c2_152 = arith.constant 2 : index
    %c0_153 = arith.constant 0 : index
    %242 = vector.load %arg3[%c2_152, %c0_153] : memref<4x16xf32, #tpu.memory_space<vmem>>, vector<1x16xf32>
    %c2_154 = arith.constant 2 : index
    %c0_155 = arith.constant 0 : index
    %243 = vector.load %arg4[%c2_154, %c0_155] : memref<4x16xf32, #tpu.memory_space<vmem>>, vector<1x16xf32>
    %244 = vector.broadcast %236 : vector<1x16xf32> to vector<72x16xf32>
    %245 = arith.subf %206, %244 : vector<72x16xf32>
    %cst_156 = arith.constant 9.99999974E-6 : f32
    %246 = vector.broadcast %cst_156 : f32 to vector<1x16xf32>
    %247 = arith.addf %241, %246 : vector<1x16xf32>
    %248 = math.rsqrt %247 : vector<1x16xf32>
    %249 = arith.mulf %248, %242 : vector<1x16xf32>
    %250 = vector.broadcast %249 : vector<1x16xf32> to vector<72x16xf32>
    %251 = arith.mulf %245, %250 : vector<72x16xf32>
    %252 = vector.broadcast %243 : vector<1x16xf32> to vector<72x16xf32>
    %253 = arith.addf %251, %252 : vector<72x16xf32>
    %cst_157 = arith.constant 0.000000e+00 : f32
    %254 = vector.broadcast %cst_157 : f32 to vector<72x16xf32>
    %255 = arith.maximumf %253, %254 : vector<72x16xf32>
    %256 = vector.extract_strided_slice %255 {offsets = [0, 0], sizes = [65, 16], strides = [1, 1]} : vector<72x16xf32> to vector<65x16xf32>
    %257 = vector.extract_strided_slice %255 {offsets = [1, 0], sizes = [65, 16], strides = [1, 1]} : vector<72x16xf32> to vector<65x16xf32>
    %258 = arith.maximumf %256, %257 : vector<65x16xf32>
    %259 = vector.extract_strided_slice %255 {offsets = [6, 0], sizes = [65, 16], strides = [1, 1]} : vector<72x16xf32> to vector<65x16xf32>
    %260 = vector.extract_strided_slice %255 {offsets = [7, 0], sizes = [65, 16], strides = [1, 1]} : vector<72x16xf32> to vector<65x16xf32>
    %261 = arith.maximumf %259, %260 : vector<65x16xf32>
    %262 = arith.maximumf %258, %261 : vector<65x16xf32>
    %c0_158 = arith.constant 0 : index
    %c0_159 = arith.constant 0 : index
    %263 = vector.load %arg12[%c0_158, %c0_159] : memref<65x16xf32, #tpu.memory_space<vmem>>, vector<65x16xf32>
    tpu.vector_store %arg12[%c0_158, %c0_159], %262 {strides = array<i32>} : memref<65x16xf32, #tpu.memory_space<vmem>>, vector<65x16xf32>,
    %cst_160 = arith.constant 0.000000e+00 : f32
    %264 = vector.broadcast %cst_160 : f32 to vector<42x16xf32>
    %c0_161 = arith.constant 0 : index
    %c0_162 = arith.constant 0 : index
    %265 = vector.load %arg13[%c0_161, %c0_162] : memref<42x16xf32, #tpu.memory_space<vmem>>, vector<42x16xf32>
    tpu.vector_store %arg13[%c0_161, %c0_162], %264 {strides = array<i32>} : memref<42x16xf32, #tpu.memory_space<vmem>>, vector<42x16xf32>,
    %c0_163 = arith.constant 0 : index
    %c0_164 = arith.constant 0 : index
    %266 = tpu.strided_load %arg12[%c0_163, %c0_164] {strides = array<i32: 2, 1>} : memref<65x16xf32, #tpu.memory_space<vmem>>, vector<2x16xf32>
    %c5 = arith.constant 5 : index
    %c0_165 = arith.constant 0 : index
    %267 = vector.load %arg13[%c5, %c0_165] : memref<42x16xf32, #tpu.memory_space<vmem>>, vector<2x16xf32>
    tpu.vector_store %arg13[%c5, %c0_165], %266 {strides = array<i32>} : memref<42x16xf32, #tpu.memory_space<vmem>>, vector<2x16xf32>,
    %c12_166 = arith.constant 12 : index
    %c0_167 = arith.constant 0 : index
    %268 = tpu.strided_load %arg12[%c12_166, %c0_167] {strides = array<i32: 2, 1>} : memref<65x16xf32, #tpu.memory_space<vmem>>, vector<2x16xf32>
    %c9 = arith.constant 9 : index
    %c0_168 = arith.constant 0 : index
    %269 = vector.load %arg13[%c9, %c0_168] : memref<42x16xf32, #tpu.memory_space<vmem>>, vector<2x16xf32>
    tpu.vector_store %arg13[%c9, %c0_168], %268 {strides = array<i32>} : memref<42x16xf32, #tpu.memory_space<vmem>>, vector<2x16xf32>,
    %c36_169 = arith.constant 36 : index
    %c0_170 = arith.constant 0 : index
    %270 = tpu.strided_load %arg12[%c36_169, %c0_170] {strides = array<i32: 2, 1>} : memref<65x16xf32, #tpu.memory_space<vmem>>, vector<2x16xf32>
    %c21_171 = arith.constant 21 : index
    %c0_172 = arith.constant 0 : index
    %271 = vector.load %arg13[%c21_171, %c0_172] : memref<42x16xf32, #tpu.memory_space<vmem>>, vector<2x16xf32>
    tpu.vector_store %arg13[%c21_171, %c0_172], %270 {strides = array<i32>} : memref<42x16xf32, #tpu.memory_space<vmem>>, vector<2x16xf32>,
    %c48 = arith.constant 48 : index
    %c0_173 = arith.constant 0 : index
    %272 = tpu.strided_load %arg12[%c48, %c0_173] {strides = array<i32: 2, 1>} : memref<65x16xf32, #tpu.memory_space<vmem>>, vector<2x16xf32>
    %c25_174 = arith.constant 25 : index
    %c0_175 = arith.constant 0 : index
    %273 = vector.load %arg13[%c25_174, %c0_175] : memref<42x16xf32, #tpu.memory_space<vmem>>, vector<2x16xf32>
    tpu.vector_store %arg13[%c25_174, %c0_175], %272 {strides = array<i32>} : memref<42x16xf32, #tpu.memory_space<vmem>>, vector<2x16xf32>,
    %c0_176 = arith.constant 0 : index
    %c0_177 = arith.constant 0 : index
    %274 = vector.load %arg13[%c0_176, %c0_177] : memref<42x16xf32, #tpu.memory_space<vmem>>, vector<32x16xf32>
    %c1_178 = arith.constant 1 : index
    %c0_179 = arith.constant 0 : index
    %275 = vector.load %arg13[%c1_178, %c0_179] : memref<42x16xf32, #tpu.memory_space<vmem>>, vector<32x16xf32>
    %c2_180 = arith.constant 2 : index
    %c0_181 = arith.constant 0 : index
    %276 = vector.load %arg13[%c2_180, %c0_181] : memref<42x16xf32, #tpu.memory_space<vmem>>, vector<32x16xf32>
    %c4 = arith.constant 4 : index
    %c0_182 = arith.constant 0 : index
    %277 = vector.load %arg13[%c4, %c0_182] : memref<42x16xf32, #tpu.memory_space<vmem>>, vector<32x16xf32>
    %c5_183 = arith.constant 5 : index
    %c0_184 = arith.constant 0 : index
    %278 = vector.load %arg13[%c5_183, %c0_184] : memref<42x16xf32, #tpu.memory_space<vmem>>, vector<32x16xf32>
    %c6_185 = arith.constant 6 : index
    %c0_186 = arith.constant 0 : index
    %279 = vector.load %arg13[%c6_185, %c0_186] : memref<42x16xf32, #tpu.memory_space<vmem>>, vector<32x16xf32>
    %c8_187 = arith.constant 8 : index
    %c0_188 = arith.constant 0 : index
    %280 = vector.load %arg13[%c8_187, %c0_188] : memref<42x16xf32, #tpu.memory_space<vmem>>, vector<32x16xf32>
    %c9_189 = arith.constant 9 : index
    %c0_190 = arith.constant 0 : index
    %281 = vector.load %arg13[%c9_189, %c0_190] : memref<42x16xf32, #tpu.memory_space<vmem>>, vector<32x16xf32>
    %c10_191 = arith.constant 10 : index
    %c0_192 = arith.constant 0 : index
    %282 = vector.load %arg13[%c10_191, %c0_192] : memref<42x16xf32, #tpu.memory_space<vmem>>, vector<32x16xf32>
    %283 = tpu.concatenate %274, %275, %276, %277, %278, %279, %280, %281, %282 in 1 : vector<32x16xf32>, vector<32x16xf32>, vector<32x16xf32>, vector<32x16xf32>, vector<32x16xf32>, vector<32x16xf32>, vector<32x16xf32>, vector<32x16xf32>, vector<32x16xf32> -> vector<32x144xf32>
    %284 = arith.truncf %283 : vector<32x144xf32> to vector<32x144xbf16>
    %c2_193 = arith.constant 2 : index
    %c0_194 = arith.constant 0 : index
    %c0_195 = arith.constant 0 : index
    %285 = vector.load %arg2[%c2_193, %c0_194, %c0_195] : memref<3x144x16xbf16, #tpu.memory_space<vmem>>, vector<1x144x16xbf16>
    %286 = vector.shape_cast %285 : vector<1x144x16xbf16> to vector<144x16xbf16>
    %cst_196 = arith.constant dense<0.000000e+00> : vector<32x16xf32>
    %287 = tpu.matmul %284, %286, %cst_196 {dimension_numbers = #tpu.dot_dimension_numbers<[1], [0], [0], [1], [0, 0, 1, 1], [], []>} : vector<32x144xbf16>, vector<144x16xbf16>, vector<32x16xf32> -> vector<32x16xf32>
    %288 = tpu.iota {dimensions = array<i32: 0>} : vector<32x1xi32>
    %289 = arith.sitofp %288 : vector<32x1xi32> to vector<32x1xf32>
    %cst_197 = arith.constant 1.600000e+01 : f32
    %290 = vector.broadcast %cst_197 : f32 to vector<32x1xf32>
    %291 = arith.divf %289, %290 : vector<32x1xf32>
    %292 = math.floor %291 : vector<32x1xf32>
    %cst_198 = arith.constant 1.600000e+01 : f32
    %293 = vector.broadcast %cst_198 : f32 to vector<32x1xf32>
    %294 = arith.mulf %292, %293 : vector<32x1xf32>
    %295 = arith.subf %289, %294 : vector<32x1xf32>
    %cst_199 = arith.constant 4.000000e+00 : f32
    %296 = vector.broadcast %cst_199 : f32 to vector<32x1xf32>
    %297 = arith.divf %295, %296 : vector<32x1xf32>
    %298 = math.floor %297 : vector<32x1xf32>
    %cst_200 = arith.constant 4.000000e+00 : f32
    %299 = vector.broadcast %cst_200 : f32 to vector<32x1xf32>
    %300 = arith.mulf %298, %299 : vector<32x1xf32>
    %301 = arith.subf %295, %300 : vector<32x1xf32>
    %cst_201 = arith.constant 2.000000e+00 : f32
    %302 = vector.broadcast %cst_201 : f32 to vector<32x1xf32>
    %303 = arith.cmpf olt, %298, %302 : vector<32x1xf32>
    %cst_202 = arith.constant 2.000000e+00 : f32
    %304 = vector.broadcast %cst_202 : f32 to vector<32x1xf32>
    %305 = arith.cmpf olt, %301, %304 : vector<32x1xf32>
    %306 = arith.andi %303, %305 : vector<32x1xi1>
    %307 = arith.extui %306 : vector<32x1xi1> to vector<32x1xi32>
    %308 = arith.sitofp %307 : vector<32x1xi32> to vector<32x1xf32>
    %309 = vector.broadcast %308 : vector<32x1xf32> to vector<32x16xf32>
    %310 = arith.mulf %287, %309 : vector<32x16xf32>
    %311 = arith.mulf %310, %287 : vector<32x16xf32>
    %312 = tpu.concatenate %310, %311 in 1 : vector<32x16xf32>, vector<32x16xf32> -> vector<32x32xf32>
    %cst_203 = arith.constant dense<0.000000e+00> : vector<32xf32>
    %313 = vector.multi_reduction <add>, %312, %cst_203 [0] : vector<32x32xf32> to vector<32xf32>
    %314 = vector.shape_cast %313 : vector<32xf32> to vector<1x32xf32>
    %315 = vector.extract_strided_slice %314 {offsets = [0, 0], sizes = [1, 16], strides = [1, 1]} : vector<1x32xf32> to vector<1x16xf32>
    %cst_204 = arith.constant 8.000000e+00 : f32
    %316 = vector.broadcast %cst_204 : f32 to vector<1x16xf32>
    %317 = arith.divf %315, %316 : vector<1x16xf32>
    %318 = vector.extract_strided_slice %314 {offsets = [0, 16], sizes = [1, 16], strides = [1, 1]} : vector<1x32xf32> to vector<1x16xf32>
    %cst_205 = arith.constant 8.000000e+00 : f32
    %319 = vector.broadcast %cst_205 : f32 to vector<1x16xf32>
    %320 = arith.divf %318, %319 : vector<1x16xf32>
    %321 = arith.mulf %317, %317 : vector<1x16xf32>
    %322 = arith.subf %320, %321 : vector<1x16xf32>
    %c3 = arith.constant 3 : index
    %c0_206 = arith.constant 0 : index
    %323 = vector.load %arg3[%c3, %c0_206] : memref<4x16xf32, #tpu.memory_space<vmem>>, vector<1x16xf32>
    %c3_207 = arith.constant 3 : index
    %c0_208 = arith.constant 0 : index
    %324 = vector.load %arg4[%c3_207, %c0_208] : memref<4x16xf32, #tpu.memory_space<vmem>>, vector<1x16xf32>
    %325 = vector.broadcast %317 : vector<1x16xf32> to vector<32x16xf32>
    %326 = arith.subf %287, %325 : vector<32x16xf32>
    %cst_209 = arith.constant 9.99999974E-6 : f32
    %327 = vector.broadcast %cst_209 : f32 to vector<1x16xf32>
    %328 = arith.addf %322, %327 : vector<1x16xf32>
    %329 = math.rsqrt %328 : vector<1x16xf32>
    %330 = arith.mulf %329, %323 : vector<1x16xf32>
    %331 = vector.broadcast %330 : vector<1x16xf32> to vector<32x16xf32>
    %332 = arith.mulf %326, %331 : vector<32x16xf32>
    %333 = vector.broadcast %324 : vector<1x16xf32> to vector<32x16xf32>
    %334 = arith.addf %332, %333 : vector<32x16xf32>
    %cst_210 = arith.constant 0.000000e+00 : f32
    %335 = vector.broadcast %cst_210 : f32 to vector<32x16xf32>
    %336 = arith.maximumf %334, %335 : vector<32x16xf32>
    %337 = vector.extract_strided_slice %336 {offsets = [0, 0], sizes = [27, 16], strides = [1, 1]} : vector<32x16xf32> to vector<27x16xf32>
    %338 = vector.extract_strided_slice %336 {offsets = [1, 0], sizes = [27, 16], strides = [1, 1]} : vector<32x16xf32> to vector<27x16xf32>
    %339 = arith.maximumf %337, %338 : vector<27x16xf32>
    %340 = vector.extract_strided_slice %336 {offsets = [4, 0], sizes = [27, 16], strides = [1, 1]} : vector<32x16xf32> to vector<27x16xf32>
    %341 = vector.extract_strided_slice %336 {offsets = [5, 0], sizes = [27, 16], strides = [1, 1]} : vector<32x16xf32> to vector<27x16xf32>
    %342 = arith.maximumf %340, %341 : vector<27x16xf32>
    %343 = arith.maximumf %339, %342 : vector<27x16xf32>
    %344 = vector.extract_strided_slice %343 {offsets = [0, 0], sizes = [1, 16], strides = [1, 1]} : vector<27x16xf32> to vector<1x16xf32>
    %345 = vector.extract_strided_slice %343 {offsets = [16, 0], sizes = [1, 16], strides = [1, 1]} : vector<27x16xf32> to vector<1x16xf32>
    %346 = tpu.concatenate %344, %345 in 0 : vector<1x16xf32>, vector<1x16xf32> -> vector<2x16xf32>
    %c0_211 = arith.constant 0 : index
    %c0_212 = arith.constant 0 : index
    %347 = vector.load %arg5[%c0_211, %c0_212] : memref<16x5xf32, #tpu.memory_space<vmem>>, vector<16x5xf32>
    %cst_213 = arith.constant dense<0.000000e+00> : vector<2x5xf32>
    %348 = tpu.matmul %346, %347, %cst_213 {dimension_numbers = #tpu.dot_dimension_numbers<[1], [0], [0], [1], [0, 0, 1, 1], [], []>} : vector<2x16xf32>, vector<16x5xf32>, vector<2x5xf32> -> vector<2x5xf32>
    %c0_214 = arith.constant 0 : index
    %c0_215 = arith.constant 0 : index
    %349 = vector.load %arg6[%c0_214, %c0_215] : memref<1x5xf32, #tpu.memory_space<vmem>>, vector<1x5xf32>
    %350 = vector.broadcast %349 : vector<1x5xf32> to vector<2x5xf32>
    %351 = arith.addf %348, %350 : vector<2x5xf32>
    %c0_216 = arith.constant 0 : index
    %c0_217 = arith.constant 0 : index
    %352 = vector.load %arg7[%c0_216, %c0_217] : memref<2x5xf32, #tpu.memory_space<vmem>>, vector<2x5xf32>
    tpu.vector_store %arg7[%c0_216, %c0_217], %351 {strides = array<i32>} : memref<2x5xf32, #tpu.memory_space<vmem>>, vector<2x5xf32>,
    return
  }
}

</mosaic_0001>

<llo_original>
// kernel: baseline_train_forward.1
$region0: #{baseline_train_forward.1}
  #allocation0 [shape = 'u32[]', space=smem, size = 0x4, offset = 0x4, fixed_abs, tag = 'smem constant byte address 0x4 - core index']
  #allocation1 [shape = 'u32[72,128]{1,0:T(1,128)}', space=vmem, size = 0x9000, scoped, tag = 'internal scratch']
  #allocation2 [shape = 'f32[629,16]{1,0:T(8,128)}', space=vmem, size = 0x4f000, scoped, tag = 'scratch operand']
  #allocation3 [shape = 'f32[222,16]{1,0:T(8,128)}', space=vmem, size = 0x1c000, scoped, tag = 'scratch operand']
  #allocation4 [shape = 'f32[189,16]{1,0:T(8,128)}', space=vmem, size = 0x18000, scoped, tag = 'scratch operand']
  #allocation5 [shape = 'f32[86,16]{1,0:T(8,128)}', space=vmem, size = 0xb000, scoped, tag = 'scratch operand']
  #allocation6 [shape = 'f32[65,16]{1,0:T(8,128)}', space=vmem, size = 0x9000, scoped, tag = 'scratch operand']
  #allocation7 [shape = 'f32[42,16]{1,0:T(8,128)}', space=vmem, size = 0x6000, scoped, tag = 'scratch operand']
  %s0 = inlined_call_operand.vmem [shape: f32[686,3], index: 0, kind: input, shape index: {}]
  %s1 = inlined_call_operand.vmem [shape: bf16[27,16], index: 1, kind: input, shape index: {}]
  %s2 = inlined_call_operand.vmem [shape: bf16[3,144,16], index: 2, kind: input, shape index: {}]
  %s3 = inlined_call_operand.vmem [shape: f32[4,16], index: 3, kind: input, shape index: {}]
  %s4 = inlined_call_operand.vmem [shape: f32[4,16], index: 4, kind: input, shape index: {}]
  %s5 = inlined_call_operand.vmem [shape: f32[16,5], index: 5, kind: input, shape index: {}]
  %s6 = inlined_call_operand.vmem [shape: f32[1,5], index: 6, kind: input, shape index: {}]
  %s7 = inlined_call_operand.hbm [shape: f32[2,5], index: 7, kind: output, shape index: {}]
  %s8 = sld [smem:[#allocation0]]
  $region38: #{baseline_train_forward.1} parent=0
    _
  %s10 = ssub.s32 1, %s8
  %s11 = scalar_select 0, %s10, %s8
  $region1: #{baseline_train_forward.1} parent=0
    #allocation8 [shape = 'u8[1024]{0}', space=vmem, size = 0x400, scoped, tag = 'output window, operand 0, single buffered']
    #allocation9 [shape = 's32[1]{0}', space=sflag, size = 0x4, scoped, tag = 'scoped memory for baseline_train_forward.1']
    %12 = vsyncpa [#allocation9], 0
    // Predicated region
    $region2: #{baseline_train_forward.1} parent=1 // pred_check
      _
    $region3: #{baseline_train_forward.1} parent=1 // pred_check_branch
      %14 = sbr.rel (0) target = $region5
    $region4: #{baseline_train_forward.1} parent=1 // pred_region
      _
    $region5: #{baseline_train_forward.1} parent=1 // pred_fallthru
      _
    // Predicated region
    $region6: #{baseline_train_forward.1} parent=1 // pred_check
      _
    $region7: #{baseline_train_forward.1} parent=1 // pred_check_branch
      %16 = sbr.rel (0) target = $region9
    $region8: #{baseline_train_forward.1} parent=1 // pred_region
      _
    $region9: #{baseline_train_forward.1} parent=1 // pred_fallthru
      _
    // Predicated region
    $region10: #{baseline_train_forward.1} parent=1 // pred_check
      _
    $region11: #{baseline_train_forward.1} parent=1 // pred_check_branch
      %18 = sbr.rel (0) target = $region13
    $region12: #{baseline_train_forward.1} parent=1 // pred_region
      _
    $region13: #{baseline_train_forward.1} parent=1 // pred_fallthru
      _
    // Predicated region
    $region14: #{baseline_train_forward.1} parent=1 // pred_check
      _
    $region15: #{baseline_train_forward.1} parent=1 // pred_check_branch
      %20 = sbr.rel (0) target = $region17
    $region16: #{baseline_train_forward.1} parent=1 // pred_region
      _
    $region17: #{baseline_train_forward.1} parent=1 // pred_fallthru
      _
    // Predicated region
    $region18: #{baseline_train_forward.1} parent=1 // pred_check
      _
    $region19: #{baseline_train_forward.1} parent=1 // pred_check_branch
      %22 = sbr.rel (0) target = $region21
    $region20: #{baseline_train_forward.1} parent=1 // pred_region
      _
    $region21: #{baseline_train_forward.1} parent=1 // pred_fallthru
      _
    // Predicated region
    $region22: #{baseline_train_forward.1} parent=1 // pred_check
      _
    $region23: #{baseline_train_forward.1} parent=1 // pred_check_branch
      %24 = sbr.rel (0) target = $region25
    $region24: #{baseline_train_forward.1} parent=1 // pred_region
      _
    $region25: #{baseline_train_forward.1} parent=1 // pred_fallthru
      _
    // Predicated region
    $region26: #{baseline_train_forward.1} parent=1 // pred_check
      _
    $region27: #{baseline_train_forward.1} parent=1 // pred_check_branch
      %26 = sbr.rel (0) target = $region29
    $region28: #{baseline_train_forward.1} parent=1 // pred_region
      _
    $region29: #{baseline_train_forward.1} parent=1 // pred_fallthru
      _
    %v28 = vld [vmem:[%s0] sm:$0xff]
    %v29 = vld [vmem:[%s0 + $0x8] sm:$0xff]
    %v30 = vld [vmem:[%s0 + $0x10] sm:$0xff]
    %v31 = vld [vmem:[%s0 + $0x18] sm:$0xff]
    %v32 = vld [vmem:[%s0 + $0x20] sm:$0xff]
    %v33 = vld [vmem:[%s0 + $0x28] sm:$0xff]
    %v34 = vld [vmem:[%s0 + $0x30] sm:$0xff]
    %v35 = vld [vmem:[%s0 + $0x38] sm:$0xff]
    %v36 = vld [vmem:[%s0 + $0x40] sm:$0xff]
    %v37 = vld [vmem:[%s0 + $0x48] sm:$0xff]
    %v38 = vld [vmem:[%s0 + $0x50] sm:$0xff]
    %v39 = vld [vmem:[%s0 + $0x58] sm:$0xff]
    %v40 = vld [vmem:[%s0 + $0x60] sm:$0xff]
    %v41 = vld [vmem:[%s0 + $0x68] sm:$0xff]
    %v42 = vld [vmem:[%s0 + $0x70] sm:$0xff]
    %v43 = vld [vmem:[%s0 + $0x78] sm:$0xff]
    %v44 = vld [vmem:[%s0 + $0x80] sm:$0xff]
    %v45 = vld [vmem:[%s0 + $0x88] sm:$0xff]
    %v46 = vld [vmem:[%s0 + $0x90] sm:$0xff]
    %v47 = vld [vmem:[%s0 + $0x98] sm:$0xff]
    %v48 = vld [vmem:[%s0 + $0xa0] sm:$0xff]
    %v49 = vld [vmem:[%s0 + $0xa8] sm:$0xff]
    %v50 = vld [vmem:[%s0 + $0xb0] sm:$0xff]
    %v51 = vld [vmem:[%s0 + $0xb8] sm:$0xff]
    %v52 = vld [vmem:[%s0 + $0xc0] sm:$0xff]
    %v53 = vld [vmem:[%s0 + $0xc8] sm:$0xff]
    %v54 = vld [vmem:[%s0 + $0xd0] sm:$0xff]
    %v55 = vld [vmem:[%s0 + $0xd8] sm:$0xff]
    %v56 = vld [vmem:[%s0 + $0xe0] sm:$0xff]
    %v57 = vld [vmem:[%s0 + $0xe8] sm:$0xff]
    %v58 = vld [vmem:[%s0 + $0xf0] sm:$0xff]
    %v59 = vld [vmem:[%s0 + $0xf8] sm:$0xff]
    %v60 = vld [vmem:[%s0 + $0x100] sm:$0xff]
    %v61 = vld [vmem:[%s0 + $0x108] sm:$0xff]
    %v62 = vld [vmem:[%s0 + $0x110] sm:$0xff]
    %v63 = vld [vmem:[%s0 + $0x118] sm:$0xff]
    %v64 = vld [vmem:[%s0 + $0x120] sm:$0xff]
    %v65 = vld [vmem:[%s0 + $0x128] sm:$0xff]
    %v66 = vld [vmem:[%s0 + $0x130] sm:$0xff]
    %v67 = vld [vmem:[%s0 + $0x138] sm:$0xff]
    %v68 = vld [vmem:[%s0 + $0x140] sm:$0xff]
    %v69 = vld [vmem:[%s0 + $0x148] sm:$0xff]
    %v70 = vld [vmem:[%s0 + $0x150] sm:$0xff]
    %v71 = vld [vmem:[%s0 + $0x158] sm:$0xff]
    %v72 = vld [vmem:[%s0 + $0x160] sm:$0xff]
    %v73 = vld [vmem:[%s0 + $0x168] sm:$0xff]
    %v74 = vld [vmem:[%s0 + $0x170] sm:$0xff]
    %v75 = vld [vmem:[%s0 + $0x178] sm:$0xff]
    %v76 = vld [vmem:[%s0 + $0x180] sm:$0xff]
    %v77 = vld [vmem:[%s0 + $0x188] sm:$0xff]
    %v78 = vld [vmem:[%s0 + $0x190] sm:$0xff]
    %v79 = vld [vmem:[%s0 + $0x198] sm:$0xff]
    %v80 = vld [vmem:[%s0 + $0x1a0] sm:$0xff]
    %v81 = vld [vmem:[%s0 + $0x1a8] sm:$0xff]
    %v82 = vld [vmem:[%s0 + $0x1b0] sm:$0xff]
    %v83 = vld [vmem:[%s0 + $0x1b8] sm:$0xff]
    %v84 = vld [vmem:[%s0 + $0x1c0] sm:$0xff]
    %v85 = vld [vmem:[%s0 + $0x1c8] sm:$0xff]
    %v86 = vld [vmem:[%s0 + $0x1d0] sm:$0xff]
    %v87 = vld [vmem:[%s0 + $0x1d8] sm:$0xff]
    %v88 = vld [vmem:[%s0 + $0x1e0] sm:$0xff]
    %v89 = vld [vmem:[%s0 + $0x1e8] sm:$0xff]
    %v90 = vld [vmem:[%s0 + $0x1f0] sm:$0xff]
    %v91 = vld [vmem:[%s0 + $0x1f8] sm:$0xff]
    %v92 = vld [vmem:[%s0 + $0x200] sm:$0xff]
    %v93 = vld [vmem:[%s0 + $0x208] sm:$0xff]
    %v94 = vld [vmem:[%s0 + $0x210] sm:$0xff]
    %v95 = vld [vmem:[%s0 + $0x218] sm:$0xff]
    %v96 = vld [vmem:[%s0 + $0x220] sm:$0xff]
    %v97 = vld [vmem:[%s0 + $0x228] sm:$0xff]
    %v98 = vld [vmem:[%s0 + $0x230] sm:$0xff]
    %v99 = vld [vmem:[%s0 + $0x238] sm:$0xff]
    %v100 = vld [vmem:[%s0 + $0x240] sm:$0xff]
    %v101 = vld [vmem:[%s0 + $0x248] sm:$0xff]
    %v102 = vld [vmem:[%s0 + $0x250] sm:$0xff]
    %v103 = vld [vmem:[%s0 + $0x258] sm:$0xff]
    %v104 = vld [vmem:[%s0 + $0x260] sm:$0xff]
    %v105 = vld [vmem:[%s0 + $0x268] sm:$0xff]
    %v106 = vld [vmem:[%s0 + $0x270] sm:$0xff]
    %v107 = vld [vmem:[%s0 + $0x278] sm:$0xff]
    %v108 = vld [vmem:[%s0 + $0x280] sm:$0xff]
    %v109 = vld [vmem:[%s0 + $0x1] sm:$0xff]
    %v110 = vld [vmem:[%s0 + $0x9] sm:$0xff]
    %v111 = vld [vmem:[%s0 + $0x11] sm:$0xff]
    %v112 = vld [vmem:[%s0 + $0x19] sm:$0xff]
    %v113 = vld [vmem:[%s0 + $0x21] sm:$0xff]
    %v114 = vld [vmem:[%s0 + $0x29] sm:$0xff]
    %v115 = vld [vmem:[%s0 + $0x31] sm:$0xff]
    %v116 = vld [vmem:[%s0 + $0x39] sm:$0xff]
    %v117 = vld [vmem:[%s0 + $0x41] sm:$0xff]
    %v118 = vld [vmem:[%s0 + $0x49] sm:$0xff]
    %v119 = vld [vmem:[%s0 + $0x51] sm:$0xff]
    %v120 = vld [vmem:[%s0 + $0x59] sm:$0xff]
    %v121 = vld [vmem:[%s0 + $0x61] sm:$0xff]
    %v122 = vld [vmem:[%s0 + $0x69] sm:$0xff]
    %v123 = vld [vmem:[%s0 + $0x71] sm:$0xff]
    %v124 = vld [vmem:[%s0 + $0x79] sm:$0xff]
    %v125 = vld [vmem:[%s0 + $0x81] sm:$0xff]
    %v126 = vld [vmem:[%s0 + $0x89] sm:$0xff]
    %v127 = vld [vmem:[%s0 + $0x91] sm:$0xff]
    %v128 = vld [vmem:[%s0 + $0x99] sm:$0xff]
    %v129 = vld [vmem:[%s0 + $0xa1] sm:$0xff]
    %v130 = vld [vmem:[%s0 + $0xa9] sm:$0xff]
    %v131 = vld [vmem:[%s0 + $0xb1] sm:$0xff]
    %v132 = vld [vmem:[%s0 + $0xb9] sm:$0xff]
    %v133 = vld [vmem:[%s0 + $0xc1] sm:$0xff]
    %v134 = vld [vmem:[%s0 + $0xc9] sm:$0xff]
    %v135 = vld [vmem:[%s0 + $0xd1] sm:$0xff]
    %v136 = vld [vmem:[%s0 + $0xd9] sm:$0xff]
    %v137 = vld [vmem:[%s0 + $0xe1] sm:$0xff]
    %v138 = vld [vmem:[%s0 + $0xe9] sm:$0xff]
    %v139 = vld [vmem:[%s0 + $0xf1] sm:$0xff]
    %v140 = vld [vmem:[%s0 + $0xf9] sm:$0xff]
    %v141 = vld [vmem:[%s0 + $0x101] sm:$0xff]
    %v142 = vld [vmem:[%s0 + $0x109] sm:$0xff]
    %v143 = vld [vmem:[%s0 + $0x111] sm:$0xff]
    %v144 = vld [vmem:[%s0 + $0x119] sm:$0xff]
    %v145 = vld [vmem:[%s0 + $0x121] sm:$0xff]
    %v146 = vld [vmem:[%s0 + $0x129] sm:$0xff]
    %v147 = vld [vmem:[%s0 + $0x131] sm:$0xff]
    %v148 = vld [vmem:[%s0 + $0x139] sm:$0xff]
    %v149 = vld [vmem:[%s0 + $0x141] sm:$0xff]
    %v150 = vld [vmem:[%s0 + $0x149] sm:$0xff]
    %v151 = vld [vmem:[%s0 + $0x151] sm:$0xff]
    %v152 = vld [vmem:[%s0 + $0x159] sm:$0xff]
    %v153 = vld [vmem:[%s0 + $0x161] sm:$0xff]
    %v154 = vld [vmem:[%s0 + $0x169] sm:$0xff]
    %v155 = vld [vmem:[%s0 + $0x171] sm:$0xff]
    %v156 = vld [vmem:[%s0 + $0x179] sm:$0xff]
    %v157 = vld [vmem:[%s0 + $0x181] sm:$0xff]
    %v158 = vld [vmem:[%s0 + $0x189] sm:$0xff]
    %v159 = vld [vmem:[%s0 + $0x191] sm:$0xff]
    %v160 = vld [vmem:[%s0 + $0x199] sm:$0xff]
    %v161 = vld [vmem:[%s0 + $0x1a1] sm:$0xff]
    %v162 = vld [vmem:[%s0 + $0x1a9] sm:$0xff]
    %v163 = vld [vmem:[%s0 + $0x1b1] sm:$0xff]
    %v164 = vld [vmem:[%s0 + $0x1b9] sm:$0xff]
    %v165 = vld [vmem:[%s0 + $0x1c1] sm:$0xff]
    %v166 = vld [vmem:[%s0 + $0x1c9] sm:$0xff]
    %v167 = vld [vmem:[%s0 + $0x1d1] sm:$0xff]
    %v168 = vld [vmem:[%s0 + $0x1d9] sm:$0xff]
    %v169 = vld [vmem:[%s0 + $0x1e1] sm:$0xff]
    %v170 = vld [vmem:[%s0 + $0x1e9] sm:$0xff]
    %v171 = vld [vmem:[%s0 + $0x1f1] sm:$0xff]
    %v172 = vld [vmem:[%s0 + $0x1f9] sm:$0xff]
    %v173 = vld [vmem:[%s0 + $0x201] sm:$0xff]
    %v174 = vld [vmem:[%s0 + $0x209] sm:$0xff]
    %v175 = vld [vmem:[%s0 + $0x211] sm:$0xff]
    %v176 = vld [vmem:[%s0 + $0x219] sm:$0xff]
    %v177 = vld [vmem:[%s0 + $0x221] sm:$0xff]
    %v178 = vld [vmem:[%s0 + $0x229] sm:$0xff]
    %v179 = vld [vmem:[%s0 + $0x231] sm:$0xff]
    %v180 = vld [vmem:[%s0 + $0x239] sm:$0xff]
    %v181 = vld [vmem:[%s0 + $0x241] sm:$0xff]
    %v182 = vld [vmem:[%s0 + $0x249] sm:$0xff]
    %v183 = vld [vmem:[%s0 + $0x251] sm:$0xff]
    %v184 = vld [vmem:[%s0 + $0x259] sm:$0xff]
    %v185 = vld [vmem:[%s0 + $0x261] sm:$0xff]
    %v186 = vld [vmem:[%s0 + $0x269] sm:$0xff]
    %v187 = vld [vmem:[%s0 + $0x271] sm:$0xff]
    %v188 = vld [vmem:[%s0 + $0x279] sm:$0xff]
    %v189 = vld [vmem:[%s0 + $0x281] sm:$0xff]
    %v190 = vld [vmem:[%s0 + $0x2] sm:$0xff]
    %v191 = vld [vmem:[%s0 + $0xa] sm:$0xff]
    %v192 = vld [vmem:[%s0 + $0x12] sm:$0xff]
    %v193 = vld [vmem:[%s0 + $0x1a] sm:$0xff]
    %v194 = vld [vmem:[%s0 + $0x22] sm:$0xff]
    %v195 = vld [vmem:[%s0 + $0x2a] sm:$0xff]
    %v196 = vld [vmem:[%s0 + $0x32] sm:$0xff]
    %v197 = vld [vmem:[%s0 + $0x3a] sm:$0xff]
    %v198 = vld [vmem:[%s0 + $0x42] sm:$0xff]
    %v199 = vld [vmem:[%s0 + $0x4a] sm:$0xff]
    %v200 = vld [vmem:[%s0 + $0x52] sm:$0xff]
    %v201 = vld [vmem:[%s0 + $0x5a] sm:$0xff]
    %v202 = vld [vmem:[%s0 + $0x62] sm:$0xff]
    %v203 = vld [vmem:[%s0 + $0x6a] sm:$0xff]
    %v204 = vld [vmem:[%s0 + $0x72] sm:$0xff]
    %v205 = vld [vmem:[%s0 + $0x7a] sm:$0xff]
    %v206 = vld [vmem:[%s0 + $0x82] sm:$0xff]
    %v207 = vld [vmem:[%s0 + $0x8a] sm:$0xff]
    %v208 = vld [vmem:[%s0 + $0x92] sm:$0xff]
    %v209 = vld [vmem:[%s0 + $0x9a] sm:$0xff]
    %v210 = vld [vmem:[%s0 + $0xa2] sm:$0xff]
    %v211 = vld [vmem:[%s0 + $0xaa] sm:$0xff]
    %v212 = vld [vmem:[%s0 + $0xb2] sm:$0xff]
    %v213 = vld [vmem:[%s0 + $0xba] sm:$0xff]
    %v214 = vld [vmem:[%s0 + $0xc2] sm:$0xff]
    %v215 = vld [vmem:[%s0 + $0xca] sm:$0xff]
    %v216 = vld [vmem:[%s0 + $0xd2] sm:$0xff]
    %v217 = vld [vmem:[%s0 + $0xda] sm:$0xff]
    %v218 = vld [vmem:[%s0 + $0xe2] sm:$0xff]
    %v219 = vld [vmem:[%s0 + $0xea] sm:$0xff]
    %v220 = vld [vmem:[%s0 + $0xf2] sm:$0xff]
    %v221 = vld [vmem:[%s0 + $0xfa] sm:$0xff]
    %v222 = vld [vmem:[%s0 + $0x102] sm:$0xff]
    %v223 = vld [vmem:[%s0 + $0x10a] sm:$0xff]
    %v224 = vld [vmem:[%s0 + $0x112] sm:$0xff]
    %v225 = vld [vmem:[%s0 + $0x11a] sm:$0xff]
    %v226 = vld [vmem:[%s0 + $0x122] sm:$0xff]
    %v227 = vld [vmem:[%s0 + $0x12a] sm:$0xff]
    %v228 = vld [vmem:[%s0 + $0x132] sm:$0xff]
    %v229 = vld [vmem:[%s0 + $0x13a] sm:$0xff]
    %v230 = vld [vmem:[%s0 + $0x142] sm:$0xff]
    %v231 = vld [vmem:[%s0 + $0x14a] sm:$0xff]
    %v232 = vld [vmem:[%s0 + $0x152] sm:$0xff]
    %v233 = vld [vmem:[%s0 + $0x15a] sm:$0xff]
    %v234 = vld [vmem:[%s0 + $0x162] sm:$0xff]
    %v235 = vld [vmem:[%s0 + $0x16a] sm:$0xff]
    %v236 = vld [vmem:[%s0 + $0x172] sm:$0xff]
    %v237 = vld [vmem:[%s0 + $0x17a] sm:$0xff]
    %v238 = vld [vmem:[%s0 + $0x182] sm:$0xff]
    %v239 = vld [vmem:[%s0 + $0x18a] sm:$0xff]
    %v240 = vld [vmem:[%s0 + $0x192] sm:$0xff]
    %v241 = vld [vmem:[%s0 + $0x19a] sm:$0xff]
    %v242 = vld [vmem:[%s0 + $0x1a2] sm:$0xff]
    %v243 = vld [vmem:[%s0 + $0x1aa] sm:$0xff]
    %v244 = vld [vmem:[%s0 + $0x1b2] sm:$0xff]
    %v245 = vld [vmem:[%s0 + $0x1ba] sm:$0xff]
    %v246 = vld [vmem:[%s0 + $0x1c2] sm:$0xff]
    %v247 = vld [vmem:[%s0 + $0x1ca] sm:$0xff]
    %v248 = vld [vmem:[%s0 + $0x1d2] sm:$0xff]
    %v249 = vld [vmem:[%s0 + $0x1da] sm:$0xff]
    %v250 = vld [vmem:[%s0 + $0x1e2] sm:$0xff]
    %v251 = vld [vmem:[%s0 + $0x1ea] sm:$0xff]
    %v252 = vld [vmem:[%s0 + $0x1f2] sm:$0xff]
    %v253 = vld [vmem:[%s0 + $0x1fa] sm:$0xff]
    %v254 = vld [vmem:[%s0 + $0x202] sm:$0xff]
    %v255 = vld [vmem:[%s0 + $0x20a] sm:$0xff]
    %v256 = vld [vmem:[%s0 + $0x212] sm:$0xff]
    %v257 = vld [vmem:[%s0 + $0x21a] sm:$0xff]
    %v258 = vld [vmem:[%s0 + $0x222] sm:$0xff]
    %v259 = vld [vmem:[%s0 + $0x22a] sm:$0xff]
    %v260 = vld [vmem:[%s0 + $0x232] sm:$0xff]
    %v261 = vld [vmem:[%s0 + $0x23a] sm:$0xff]
    %v262 = vld [vmem:[%s0 + $0x242] sm:$0xff]
    %v263 = vld [vmem:[%s0 + $0x24a] sm:$0xff]
    %v264 = vld [vmem:[%s0 + $0x252] sm:$0xff]
    %v265 = vld [vmem:[%s0 + $0x25a] sm:$0xff]
    %v266 = vld [vmem:[%s0 + $0x262] sm:$0xff]
    %v267 = vld [vmem:[%s0 + $0x26a] sm:$0xff]
    %v268 = vld [vmem:[%s0 + $0x272] sm:$0xff]
    %v269 = vld [vmem:[%s0 + $0x27a] sm:$0xff]
    %v270 = vld [vmem:[%s0 + $0x282] sm:$0xff]
    %v271 = vld [vmem:[%s0 + $0x28a] sm:$0xff]
    %v272 = vld [vmem:[%s0 + $0x292] sm:$0xff]
    %v273 = vld [vmem:[%s0 + $0x13] sm:$0xff]
    %v274 = vld [vmem:[%s0 + $0x1b] sm:$0xff]
    %v275 = vld [vmem:[%s0 + $0x23] sm:$0xff]
    %v276 = vld [vmem:[%s0 + $0x2b] sm:$0xff]
    %v277 = vld [vmem:[%s0 + $0x33] sm:$0xff]
    %v278 = vld [vmem:[%s0 + $0x3b] sm:$0xff]
    %v279 = vld [vmem:[%s0 + $0x43] sm:$0xff]
    %v280 = vld [vmem:[%s0 + $0x4b] sm:$0xff]
    %v281 = vld [vmem:[%s0 + $0x53] sm:$0xff]
    %v282 = vld [vmem:[%s0 + $0x5b] sm:$0xff]
    %v283 = vld [vmem:[%s0 + $0x63] sm:$0xff]
    %v284 = vld [vmem:[%s0 + $0x6b] sm:$0xff]
    %v285 = vld [vmem:[%s0 + $0x73] sm:$0xff]
    %v286 = vld [vmem:[%s0 + $0x7b] sm:$0xff]
    %v287 = vld [vmem:[%s0 + $0x83] sm:$0xff]
    %v288 = vld [vmem:[%s0 + $0x8b] sm:$0xff]
    %v289 = vld [vmem:[%s0 + $0x93] sm:$0xff]
    %v290 = vld [vmem:[%s0 + $0x9b] sm:$0xff]
    %v291 = vld [vmem:[%s0 + $0xa3] sm:$0xff]
    %v292 = vld [vmem:[%s0 + $0xab] sm:$0xff]
    %v293 = vld [vmem:[%s0 + $0xb3] sm:$0xff]
    %v294 = vld [vmem:[%s0 + $0xbb] sm:$0xff]
    %v295 = vld [vmem:[%s0 + $0xc3] sm:$0xff]
    %v296 = vld [vmem:[%s0 + $0xcb] sm:$0xff]
    %v297 = vld [vmem:[%s0 + $0xd3] sm:$0xff]
    %v298 = vld [vmem:[%s0 + $0xdb] sm:$0xff]
    %v299 = vld [vmem:[%s0 + $0xe3] sm:$0xff]
    %v300 = vld [vmem:[%s0 + $0xeb] sm:$0xff]
    %v301 = vld [vmem:[%s0 + $0xf3] sm:$0xff]
    %v302 = vld [vmem:[%s0 + $0xfb] sm:$0xff]
    %v303 = vld [vmem:[%s0 + $0x103] sm:$0xff]
    %v304 = vld [vmem:[%s0 + $0x10b] sm:$0xff]
    %v305 = vld [vmem:[%s0 + $0x113] sm:$0xff]
    %v306 = vld [vmem:[%s0 + $0x11b] sm:$0xff]
    %v307 = vld [vmem:[%s0 + $0x123] sm:$0xff]
    %v308 = vld [vmem:[%s0 + $0x12b] sm:$0xff]
    %v309 = vld [vmem:[%s0 + $0x133] sm:$0xff]
    %v310 = vld [vmem:[%s0 + $0x13b] sm:$0xff]
    %v311 = vld [vmem:[%s0 + $0x143] sm:$0xff]
    %v312 = vld [vmem:[%s0 + $0x14b] sm:$0xff]
    %v313 = vld [vmem:[%s0 + $0x153] sm:$0xff]
    %v314 = vld [vmem:[%s0 + $0x15b] sm:$0xff]
    %v315 = vld [vmem:[%s0 + $0x163] sm:$0xff]
    %v316 = vld [vmem:[%s0 + $0x16b] sm:$0xff]
    %v317 = vld [vmem:[%s0 + $0x173] sm:$0xff]
    %v318 = vld [vmem:[%s0 + $0x17b] sm:$0xff]
    %v319 = vld [vmem:[%s0 + $0x183] sm:$0xff]
    %v320 = vld [vmem:[%s0 + $0x18b] sm:$0xff]
    %v321 = vld [vmem:[%s0 + $0x193] sm:$0xff]
    %v322 = vld [vmem:[%s0 + $0x19b] sm:$0xff]
    %v323 = vld [vmem:[%s0 + $0x1a3] sm:$0xff]
    %v324 = vld [vmem:[%s0 + $0x1ab] sm:$0xff]
    %v325 = vld [vmem:[%s0 + $0x1b3] sm:$0xff]
    %v326 = vld [vmem:[%s0 + $0x1bb] sm:$0xff]
    %v327 = vld [vmem:[%s0 + $0x1c3] sm:$0xff]
    %v328 = vld [vmem:[%s0 + $0x1cb] sm:$0xff]
    %v329 = vld [vmem:[%s0 + $0x1d3] sm:$0xff]
    %v330 = vld [vmem:[%s0 + $0x1db] sm:$0xff]
    %v331 = vld [vmem:[%s0 + $0x1e3] sm:$0xff]
    %v332 = vld [vmem:[%s0 + $0x1eb] sm:$0xff]
    %v333 = vld [vmem:[%s0 + $0x1f3] sm:$0xff]
    %v334 = vld [vmem:[%s0 + $0x1fb] sm:$0xff]
    %v335 = vld [vmem:[%s0 + $0x203] sm:$0xff]
    %v336 = vld [vmem:[%s0 + $0x20b] sm:$0xff]
    %v337 = vld [vmem:[%s0 + $0x213] sm:$0xff]
    %v338 = vld [vmem:[%s0 + $0x21b] sm:$0xff]
    %v339 = vld [vmem:[%s0 + $0x223] sm:$0xff]
    %v340 = vld [vmem:[%s0 + $0x22b] sm:$0xff]
    %v341 = vld [vmem:[%s0 + $0x233] sm:$0xff]
    %v342 = vld [vmem:[%s0 + $0x23b] sm:$0xff]
    %v343 = vld [vmem:[%s0 + $0x243] sm:$0xff]
    %v344 = vld [vmem:[%s0 + $0x24b] sm:$0xff]
    %v345 = vld [vmem:[%s0 + $0x253] sm:$0xff]
    %v346 = vld [vmem:[%s0 + $0x25b] sm:$0xff]
    %v347 = vld [vmem:[%s0 + $0x263] sm:$0xff]
    %v348 = vld [vmem:[%s0 + $0x26b] sm:$0xff]
    %v349 = vld [vmem:[%s0 + $0x273] sm:$0xff]
    %v350 = vld [vmem:[%s0 + $0x27b] sm:$0xff]
    %v351 = vld [vmem:[%s0 + $0x283] sm:$0xff]
    %v352 = vld [vmem:[%s0 + $0x28b] sm:$0xff]
    %v353 = vld [vmem:[%s0 + $0x293] sm:$0xff]
    %v354 = vld [vmem:[%s0 + $0x14] sm:$0xff]
    %v355 = vld [vmem:[%s0 + $0x1c] sm:$0xff]
    %v356 = vld [vmem:[%s0 + $0x24] sm:$0xff]
    %v357 = vld [vmem:[%s0 + $0x2c] sm:$0xff]
    %v358 = vld [vmem:[%s0 + $0x34] sm:$0xff]
    %v359 = vld [vmem:[%s0 + $0x3c] sm:$0xff]
    %v360 = vld [vmem:[%s0 + $0x44] sm:$0xff]
    %v361 = vld [vmem:[%s0 + $0x4c] sm:$0xff]
    %v362 = vld [vmem:[%s0 + $0x54] sm:$0xff]
    %v363 = vld [vmem:[%s0 + $0x5c] sm:$0xff]
    %v364 = vld [vmem:[%s0 + $0x64] sm:$0xff]
    %v365 = vld [vmem:[%s0 + $0x6c] sm:$0xff]
    %v366 = vld [vmem:[%s0 + $0x74] sm:$0xff]
    %v367 = vld [vmem:[%s0 + $0x7c] sm:$0xff]
    %v368 = vld [vmem:[%s0 + $0x84] sm:$0xff]
    %v369 = vld [vmem:[%s0 + $0x8c] sm:$0xff]
    %v370 = vld [vmem:[%s0 + $0x94] sm:$0xff]
    %v371 = vld [vmem:[%s0 + $0x9c] sm:$0xff]
    %v372 = vld [vmem:[%s0 + $0xa4] sm:$0xff]
    %v373 = vld [vmem:[%s0 + $0xac] sm:$0xff]
    %v374 = vld [vmem:[%s0 + $0xb4] sm:$0xff]
    %v375 = vld [vmem:[%s0 + $0xbc] sm:$0xff]
    %v376 = vld [vmem:[%s0 + $0xc4] sm:$0xff]
    %v377 = vld [vmem:[%s0 + $0xcc] sm:$0xff]
    %v378 = vld [vmem:[%s0 + $0xd4] sm:$0xff]
    %v379 = vld [vmem:[%s0 + $0xdc] sm:$0xff]
    %v380 = vld [vmem:[%s0 + $0xe4] sm:$0xff]
    %v381 = vld [vmem:[%s0 + $0xec] sm:$0xff]
    %v382 = vld [vmem:[%s0 + $0xf4] sm:$0xff]
    %v383 = vld [vmem:[%s0 + $0xfc] sm:$0xff]
    %v384 = vld [vmem:[%s0 + $0x104] sm:$0xff]
    %v385 = vld [vmem:[%s0 + $0x10c] sm:$0xff]
    %v386 = vld [vmem:[%s0 + $0x114] sm:$0xff]
    %v387 = vld [vmem:[%s0 + $0x11c] sm:$0xff]
    %v388 = vld [vmem:[%s0 + $0x124] sm:$0xff]
    %v389 = vld [vmem:[%s0 + $0x12c] sm:$0xff]
    %v390 = vld [vmem:[%s0 + $0x134] sm:$0xff]
    %v391 = vld [vmem:[%s0 + $0x13c] sm:$0xff]
    %v392 = vld [vmem:[%s0 + $0x144] sm:$0xff]
    %v393 = vld [vmem:[%s0 + $0x14c] sm:$0xff]
    %v394 = vld [vmem:[%s0 + $0x154] sm:$0xff]
    %v395 = vld [vmem:[%s0 + $0x15c] sm:$0xff]
    %v396 = vld [vmem:[%s0 + $0x164] sm:$0xff]
    %v397 = vld [vmem:[%s0 + $0x16c] sm:$0xff]
    %v398 = vld [vmem:[%s0 + $0x174] sm:$0xff]
    %v399 = vld [vmem:[%s0 + $0x17c] sm:$0xff]
    %v400 = vld [vmem:[%s0 + $0x184] sm:$0xff]
    %v401 = vld [vmem:[%s0 + $0x18c] sm:$0xff]
    %v402 = vld [vmem:[%s0 + $0x194] sm:$0xff]
    %v403 = vld [vmem:[%s0 + $0x19c] sm:$0xff]
    %v404 = vld [vmem:[%s0 + $0x1a4] sm:$0xff]
    %v405 = vld [vmem:[%s0 + $0x1ac] sm:$0xff]
    %v406 = vld [vmem:[%s0 + $0x1b4] sm:$0xff]
    %v407 = vld [vmem:[%s0 + $0x1bc] sm:$0xff]
    %v408 = vld [vmem:[%s0 + $0x1c4] sm:$0xff]
    %v409 = vld [vmem:[%s0 + $0x1cc] sm:$0xff]
    %v410 = vld [vmem:[%s0 + $0x1d4] sm:$0xff]
    %v411 = vld [vmem:[%s0 + $0x1dc] sm:$0xff]
    %v412 = vld [vmem:[%s0 + $0x1e4] sm:$0xff]
    %v413 = vld [vmem:[%s0 + $0x1ec] sm:$0xff]
    %v414 = vld [vmem:[%s0 + $0x1f4] sm:$0xff]
    %v415 = vld [vmem:[%s0 + $0x1fc] sm:$0xff]
    %v416 = vld [vmem:[%s0 + $0x204] sm:$0xff]
    %v417 = vld [vmem:[%s0 + $0x20c] sm:$0xff]
    %v418 = vld [vmem:[%s0 + $0x214] sm:$0xff]
    %v419 = vld [vmem:[%s0 + $0x21c] sm:$0xff]
    %v420 = vld [vmem:[%s0 + $0x224] sm:$0xff]
    %v421 = vld [vmem:[%s0 + $0x22c] sm:$0xff]
    %v422 = vld [vmem:[%s0 + $0x234] sm:$0xff]
    %v423 = vld [vmem:[%s0 + $0x23c] sm:$0xff]
    %v424 = vld [vmem:[%s0 + $0x244] sm:$0xff]
    %v425 = vld [vmem:[%s0 + $0x24c] sm:$0xff]
    %v426 = vld [vmem:[%s0 + $0x254] sm:$0xff]
    %v427 = vld [vmem:[%s0 + $0x25c] sm:$0xff]
    %v428 = vld [vmem:[%s0 + $0x264] sm:$0xff]
    %v429 = vld [vmem:[%s0 + $0x26c] sm:$0xff]
    %v430 = vld [vmem:[%s0 + $0x274] sm:$0xff]
    %v431 = vld [vmem:[%s0 + $0x27c] sm:$0xff]
    %v432 = vld [vmem:[%s0 + $0x284] sm:$0xff]
    %v433 = vld [vmem:[%s0 + $0x28c] sm:$0xff]
    %v434 = vld [vmem:[%s0 + $0x294] sm:$0xff]
    %v435 = vld [vmem:[%s0 + $0x29c] sm:$0xff]
    %v436 = vld [vmem:[%s0 + $0x2a4] sm:$0xff]
    %v437 = vld [vmem:[%s0 + $0x25] sm:$0xff]
    %v438 = vld [vmem:[%s0 + $0x2d] sm:$0xff]
    %v439 = vld [vmem:[%s0 + $0x35] sm:$0xff]
    %v440 = vld [vmem:[%s0 + $0x3d] sm:$0xff]
    %v441 = vld [vmem:[%s0 + $0x45] sm:$0xff]
    %v442 = vld [vmem:[%s0 + $0x4d] sm:$0xff]
    %v443 = vld [vmem:[%s0 + $0x55] sm:$0xff]
    %v444 = vld [vmem:[%s0 + $0x5d] sm:$0xff]
    %v445 = vld [vmem:[%s0 + $0x65] sm:$0xff]
    %v446 = vld [vmem:[%s0 + $0x6d] sm:$0xff]
    %v447 = vld [vmem:[%s0 + $0x75] sm:$0xff]
    %v448 = vld [vmem:[%s0 + $0x7d] sm:$0xff]
    %v449 = vld [vmem:[%s0 + $0x85] sm:$0xff]
    %v450 = vld [vmem:[%s0 + $0x8d] sm:$0xff]
    %v451 = vld [vmem:[%s0 + $0x95] sm:$0xff]
    %v452 = vld [vmem:[%s0 + $0x9d] sm:$0xff]
    %v453 = vld [vmem:[%s0 + $0xa5] sm:$0xff]
    %v454 = vld [vmem:[%s0 + $0xad] sm:$0xff]
    %v455 = vld [vmem:[%s0 + $0xb5] sm:$0xff]
    %v456 = vld [vmem:[%s0 + $0xbd] sm:$0xff]
    %v457 = vld [vmem:[%s0 + $0xc5] sm:$0xff]
    %v458 = vld [vmem:[%s0 + $0xcd] sm:$0xff]
    %v459 = vld [vmem:[%s0 + $0xd5] sm:$0xff]
    %v460 = vld [vmem:[%s0 + $0xdd] sm:$0xff]
    %v461 = vld [vmem:[%s0 + $0xe5] sm:$0xff]
    %v462 = vld [vmem:[%s0 + $0xed] sm:$0xff]
    %v463 = vld [vmem:[%s0 + $0xf5] sm:$0xff]
    %v464 = vld [vmem:[%s0 + $0xfd] sm:$0xff]
    %v465 = vld [vmem:[%s0 + $0x105] sm:$0xff]
    %v466 = vld [vmem:[%s0 + $0x10d] sm:$0xff]
    %v467 = vld [vmem:[%s0 + $0x115] sm:$0xff]
    %v468 = vld [vmem:[%s0 + $0x11d] sm:$0xff]
    %v469 = vld [vmem:[%s0 + $0x125] sm:$0xff]
    %v470 = vld [vmem:[%s0 + $0x12d] sm:$0xff]
    %v471 = vld [vmem:[%s0 + $0x135] sm:$0xff]
    %v472 = vld [vmem:[%s0 + $0x13d] sm:$0xff]
    %v473 = vld [vmem:[%s0 + $0x145] sm:$0xff]
    %v474 = vld [vmem:[%s0 + $0x14d] sm:$0xff]
    %v475 = vld [vmem:[%s0 + $0x155] sm:$0xff]
    %v476 = vld [vmem:[%s0 + $0x15d] sm:$0xff]
    %v477 = vld [vmem:[%s0 + $0x165] sm:$0xff]
    %v478 = vld [vmem:[%s0 + $0x16d] sm:$0xff]
    %v479 = vld [vmem:[%s0 + $0x175] sm:$0xff]
    %v480 = vld [vmem:[%s0 + $0x17d] sm:$0xff]
    %v481 = vld [vmem:[%s0 + $0x185] sm:$0xff]
    %v482 = vld [vmem:[%s0 + $0x18d] sm:$0xff]
    %v483 = vld [vmem:[%s0 + $0x195] sm:$0xff]
    %v484 = vld [vmem:[%s0 + $0x19d] sm:$0xff]
    %v485 = vld [vmem:[%s0 + $0x1a5] sm:$0xff]
    %v486 = vld [vmem:[%s0 + $0x1ad] sm:$0xff]
    %v487 = vld [vmem:[%s0 + $0x1b5] sm:$0xff]
    %v488 = vld [vmem:[%s0 + $0x1bd] sm:$0xff]
    %v489 = vld [vmem:[%s0 + $0x1c5] sm:$0xff]
    %v490 = vld [vmem:[%s0 + $0x1cd] sm:$0xff]
    %v491 = vld [vmem:[%s0 + $0x1d5] sm:$0xff]
    %v492 = vld [vmem:[%s0 + $0x1dd] sm:$0xff]
    %v493 = vld [vmem:[%s0 + $0x1e5] sm:$0xff]
    %v494 = vld [vmem:[%s0 + $0x1ed] sm:$0xff]
    %v495 = vld [vmem:[%s0 + $0x1f5] sm:$0xff]
    %v496 = vld [vmem:[%s0 + $0x1fd] sm:$0xff]
    %v497 = vld [vmem:[%s0 + $0x205] sm:$0xff]
    %v498 = vld [vmem:[%s0 + $0x20d] sm:$0xff]
    %v499 = vld [vmem:[%s0 + $0x215] sm:$0xff]
    %v500 = vld [vmem:[%s0 + $0x21d] sm:$0xff]
    %v501 = vld [vmem:[%s0 + $0x225] sm:$0xff]
    %v502 = vld [vmem:[%s0 + $0x22d] sm:$0xff]
    %v503 = vld [vmem:[%s0 + $0x235] sm:$0xff]
    %v504 = vld [vmem:[%s0 + $0x23d] sm:$0xff]
    %v505 = vld [vmem:[%s0 + $0x245] sm:$0xff]
    %v506 = vld [vmem:[%s0 + $0x24d] sm:$0xff]
    %v507 = vld [vmem:[%s0 + $0x255] sm:$0xff]
    %v508 = vld [vmem:[%s0 + $0x25d] sm:$0xff]
    %v509 = vld [vmem:[%s0 + $0x265] sm:$0xff]
    %v510 = vld [vmem:[%s0 + $0x26d] sm:$0xff]
    %v511 = vld [vmem:[%s0 + $0x275] sm:$0xff]
    %v512 = vld [vmem:[%s0 + $0x27d] sm:$0xff]
    %v513 = vld [vmem:[%s0 + $0x285] sm:$0xff]
    %v514 = vld [vmem:[%s0 + $0x28d] sm:$0xff]
    %v515 = vld [vmem:[%s0 + $0x295] sm:$0xff]
    %v516 = vld [vmem:[%s0 + $0x29d] sm:$0xff]
    %v517 = vld [vmem:[%s0 + $0x2a5] sm:$0xff]
    %v518 = vld [vmem:[%s0 + $0x26] sm:$0xff]
    %v519 = vld [vmem:[%s0 + $0x2e] sm:$0xff]
    %v520 = vld [vmem:[%s0 + $0x36] sm:$0xff]
    %v521 = vld [vmem:[%s0 + $0x3e] sm:$0xff]
    %v522 = vld [vmem:[%s0 + $0x46] sm:$0xff]
    %v523 = vld [vmem:[%s0 + $0x4e] sm:$0xff]
    %v524 = vld [vmem:[%s0 + $0x56] sm:$0xff]
    %v525 = vld [vmem:[%s0 + $0x5e] sm:$0xff]
    %v526 = vld [vmem:[%s0 + $0x66] sm:$0xff]
    %v527 = vld [vmem:[%s0 + $0x6e] sm:$0xff]
    %v528 = vld [vmem:[%s0 + $0x76] sm:$0xff]
    %v529 = vld [vmem:[%s0 + $0x7e] sm:$0xff]
    %v530 = vld [vmem:[%s0 + $0x86] sm:$0xff]
    %v531 = vld [vmem:[%s0 + $0x8e] sm:$0xff]
    %v532 = vld [vmem:[%s0 + $0x96] sm:$0xff]
    %v533 = vld [vmem:[%s0 + $0x9e] sm:$0xff]
    %v534 = vld [vmem:[%s0 + $0xa6] sm:$0xff]
    %v535 = vld [vmem:[%s0 + $0xae] sm:$0xff]
    %v536 = vld [vmem:[%s0 + $0xb6] sm:$0xff]
    %v537 = vld [vmem:[%s0 + $0xbe] sm:$0xff]
    %v538 = vld [vmem:[%s0 + $0xc6] sm:$0xff]
    %v539 = vld [vmem:[%s0 + $0xce] sm:$0xff]
    %v540 = vld [vmem:[%s0 + $0xd6] sm:$0xff]
    %v541 = vld [vmem:[%s0 + $0xde] sm:$0xff]
    %v542 = vld [vmem:[%s0 + $0xe6] sm:$0xff]
    %v543 = vld [vmem:[%s0 + $0xee] sm:$0xff]
    %v544 = vld [vmem:[%s0 + $0xf6] sm:$0xff]
    %v545 = vld [vmem:[%s0 + $0xfe] sm:$0xff]
    %v546 = vld [vmem:[%s0 + $0x106] sm:$0xff]
    %v547 = vld [vmem:[%s0 + $0x10e] sm:$0xff]
    %v548 = vld [vmem:[%s0 + $0x116] sm:$0xff]
    %v549 = vld [vmem:[%s0 + $0x11e] sm:$0xff]
    %v550 = vld [vmem:[%s0 + $0x126] sm:$0xff]
    %v551 = vld [vmem:[%s0 + $0x12e] sm:$0xff]
    %v552 = vld [vmem:[%s0 + $0x136] sm:$0xff]
    %v553 = vld [vmem:[%s0 + $0x13e] sm:$0xff]
    %v554 = vld [vmem:[%s0 + $0x146] sm:$0xff]
    %v555 = vld [vmem:[%s0 + $0x14e] sm:$0xff]
    %v556 = vld [vmem:[%s0 + $0x156] sm:$0xff]
    %v557 = vld [vmem:[%s0 + $0x15e] sm:$0xff]
    %v558 = vld [vmem:[%s0 + $0x166] sm:$0xff]
    %v559 = vld [vmem:[%s0 + $0x16e] sm:$0xff]
    %v560 = vld [vmem:[%s0 + $0x176] sm:$0xff]
    %v561 = vld [vmem:[%s0 + $0x17e] sm:$0xff]
    %v562 = vld [vmem:[%s0 + $0x186] sm:$0xff]
    %v563 = vld [vmem:[%s0 + $0x18e] sm:$0xff]
    %v564 = vld [vmem:[%s0 + $0x196] sm:$0xff]
    %v565 = vld [vmem:[%s0 + $0x19e] sm:$0xff]
    %v566 = vld [vmem:[%s0 + $0x1a6] sm:$0xff]
    %v567 = vld [vmem:[%s0 + $0x1ae] sm:$0xff]
    %v568 = vld [vmem:[%s0 + $0x1b6] sm:$0xff]
    %v569 = vld [vmem:[%s0 + $0x1be] sm:$0xff]
    %v570 = vld [vmem:[%s0 + $0x1c6] sm:$0xff]
    %v571 = vld [vmem:[%s0 + $0x1ce] sm:$0xff]
    %v572 = vld [vmem:[%s0 + $0x1d6] sm:$0xff]
    %v573 = vld [vmem:[%s0 + $0x1de] sm:$0xff]
    %v574 = vld [vmem:[%s0 + $0x1e6] sm:$0xff]
    %v575 = vld [vmem:[%s0 + $0x1ee] sm:$0xff]
    %v576 = vld [vmem:[%s0 + $0x1f6] sm:$0xff]
    %v577 = vld [vmem:[%s0 + $0x1fe] sm:$0xff]
    %v578 = vld [vmem:[%s0 + $0x206] sm:$0xff]
    %v579 = vld [vmem:[%s0 + $0x20e] sm:$0xff]
    %v580 = vld [vmem:[%s0 + $0x216] sm:$0xff]
    %v581 = vld [vmem:[%s0 + $0x21e] sm:$0xff]
    %v582 = vld [vmem:[%s0 + $0x226] sm:$0xff]
    %v583 = vld [vmem:[%s0 + $0x22e] sm:$0xff]
    %v584 = vld [vmem:[%s0 + $0x236] sm:$0xff]
    %v585 = vld [vmem:[%s0 + $0x23e] sm:$0xff]
    %v586 = vld [vmem:[%s0 + $0x246] sm:$0xff]
    %v587 = vld [vmem:[%s0 + $0x24e] sm:$0xff]
    %v588 = vld [vmem:[%s0 + $0x256] sm:$0xff]
    %v589 = vld [vmem:[%s0 + $0x25e] sm:$0xff]
    %v590 = vld [vmem:[%s0 + $0x266] sm:$0xff]
    %v591 = vld [vmem:[%s0 + $0x26e] sm:$0xff]
    %v592 = vld [vmem:[%s0 + $0x276] sm:$0xff]
    %v593 = vld [vmem:[%s0 + $0x27e] sm:$0xff]
    %v594 = vld [vmem:[%s0 + $0x286] sm:$0xff]
    %v595 = vld [vmem:[%s0 + $0x28e] sm:$0xff]
    %v596 = vld [vmem:[%s0 + $0x296] sm:$0xff]
    %v597 = vld [vmem:[%s0 + $0x29e] sm:$0xff]
    %v598 = vld [vmem:[%s0 + $0x2a6] sm:$0xff]
    %680 = vrot.lane.b32.xlu0 %v109, 3
    %v681 = vpop.permute.xlu0 %680
    %682 = vrot.lane.b32.xlu0 %v110, 3
    %v683 = vpop.permute.xlu0 %682
    %684 = vrot.lane.b32.xlu0 %v111, 3
    %v685 = vpop.permute.xlu0 %684
    %686 = vrot.lane.b32.xlu0 %v112, 3
    %v687 = vpop.permute.xlu0 %686
    %688 = vrot.lane.b32.xlu0 %v113, 3
    %v689 = vpop.permute.xlu0 %688
    %690 = vrot.lane.b32.xlu0 %v114, 3
    %v691 = vpop.permute.xlu0 %690
    %692 = vrot.lane.b32.xlu0 %v115, 3
    %v693 = vpop.permute.xlu0 %692
    %694 = vrot.lane.b32.xlu0 %v116, 3
    %v695 = vpop.permute.xlu0 %694
    %696 = vrot.lane.b32.xlu0 %v117, 3
    %v697 = vpop.permute.xlu0 %696
    %698 = vrot.lane.b32.xlu0 %v118, 3
    %v699 = vpop.permute.xlu0 %698
    %700 = vrot.lane.b32.xlu0 %v119, 3
    %v701 = vpop.permute.xlu0 %700
    %702 = vrot.lane.b32.xlu0 %v120, 3
    %v703 = vpop.permute.xlu0 %702
    %704 = vrot.lane.b32.xlu0 %v121, 3
    %v705 = vpop.permute.xlu0 %704
    %706 = vrot.lane.b32.xlu0 %v122, 3
    %v707 = vpop.permute.xlu0 %706
    %708 = vrot.lane.b32.xlu0 %v123, 3
    %v709 = vpop.permute.xlu0 %708
    %710 = vrot.lane.b32.xlu0 %v124, 3
    %v711 = vpop.permute.xlu0 %710
    %712 = vrot.lane.b32.xlu0 %v125, 3
    %v713 = vpop.permute.xlu0 %712
    %714 = vrot.lane.b32.xlu0 %v126, 3
    %v715 = vpop.permute.xlu0 %714
    %716 = vrot.lane.b32.xlu0 %v127, 3
    %v717 = vpop.permute.xlu0 %716
    %718 = vrot.lane.b32.xlu0 %v128, 3
    %v719 = vpop.permute.xlu0 %718
    %720 = vrot.lane.b32.xlu0 %v129, 3
    %v721 = vpop.permute.xlu0 %720
    %722 = vrot.lane.b32.xlu0 %v130, 3
    %v723 = vpop.permute.xlu0 %722
    %724 = vrot.lane.b32.xlu0 %v131, 3
    %v725 = vpop.permute.xlu0 %724
    %726 = vrot.lane.b32.xlu0 %v132, 3
    %v727 = vpop.permute.xlu0 %726
    %728 = vrot.lane.b32.xlu0 %v133, 3
    %v729 = vpop.permute.xlu0 %728
    %730 = vrot.lane.b32.xlu0 %v134, 3
    %v731 = vpop.permute.xlu0 %730
    %732 = vrot.lane.b32.xlu0 %v135, 3
    %v733 = vpop.permute.xlu0 %732
    %734 = vrot.lane.b32.xlu0 %v136, 3
    %v735 = vpop.permute.xlu0 %734
    %736 = vrot.lane.b32.xlu0 %v137, 3
    %v737 = vpop.permute.xlu0 %736
    %738 = vrot.lane.b32.xlu0 %v138, 3
    %v739 = vpop.permute.xlu0 %738
    %740 = vrot.lane.b32.xlu0 %v139, 3
    %v741 = vpop.permute.xlu0 %740
    %742 = vrot.lane.b32.xlu0 %v140, 3
    %v743 = vpop.permute.xlu0 %742
    %744 = vrot.lane.b32.xlu0 %v141, 3
    %v745 = vpop.permute.xlu0 %744
    %746 = vrot.lane.b32.xlu0 %v142, 3
    %v747 = vpop.permute.xlu0 %746
    %748 = vrot.lane.b32.xlu0 %v143, 3
    %v749 = vpop.permute.xlu0 %748
    %750 = vrot.lane.b32.xlu0 %v144, 3
    %v751 = vpop.permute.xlu0 %750
    %752 = vrot.lane.b32.xlu0 %v145, 3
    %v753 = vpop.permute.xlu0 %752
    %754 = vrot.lane.b32.xlu0 %v146, 3
    %v755 = vpop.permute.xlu0 %754
    %756 = vrot.lane.b32.xlu0 %v147, 3
    %v757 = vpop.permute.xlu0 %756
    %758 = vrot.lane.b32.xlu0 %v148, 3
    %v759 = vpop.permute.xlu0 %758
    %760 = vrot.lane.b32.xlu0 %v149, 3
    %v761 = vpop.permute.xlu0 %760
    %762 = vrot.lane.b32.xlu0 %v150, 3
    %v763 = vpop.permute.xlu0 %762
    %764 = vrot.lane.b32.xlu0 %v151, 3
    %v765 = vpop.permute.xlu0 %764
    %766 = vrot.lane.b32.xlu0 %v152, 3
    %v767 = vpop.permute.xlu0 %766
    %768 = vrot.lane.b32.xlu0 %v153, 3
    %v769 = vpop.permute.xlu0 %768
    %770 = vrot.lane.b32.xlu0 %v154, 3
    %v771 = vpop.permute.xlu0 %770
    %772 = vrot.lane.b32.xlu0 %v155, 3
    %v773 = vpop.permute.xlu0 %772
    %774 = vrot.lane.b32.xlu0 %v156, 3
    %v775 = vpop.permute.xlu0 %774
    %776 = vrot.lane.b32.xlu0 %v157, 3
    %v777 = vpop.permute.xlu0 %776
    %778 = vrot.lane.b32.xlu0 %v158, 3
    %v779 = vpop.permute.xlu0 %778
    %780 = vrot.lane.b32.xlu0 %v159, 3
    %v781 = vpop.permute.xlu0 %780
    %782 = vrot.lane.b32.xlu0 %v160, 3
    %v783 = vpop.permute.xlu0 %782
    %784 = vrot.lane.b32.xlu0 %v161, 3
    %v785 = vpop.permute.xlu0 %784
    %786 = vrot.lane.b32.xlu0 %v162, 3
    %v787 = vpop.permute.xlu0 %786
    %788 = vrot.lane.b32.xlu0 %v163, 3
    %v789 = vpop.permute.xlu0 %788
    %790 = vrot.lane.b32.xlu0 %v164, 3
    %v791 = vpop.permute.xlu0 %790
    %792 = vrot.lane.b32.xlu0 %v165, 3
    %v793 = vpop.permute.xlu0 %792
    %794 = vrot.lane.b32.xlu0 %v166, 3
    %v795 = vpop.permute.xlu0 %794
    %796 = vrot.lane.b32.xlu0 %v167, 3
    %v797 = vpop.permute.xlu0 %796
    %798 = vrot.lane.b32.xlu0 %v168, 3
    %v799 = vpop.permute.xlu0 %798
    %800 = vrot.lane.b32.xlu0 %v169, 3
    %v801 = vpop.permute.xlu0 %800
    %802 = vrot.lane.b32.xlu0 %v170, 3
    %v803 = vpop.permute.xlu0 %802
    %804 = vrot.lane.b32.xlu0 %v171, 3
    %v805 = vpop.permute.xlu0 %804
    %806 = vrot.lane.b32.xlu0 %v172, 3
    %v807 = vpop.permute.xlu0 %806
    %808 = vrot.lane.b32.xlu0 %v173, 3
    %v809 = vpop.permute.xlu0 %808
    %810 = vrot.lane.b32.xlu0 %v174, 3
    %v811 = vpop.permute.xlu0 %810
    %812 = vrot.lane.b32.xlu0 %v175, 3
    %v813 = vpop.permute.xlu0 %812
    %814 = vrot.lane.b32.xlu0 %v176, 3
    %v815 = vpop.permute.xlu0 %814
    %816 = vrot.lane.b32.xlu0 %v177, 3
    %v817 = vpop.permute.xlu0 %816
    %818 = vrot.lane.b32.xlu0 %v178, 3
    %v819 = vpop.permute.xlu0 %818
    %820 = vrot.lane.b32.xlu0 %v179, 3
    %v821 = vpop.permute.xlu0 %820
    %822 = vrot.lane.b32.xlu0 %v180, 3
    %v823 = vpop.permute.xlu0 %822
    %824 = vrot.lane.b32.xlu0 %v181, 3
    %v825 = vpop.permute.xlu0 %824
    %826 = vrot.lane.b32.xlu0 %v182, 3
    %v827 = vpop.permute.xlu0 %826
    %828 = vrot.lane.b32.xlu0 %v183, 3
    %v829 = vpop.permute.xlu0 %828
    %830 = vrot.lane.b32.xlu0 %v184, 3
    %v831 = vpop.permute.xlu0 %830
    %832 = vrot.lane.b32.xlu0 %v185, 3
    %v833 = vpop.permute.xlu0 %832
    %834 = vrot.lane.b32.xlu0 %v186, 3
    %v835 = vpop.permute.xlu0 %834
    %836 = vrot.lane.b32.xlu0 %v187, 3
    %v837 = vpop.permute.xlu0 %836
    %838 = vrot.lane.b32.xlu0 %v188, 3
    %v839 = vpop.permute.xlu0 %838
    %840 = vrot.lane.b32.xlu0 %v189, 3
    %v841 = vpop.permute.xlu0 %840
    %1004 = vrot.lane.b32.xlu0 %v190, 6
    %v1005 = vpop.permute.xlu0 %1004
    %1006 = vrot.lane.b32.xlu0 %v191, 6
    %v1007 = vpop.permute.xlu0 %1006
    %1008 = vrot.lane.b32.xlu0 %v192, 6
    %v1009 = vpop.permute.xlu0 %1008
    %1010 = vrot.lane.b32.xlu0 %v193, 6
    %v1011 = vpop.permute.xlu0 %1010
    %1012 = vrot.lane.b32.xlu0 %v194, 6
    %v1013 = vpop.permute.xlu0 %1012
    %1014 = vrot.lane.b32.xlu0 %v195, 6
    %v1015 = vpop.permute.xlu0 %1014
    %1016 = vrot.lane.b32.xlu0 %v196, 6
    %v1017 = vpop.permute.xlu0 %1016
    %1018 = vrot.lane.b32.xlu0 %v197, 6
    %v1019 = vpop.permute.xlu0 %1018
    %1020 = vrot.lane.b32.xlu0 %v198, 6
    %v1021 = vpop.permute.xlu0 %1020
    %1022 = vrot.lane.b32.xlu0 %v199, 6
    %v1023 = vpop.permute.xlu0 %1022
    %1024 = vrot.lane.b32.xlu0 %v200, 6
    %v1025 = vpop.permute.xlu0 %1024
    %1026 = vrot.lane.b32.xlu0 %v201, 6
    %v1027 = vpop.permute.xlu0 %1026
    %1028 = vrot.lane.b32.xlu0 %v202, 6
    %v1029 = vpop.permute.xlu0 %1028
    %1030 = vrot.lane.b32.xlu0 %v203, 6
    %v1031 = vpop.permute.xlu0 %1030
    %1032 = vrot.lane.b32.xlu0 %v204, 6
    %v1033 = vpop.permute.xlu0 %1032
    %1034 = vrot.lane.b32.xlu0 %v205, 6
    %v1035 = vpop.permute.xlu0 %1034
    %1036 = vrot.lane.b32.xlu0 %v206, 6
    %v1037 = vpop.permute.xlu0 %1036
    %1038 = vrot.lane.b32.xlu0 %v207, 6
    %v1039 = vpop.permute.xlu0 %1038
    %1040 = vrot.lane.b32.xlu0 %v208, 6
    %v1041 = vpop.permute.xlu0 %1040
    %1042 = vrot.lane.b32.xlu0 %v209, 6
    %v1043 = vpop.permute.xlu0 %1042
    %1044 = vrot.lane.b32.xlu0 %v210, 6
    %v1045 = vpop.permute.xlu0 %1044
    %1046 = vrot.lane.b32.xlu0 %v211, 6
    %v1047 = vpop.permute.xlu0 %1046
    %1048 = vrot.lane.b32.xlu0 %v212, 6
    %v1049 = vpop.permute.xlu0 %1048
    %1050 = vrot.lane.b32.xlu0 %v213, 6
    %v1051 = vpop.permute.xlu0 %1050
    %1052 = vrot.lane.b32.xlu0 %v214, 6
    %v1053 = vpop.permute.xlu0 %1052
    %1054 = vrot.lane.b32.xlu0 %v215, 6
    %v1055 = vpop.permute.xlu0 %1054
    %1056 = vrot.lane.b32.xlu0 %v216, 6
    %v1057 = vpop.permute.xlu0 %1056
    %1058 = vrot.lane.b32.xlu0 %v217, 6
    %v1059 = vpop.permute.xlu0 %1058
    %1060 = vrot.lane.b32.xlu0 %v218, 6
    %v1061 = vpop.permute.xlu0 %1060
    %1062 = vrot.lane.b32.xlu0 %v219, 6
    %v1063 = vpop.permute.xlu0 %1062
    %1064 = vrot.lane.b32.xlu0 %v220, 6
    %v1065 = vpop.permute.xlu0 %1064
    %1066 = vrot.lane.b32.xlu0 %v221, 6
    %v1067 = vpop.permute.xlu0 %1066
    %1068 = vrot.lane.b32.xlu0 %v222, 6
    %v1069 = vpop.permute.xlu0 %1068
    %1070 = vrot.lane.b32.xlu0 %v223, 6
    %v1071 = vpop.permute.xlu0 %1070
    %1072 = vrot.lane.b32.xlu0 %v224, 6
    %v1073 = vpop.permute.xlu0 %1072
    %1074 = vrot.lane.b32.xlu0 %v225, 6
    %v1075 = vpop.permute.xlu0 %1074
    %1076 = vrot.lane.b32.xlu0 %v226, 6
    %v1077 = vpop.permute.xlu0 %1076
    %1078 = vrot.lane.b32.xlu0 %v227, 6
    %v1079 = vpop.permute.xlu0 %1078
    %1080 = vrot.lane.b32.xlu0 %v228, 6
    %v1081 = vpop.permute.xlu0 %1080
    %1082 = vrot.lane.b32.xlu0 %v229, 6
    %v1083 = vpop.permute.xlu0 %1082
    %1084 = vrot.lane.b32.xlu0 %v230, 6
    %v1085 = vpop.permute.xlu0 %1084
    %1086 = vrot.lane.b32.xlu0 %v231, 6
    %v1087 = vpop.permute.xlu0 %1086
    %1088 = vrot.lane.b32.xlu0 %v232, 6
    %v1089 = vpop.permute.xlu0 %1088
    %1090 = vrot.lane.b32.xlu0 %v233, 6
    %v1091 = vpop.permute.xlu0 %1090
    %1092 = vrot.lane.b32.xlu0 %v234, 6
    %v1093 = vpop.permute.xlu0 %1092
    %1094 = vrot.lane.b32.xlu0 %v235, 6
    %v1095 = vpop.permute.xlu0 %1094
    %1096 = vrot.lane.b32.xlu0 %v236, 6
    %v1097 = vpop.permute.xlu0 %1096
    %1098 = vrot.lane.b32.xlu0 %v237, 6
    %v1099 = vpop.permute.xlu0 %1098
    %1100 = vrot.lane.b32.xlu0 %v238, 6
    %v1101 = vpop.permute.xlu0 %1100
    %1102 = vrot.lane.b32.xlu0 %v239, 6
    %v1103 = vpop.permute.xlu0 %1102
    %1104 = vrot.lane.b32.xlu0 %v240, 6
    %v1105 = vpop.permute.xlu0 %1104
    %1106 = vrot.lane.b32.xlu0 %v241, 6
    %v1107 = vpop.permute.xlu0 %1106
    %1108 = vrot.lane.b32.xlu0 %v242, 6
    %v1109 = vpop.permute.xlu0 %1108
    %1110 = vrot.lane.b32.xlu0 %v243, 6
    %v1111 = vpop.permute.xlu0 %1110
    %1112 = vrot.lane.b32.xlu0 %v244, 6
    %v1113 = vpop.permute.xlu0 %1112
    %1114 = vrot.lane.b32.xlu0 %v245, 6
    %v1115 = vpop.permute.xlu0 %1114
    %1116 = vrot.lane.b32.xlu0 %v246, 6
    %v1117 = vpop.permute.xlu0 %1116
    %1118 = vrot.lane.b32.xlu0 %v247, 6
    %v1119 = vpop.permute.xlu0 %1118
    %1120 = vrot.lane.b32.xlu0 %v248, 6
    %v1121 = vpop.permute.xlu0 %1120
    %1122 = vrot.lane.b32.xlu0 %v249, 6
    %v1123 = vpop.permute.xlu0 %1122
    %1124 = vrot.lane.b32.xlu0 %v250, 6
    %v1125 = vpop.permute.xlu0 %1124
    %1126 = vrot.lane.b32.xlu0 %v251, 6
    %v1127 = vpop.permute.xlu0 %1126
    %1128 = vrot.lane.b32.xlu0 %v252, 6
    %v1129 = vpop.permute.xlu0 %1128
    %1130 = vrot.lane.b32.xlu0 %v253, 6
    %v1131 = vpop.permute.xlu0 %1130
    %1132 = vrot.lane.b32.xlu0 %v254, 6
    %v1133 = vpop.permute.xlu0 %1132
    %1134 = vrot.lane.b32.xlu0 %v255, 6
    %v1135 = vpop.permute.xlu0 %1134
    %1136 = vrot.lane.b32.xlu0 %v256, 6
    %v1137 = vpop.permute.xlu0 %1136
    %1138 = vrot.lane.b32.xlu0 %v257, 6
    %v1139 = vpop.permute.xlu0 %1138
    %1140 = vrot.lane.b32.xlu0 %v258, 6
    %v1141 = vpop.permute.xlu0 %1140
    %1142 = vrot.lane.b32.xlu0 %v259, 6
    %v1143 = vpop.permute.xlu0 %1142
    %1144 = vrot.lane.b32.xlu0 %v260, 6
    %v1145 = vpop.permute.xlu0 %1144
    %1146 = vrot.lane.b32.xlu0 %v261, 6
    %v1147 = vpop.permute.xlu0 %1146
    %1148 = vrot.lane.b32.xlu0 %v262, 6
    %v1149 = vpop.permute.xlu0 %1148
    %1150 = vrot.lane.b32.xlu0 %v263, 6
    %v1151 = vpop.permute.xlu0 %1150
    %1152 = vrot.lane.b32.xlu0 %v264, 6
    %v1153 = vpop.permute.xlu0 %1152
    %1154 = vrot.lane.b32.xlu0 %v265, 6
    %v1155 = vpop.permute.xlu0 %1154
    %1156 = vrot.lane.b32.xlu0 %v266, 6
    %v1157 = vpop.permute.xlu0 %1156
    %1158 = vrot.lane.b32.xlu0 %v267, 6
    %v1159 = vpop.permute.xlu0 %1158
    %1160 = vrot.lane.b32.xlu0 %v268, 6
    %v1161 = vpop.permute.xlu0 %1160
    %1162 = vrot.lane.b32.xlu0 %v269, 6
    %v1163 = vpop.permute.xlu0 %1162
    %1164 = vrot.lane.b32.xlu0 %v270, 6
    %v1165 = vpop.permute.xlu0 %1164
    %1249 = vrot.lane.b32.xlu0 %v192, 9
    %v1250 = vpop.permute.xlu0 %1249
    %1251 = vrot.lane.b32.xlu0 %v193, 9
    %v1252 = vpop.permute.xlu0 %1251
    %1253 = vrot.lane.b32.xlu0 %v194, 9
    %v1254 = vpop.permute.xlu0 %1253
    %1255 = vrot.lane.b32.xlu0 %v195, 9
    %v1256 = vpop.permute.xlu0 %1255
    %1257 = vrot.lane.b32.xlu0 %v196, 9
    %v1258 = vpop.permute.xlu0 %1257
    %1259 = vrot.lane.b32.xlu0 %v197, 9
    %v1260 = vpop.permute.xlu0 %1259
    %1261 = vrot.lane.b32.xlu0 %v198, 9
    %v1262 = vpop.permute.xlu0 %1261
    %1263 = vrot.lane.b32.xlu0 %v199, 9
    %v1264 = vpop.permute.xlu0 %1263
    %1265 = vrot.lane.b32.xlu0 %v200, 9
    %v1266 = vpop.permute.xlu0 %1265
    %1267 = vrot.lane.b32.xlu0 %v201, 9
    %v1268 = vpop.permute.xlu0 %1267
    %1269 = vrot.lane.b32.xlu0 %v202, 9
    %v1270 = vpop.permute.xlu0 %1269
    %1271 = vrot.lane.b32.xlu0 %v203, 9
    %v1272 = vpop.permute.xlu0 %1271
    %1273 = vrot.lane.b32.xlu0 %v204, 9
    %v1274 = vpop.permute.xlu0 %1273
    %1275 = vrot.lane.b32.xlu0 %v205, 9
    %v1276 = vpop.permute.xlu0 %1275
    %1277 = vrot.lane.b32.xlu0 %v206, 9
    %v1278 = vpop.permute.xlu0 %1277
    %1279 = vrot.lane.b32.xlu0 %v207, 9
    %v1280 = vpop.permute.xlu0 %1279
    %1281 = vrot.lane.b32.xlu0 %v208, 9
    %v1282 = vpop.permute.xlu0 %1281
    %1283 = vrot.lane.b32.xlu0 %v209, 9
    %v1284 = vpop.permute.xlu0 %1283
    %1285 = vrot.lane.b32.xlu0 %v210, 9
    %v1286 = vpop.permute.xlu0 %1285
    %1287 = vrot.lane.b32.xlu0 %v211, 9
    %v1288 = vpop.permute.xlu0 %1287
    %1289 = vrot.lane.b32.xlu0 %v212, 9
    %v1290 = vpop.permute.xlu0 %1289
    %1291 = vrot.lane.b32.xlu0 %v213, 9
    %v1292 = vpop.permute.xlu0 %1291
    %1293 = vrot.lane.b32.xlu0 %v214, 9
    %v1294 = vpop.permute.xlu0 %1293
    %1295 = vrot.lane.b32.xlu0 %v215, 9
    %v1296 = vpop.permute.xlu0 %1295
    %1297 = vrot.lane.b32.xlu0 %v216, 9
    %v1298 = vpop.permute.xlu0 %1297
    %1299 = vrot.lane.b32.xlu0 %v217, 9
    %v1300 = vpop.permute.xlu0 %1299
    %1301 = vrot.lane.b32.xlu0 %v218, 9
    %v1302 = vpop.permute.xlu0 %1301
    %1303 = vrot.lane.b32.xlu0 %v219, 9
    %v1304 = vpop.permute.xlu0 %1303
    %1305 = vrot.lane.b32.xlu0 %v220, 9
    %v1306 = vpop.permute.xlu0 %1305
    %1307 = vrot.lane.b32.xlu0 %v221, 9
    %v1308 = vpop.permute.xlu0 %1307
    %1309 = vrot.lane.b32.xlu0 %v222, 9
    %v1310 = vpop.permute.xlu0 %1309
    %1311 = vrot.lane.b32.xlu0 %v223, 9
    %v1312 = vpop.permute.xlu0 %1311
    %1313 = vrot.lane.b32.xlu0 %v224, 9
    %v1314 = vpop.permute.xlu0 %1313
    %1315 = vrot.lane.b32.xlu0 %v225, 9
    %v1316 = vpop.permute.xlu0 %1315
    %1317 = vrot.lane.b32.xlu0 %v226, 9
    %v1318 = vpop.permute.xlu0 %1317
    %1319 = vrot.lane.b32.xlu0 %v227, 9
    %v1320 = vpop.permute.xlu0 %1319
    %1321 = vrot.lane.b32.xlu0 %v228, 9
    %v1322 = vpop.permute.xlu0 %1321
    %1323 = vrot.lane.b32.xlu0 %v229, 9
    %v1324 = vpop.permute.xlu0 %1323
    %1325 = vrot.lane.b32.xlu0 %v230, 9
    %v1326 = vpop.permute.xlu0 %1325
    %1327 = vrot.lane.b32.xlu0 %v231, 9
    %v1328 = vpop.permute.xlu0 %1327
    %1329 = vrot.lane.b32.xlu0 %v232, 9
    %v1330 = vpop.permute.xlu0 %1329
    %1331 = vrot.lane.b32.xlu0 %v233, 9
    %v1332 = vpop.permute.xlu0 %1331
    %1333 = vrot.lane.b32.xlu0 %v234, 9
    %v1334 = vpop.permute.xlu0 %1333
    %1335 = vrot.lane.b32.xlu0 %v235, 9
    %v1336 = vpop.permute.xlu0 %1335
    %1337 = vrot.lane.b32.xlu0 %v236, 9
    %v1338 = vpop.permute.xlu0 %1337
    %1339 = vrot.lane.b32.xlu0 %v237, 9
    %v1340 = vpop.permute.xlu0 %1339
    %1341 = vrot.lane.b32.xlu0 %v238, 9
    %v1342 = vpop.permute.xlu0 %1341
    %1343 = vrot.lane.b32.xlu0 %v239, 9
    %v1344 = vpop.permute.xlu0 %1343
    %1345 = vrot.lane.b32.xlu0 %v240, 9
    %v1346 = vpop.permute.xlu0 %1345
    %1347 = vrot.lane.b32.xlu0 %v241, 9
    %v1348 = vpop.permute.xlu0 %1347
    %1349 = vrot.lane.b32.xlu0 %v242, 9
    %v1350 = vpop.permute.xlu0 %1349
    %1351 = vrot.lane.b32.xlu0 %v243, 9
    %v1352 = vpop.permute.xlu0 %1351
    %1353 = vrot.lane.b32.xlu0 %v244, 9
    %v1354 = vpop.permute.xlu0 %1353
    %1355 = vrot.lane.b32.xlu0 %v245, 9
    %v1356 = vpop.permute.xlu0 %1355
    %1357 = vrot.lane.b32.xlu0 %v246, 9
    %v1358 = vpop.permute.xlu0 %1357
    %1359 = vrot.lane.b32.xlu0 %v247, 9
    %v1360 = vpop.permute.xlu0 %1359
    %1361 = vrot.lane.b32.xlu0 %v248, 9
    %v1362 = vpop.permute.xlu0 %1361
    %1363 = vrot.lane.b32.xlu0 %v249, 9
    %v1364 = vpop.permute.xlu0 %1363
    %1365 = vrot.lane.b32.xlu0 %v250, 9
    %v1366 = vpop.permute.xlu0 %1365
    %1367 = vrot.lane.b32.xlu0 %v251, 9
    %v1368 = vpop.permute.xlu0 %1367
    %1369 = vrot.lane.b32.xlu0 %v252, 9
    %v1370 = vpop.permute.xlu0 %1369
    %1371 = vrot.lane.b32.xlu0 %v253, 9
    %v1372 = vpop.permute.xlu0 %1371
    %1373 = vrot.lane.b32.xlu0 %v254, 9
    %v1374 = vpop.permute.xlu0 %1373
    %1375 = vrot.lane.b32.xlu0 %v255, 9
    %v1376 = vpop.permute.xlu0 %1375
    %1377 = vrot.lane.b32.xlu0 %v256, 9
    %v1378 = vpop.permute.xlu0 %1377
    %1379 = vrot.lane.b32.xlu0 %v257, 9
    %v1380 = vpop.permute.xlu0 %1379
    %1381 = vrot.lane.b32.xlu0 %v258, 9
    %v1382 = vpop.permute.xlu0 %1381
    %1383 = vrot.lane.b32.xlu0 %v259, 9
    %v1384 = vpop.permute.xlu0 %1383
    %1385 = vrot.lane.b32.xlu0 %v260, 9
    %v1386 = vpop.permute.xlu0 %1385
    %1387 = vrot.lane.b32.xlu0 %v261, 9
    %v1388 = vpop.permute.xlu0 %1387
    %1389 = vrot.lane.b32.xlu0 %v262, 9
    %v1390 = vpop.permute.xlu0 %1389
    %1391 = vrot.lane.b32.xlu0 %v263, 9
    %v1392 = vpop.permute.xlu0 %1391
    %1393 = vrot.lane.b32.xlu0 %v264, 9
    %v1394 = vpop.permute.xlu0 %1393
    %1395 = vrot.lane.b32.xlu0 %v265, 9
    %v1396 = vpop.permute.xlu0 %1395
    %1397 = vrot.lane.b32.xlu0 %v266, 9
    %v1398 = vpop.permute.xlu0 %1397
    %1399 = vrot.lane.b32.xlu0 %v267, 9
    %v1400 = vpop.permute.xlu0 %1399
    %1401 = vrot.lane.b32.xlu0 %v268, 9
    %v1402 = vpop.permute.xlu0 %1401
    %1403 = vrot.lane.b32.xlu0 %v269, 9
    %v1404 = vpop.permute.xlu0 %1403
    %1405 = vrot.lane.b32.xlu0 %v270, 9
    %v1406 = vpop.permute.xlu0 %1405
    %1407 = vrot.lane.b32.xlu0 %v271, 9
    %v1408 = vpop.permute.xlu0 %1407
    %1409 = vrot.lane.b32.xlu0 %v272, 9
    %v1410 = vpop.permute.xlu0 %1409
    %1573 = vrot.lane.b32.xlu0 %v273, 12
    %v1574 = vpop.permute.xlu0 %1573
    %1575 = vrot.lane.b32.xlu0 %v274, 12
    %v1576 = vpop.permute.xlu0 %1575
    %1577 = vrot.lane.b32.xlu0 %v275, 12
    %v1578 = vpop.permute.xlu0 %1577
    %1579 = vrot.lane.b32.xlu0 %v276, 12
    %v1580 = vpop.permute.xlu0 %1579
    %1581 = vrot.lane.b32.xlu0 %v277, 12
    %v1582 = vpop.permute.xlu0 %1581
    %1583 = vrot.lane.b32.xlu0 %v278, 12
    %v1584 = vpop.permute.xlu0 %1583
    %1585 = vrot.lane.b32.xlu0 %v279, 12
    %v1586 = vpop.permute.xlu0 %1585
    %1587 = vrot.lane.b32.xlu0 %v280, 12
    %v1588 = vpop.permute.xlu0 %1587
    %1589 = vrot.lane.b32.xlu0 %v281, 12
    %v1590 = vpop.permute.xlu0 %1589
    %1591 = vrot.lane.b32.xlu0 %v282, 12
    %v1592 = vpop.permute.xlu0 %1591
    %1593 = vrot.lane.b32.xlu0 %v283, 12
    %v1594 = vpop.permute.xlu0 %1593
    %1595 = vrot.lane.b32.xlu0 %v284, 12
    %v1596 = vpop.permute.xlu0 %1595
    %1597 = vrot.lane.b32.xlu0 %v285, 12
    %v1598 = vpop.permute.xlu0 %1597
    %1599 = vrot.lane.b32.xlu0 %v286, 12
    %v1600 = vpop.permute.xlu0 %1599
    %1601 = vrot.lane.b32.xlu0 %v287, 12
    %v1602 = vpop.permute.xlu0 %1601
    %1603 = vrot.lane.b32.xlu0 %v288, 12
    %v1604 = vpop.permute.xlu0 %1603
    %1605 = vrot.lane.b32.xlu0 %v289, 12
    %v1606 = vpop.permute.xlu0 %1605
    %1607 = vrot.lane.b32.xlu0 %v290, 12
    %v1608 = vpop.permute.xlu0 %1607
    %1609 = vrot.lane.b32.xlu0 %v291, 12
    %v1610 = vpop.permute.xlu0 %1609
    %1611 = vrot.lane.b32.xlu0 %v292, 12
    %v1612 = vpop.permute.xlu0 %1611
    %1613 = vrot.lane.b32.xlu0 %v293, 12
    %v1614 = vpop.permute.xlu0 %1613
    %1615 = vrot.lane.b32.xlu0 %v294, 12
    %v1616 = vpop.permute.xlu0 %1615
    %1617 = vrot.lane.b32.xlu0 %v295, 12
    %v1618 = vpop.permute.xlu0 %1617
    %1619 = vrot.lane.b32.xlu0 %v296, 12
    %v1620 = vpop.permute.xlu0 %1619
    %1621 = vrot.lane.b32.xlu0 %v297, 12
    %v1622 = vpop.permute.xlu0 %1621
    %1623 = vrot.lane.b32.xlu0 %v298, 12
    %v1624 = vpop.permute.xlu0 %1623
    %1625 = vrot.lane.b32.xlu0 %v299, 12
    %v1626 = vpop.permute.xlu0 %1625
    %1627 = vrot.lane.b32.xlu0 %v300, 12
    %v1628 = vpop.permute.xlu0 %1627
    %1629 = vrot.lane.b32.xlu0 %v301, 12
    %v1630 = vpop.permute.xlu0 %1629
    %1631 = vrot.lane.b32.xlu0 %v302, 12
    %v1632 = vpop.permute.xlu0 %1631
    %1633 = vrot.lane.b32.xlu0 %v303, 12
    %v1634 = vpop.permute.xlu0 %1633
    %1635 = vrot.lane.b32.xlu0 %v304, 12
    %v1636 = vpop.permute.xlu0 %1635
    %1637 = vrot.lane.b32.xlu0 %v305, 12
    %v1638 = vpop.permute.xlu0 %1637
    %1639 = vrot.lane.b32.xlu0 %v306, 12
    %v1640 = vpop.permute.xlu0 %1639
    %1641 = vrot.lane.b32.xlu0 %v307, 12
    %v1642 = vpop.permute.xlu0 %1641
    %1643 = vrot.lane.b32.xlu0 %v308, 12
    %v1644 = vpop.permute.xlu0 %1643
    %1645 = vrot.lane.b32.xlu0 %v309, 12
    %v1646 = vpop.permute.xlu0 %1645
    %1647 = vrot.lane.b32.xlu0 %v310, 12
    %v1648 = vpop.permute.xlu0 %1647
    %1649 = vrot.lane.b32.xlu0 %v311, 12
    %v1650 = vpop.permute.xlu0 %1649
    %1651 = vrot.lane.b32.xlu0 %v312, 12
    %v1652 = vpop.permute.xlu0 %1651
    %1653 = vrot.lane.b32.xlu0 %v313, 12
    %v1654 = vpop.permute.xlu0 %1653
    %1655 = vrot.lane.b32.xlu0 %v314, 12
    %v1656 = vpop.permute.xlu0 %1655
    %1657 = vrot.lane.b32.xlu0 %v315, 12
    %v1658 = vpop.permute.xlu0 %1657
    %1659 = vrot.lane.b32.xlu0 %v316, 12
    %v1660 = vpop.permute.xlu0 %1659
    %1661 = vrot.lane.b32.xlu0 %v317, 12
    %v1662 = vpop.permute.xlu0 %1661
    %1663 = vrot.lane.b32.xlu0 %v318, 12
    %v1664 = vpop.permute.xlu0 %1663
    %1665 = vrot.lane.b32.xlu0 %v319, 12
    %v1666 = vpop.permute.xlu0 %1665
    %1667 = vrot.lane.b32.xlu0 %v320, 12
    %v1668 = vpop.permute.xlu0 %1667
    %1669 = vrot.lane.b32.xlu0 %v321, 12
    %v1670 = vpop.permute.xlu0 %1669
    %1671 = vrot.lane.b32.xlu0 %v322, 12
    %v1672 = vpop.permute.xlu0 %1671
    %1673 = vrot.lane.b32.xlu0 %v323, 12
    %v1674 = vpop.permute.xlu0 %1673
    %1675 = vrot.lane.b32.xlu0 %v324, 12
    %v1676 = vpop.permute.xlu0 %1675
    %1677 = vrot.lane.b32.xlu0 %v325, 12
    %v1678 = vpop.permute.xlu0 %1677
    %1679 = vrot.lane.b32.xlu0 %v326, 12
    %v1680 = vpop.permute.xlu0 %1679
    %1681 = vrot.lane.b32.xlu0 %v327, 12
    %v1682 = vpop.permute.xlu0 %1681
    %1683 = vrot.lane.b32.xlu0 %v328, 12
    %v1684 = vpop.permute.xlu0 %1683
    %1685 = vrot.lane.b32.xlu0 %v329, 12
    %v1686 = vpop.permute.xlu0 %1685
    %1687 = vrot.lane.b32.xlu0 %v330, 12
    %v1688 = vpop.permute.xlu0 %1687
    %1689 = vrot.lane.b32.xlu0 %v331, 12
    %v1690 = vpop.permute.xlu0 %1689
    %1691 = vrot.lane.b32.xlu0 %v332, 12
    %v1692 = vpop.permute.xlu0 %1691
    %1693 = vrot.lane.b32.xlu0 %v333, 12
    %v1694 = vpop.permute.xlu0 %1693
    %1695 = vrot.lane.b32.xlu0 %v334, 12
    %v1696 = vpop.permute.xlu0 %1695
    %1697 = vrot.lane.b32.xlu0 %v335, 12
    %v1698 = vpop.permute.xlu0 %1697
    %1699 = vrot.lane.b32.xlu0 %v336, 12
    %v1700 = vpop.permute.xlu0 %1699
    %1701 = vrot.lane.b32.xlu0 %v337, 12
    %v1702 = vpop.permute.xlu0 %1701
    %1703 = vrot.lane.b32.xlu0 %v338, 12
    %v1704 = vpop.permute.xlu0 %1703
    %1705 = vrot.lane.b32.xlu0 %v339, 12
    %v1706 = vpop.permute.xlu0 %1705
    %1707 = vrot.lane.b32.xlu0 %v340, 12
    %v1708 = vpop.permute.xlu0 %1707
    %1709 = vrot.lane.b32.xlu0 %v341, 12
    %v1710 = vpop.permute.xlu0 %1709
    %1711 = vrot.lane.b32.xlu0 %v342, 12
    %v1712 = vpop.permute.xlu0 %1711
    %1713 = vrot.lane.b32.xlu0 %v343, 12
    %v1714 = vpop.permute.xlu0 %1713
    %1715 = vrot.lane.b32.xlu0 %v344, 12
    %v1716 = vpop.permute.xlu0 %1715
    %1717 = vrot.lane.b32.xlu0 %v345, 12
    %v1718 = vpop.permute.xlu0 %1717
    %1719 = vrot.lane.b32.xlu0 %v346, 12
    %v1720 = vpop.permute.xlu0 %1719
    %1721 = vrot.lane.b32.xlu0 %v347, 12
    %v1722 = vpop.permute.xlu0 %1721
    %1723 = vrot.lane.b32.xlu0 %v348, 12
    %v1724 = vpop.permute.xlu0 %1723
    %1725 = vrot.lane.b32.xlu0 %v349, 12
    %v1726 = vpop.permute.xlu0 %1725
    %1727 = vrot.lane.b32.xlu0 %v350, 12
    %v1728 = vpop.permute.xlu0 %1727
    %1729 = vrot.lane.b32.xlu0 %v351, 12
    %v1730 = vpop.permute.xlu0 %1729
    %1731 = vrot.lane.b32.xlu0 %v352, 12
    %v1732 = vpop.permute.xlu0 %1731
    %1733 = vrot.lane.b32.xlu0 %v353, 12
    %v1734 = vpop.permute.xlu0 %1733
    %1897 = vrot.lane.b32.xlu0 %v354, 15
    %v1898 = vpop.permute.xlu0 %1897
    %1899 = vrot.lane.b32.xlu0 %v355, 15
    %v1900 = vpop.permute.xlu0 %1899
    %1901 = vrot.lane.b32.xlu0 %v356, 15
    %v1902 = vpop.permute.xlu0 %1901
    %1903 = vrot.lane.b32.xlu0 %v357, 15
    %v1904 = vpop.permute.xlu0 %1903
    %1905 = vrot.lane.b32.xlu0 %v358, 15
    %v1906 = vpop.permute.xlu0 %1905
    %1907 = vrot.lane.b32.xlu0 %v359, 15
    %v1908 = vpop.permute.xlu0 %1907
    %1909 = vrot.lane.b32.xlu0 %v360, 15
    %v1910 = vpop.permute.xlu0 %1909
    %1911 = vrot.lane.b32.xlu0 %v361, 15
    %v1912 = vpop.permute.xlu0 %1911
    %1913 = vrot.lane.b32.xlu0 %v362, 15
    %v1914 = vpop.permute.xlu0 %1913
    %1915 = vrot.lane.b32.xlu0 %v363, 15
    %v1916 = vpop.permute.xlu0 %1915
    %1917 = vrot.lane.b32.xlu0 %v364, 15
    %v1918 = vpop.permute.xlu0 %1917
    %1919 = vrot.lane.b32.xlu0 %v365, 15
    %v1920 = vpop.permute.xlu0 %1919
    %1921 = vrot.lane.b32.xlu0 %v366, 15
    %v1922 = vpop.permute.xlu0 %1921
    %1923 = vrot.lane.b32.xlu0 %v367, 15
    %v1924 = vpop.permute.xlu0 %1923
    %1925 = vrot.lane.b32.xlu0 %v368, 15
    %v1926 = vpop.permute.xlu0 %1925
    %1927 = vrot.lane.b32.xlu0 %v369, 15
    %v1928 = vpop.permute.xlu0 %1927
    %1929 = vrot.lane.b32.xlu0 %v370, 15
    %v1930 = vpop.permute.xlu0 %1929
    %1931 = vrot.lane.b32.xlu0 %v371, 15
    %v1932 = vpop.permute.xlu0 %1931
    %1933 = vrot.lane.b32.xlu0 %v372, 15
    %v1934 = vpop.permute.xlu0 %1933
    %1935 = vrot.lane.b32.xlu0 %v373, 15
    %v1936 = vpop.permute.xlu0 %1935
    %1937 = vrot.lane.b32.xlu0 %v374, 15
    %v1938 = vpop.permute.xlu0 %1937
    %1939 = vrot.lane.b32.xlu0 %v375, 15
    %v1940 = vpop.permute.xlu0 %1939
    %1941 = vrot.lane.b32.xlu0 %v376, 15
    %v1942 = vpop.permute.xlu0 %1941
    %1943 = vrot.lane.b32.xlu0 %v377, 15
    %v1944 = vpop.permute.xlu0 %1943
    %1945 = vrot.lane.b32.xlu0 %v378, 15
    %v1946 = vpop.permute.xlu0 %1945
    %1947 = vrot.lane.b32.xlu0 %v379, 15
    %v1948 = vpop.permute.xlu0 %1947
    %1949 = vrot.lane.b32.xlu0 %v380, 15
    %v1950 = vpop.permute.xlu0 %1949
    %1951 = vrot.lane.b32.xlu0 %v381, 15
    %v1952 = vpop.permute.xlu0 %1951
    %1953 = vrot.lane.b32.xlu0 %v382, 15
    %v1954 = vpop.permute.xlu0 %1953
    %1955 = vrot.lane.b32.xlu0 %v383, 15
    %v1956 = vpop.permute.xlu0 %1955
    %1957 = vrot.lane.b32.xlu0 %v384, 15
    %v1958 = vpop.permute.xlu0 %1957
    %1959 = vrot.lane.b32.xlu0 %v385, 15
    %v1960 = vpop.permute.xlu0 %1959
    %1961 = vrot.lane.b32.xlu0 %v386, 15
    %v1962 = vpop.permute.xlu0 %1961
    %1963 = vrot.lane.b32.xlu0 %v387, 15
    %v1964 = vpop.permute.xlu0 %1963
    %1965 = vrot.lane.b32.xlu0 %v388, 15
    %v1966 = vpop.permute.xlu0 %1965
    %1967 = vrot.lane.b32.xlu0 %v389, 15
    %v1968 = vpop.permute.xlu0 %1967
    %1969 = vrot.lane.b32.xlu0 %v390, 15
    %v1970 = vpop.permute.xlu0 %1969
    %1971 = vrot.lane.b32.xlu0 %v391, 15
    %v1972 = vpop.permute.xlu0 %1971
    %1973 = vrot.lane.b32.xlu0 %v392, 15
    %v1974 = vpop.permute.xlu0 %1973
    %1975 = vrot.lane.b32.xlu0 %v393, 15
    %v1976 = vpop.permute.xlu0 %1975
    %1977 = vrot.lane.b32.xlu0 %v394, 15
    %v1978 = vpop.permute.xlu0 %1977
    %1979 = vrot.lane.b32.xlu0 %v395, 15
    %v1980 = vpop.permute.xlu0 %1979
    %1981 = vrot.lane.b32.xlu0 %v396, 15
    %v1982 = vpop.permute.xlu0 %1981
    %1983 = vrot.lane.b32.xlu0 %v397, 15
    %v1984 = vpop.permute.xlu0 %1983
    %1985 = vrot.lane.b32.xlu0 %v398, 15
    %v1986 = vpop.permute.xlu0 %1985
    %1987 = vrot.lane.b32.xlu0 %v399, 15
    %v1988 = vpop.permute.xlu0 %1987
    %1989 = vrot.lane.b32.xlu0 %v400, 15
    %v1990 = vpop.permute.xlu0 %1989
    %1991 = vrot.lane.b32.xlu0 %v401, 15
    %v1992 = vpop.permute.xlu0 %1991
    %1993 = vrot.lane.b32.xlu0 %v402, 15
    %v1994 = vpop.permute.xlu0 %1993
    %1995 = vrot.lane.b32.xlu0 %v403, 15
    %v1996 = vpop.permute.xlu0 %1995
    %1997 = vrot.lane.b32.xlu0 %v404, 15
    %v1998 = vpop.permute.xlu0 %1997
    %1999 = vrot.lane.b32.xlu0 %v405, 15
    %v2000 = vpop.permute.xlu0 %1999
    %2001 = vrot.lane.b32.xlu0 %v406, 15
    %v2002 = vpop.permute.xlu0 %2001
    %2003 = vrot.lane.b32.xlu0 %v407, 15
    %v2004 = vpop.permute.xlu0 %2003
    %2005 = vrot.lane.b32.xlu0 %v408, 15
    %v2006 = vpop.permute.xlu0 %2005
    %2007 = vrot.lane.b32.xlu0 %v409, 15
    %v2008 = vpop.permute.xlu0 %2007
    %2009 = vrot.lane.b32.xlu0 %v410, 15
    %v2010 = vpop.permute.xlu0 %2009
    %2011 = vrot.lane.b32.xlu0 %v411, 15
    %v2012 = vpop.permute.xlu0 %2011
    %2013 = vrot.lane.b32.xlu0 %v412, 15
    %v2014 = vpop.permute.xlu0 %2013
    %2015 = vrot.lane.b32.xlu0 %v413, 15
    %v2016 = vpop.permute.xlu0 %2015
    %2017 = vrot.lane.b32.xlu0 %v414, 15
    %v2018 = vpop.permute.xlu0 %2017
    %2019 = vrot.lane.b32.xlu0 %v415, 15
    %v2020 = vpop.permute.xlu0 %2019
    %2021 = vrot.lane.b32.xlu0 %v416, 15
    %v2022 = vpop.permute.xlu0 %2021
    %2023 = vrot.lane.b32.xlu0 %v417, 15
    %v2024 = vpop.permute.xlu0 %2023
    %2025 = vrot.lane.b32.xlu0 %v418, 15
    %v2026 = vpop.permute.xlu0 %2025
    %2027 = vrot.lane.b32.xlu0 %v419, 15
    %v2028 = vpop.permute.xlu0 %2027
    %2029 = vrot.lane.b32.xlu0 %v420, 15
    %v2030 = vpop.permute.xlu0 %2029
    %2031 = vrot.lane.b32.xlu0 %v421, 15
    %v2032 = vpop.permute.xlu0 %2031
    %2033 = vrot.lane.b32.xlu0 %v422, 15
    %v2034 = vpop.permute.xlu0 %2033
    %2035 = vrot.lane.b32.xlu0 %v423, 15
    %v2036 = vpop.permute.xlu0 %2035
    %2037 = vrot.lane.b32.xlu0 %v424, 15
    %v2038 = vpop.permute.xlu0 %2037
    %2039 = vrot.lane.b32.xlu0 %v425, 15
    %v2040 = vpop.permute.xlu0 %2039
    %2041 = vrot.lane.b32.xlu0 %v426, 15
    %v2042 = vpop.permute.xlu0 %2041
    %2043 = vrot.lane.b32.xlu0 %v427, 15
    %v2044 = vpop.permute.xlu0 %2043
    %2045 = vrot.lane.b32.xlu0 %v428, 15
    %v2046 = vpop.permute.xlu0 %2045
    %2047 = vrot.lane.b32.xlu0 %v429, 15
    %v2048 = vpop.permute.xlu0 %2047
    %2049 = vrot.lane.b32.xlu0 %v430, 15
    %v2050 = vpop.permute.xlu0 %2049
    %2051 = vrot.lane.b32.xlu0 %v431, 15
    %v2052 = vpop.permute.xlu0 %2051
    %2053 = vrot.lane.b32.xlu0 %v432, 15
    %v2054 = vpop.permute.xlu0 %2053
    %2055 = vrot.lane.b32.xlu0 %v433, 15
    %v2056 = vpop.permute.xlu0 %2055
    %2057 = vrot.lane.b32.xlu0 %v434, 15
    %v2058 = vpop.permute.xlu0 %2057
    %2142 = vrot.lane.b32.xlu0 %v356, 18
    %v2143 = vpop.permute.xlu0 %2142
    %2144 = vrot.lane.b32.xlu0 %v357, 18
    %v2145 = vpop.permute.xlu0 %2144
    %2146 = vrot.lane.b32.xlu0 %v358, 18
    %v2147 = vpop.permute.xlu0 %2146
    %2148 = vrot.lane.b32.xlu0 %v359, 18
    %v2149 = vpop.permute.xlu0 %2148
    %2150 = vrot.lane.b32.xlu0 %v360, 18
    %v2151 = vpop.permute.xlu0 %2150
    %2152 = vrot.lane.b32.xlu0 %v361, 18
    %v2153 = vpop.permute.xlu0 %2152
    %2154 = vrot.lane.b32.xlu0 %v362, 18
    %v2155 = vpop.permute.xlu0 %2154
    %2156 = vrot.lane.b32.xlu0 %v363, 18
    %v2157 = vpop.permute.xlu0 %2156
    %2158 = vrot.lane.b32.xlu0 %v364, 18
    %v2159 = vpop.permute.xlu0 %2158
    %2160 = vrot.lane.b32.xlu0 %v365, 18
    %v2161 = vpop.permute.xlu0 %2160
    %2162 = vrot.lane.b32.xlu0 %v366, 18
    %v2163 = vpop.permute.xlu0 %2162
    %2164 = vrot.lane.b32.xlu0 %v367, 18
    %v2165 = vpop.permute.xlu0 %2164
    %2166 = vrot.lane.b32.xlu0 %v368, 18
    %v2167 = vpop.permute.xlu0 %2166
    %2168 = vrot.lane.b32.xlu0 %v369, 18
    %v2169 = vpop.permute.xlu0 %2168
    %2170 = vrot.lane.b32.xlu0 %v370, 18
    %v2171 = vpop.permute.xlu0 %2170
    %2172 = vrot.lane.b32.xlu0 %v371, 18
    %v2173 = vpop.permute.xlu0 %2172
    %2174 = vrot.lane.b32.xlu0 %v372, 18
    %v2175 = vpop.permute.xlu0 %2174
    %2176 = vrot.lane.b32.xlu0 %v373, 18
    %v2177 = vpop.permute.xlu0 %2176
    %2178 = vrot.lane.b32.xlu0 %v374, 18
    %v2179 = vpop.permute.xlu0 %2178
    %2180 = vrot.lane.b32.xlu0 %v375, 18
    %v2181 = vpop.permute.xlu0 %2180
    %2182 = vrot.lane.b32.xlu0 %v376, 18
    %v2183 = vpop.permute.xlu0 %2182
    %2184 = vrot.lane.b32.xlu0 %v377, 18
    %v2185 = vpop.permute.xlu0 %2184
    %2186 = vrot.lane.b32.xlu0 %v378, 18
    %v2187 = vpop.permute.xlu0 %2186
    %2188 = vrot.lane.b32.xlu0 %v379, 18
    %v2189 = vpop.permute.xlu0 %2188
    %2190 = vrot.lane.b32.xlu0 %v380, 18
    %v2191 = vpop.permute.xlu0 %2190
    %2192 = vrot.lane.b32.xlu0 %v381, 18
    %v2193 = vpop.permute.xlu0 %2192
    %2194 = vrot.lane.b32.xlu0 %v382, 18
    %v2195 = vpop.permute.xlu0 %2194
    %2196 = vrot.lane.b32.xlu0 %v383, 18
    %v2197 = vpop.permute.xlu0 %2196
    %2198 = vrot.lane.b32.xlu0 %v384, 18
    %v2199 = vpop.permute.xlu0 %2198
    %2200 = vrot.lane.b32.xlu0 %v385, 18
    %v2201 = vpop.permute.xlu0 %2200
    %2202 = vrot.lane.b32.xlu0 %v386, 18
    %v2203 = vpop.permute.xlu0 %2202
    %2204 = vrot.lane.b32.xlu0 %v387, 18
    %v2205 = vpop.permute.xlu0 %2204
    %2206 = vrot.lane.b32.xlu0 %v388, 18
    %v2207 = vpop.permute.xlu0 %2206
    %2208 = vrot.lane.b32.xlu0 %v389, 18
    %v2209 = vpop.permute.xlu0 %2208
    %2210 = vrot.lane.b32.xlu0 %v390, 18
    %v2211 = vpop.permute.xlu0 %2210
    %2212 = vrot.lane.b32.xlu0 %v391, 18
    %v2213 = vpop.permute.xlu0 %2212
    %2214 = vrot.lane.b32.xlu0 %v392, 18
    %v2215 = vpop.permute.xlu0 %2214
    %2216 = vrot.lane.b32.xlu0 %v393, 18
    %v2217 = vpop.permute.xlu0 %2216
    %2218 = vrot.lane.b32.xlu0 %v394, 18
    %v2219 = vpop.permute.xlu0 %2218
    %2220 = vrot.lane.b32.xlu0 %v395, 18
    %v2221 = vpop.permute.xlu0 %2220
    %2222 = vrot.lane.b32.xlu0 %v396, 18
    %v2223 = vpop.permute.xlu0 %2222
    %2224 = vrot.lane.b32.xlu0 %v397, 18
    %v2225 = vpop.permute.xlu0 %2224
    %2226 = vrot.lane.b32.xlu0 %v398, 18
    %v2227 = vpop.permute.xlu0 %2226
    %2228 = vrot.lane.b32.xlu0 %v399, 18
    %v2229 = vpop.permute.xlu0 %2228
    %2230 = vrot.lane.b32.xlu0 %v400, 18
    %v2231 = vpop.permute.xlu0 %2230
    %2232 = vrot.lane.b32.xlu0 %v401, 18
    %v2233 = vpop.permute.xlu0 %2232
    %2234 = vrot.lane.b32.xlu0 %v402, 18
    %v2235 = vpop.permute.xlu0 %2234
    %2236 = vrot.lane.b32.xlu0 %v403, 18
    %v2237 = vpop.permute.xlu0 %2236
    %2238 = vrot.lane.b32.xlu0 %v404, 18
    %v2239 = vpop.permute.xlu0 %2238
    %2240 = vrot.lane.b32.xlu0 %v405, 18
    %v2241 = vpop.permute.xlu0 %2240
    %2242 = vrot.lane.b32.xlu0 %v406, 18
    %v2243 = vpop.permute.xlu0 %2242
    %2244 = vrot.lane.b32.xlu0 %v407, 18
    %v2245 = vpop.permute.xlu0 %2244
    %2246 = vrot.lane.b32.xlu0 %v408, 18
    %v2247 = vpop.permute.xlu0 %2246
    %2248 = vrot.lane.b32.xlu0 %v409, 18
    %v2249 = vpop.permute.xlu0 %2248
    %2250 = vrot.lane.b32.xlu0 %v410, 18
    %v2251 = vpop.permute.xlu0 %2250
    %2252 = vrot.lane.b32.xlu0 %v411, 18
    %v2253 = vpop.permute.xlu0 %2252
    %2254 = vrot.lane.b32.xlu0 %v412, 18
    %v2255 = vpop.permute.xlu0 %2254
    %2256 = vrot.lane.b32.xlu0 %v413, 18
    %v2257 = vpop.permute.xlu0 %2256
    %2258 = vrot.lane.b32.xlu0 %v414, 18
    %v2259 = vpop.permute.xlu0 %2258
    %2260 = vrot.lane.b32.xlu0 %v415, 18
    %v2261 = vpop.permute.xlu0 %2260
    %2262 = vrot.lane.b32.xlu0 %v416, 18
    %v2263 = vpop.permute.xlu0 %2262
    %2264 = vrot.lane.b32.xlu0 %v417, 18
    %v2265 = vpop.permute.xlu0 %2264
    %2266 = vrot.lane.b32.xlu0 %v418, 18
    %v2267 = vpop.permute.xlu0 %2266
    %2268 = vrot.lane.b32.xlu0 %v419, 18
    %v2269 = vpop.permute.xlu0 %2268
    %2270 = vrot.lane.b32.xlu0 %v420, 18
    %v2271 = vpop.permute.xlu0 %2270
    %2272 = vrot.lane.b32.xlu0 %v421, 18
    %v2273 = vpop.permute.xlu0 %2272
    %2274 = vrot.lane.b32.xlu0 %v422, 18
    %v2275 = vpop.permute.xlu0 %2274
    %2276 = vrot.lane.b32.xlu0 %v423, 18
    %v2277 = vpop.permute.xlu0 %2276
    %2278 = vrot.lane.b32.xlu0 %v424, 18
    %v2279 = vpop.permute.xlu0 %2278
    %2280 = vrot.lane.b32.xlu0 %v425, 18
    %v2281 = vpop.permute.xlu0 %2280
    %2282 = vrot.lane.b32.xlu0 %v426, 18
    %v2283 = vpop.permute.xlu0 %2282
    %2284 = vrot.lane.b32.xlu0 %v427, 18
    %v2285 = vpop.permute.xlu0 %2284
    %2286 = vrot.lane.b32.xlu0 %v428, 18
    %v2287 = vpop.permute.xlu0 %2286
    %2288 = vrot.lane.b32.xlu0 %v429, 18
    %v2289 = vpop.permute.xlu0 %2288
    %2290 = vrot.lane.b32.xlu0 %v430, 18
    %v2291 = vpop.permute.xlu0 %2290
    %2292 = vrot.lane.b32.xlu0 %v431, 18
    %v2293 = vpop.permute.xlu0 %2292
    %2294 = vrot.lane.b32.xlu0 %v432, 18
    %v2295 = vpop.permute.xlu0 %2294
    %2296 = vrot.lane.b32.xlu0 %v433, 18
    %v2297 = vpop.permute.xlu0 %2296
    %2298 = vrot.lane.b32.xlu0 %v434, 18
    %v2299 = vpop.permute.xlu0 %2298
    %2300 = vrot.lane.b32.xlu0 %v435, 18
    %v2301 = vpop.permute.xlu0 %2300
    %2302 = vrot.lane.b32.xlu0 %v436, 18
    %v2303 = vpop.permute.xlu0 %2302
    %2466 = vrot.lane.b32.xlu0 %v437, 21
    %v2467 = vpop.permute.xlu0 %2466
    %2468 = vrot.lane.b32.xlu0 %v438, 21
    %v2469 = vpop.permute.xlu0 %2468
    %2470 = vrot.lane.b32.xlu0 %v439, 21
    %v2471 = vpop.permute.xlu0 %2470
    %2472 = vrot.lane.b32.xlu0 %v440, 21
    %v2473 = vpop.permute.xlu0 %2472
    %2474 = vrot.lane.b32.xlu0 %v441, 21
    %v2475 = vpop.permute.xlu0 %2474
    %2476 = vrot.lane.b32.xlu0 %v442, 21
    %v2477 = vpop.permute.xlu0 %2476
    %2478 = vrot.lane.b32.xlu0 %v443, 21
    %v2479 = vpop.permute.xlu0 %2478
    %2480 = vrot.lane.b32.xlu0 %v444, 21
    %v2481 = vpop.permute.xlu0 %2480
    %2482 = vrot.lane.b32.xlu0 %v445, 21
    %v2483 = vpop.permute.xlu0 %2482
    %2484 = vrot.lane.b32.xlu0 %v446, 21
    %v2485 = vpop.permute.xlu0 %2484
    %2486 = vrot.lane.b32.xlu0 %v447, 21
    %v2487 = vpop.permute.xlu0 %2486
    %2488 = vrot.lane.b32.xlu0 %v448, 21
    %v2489 = vpop.permute.xlu0 %2488
    %2490 = vrot.lane.b32.xlu0 %v449, 21
    %v2491 = vpop.permute.xlu0 %2490
    %2492 = vrot.lane.b32.xlu0 %v450, 21
    %v2493 = vpop.permute.xlu0 %2492
    %2494 = vrot.lane.b32.xlu0 %v451, 21
    %v2495 = vpop.permute.xlu0 %2494
    %2496 = vrot.lane.b32.xlu0 %v452, 21
    %v2497 = vpop.permute.xlu0 %2496
    %2498 = vrot.lane.b32.xlu0 %v453, 21
    %v2499 = vpop.permute.xlu0 %2498
    %2500 = vrot.lane.b32.xlu0 %v454, 21
    %v2501 = vpop.permute.xlu0 %2500
    %2502 = vrot.lane.b32.xlu0 %v455, 21
    %v2503 = vpop.permute.xlu0 %2502
    %2504 = vrot.lane.b32.xlu0 %v456, 21
    %v2505 = vpop.permute.xlu0 %2504
    %2506 = vrot.lane.b32.xlu0 %v457, 21
    %v2507 = vpop.permute.xlu0 %2506
    %2508 = vrot.lane.b32.xlu0 %v458, 21
    %v2509 = vpop.permute.xlu0 %2508
    %2510 = vrot.lane.b32.xlu0 %v459, 21
    %v2511 = vpop.permute.xlu0 %2510
    %2512 = vrot.lane.b32.xlu0 %v460, 21
    %v2513 = vpop.permute.xlu0 %2512
    %2514 = vrot.lane.b32.xlu0 %v461, 21
    %v2515 = vpop.permute.xlu0 %2514
    %2516 = vrot.lane.b32.xlu0 %v462, 21
    %v2517 = vpop.permute.xlu0 %2516
    %2518 = vrot.lane.b32.xlu0 %v463, 21
    %v2519 = vpop.permute.xlu0 %2518
    %2520 = vrot.lane.b32.xlu0 %v464, 21
    %v2521 = vpop.permute.xlu0 %2520
    %2522 = vrot.lane.b32.xlu0 %v465, 21
    %v2523 = vpop.permute.xlu0 %2522
    %2524 = vrot.lane.b32.xlu0 %v466, 21
    %v2525 = vpop.permute.xlu0 %2524
    %2526 = vrot.lane.b32.xlu0 %v467, 21
    %v2527 = vpop.permute.xlu0 %2526
    %2528 = vrot.lane.b32.xlu0 %v468, 21
    %v2529 = vpop.permute.xlu0 %2528
    %2530 = vrot.lane.b32.xlu0 %v469, 21
    %v2531 = vpop.permute.xlu0 %2530
    %2532 = vrot.lane.b32.xlu0 %v470, 21
    %v2533 = vpop.permute.xlu0 %2532
    %2534 = vrot.lane.b32.xlu0 %v471, 21
    %v2535 = vpop.permute.xlu0 %2534
    %2536 = vrot.lane.b32.xlu0 %v472, 21
    %v2537 = vpop.permute.xlu0 %2536
    %2538 = vrot.lane.b32.xlu0 %v473, 21
    %v2539 = vpop.permute.xlu0 %2538
    %2540 = vrot.lane.b32.xlu0 %v474, 21
    %v2541 = vpop.permute.xlu0 %2540
    %2542 = vrot.lane.b32.xlu0 %v475, 21
    %v2543 = vpop.permute.xlu0 %2542
    %2544 = vrot.lane.b32.xlu0 %v476, 21
    %v2545 = vpop.permute.xlu0 %2544
    %2546 = vrot.lane.b32.xlu0 %v477, 21
    %v2547 = vpop.permute.xlu0 %2546
    %2548 = vrot.lane.b32.xlu0 %v478, 21
    %v2549 = vpop.permute.xlu0 %2548
    %2550 = vrot.lane.b32.xlu0 %v479, 21
    %v2551 = vpop.permute.xlu0 %2550
    %2552 = vrot.lane.b32.xlu0 %v480, 21
    %v2553 = vpop.permute.xlu0 %2552
    %2554 = vrot.lane.b32.xlu0 %v481, 21
    %v2555 = vpop.permute.xlu0 %2554
    %2556 = vrot.lane.b32.xlu0 %v482, 21
    %v2557 = vpop.permute.xlu0 %2556
    %2558 = vrot.lane.b32.xlu0 %v483, 21
    %v2559 = vpop.permute.xlu0 %2558
    %2560 = vrot.lane.b32.xlu0 %v484, 21
    %v2561 = vpop.permute.xlu0 %2560
    %2562 = vrot.lane.b32.xlu0 %v485, 21
    %v2563 = vpop.permute.xlu0 %2562
    %2564 = vrot.lane.b32.xlu0 %v486, 21
    %v2565 = vpop.permute.xlu0 %2564
    %2566 = vrot.lane.b32.xlu0 %v487, 21
    %v2567 = vpop.permute.xlu0 %2566
    %2568 = vrot.lane.b32.xlu0 %v488, 21
    %v2569 = vpop.permute.xlu0 %2568
    %2570 = vrot.lane.b32.xlu0 %v489, 21
    %v2571 = vpop.permute.xlu0 %2570
    %2572 = vrot.lane.b32.xlu0 %v490, 21
    %v2573 = vpop.permute.xlu0 %2572
    %2574 = vrot.lane.b32.xlu0 %v491, 21
    %v2575 = vpop.permute.xlu0 %2574
    %2576 = vrot.lane.b32.xlu0 %v492, 21
    %v2577 = vpop.permute.xlu0 %2576
    %2578 = vrot.lane.b32.xlu0 %v493, 21
    %v2579 = vpop.permute.xlu0 %2578
    %2580 = vrot.lane.b32.xlu0 %v494, 21
    %v2581 = vpop.permute.xlu0 %2580
    %2582 = vrot.lane.b32.xlu0 %v495, 21
    %v2583 = vpop.permute.xlu0 %2582
    %2584 = vrot.lane.b32.xlu0 %v496, 21
    %v2585 = vpop.permute.xlu0 %2584
    %2586 = vrot.lane.b32.xlu0 %v497, 21
    %v2587 = vpop.permute.xlu0 %2586
    %2588 = vrot.lane.b32.xlu0 %v498, 21
    %v2589 = vpop.permute.xlu0 %2588
    %2590 = vrot.lane.b32.xlu0 %v499, 21
    %v2591 = vpop.permute.xlu0 %2590
    %2592 = vrot.lane.b32.xlu0 %v500, 21
    %v2593 = vpop.permute.xlu0 %2592
    %2594 = vrot.lane.b32.xlu0 %v501, 21
    %v2595 = vpop.permute.xlu0 %2594
    %2596 = vrot.lane.b32.xlu0 %v502, 21
    %v2597 = vpop.permute.xlu0 %2596
    %2598 = vrot.lane.b32.xlu0 %v503, 21
    %v2599 = vpop.permute.xlu0 %2598
    %2600 = vrot.lane.b32.xlu0 %v504, 21
    %v2601 = vpop.permute.xlu0 %2600
    %2602 = vrot.lane.b32.xlu0 %v505, 21
    %v2603 = vpop.permute.xlu0 %2602
    %2604 = vrot.lane.b32.xlu0 %v506, 21
    %v2605 = vpop.permute.xlu0 %2604
    %2606 = vrot.lane.b32.xlu0 %v507, 21
    %v2607 = vpop.permute.xlu0 %2606
    %2608 = vrot.lane.b32.xlu0 %v508, 21
    %v2609 = vpop.permute.xlu0 %2608
    %2610 = vrot.lane.b32.xlu0 %v509, 21
    %v2611 = vpop.permute.xlu0 %2610
    %2612 = vrot.lane.b32.xlu0 %v510, 21
    %v2613 = vpop.permute.xlu0 %2612
    %2614 = vrot.lane.b32.xlu0 %v511, 21
    %v2615 = vpop.permute.xlu0 %2614
    %2616 = vrot.lane.b32.xlu0 %v512, 21
    %v2617 = vpop.permute.xlu0 %2616
    %2618 = vrot.lane.b32.xlu0 %v513, 21
    %v2619 = vpop.permute.xlu0 %2618
    %2620 = vrot.lane.b32.xlu0 %v514, 21
    %v2621 = vpop.permute.xlu0 %2620
    %2622 = vrot.lane.b32.xlu0 %v515, 21
    %v2623 = vpop.permute.xlu0 %2622
    %2624 = vrot.lane.b32.xlu0 %v516, 21
    %v2625 = vpop.permute.xlu0 %2624
    %2626 = vrot.lane.b32.xlu0 %v517, 21
    %v2627 = vpop.permute.xlu0 %2626
    %2790 = vrot.lane.b32.xlu0 %v518, 24
    %v2791 = vpop.permute.xlu0 %2790
    %2792 = vrot.lane.b32.xlu0 %v519, 24
    %v2793 = vpop.permute.xlu0 %2792
    %2794 = vrot.lane.b32.xlu0 %v520, 24
    %v2795 = vpop.permute.xlu0 %2794
    %2796 = vrot.lane.b32.xlu0 %v521, 24
    %v2797 = vpop.permute.xlu0 %2796
    %2798 = vrot.lane.b32.xlu0 %v522, 24
    %v2799 = vpop.permute.xlu0 %2798
    %2800 = vrot.lane.b32.xlu0 %v523, 24
    %v2801 = vpop.permute.xlu0 %2800
    %2802 = vrot.lane.b32.xlu0 %v524, 24
    %v2803 = vpop.permute.xlu0 %2802
    %2804 = vrot.lane.b32.xlu0 %v525, 24
    %v2805 = vpop.permute.xlu0 %2804
    %2806 = vrot.lane.b32.xlu0 %v526, 24
    %v2807 = vpop.permute.xlu0 %2806
    %2808 = vrot.lane.b32.xlu0 %v527, 24
    %v2809 = vpop.permute.xlu0 %2808
    %2810 = vrot.lane.b32.xlu0 %v528, 24
    %v2811 = vpop.permute.xlu0 %2810
    %2812 = vrot.lane.b32.xlu0 %v529, 24
    %v2813 = vpop.permute.xlu0 %2812
    %2814 = vrot.lane.b32.xlu0 %v530, 24
    %v2815 = vpop.permute.xlu0 %2814
    %2816 = vrot.lane.b32.xlu0 %v531, 24
    %v2817 = vpop.permute.xlu0 %2816
    %2818 = vrot.lane.b32.xlu0 %v532, 24
    %v2819 = vpop.permute.xlu0 %2818
    %2820 = vrot.lane.b32.xlu0 %v533, 24
    %v2821 = vpop.permute.xlu0 %2820
    %2822 = vrot.lane.b32.xlu0 %v534, 24
    %v2823 = vpop.permute.xlu0 %2822
    %2824 = vrot.lane.b32.xlu0 %v535, 24
    %v2825 = vpop.permute.xlu0 %2824
    %2826 = vrot.lane.b32.xlu0 %v536, 24
    %v2827 = vpop.permute.xlu0 %2826
    %2828 = vrot.lane.b32.xlu0 %v537, 24
    %v2829 = vpop.permute.xlu0 %2828
    %2830 = vrot.lane.b32.xlu0 %v538, 24
    %v2831 = vpop.permute.xlu0 %2830
    %2832 = vrot.lane.b32.xlu0 %v539, 24
    %v2833 = vpop.permute.xlu0 %2832
    %2834 = vrot.lane.b32.xlu0 %v540, 24
    %v2835 = vpop.permute.xlu0 %2834
    %2836 = vrot.lane.b32.xlu0 %v541, 24
    %v2837 = vpop.permute.xlu0 %2836
    %2838 = vrot.lane.b32.xlu0 %v542, 24
    %v2839 = vpop.permute.xlu0 %2838
    %2840 = vrot.lane.b32.xlu0 %v543, 24
    %v2841 = vpop.permute.xlu0 %2840
    %2842 = vrot.lane.b32.xlu0 %v544, 24
    %v2843 = vpop.permute.xlu0 %2842
    %2844 = vrot.lane.b32.xlu0 %v545, 24
    %v2845 = vpop.permute.xlu0 %2844
    %2846 = vrot.lane.b32.xlu0 %v546, 24
    %v2847 = vpop.permute.xlu0 %2846
    %2848 = vrot.lane.b32.xlu0 %v547, 24
    %v2849 = vpop.permute.xlu0 %2848
    %2850 = vrot.lane.b32.xlu0 %v548, 24
    %v2851 = vpop.permute.xlu0 %2850
    %2852 = vrot.lane.b32.xlu0 %v549, 24
    %v2853 = vpop.permute.xlu0 %2852
    %2854 = vrot.lane.b32.xlu0 %v550, 24
    %v2855 = vpop.permute.xlu0 %2854
    %2856 = vrot.lane.b32.xlu0 %v551, 24
    %v2857 = vpop.permute.xlu0 %2856
    %2858 = vrot.lane.b32.xlu0 %v552, 24
    %v2859 = vpop.permute.xlu0 %2858
    %2860 = vrot.lane.b32.xlu0 %v553, 24
    %v2861 = vpop.permute.xlu0 %2860
    %2862 = vrot.lane.b32.xlu0 %v554, 24
    %v2863 = vpop.permute.xlu0 %2862
    %2864 = vrot.lane.b32.xlu0 %v555, 24
    %v2865 = vpop.permute.xlu0 %2864
    %2866 = vrot.lane.b32.xlu0 %v556, 24
    %v2867 = vpop.permute.xlu0 %2866
    %2868 = vrot.lane.b32.xlu0 %v557, 24
    %v2869 = vpop.permute.xlu0 %2868
    %2870 = vrot.lane.b32.xlu0 %v558, 24
    %v2871 = vpop.permute.xlu0 %2870
    %2872 = vrot.lane.b32.xlu0 %v559, 24
    %v2873 = vpop.permute.xlu0 %2872
    %2874 = vrot.lane.b32.xlu0 %v560, 24
    %v2875 = vpop.permute.xlu0 %2874
    %2876 = vrot.lane.b32.xlu0 %v561, 24
    %v2877 = vpop.permute.xlu0 %2876
    %2878 = vrot.lane.b32.xlu0 %v562, 24
    %v2879 = vpop.permute.xlu0 %2878
    %2880 = vrot.lane.b32.xlu0 %v563, 24
    %v2881 = vpop.permute.xlu0 %2880
    %2882 = vrot.lane.b32.xlu0 %v564, 24
    %v2883 = vpop.permute.xlu0 %2882
    %2884 = vrot.lane.b32.xlu0 %v565, 24
    %v2885 = vpop.permute.xlu0 %2884
    %2886 = vrot.lane.b32.xlu0 %v566, 24
    %v2887 = vpop.permute.xlu0 %2886
    %2888 = vrot.lane.b32.xlu0 %v567, 24
    %v2889 = vpop.permute.xlu0 %2888
    %2890 = vrot.lane.b32.xlu0 %v568, 24
    %v2891 = vpop.permute.xlu0 %2890
    %2892 = vrot.lane.b32.xlu0 %v569, 24
    %v2893 = vpop.permute.xlu0 %2892
    %2894 = vrot.lane.b32.xlu0 %v570, 24
    %v2895 = vpop.permute.xlu0 %2894
    %2896 = vrot.lane.b32.xlu0 %v571, 24
    %v2897 = vpop.permute.xlu0 %2896
    %2898 = vrot.lane.b32.xlu0 %v572, 24
    %v2899 = vpop.permute.xlu0 %2898
    %2900 = vrot.lane.b32.xlu0 %v573, 24
    %v2901 = vpop.permute.xlu0 %2900
    %2902 = vrot.lane.b32.xlu0 %v574, 24
    %v2903 = vpop.permute.xlu0 %2902
    %2904 = vrot.lane.b32.xlu0 %v575, 24
    %v2905 = vpop.permute.xlu0 %2904
    %2906 = vrot.lane.b32.xlu0 %v576, 24
    %v2907 = vpop.permute.xlu0 %2906
    %2908 = vrot.lane.b32.xlu0 %v577, 24
    %v2909 = vpop.permute.xlu0 %2908
    %2910 = vrot.lane.b32.xlu0 %v578, 24
    %v2911 = vpop.permute.xlu0 %2910
    %2912 = vrot.lane.b32.xlu0 %v579, 24
    %v2913 = vpop.permute.xlu0 %2912
    %2914 = vrot.lane.b32.xlu0 %v580, 24
    %v2915 = vpop.permute.xlu0 %2914
    %2916 = vrot.lane.b32.xlu0 %v581, 24
    %v2917 = vpop.permute.xlu0 %2916
    %2918 = vrot.lane.b32.xlu0 %v582, 24
    %v2919 = vpop.permute.xlu0 %2918
    %2920 = vrot.lane.b32.xlu0 %v583, 24
    %v2921 = vpop.permute.xlu0 %2920
    %2922 = vrot.lane.b32.xlu0 %v584, 24
    %v2923 = vpop.permute.xlu0 %2922
    %2924 = vrot.lane.b32.xlu0 %v585, 24
    %v2925 = vpop.permute.xlu0 %2924
    %2926 = vrot.lane.b32.xlu0 %v586, 24
    %v2927 = vpop.permute.xlu0 %2926
    %2928 = vrot.lane.b32.xlu0 %v587, 24
    %v2929 = vpop.permute.xlu0 %2928
    %2930 = vrot.lane.b32.xlu0 %v588, 24
    %v2931 = vpop.permute.xlu0 %2930
    %2932 = vrot.lane.b32.xlu0 %v589, 24
    %v2933 = vpop.permute.xlu0 %2932
    %2934 = vrot.lane.b32.xlu0 %v590, 24
    %v2935 = vpop.permute.xlu0 %2934
    %2936 = vrot.lane.b32.xlu0 %v591, 24
    %v2937 = vpop.permute.xlu0 %2936
    %2938 = vrot.lane.b32.xlu0 %v592, 24
    %v2939 = vpop.permute.xlu0 %2938
    %2940 = vrot.lane.b32.xlu0 %v593, 24
    %v2941 = vpop.permute.xlu0 %2940
    %2942 = vrot.lane.b32.xlu0 %v594, 24
    %v2943 = vpop.permute.xlu0 %2942
    %2944 = vrot.lane.b32.xlu0 %v595, 24
    %v2945 = vpop.permute.xlu0 %2944
    %2946 = vrot.lane.b32.xlu0 %v596, 24
    %v2947 = vpop.permute.xlu0 %2946
    %2948 = vrot.lane.b32.xlu0 %v597, 24
    %v2949 = vpop.permute.xlu0 %2948
    %2950 = vrot.lane.b32.xlu0 %v598, 24
    %v2951 = vpop.permute.xlu0 %2950
    %vm3033 = vcmask 23552
    %v3034 = vsel %vm3033, %v28, %v681
    %v3035 = vsel %vm3033, %v29, %v683
    %v3036 = vsel %vm3033, %v30, %v685
    %v3037 = vsel %vm3033, %v31, %v687
    %v3038 = vsel %vm3033, %v32, %v689
    %v3039 = vsel %vm3033, %v33, %v691
    %v3040 = vsel %vm3033, %v34, %v693
    %v3041 = vsel %vm3033, %v35, %v695
    %v3042 = vsel %vm3033, %v36, %v697
    %v3043 = vsel %vm3033, %v37, %v699
    %v3044 = vsel %vm3033, %v38, %v701
    %v3045 = vsel %vm3033, %v39, %v703
    %v3046 = vsel %vm3033, %v40, %v705
    %v3047 = vsel %vm3033, %v41, %v707
    %v3048 = vsel %vm3033, %v42, %v709
    %v3049 = vsel %vm3033, %v43, %v711
    %v3050 = vsel %vm3033, %v44, %v713
    %v3051 = vsel %vm3033, %v45, %v715
    %v3052 = vsel %vm3033, %v46, %v717
    %v3053 = vsel %vm3033, %v47, %v719
    %v3054 = vsel %vm3033, %v48, %v721
    %v3055 = vsel %vm3033, %v49, %v723
    %v3056 = vsel %vm3033, %v50, %v725
    %v3057 = vsel %vm3033, %v51, %v727
    %v3058 = vsel %vm3033, %v52, %v729
    %v3059 = vsel %vm3033, %v53, %v731
    %v3060 = vsel %vm3033, %v54, %v733
    %v3061 = vsel %vm3033, %v55, %v735
    %v3062 = vsel %vm3033, %v56, %v737
    %v3063 = vsel %vm3033, %v57, %v739
    %v3064 = vsel %vm3033, %v58, %v741
    %v3065 = vsel %vm3033, %v59, %v743
    %v3066 = vsel %vm3033, %v60, %v745
    %v3067 = vsel %vm3033, %v61, %v747
    %v3068 = vsel %vm3033, %v62, %v749
    %v3069 = vsel %vm3033, %v63, %v751
    %v3070 = vsel %vm3033, %v64, %v753
    %v3071 = vsel %vm3033, %v65, %v755
    %v3072 = vsel %vm3033, %v66, %v757
    %v3073 = vsel %vm3033, %v67, %v759
    %v3074 = vsel %vm3033, %v68, %v761
    %v3075 = vsel %vm3033, %v69, %v763
    %v3076 = vsel %vm3033, %v70, %v765
    %v3077 = vsel %vm3033, %v71, %v767
    %v3078 = vsel %vm3033, %v72, %v769
    %v3079 = vsel %vm3033, %v73, %v771
    %v3080 = vsel %vm3033, %v74, %v773
    %v3081 = vsel %vm3033, %v75, %v775
    %v3082 = vsel %vm3033, %v76, %v777
    %v3083 = vsel %vm3033, %v77, %v779
    %v3084 = vsel %vm3033, %v78, %v781
    %v3085 = vsel %vm3033, %v79, %v783
    %v3086 = vsel %vm3033, %v80, %v785
    %v3087 = vsel %vm3033, %v81, %v787
    %v3088 = vsel %vm3033, %v82, %v789
    %v3089 = vsel %vm3033, %v83, %v791
    %v3090 = vsel %vm3033, %v84, %v793
    %v3091 = vsel %vm3033, %v85, %v795
    %v3092 = vsel %vm3033, %v86, %v797
    %v3093 = vsel %vm3033, %v87, %v799
    %v3094 = vsel %vm3033, %v88, %v801
    %v3095 = vsel %vm3033, %v89, %v803
    %v3096 = vsel %vm3033, %v90, %v805
    %v3097 = vsel %vm3033, %v91, %v807
    %v3098 = vsel %vm3033, %v92, %v809
    %v3099 = vsel %vm3033, %v93, %v811
    %v3100 = vsel %vm3033, %v94, %v813
    %v3101 = vsel %vm3033, %v95, %v815
    %v3102 = vsel %vm3033, %v96, %v817
    %v3103 = vsel %vm3033, %v97, %v819
    %v3104 = vsel %vm3033, %v98, %v821
    %v3105 = vsel %vm3033, %v99, %v823
    %v3106 = vsel %vm3033, %v100, %v825
    %v3107 = vsel %vm3033, %v101, %v827
    %v3108 = vsel %vm3033, %v102, %v829
    %v3109 = vsel %vm3033, %v103, %v831
    %v3110 = vsel %vm3033, %v104, %v833
    %v3111 = vsel %vm3033, %v105, %v835
    %v3112 = vsel %vm3033, %v106, %v837
    %v3113 = vsel %vm3033, %v107, %v839
    %v3114 = vsel %vm3033, %v108, %v841
    %vm3115 = vcmask 48128
    %v3116 = vsel %vm3115, %v3034, %v1005
    %v3117 = vsel %vm3115, %v3035, %v1007
    %v3118 = vsel %vm3115, %v3036, %v1009
    %v3119 = vsel %vm3115, %v3037, %v1011
    %v3120 = vsel %vm3115, %v3038, %v1013
    %v3121 = vsel %vm3115, %v3039, %v1015
    %v3122 = vsel %vm3115, %v3040, %v1017
    %v3123 = vsel %vm3115, %v3041, %v1019
    %v3124 = vsel %vm3115, %v3042, %v1021
    %v3125 = vsel %vm3115, %v3043, %v1023
    %v3126 = vsel %vm3115, %v3044, %v1025
    %v3127 = vsel %vm3115, %v3045, %v1027
    %v3128 = vsel %vm3115, %v3046, %v1029
    %v3129 = vsel %vm3115, %v3047, %v1031
    %v3130 = vsel %vm3115, %v3048, %v1033
    %v3131 = vsel %vm3115, %v3049, %v1035
    %v3132 = vsel %vm3115, %v3050, %v1037
    %v3133 = vsel %vm3115, %v3051, %v1039
    %v3134 = vsel %vm3115, %v3052, %v1041
    %v3135 = vsel %vm3115, %v3053, %v1043
    %v3136 = vsel %vm3115, %v3054, %v1045
    %v3137 = vsel %vm3115, %v3055, %v1047
    %v3138 = vsel %vm3115, %v3056, %v1049
    %v3139 = vsel %vm3115, %v3057, %v1051
    %v3140 = vsel %vm3115, %v3058, %v1053
    %v3141 = vsel %vm3115, %v3059, %v1055
    %v3142 = vsel %vm3115, %v3060, %v1057
    %v3143 = vsel %vm3115, %v3061, %v1059
    %v3144 = vsel %vm3115, %v3062, %v1061
    %v3145 = vsel %vm3115, %v3063, %v1063
    %v3146 = vsel %vm3115, %v3064, %v1065
    %v3147 = vsel %vm3115, %v3065, %v1067
    %v3148 = vsel %vm3115, %v3066, %v1069
    %v3149 = vsel %vm3115, %v3067, %v1071
    %v3150 = vsel %vm3115, %v3068, %v1073
    %v3151 = vsel %vm3115, %v3069, %v1075
    %v3152 = vsel %vm3115, %v3070, %v1077
    %v3153 = vsel %vm3115, %v3071, %v1079
    %v3154 = vsel %vm3115, %v3072, %v1081
    %v3155 = vsel %vm3115, %v3073, %v1083
    %v3156 = vsel %vm3115, %v3074, %v1085
    %v3157 = vsel %vm3115, %v3075, %v1087
    %v3158 = vsel %vm3115, %v3076, %v1089
    %v3159 = vsel %vm3115, %v3077, %v1091
    %v3160 = vsel %vm3115, %v3078, %v1093
    %v3161 = vsel %vm3115, %v3079, %v1095
    %v3162 = vsel %vm3115, %v3080, %v1097
    %v3163 = vsel %vm3115, %v3081, %v1099
    %v3164 = vsel %vm3115, %v3082, %v1101
    %v3165 = vsel %vm3115, %v3083, %v1103
    %v3166 = vsel %vm3115, %v3084, %v1105
    %v3167 = vsel %vm3115, %v3085, %v1107
    %v3168 = vsel %vm3115, %v3086, %v1109
    %v3169 = vsel %vm3115, %v3087, %v1111
    %v3170 = vsel %vm3115, %v3088, %v1113
    %v3171 = vsel %vm3115, %v3089, %v1115
    %v3172 = vsel %vm3115, %v3090, %v1117
    %v3173 = vsel %vm3115, %v3091, %v1119
    %v3174 = vsel %vm3115, %v3092, %v1121
    %v3175 = vsel %vm3115, %v3093, %v1123
    %v3176 = vsel %vm3115, %v3094, %v1125
    %v3177 = vsel %vm3115, %v3095, %v1127
    %v3178 = vsel %vm3115, %v3096, %v1129
    %v3179 = vsel %vm3115, %v3097, %v1131
    %v3180 = vsel %vm3115, %v3098, %v1133
    %v3181 = vsel %vm3115, %v3099, %v1135
    %v3182 = vsel %vm3115, %v3100, %v1137
    %v3183 = vsel %vm3115, %v3101, %v1139
    %v3184 = vsel %vm3115, %v3102, %v1141
    %v3185 = vsel %vm3115, %v3103, %v1143
    %v3186 = vsel %vm3115, %v3104, %v1145
    %v3187 = vsel %vm3115, %v3105, %v1147
    %v3188 = vsel %vm3115, %v3106, %v1149
    %v3189 = vsel %vm3115, %v3107, %v1151
    %v3190 = vsel %vm3115, %v3108, %v1153
    %v3191 = vsel %vm3115, %v3109, %v1155
    %v3192 = vsel %vm3115, %v3110, %v1157
    %v3193 = vsel %vm3115, %v3111, %v1159
    %v3194 = vsel %vm3115, %v3112, %v1161
    %v3195 = vsel %vm3115, %v3113, %v1163
    %v3196 = vsel %vm3115, %v3114, %v1165
    %vm3197 = vcmask 72704
    %v3198 = vsel %vm3197, %v3116, %v1250
    %v3199 = vsel %vm3197, %v3117, %v1252
    %v3200 = vsel %vm3197, %v3118, %v1254
    %v3201 = vsel %vm3197, %v3119, %v1256
    %v3202 = vsel %vm3197, %v3120, %v1258
    %v3203 = vsel %vm3197, %v3121, %v1260
    %v3204 = vsel %vm3197, %v3122, %v1262
    %v3205 = vsel %vm3197, %v3123, %v1264
    %v3206 = vsel %vm3197, %v3124, %v1266
    %v3207 = vsel %vm3197, %v3125, %v1268
    %v3208 = vsel %vm3197, %v3126, %v1270
    %v3209 = vsel %vm3197, %v3127, %v1272
    %v3210 = vsel %vm3197, %v3128, %v1274
    %v3211 = vsel %vm3197, %v3129, %v1276
    %v3212 = vsel %vm3197, %v3130, %v1278
    %v3213 = vsel %vm3197, %v3131, %v1280
    %v3214 = vsel %vm3197, %v3132, %v1282
    %v3215 = vsel %vm3197, %v3133, %v1284
    %v3216 = vsel %vm3197, %v3134, %v1286
    %v3217 = vsel %vm3197, %v3135, %v1288
    %v3218 = vsel %vm3197, %v3136, %v1290
    %v3219 = vsel %vm3197, %v3137, %v1292
    %v3220 = vsel %vm3197, %v3138, %v1294
    %v3221 = vsel %vm3197, %v3139, %v1296
    %v3222 = vsel %vm3197, %v3140, %v1298
    %v3223 = vsel %vm3197, %v3141, %v1300
    %v3224 = vsel %vm3197, %v3142, %v1302
    %v3225 = vsel %vm3197, %v3143, %v1304
    %v3226 = vsel %vm3197, %v3144, %v1306
    %v3227 = vsel %vm3197, %v3145, %v1308
    %v3228 = vsel %vm3197, %v3146, %v1310
    %v3229 = vsel %vm3197, %v3147, %v1312
    %v3230 = vsel %vm3197, %v3148, %v1314
    %v3231 = vsel %vm3197, %v3149, %v1316
    %v3232 = vsel %vm3197, %v3150, %v1318
    %v3233 = vsel %vm3197, %v3151, %v1320
    %v3234 = vsel %vm3197, %v3152, %v1322
    %v3235 = vsel %vm3197, %v3153, %v1324
    %v3236 = vsel %vm3197, %v3154, %v1326
    %v3237 = vsel %vm3197, %v3155, %v1328
    %v3238 = vsel %vm3197, %v3156, %v1330
    %v3239 = vsel %vm3197, %v3157, %v1332
    %v3240 = vsel %vm3197, %v3158, %v1334
    %v3241 = vsel %vm3197, %v3159, %v1336
    %v3242 = vsel %vm3197, %v3160, %v1338
    %v3243 = vsel %vm3197, %v3161, %v1340
    %v3244 = vsel %vm3197, %v3162, %v1342
    %v3245 = vsel %vm3197, %v3163, %v1344
    %v3246 = vsel %vm3197, %v3164, %v1346
    %v3247 = vsel %vm3197, %v3165, %v1348
    %v3248 = vsel %vm3197, %v3166, %v1350
    %v3249 = vsel %vm3197, %v3167, %v1352
    %v3250 = vsel %vm3197, %v3168, %v1354
    %v3251 = vsel %vm3197, %v3169, %v1356
    %v3252 = vsel %vm3197, %v3170, %v1358
    %v3253 = vsel %vm3197, %v3171, %v1360
    %v3254 = vsel %vm3197, %v3172, %v1362
    %v3255 = vsel %vm3197, %v3173, %v1364
    %v3256 = vsel %vm3197, %v3174, %v1366
    %v3257 = vsel %vm3197, %v3175, %v1368
    %v3258 = vsel %vm3197, %v3176, %v1370
    %v3259 = vsel %vm3197, %v3177, %v1372
    %v3260 = vsel %vm3197, %v3178, %v1374
    %v3261 = vsel %vm3197, %v3179, %v1376
    %v3262 = vsel %vm3197, %v3180, %v1378
    %v3263 = vsel %vm3197, %v3181, %v1380
    %v3264 = vsel %vm3197, %v3182, %v1382
    %v3265 = vsel %vm3197, %v3183, %v1384
    %v3266 = vsel %vm3197, %v3184, %v1386
    %v3267 = vsel %vm3197, %v3185, %v1388
    %v3268 = vsel %vm3197, %v3186, %v1390
    %v3269 = vsel %vm3197, %v3187, %v1392
    %v3270 = vsel %vm3197, %v3188, %v1394
    %v3271 = vsel %vm3197, %v3189, %v1396
    %v3272 = vsel %vm3197, %v3190, %v1398
    %v3273 = vsel %vm3197, %v3191, %v1400
    %v3274 = vsel %vm3197, %v3192, %v1402
    %v3275 = vsel %vm3197, %v3193, %v1404
    %v3276 = vsel %vm3197, %v3194, %v1406
    %v3277 = vsel %vm3197, %v3195, %v1408
    %v3278 = vsel %vm3197, %v3196, %v1410
    %vm3279 = vcmask 97280
    %v3280 = vsel %vm3279, %v3198, %v1574
    %v3281 = vsel %vm3279, %v3199, %v1576
    %v3282 = vsel %vm3279, %v3200, %v1578
    %v3283 = vsel %vm3279, %v3201, %v1580
    %v3284 = vsel %vm3279, %v3202, %v1582
    %v3285 = vsel %vm3279, %v3203, %v1584
    %v3286 = vsel %vm3279, %v3204, %v1586
    %v3287 = vsel %vm3279, %v3205, %v1588
    %v3288 = vsel %vm3279, %v3206, %v1590
    %v3289 = vsel %vm3279, %v3207, %v1592
    %v3290 = vsel %vm3279, %v3208, %v1594
    %v3291 = vsel %vm3279, %v3209, %v1596
    %v3292 = vsel %vm3279, %v3210, %v1598
    %v3293 = vsel %vm3279, %v3211, %v1600
    %v3294 = vsel %vm3279, %v3212, %v1602
    %v3295 = vsel %vm3279, %v3213, %v1604
    %v3296 = vsel %vm3279, %v3214, %v1606
    %v3297 = vsel %vm3279, %v3215, %v1608
    %v3298 = vsel %vm3279, %v3216, %v1610
    %v3299 = vsel %vm3279, %v3217, %v1612
    %v3300 = vsel %vm3279, %v3218, %v1614
    %v3301 = vsel %vm3279, %v3219, %v1616
    %v3302 = vsel %vm3279, %v3220, %v1618
    %v3303 = vsel %vm3279, %v3221, %v1620
    %v3304 = vsel %vm3279, %v3222, %v1622
    %v3305 = vsel %vm3279, %v3223, %v1624
    %v3306 = vsel %vm3279, %v3224, %v1626
    %v3307 = vsel %vm3279, %v3225, %v1628
    %v3308 = vsel %vm3279, %v3226, %v1630
    %v3309 = vsel %vm3279, %v3227, %v1632
    %v3310 = vsel %vm3279, %v3228, %v1634
    %v3311 = vsel %vm3279, %v3229, %v1636
    %v3312 = vsel %vm3279, %v3230, %v1638
    %v3313 = vsel %vm3279, %v3231, %v1640
    %v3314 = vsel %vm3279, %v3232, %v1642
    %v3315 = vsel %vm3279, %v3233, %v1644
    %v3316 = vsel %vm3279, %v3234, %v1646
    %v3317 = vsel %vm3279, %v3235, %v1648
    %v3318 = vsel %vm3279, %v3236, %v1650
    %v3319 = vsel %vm3279, %v3237, %v1652
    %v3320 = vsel %vm3279, %v3238, %v1654
    %v3321 = vsel %vm3279, %v3239, %v1656
    %v3322 = vsel %vm3279, %v3240, %v1658
    %v3323 = vsel %vm3279, %v3241, %v1660
    %v3324 = vsel %vm3279, %v3242, %v1662
    %v3325 = vsel %vm3279, %v3243, %v1664
    %v3326 = vsel %vm3279, %v3244, %v1666
    %v3327 = vsel %vm3279, %v3245, %v1668
    %v3328 = vsel %vm3279, %v3246, %v1670
    %v3329 = vsel %vm3279, %v3247, %v1672
    %v3330 = vsel %vm3279, %v3248, %v1674
    %v3331 = vsel %vm3279, %v3249, %v1676
    %v3332 = vsel %vm3279, %v3250, %v1678
    %v3333 = vsel %vm3279, %v3251, %v1680
    %v3334 = vsel %vm3279, %v3252, %v1682
    %v3335 = vsel %vm3279, %v3253, %v1684
    %v3336 = vsel %vm3279, %v3254, %v1686
    %v3337 = vsel %vm3279, %v3255, %v1688
    %v3338 = vsel %vm3279, %v3256, %v1690
    %v3339 = vsel %vm3279, %v3257, %v1692
    %v3340 = vsel %vm3279, %v3258, %v1694
    %v3341 = vsel %vm3279, %v3259, %v1696
    %v3342 = vsel %vm3279, %v3260, %v1698
    %v3343 = vsel %vm3279, %v3261, %v1700
    %v3344 = vsel %vm3279, %v3262, %v1702
    %v3345 = vsel %vm3279, %v3263, %v1704
    %v3346 = vsel %vm3279, %v3264, %v1706
    %v3347 = vsel %vm3279, %v3265, %v1708
    %v3348 = vsel %vm3279, %v3266, %v1710
    %v3349 = vsel %vm3279, %v3267, %v1712
    %v3350 = vsel %vm3279, %v3268, %v1714
    %v3351 = vsel %vm3279, %v3269, %v1716
    %v3352 = vsel %vm3279, %v3270, %v1718
    %v3353 = vsel %vm3279, %v3271, %v1720
    %v3354 = vsel %vm3279, %v3272, %v1722
    %v3355 = vsel %vm3279, %v3273, %v1724
    %v3356 = vsel %vm3279, %v3274, %v1726
    %v3357 = vsel %vm3279, %v3275, %v1728
    %v3358 = vsel %vm3279, %v3276, %v1730
    %v3359 = vsel %vm3279, %v3277, %v1732
    %v3360 = vsel %vm3279, %v3278, %v1734
    %vm3361 = vcmask 121856
    %v3362 = vsel %vm3361, %v3280, %v1898
    %v3363 = vsel %vm3361, %v3281, %v1900
    %v3364 = vsel %vm3361, %v3282, %v1902
    %v3365 = vsel %vm3361, %v3283, %v1904
    %v3366 = vsel %vm3361, %v3284, %v1906
    %v3367 = vsel %vm3361, %v3285, %v1908
    %v3368 = vsel %vm3361, %v3286, %v1910
    %v3369 = vsel %vm3361, %v3287, %v1912
    %v3370 = vsel %vm3361, %v3288, %v1914
    %v3371 = vsel %vm3361, %v3289, %v1916
    %v3372 = vsel %vm3361, %v3290, %v1918
    %v3373 = vsel %vm3361, %v3291, %v1920
    %v3374 = vsel %vm3361, %v3292, %v1922
    %v3375 = vsel %vm3361, %v3293, %v1924
    %v3376 = vsel %vm3361, %v3294, %v1926
    %v3377 = vsel %vm3361, %v3295, %v1928
    %v3378 = vsel %vm3361, %v3296, %v1930
    %v3379 = vsel %vm3361, %v3297, %v1932
    %v3380 = vsel %vm3361, %v3298, %v1934
    %v3381 = vsel %vm3361, %v3299, %v1936
    %v3382 = vsel %vm3361, %v3300, %v1938
    %v3383 = vsel %vm3361, %v3301, %v1940
    %v3384 = vsel %vm3361, %v3302, %v1942
    %v3385 = vsel %vm3361, %v3303, %v1944
    %v3386 = vsel %vm3361, %v3304, %v1946
    %v3387 = vsel %vm3361, %v3305, %v1948
    %v3388 = vsel %vm3361, %v3306, %v1950
    %v3389 = vsel %vm3361, %v3307, %v1952
    %v3390 = vsel %vm3361, %v3308, %v1954
    %v3391 = vsel %vm3361, %v3309, %v1956
    %v3392 = vsel %vm3361, %v3310, %v1958
    %v3393 = vsel %vm3361, %v3311, %v1960
    %v3394 = vsel %vm3361, %v3312, %v1962
    %v3395 = vsel %vm3361, %v3313, %v1964
    %v3396 = vsel %vm3361, %v3314, %v1966
    %v3397 = vsel %vm3361, %v3315, %v1968
    %v3398 = vsel %vm3361, %v3316, %v1970
    %v3399 = vsel %vm3361, %v3317, %v1972
    %v3400 = vsel %vm3361, %v3318, %v1974
    %v3401 = vsel %vm3361, %v3319, %v1976
    %v3402 = vsel %vm3361, %v3320, %v1978
    %v3403 = vsel %vm3361, %v3321, %v1980
    %v3404 = vsel %vm3361, %v3322, %v1982
    %v3405 = vsel %vm3361, %v3323, %v1984
    %v3406 = vsel %vm3361, %v3324, %v1986
    %v3407 = vsel %vm3361, %v3325, %v1988
    %v3408 = vsel %vm3361, %v3326, %v1990
    %v3409 = vsel %vm3361, %v3327, %v1992
    %v3410 = vsel %vm3361, %v3328, %v1994
    %v3411 = vsel %vm3361, %v3329, %v1996
    %v3412 = vsel %vm3361, %v3330, %v1998
    %v3413 = vsel %vm3361, %v3331, %v2000
    %v3414 = vsel %vm3361, %v3332, %v2002
    %v3415 = vsel %vm3361, %v3333, %v2004
    %v3416 = vsel %vm3361, %v3334, %v2006
    %v3417 = vsel %vm3361, %v3335, %v2008
    %v3418 = vsel %vm3361, %v3336, %v2010
    %v3419 = vsel %vm3361, %v3337, %v2012
    %v3420 = vsel %vm3361, %v3338, %v2014
    %v3421 = vsel %vm3361, %v3339, %v2016
    %v3422 = vsel %vm3361, %v3340, %v2018
    %v3423 = vsel %vm3361, %v3341, %v2020
    %v3424 = vsel %vm3361, %v3342, %v2022
    %v3425 = vsel %vm3361, %v3343, %v2024
    %v3426 = vsel %vm3361, %v3344, %v2026
    %v3427 = vsel %vm3361, %v3345, %v2028
    %v3428 = vsel %vm3361, %v3346, %v2030
    %v3429 = vsel %vm3361, %v3347, %v2032
    %v3430 = vsel %vm3361, %v3348, %v2034
    %v3431 = vsel %vm3361, %v3349, %v2036
    %v3432 = vsel %vm3361, %v3350, %v2038
    %v3433 = vsel %vm3361, %v3351, %v2040
    %v3434 = vsel %vm3361, %v3352, %v2042
    %v3435 = vsel %vm3361, %v3353, %v2044
    %v3436 = vsel %vm3361, %v3354, %v2046
    %v3437 = vsel %vm3361, %v3355, %v2048
    %v3438 = vsel %vm3361, %v3356, %v2050
    %v3439 = vsel %vm3361, %v3357, %v2052
    %v3440 = vsel %vm3361, %v3358, %v2054
    %v3441 = vsel %vm3361, %v3359, %v2056
    %v3442 = vsel %vm3361, %v3360, %v2058
    %vm3443 = vcmask 146432
    %v3444 = vsel %vm3443, %v3362, %v2143
    %v3445 = vsel %vm3443, %v3363, %v2145
    %v3446 = vsel %vm3443, %v3364, %v2147
    %v3447 = vsel %vm3443, %v3365, %v2149
    %v3448 = vsel %vm3443, %v3366, %v2151
    %v3449 = vsel %vm3443, %v3367, %v2153
    %v3450 = vsel %vm3443, %v3368, %v2155
    %v3451 = vsel %vm3443, %v3369, %v2157
    %v3452 = vsel %vm3443, %v3370, %v2159
    %v3453 = vsel %vm3443, %v3371, %v2161
    %v3454 = vsel %vm3443, %v3372, %v2163
    %v3455 = vsel %vm3443, %v3373, %v2165
    %v3456 = vsel %vm3443, %v3374, %v2167
    %v3457 = vsel %vm3443, %v3375, %v2169
    %v3458 = vsel %vm3443, %v3376, %v2171
    %v3459 = vsel %vm3443, %v3377, %v2173
    %v3460 = vsel %vm3443, %v3378, %v2175
    %v3461 = vsel %vm3443, %v3379, %v2177
    %v3462 = vsel %vm3443, %v3380, %v2179
    %v3463 = vsel %vm3443, %v3381, %v2181
    %v3464 = vsel %vm3443, %v3382, %v2183
    %v3465 = vsel %vm3443, %v3383, %v2185
    %v3466 = vsel %vm3443, %v3384, %v2187
    %v3467 = vsel %vm3443, %v3385, %v2189
    %v3468 = vsel %vm3443, %v3386, %v2191
    %v3469 = vsel %vm3443, %v3387, %v2193
    %v3470 = vsel %vm3443, %v3388, %v2195
    %v3471 = vsel %vm3443, %v3389, %v2197
    %v3472 = vsel %vm3443, %v3390, %v2199
    %v3473 = vsel %vm3443, %v3391, %v2201
    %v3474 = vsel %vm3443, %v3392, %v2203
    %v3475 = vsel %vm3443, %v3393, %v2205
    %v3476 = vsel %vm3443, %v3394, %v2207
    %v3477 = vsel %vm3443, %v3395, %v2209
    %v3478 = vsel %vm3443, %v3396, %v2211
    %v3479 = vsel %vm3443, %v3397, %v2213
    %v3480 = vsel %vm3443, %v3398, %v2215
    %v3481 = vsel %vm3443, %v3399, %v2217
    %v3482 = vsel %vm3443, %v3400, %v2219
    %v3483 = vsel %vm3443, %v3401, %v2221
    %v3484 = vsel %vm3443, %v3402, %v2223
    %v3485 = vsel %vm3443, %v3403, %v2225
    %v3486 = vsel %vm3443, %v3404, %v2227
    %v3487 = vsel %vm3443, %v3405, %v2229
    %v3488 = vsel %vm3443, %v3406, %v2231
    %v3489 = vsel %vm3443, %v3407, %v2233
    %v3490 = vsel %vm3443, %v3408, %v2235
    %v3491 = vsel %vm3443, %v3409, %v2237
    %v3492 = vsel %vm3443, %v3410, %v2239
    %v3493 = vsel %vm3443, %v3411, %v2241
    %v3494 = vsel %vm3443, %v3412, %v2243
    %v3495 = vsel %vm3443, %v3413, %v2245
    %v3496 = vsel %vm3443, %v3414, %v2247
    %v3497 = vsel %vm3443, %v3415, %v2249
    %v3498 = vsel %vm3443, %v3416, %v2251
    %v3499 = vsel %vm3443, %v3417, %v2253
    %v3500 = vsel %vm3443, %v3418, %v2255
    %v3501 = vsel %vm3443, %v3419, %v2257
    %v3502 = vsel %vm3443, %v3420, %v2259
    %v3503 = vsel %vm3443, %v3421, %v2261
    %v3504 = vsel %vm3443, %v3422, %v2263
    %v3505 = vsel %vm3443, %v3423, %v2265
    %v3506 = vsel %vm3443, %v3424, %v2267
    %v3507 = vsel %vm3443, %v3425, %v2269
    %v3508 = vsel %vm3443, %v3426, %v2271
    %v3509 = vsel %vm3443, %v3427, %v2273
    %v3510 = vsel %vm3443, %v3428, %v2275
    %v3511 = vsel %vm3443, %v3429, %v2277
    %v3512 = vsel %vm3443, %v3430, %v2279
    %v3513 = vsel %vm3443, %v3431, %v2281
    %v3514 = vsel %vm3443, %v3432, %v2283
    %v3515 = vsel %vm3443, %v3433, %v2285
    %v3516 = vsel %vm3443, %v3434, %v2287
    %v3517 = vsel %vm3443, %v3435, %v2289
    %v3518 = vsel %vm3443, %v3436, %v2291
    %v3519 = vsel %vm3443, %v3437, %v2293
    %v3520 = vsel %vm3443, %v3438, %v2295
    %v3521 = vsel %vm3443, %v3439, %v2297
    %v3522 = vsel %vm3443, %v3440, %v2299
    %v3523 = vsel %vm3443, %v3441, %v2301
    %v3524 = vsel %vm3443, %v3442, %v2303
    %vm3525 = vcmask 171008
    %v3526 = vsel %vm3525, %v3444, %v2467
    %v3527 = vsel %vm3525, %v3445, %v2469
    %v3528 = vsel %vm3525, %v3446, %v2471
    %v3529 = vsel %vm3525, %v3447, %v2473
    %v3530 = vsel %vm3525, %v3448, %v2475
    %v3531 = vsel %vm3525, %v3449, %v2477
    %v3532 = vsel %vm3525, %v3450, %v2479
    %v3533 = vsel %vm3525, %v3451, %v2481
    %v3534 = vsel %vm3525, %v3452, %v2483
    %v3535 = vsel %vm3525, %v3453, %v2485
    %v3536 = vsel %vm3525, %v3454, %v2487
    %v3537 = vsel %vm3525, %v3455, %v2489
    %v3538 = vsel %vm3525, %v3456, %v2491
    %v3539 = vsel %vm3525, %v3457, %v2493
    %v3540 = vsel %vm3525, %v3458, %v2495
    %v3541 = vsel %vm3525, %v3459, %v2497
    %v3542 = vsel %vm3525, %v3460, %v2499
    %v3543 = vsel %vm3525, %v3461, %v2501
    %v3544 = vsel %vm3525, %v3462, %v2503
    %v3545 = vsel %vm3525, %v3463, %v2505
    %v3546 = vsel %vm3525, %v3464, %v2507
    %v3547 = vsel %vm3525, %v3465, %v2509
    %v3548 = vsel %vm3525, %v3466, %v2511
    %v3549 = vsel %vm3525, %v3467, %v2513
    %v3550 = vsel %vm3525, %v3468, %v2515
    %v3551 = vsel %vm3525, %v3469, %v2517
    %v3552 = vsel %vm3525, %v3470, %v2519
    %v3553 = vsel %vm3525, %v3471, %v2521
    %v3554 = vsel %vm3525, %v3472, %v2523
    %v3555 = vsel %vm3525, %v3473, %v2525
    %v3556 = vsel %vm3525, %v3474, %v2527
    %v3557 = vsel %vm3525, %v3475, %v2529
    %v3558 = vsel %vm3525, %v3476, %v2531
    %v3559 = vsel %vm3525, %v3477, %v2533
    %v3560 = vsel %vm3525, %v3478, %v2535
    %v3561 = vsel %vm3525, %v3479, %v2537
    %v3562 = vsel %vm3525, %v3480, %v2539
    %v3563 = vsel %vm3525, %v3481, %v2541
    %v3564 = vsel %vm3525, %v3482, %v2543
    %v3565 = vsel %vm3525, %v3483, %v2545
    %v3566 = vsel %vm3525, %v3484, %v2547
    %v3567 = vsel %vm3525, %v3485, %v2549
    %v3568 = vsel %vm3525, %v3486, %v2551
    %v3569 = vsel %vm3525, %v3487, %v2553
    %v3570 = vsel %vm3525, %v3488, %v2555
    %v3571 = vsel %vm3525, %v3489, %v2557
    %v3572 = vsel %vm3525, %v3490, %v2559
    %v3573 = vsel %vm3525, %v3491, %v2561
    %v3574 = vsel %vm3525, %v3492, %v2563
    %v3575 = vsel %vm3525, %v3493, %v2565
    %v3576 = vsel %vm3525, %v3494, %v2567
    %v3577 = vsel %vm3525, %v3495, %v2569
    %v3578 = vsel %vm3525, %v3496, %v2571
    %v3579 = vsel %vm3525, %v3497, %v2573
    %v3580 = vsel %vm3525, %v3498, %v2575
    %v3581 = vsel %vm3525, %v3499, %v2577
    %v3582 = vsel %vm3525, %v3500, %v2579
    %v3583 = vsel %vm3525, %v3501, %v2581
    %v3584 = vsel %vm3525, %v3502, %v2583
    %v3585 = vsel %vm3525, %v3503, %v2585
    %v3586 = vsel %vm3525, %v3504, %v2587
    %v3587 = vsel %vm3525, %v3505, %v2589
    %v3588 = vsel %vm3525, %v3506, %v2591
    %v3589 = vsel %vm3525, %v3507, %v2593
    %v3590 = vsel %vm3525, %v3508, %v2595
    %v3591 = vsel %vm3525, %v3509, %v2597
    %v3592 = vsel %vm3525, %v3510, %v2599
    %v3593 = vsel %vm3525, %v3511, %v2601
    %v3594 = vsel %vm3525, %v3512, %v2603
    %v3595 = vsel %vm3525, %v3513, %v2605
    %v3596 = vsel %vm3525, %v3514, %v2607
    %v3597 = vsel %vm3525, %v3515, %v2609
    %v3598 = vsel %vm3525, %v3516, %v2611
    %v3599 = vsel %vm3525, %v3517, %v2613
    %v3600 = vsel %vm3525, %v3518, %v2615
    %v3601 = vsel %vm3525, %v3519, %v2617
    %v3602 = vsel %vm3525, %v3520, %v2619
    %v3603 = vsel %vm3525, %v3521, %v2621
    %v3604 = vsel %vm3525, %v3522, %v2623
    %v3605 = vsel %vm3525, %v3523, %v2625
    %v3606 = vsel %vm3525, %v3524, %v2627
    %vm3607 = vcmask 195584
    %v3608 = vsel %vm3607, %v3526, %v2791
    %v3609 = vsel %vm3607, %v3527, %v2793
    %v3610 = vsel %vm3607, %v3528, %v2795
    %v3611 = vsel %vm3607, %v3529, %v2797
    %v3612 = vsel %vm3607, %v3530, %v2799
    %v3613 = vsel %vm3607, %v3531, %v2801
    %v3614 = vsel %vm3607, %v3532, %v2803
    %v3615 = vsel %vm3607, %v3533, %v2805
    %v3616 = vsel %vm3607, %v3534, %v2807
    %v3617 = vsel %vm3607, %v3535, %v2809
    %v3618 = vsel %vm3607, %v3536, %v2811
    %v3619 = vsel %vm3607, %v3537, %v2813
    %v3620 = vsel %vm3607, %v3538, %v2815
    %v3621 = vsel %vm3607, %v3539, %v2817
    %v3622 = vsel %vm3607, %v3540, %v2819
    %v3623 = vsel %vm3607, %v3541, %v2821
    %v3624 = vsel %vm3607, %v3542, %v2823
    %v3625 = vsel %vm3607, %v3543, %v2825
    %v3626 = vsel %vm3607, %v3544, %v2827
    %v3627 = vsel %vm3607, %v3545, %v2829
    %v3628 = vsel %vm3607, %v3546, %v2831
    %v3629 = vsel %vm3607, %v3547, %v2833
    %v3630 = vsel %vm3607, %v3548, %v2835
    %v3631 = vsel %vm3607, %v3549, %v2837
    %v3632 = vsel %vm3607, %v3550, %v2839
    %v3633 = vsel %vm3607, %v3551, %v2841
    %v3634 = vsel %vm3607, %v3552, %v2843
    %v3635 = vsel %vm3607, %v3553, %v2845
    %v3636 = vsel %vm3607, %v3554, %v2847
    %v3637 = vsel %vm3607, %v3555, %v2849
    %v3638 = vsel %vm3607, %v3556, %v2851
    %v3639 = vsel %vm3607, %v3557, %v2853
    %v3640 = vsel %vm3607, %v3558, %v2855
    %v3641 = vsel %vm3607, %v3559, %v2857
    %v3642 = vsel %vm3607, %v3560, %v2859
    %v3643 = vsel %vm3607, %v3561, %v2861
    %v3644 = vsel %vm3607, %v3562, %v2863
    %v3645 = vsel %vm3607, %v3563, %v2865
    %v3646 = vsel %vm3607, %v3564, %v2867
    %v3647 = vsel %vm3607, %v3565, %v2869
    %v3648 = vsel %vm3607, %v3566, %v2871
    %v3649 = vsel %vm3607, %v3567, %v2873
    %v3650 = vsel %vm3607, %v3568, %v2875
    %v3651 = vsel %vm3607, %v3569, %v2877
    %v3652 = vsel %vm3607, %v3570, %v2879
    %v3653 = vsel %vm3607, %v3571, %v2881
    %v3654 = vsel %vm3607, %v3572, %v2883
    %v3655 = vsel %vm3607, %v3573, %v2885
    %v3656 = vsel %vm3607, %v3574, %v2887
    %v3657 = vsel %vm3607, %v3575, %v2889
    %v3658 = vsel %vm3607, %v3576, %v2891
    %v3659 = vsel %vm3607, %v3577, %v2893
    %v3660 = vsel %vm3607, %v3578, %v2895
    %v3661 = vsel %vm3607, %v3579, %v2897
    %v3662 = vsel %vm3607, %v3580, %v2899
    %v3663 = vsel %vm3607, %v3581, %v2901
    %v3664 = vsel %vm3607, %v3582, %v2903
    %v3665 = vsel %vm3607, %v3583, %v2905
    %v3666 = vsel %vm3607, %v3584, %v2907
    %v3667 = vsel %vm3607, %v3585, %v2909
    %v3668 = vsel %vm3607, %v3586, %v2911
    %v3669 = vsel %vm3607, %v3587, %v2913
    %v3670 = vsel %vm3607, %v3588, %v2915
    %v3671 = vsel %vm3607, %v3589, %v2917
    %v3672 = vsel %vm3607, %v3590, %v2919
    %v3673 = vsel %vm3607, %v3591, %v2921
    %v3674 = vsel %vm3607, %v3592, %v2923
    %v3675 = vsel %vm3607, %v3593, %v2925
    %v3676 = vsel %vm3607, %v3594, %v2927
    %v3677 = vsel %vm3607, %v3595, %v2929
    %v3678 = vsel %vm3607, %v3596, %v2931
    %v3679 = vsel %vm3607, %v3597, %v2933
    %v3680 = vsel %vm3607, %v3598, %v2935
    %v3681 = vsel %vm3607, %v3599, %v2937
    %v3682 = vsel %vm3607, %v3600, %v2939
    %v3683 = vsel %vm3607, %v3601, %v2941
    %v3684 = vsel %vm3607, %v3602, %v2943
    %v3685 = vsel %vm3607, %v3603, %v2945
    %v3686 = vsel %vm3607, %v3604, %v2947
    %v3687 = vsel %vm3607, %v3605, %v2949
    %v3688 = vsel %vm3607, %v3606, %v2951
    %v3689 = vpack.c.bf16 %v3609, %v3608
    %v3690 = vpack.c.bf16 %v3611, %v3610
    %v3691 = vpack.c.bf16 %v3613, %v3612
    %v3692 = vpack.c.bf16 %v3615, %v3614
    %v3693 = vpack.c.bf16 %v3617, %v3616
    %v3694 = vpack.c.bf16 %v3619, %v3618
    %v3695 = vpack.c.bf16 %v3621, %v3620
    %v3696 = vpack.c.bf16 %v3623, %v3622
    %v3697 = vpack.c.bf16 %v3625, %v3624
    %v3698 = vpack.c.bf16 %v3627, %v3626
    %v3699 = vpack.c.bf16 %v3629, %v3628
    %v3700 = vpack.c.bf16 %v3631, %v3630
    %v3701 = vpack.c.bf16 %v3633, %v3632
    %v3702 = vpack.c.bf16 %v3635, %v3634
    %v3703 = vpack.c.bf16 %v3637, %v3636
    %v3704 = vpack.c.bf16 %v3639, %v3638
    %v3705 = vpack.c.bf16 %v3641, %v3640
    %v3706 = vpack.c.bf16 %v3643, %v3642
    %v3707 = vpack.c.bf16 %v3645, %v3644
    %v3708 = vpack.c.bf16 %v3647, %v3646
    %v3709 = vpack.c.bf16 %v3649, %v3648
    %v3710 = vpack.c.bf16 %v3651, %v3650
    %v3711 = vpack.c.bf16 %v3653, %v3652
    %v3712 = vpack.c.bf16 %v3655, %v3654
    %v3713 = vpack.c.bf16 %v3657, %v3656
    %v3714 = vpack.c.bf16 %v3659, %v3658
    %v3715 = vpack.c.bf16 %v3661, %v3660
    %v3716 = vpack.c.bf16 %v3663, %v3662
    %v3717 = vpack.c.bf16 %v3665, %v3664
    %v3718 = vpack.c.bf16 %v3667, %v3666
    %v3719 = vpack.c.bf16 %v3669, %v3668
    %v3720 = vpack.c.bf16 %v3671, %v3670
    %v3721 = vpack.c.bf16 %v3673, %v3672
    %v3722 = vpack.c.bf16 %v3675, %v3674
    %v3723 = vpack.c.bf16 %v3677, %v3676
    %v3724 = vpack.c.bf16 %v3679, %v3678
    %v3725 = vpack.c.bf16 %v3681, %v3680
    %v3726 = vpack.c.bf16 %v3683, %v3682
    %v3727 = vpack.c.bf16 %v3685, %v3684
    %v3728 = vpack.c.bf16 %v3687, %v3686
    %v3729 = vpack.c.bf16 %v3688, %v3688
    %v3730 = vld [vmem:[%s1] sm:$0xf]
    %v3731 = vld [vmem:[%s1 + $0x4] sm:$0xf]
    %v3732 = vld [vmem:[%s1 + $0x8] sm:$0xf]
    %v3733 = vld [vmem:[%s1 + $0xc] sm:$0x3]
    %v3738 = vunpack.c.l.b16 %v3730
    %v3739 = vunpack.c.l.b16 %v3731
    %v3740 = vunpack.c.l.b16 %v3732
    %v3741 = vunpack.c.l.b16 %v3733
    %v3742 = vpack.c.b16 %v3739, %v3738
    %v3743 = vpack.c.b16 %v3741, %v3740
    %vm3745 = vcmask 220160
    %v3747 = vsel %vm3745, %v3689, 0
    %v3750 = vsel %vm3745, %v3690, 0
    %v3753 = vsel %vm3745, %v3691, 0
    %v3756 = vsel %vm3745, %v3692, 0
    %v3759 = vsel %vm3745, %v3693, 0
    %v3762 = vsel %vm3745, %v3694, 0
    %v3765 = vsel %vm3745, %v3695, 0
    %v3768 = vsel %vm3745, %v3696, 0
    %v3771 = vsel %vm3745, %v3697, 0
    %v3774 = vsel %vm3745, %v3698, 0
    %v3777 = vsel %vm3745, %v3699, 0
    %v3780 = vsel %vm3745, %v3700, 0
    %v3783 = vsel %vm3745, %v3701, 0
    %v3786 = vsel %vm3745, %v3702, 0
    %v3789 = vsel %vm3745, %v3703, 0
    %v3792 = vsel %vm3745, %v3704, 0
    %v3795 = vsel %vm3745, %v3705, 0
    %v3798 = vsel %vm3745, %v3706, 0
    %v3801 = vsel %vm3745, %v3707, 0
    %v3804 = vsel %vm3745, %v3708, 0
    %v3807 = vsel %vm3745, %v3709, 0
    %v3810 = vsel %vm3745, %v3710, 0
    %v3813 = vsel %vm3745, %v3711, 0
    %v3816 = vsel %vm3745, %v3712, 0
    %v3819 = vsel %vm3745, %v3713, 0
    %v3822 = vsel %vm3745, %v3714, 0
    %v3825 = vsel %vm3745, %v3715, 0
    %v3828 = vsel %vm3745, %v3716, 0
    %v3831 = vsel %vm3745, %v3717, 0
    %v3834 = vsel %vm3745, %v3718, 0
    %v3837 = vsel %vm3745, %v3719, 0
    %v3840 = vsel %vm3745, %v3720, 0
    %v3843 = vsel %vm3745, %v3721, 0
    %v3846 = vsel %vm3745, %v3722, 0
    %v3849 = vsel %vm3745, %v3723, 0
    %v3852 = vsel %vm3745, %v3724, 0
    %v3855 = vsel %vm3745, %v3725, 0
    %v3858 = vsel %vm3745, %v3726, 0
    %v3861 = vsel %vm3745, %v3727, 0
    %v3864 = vsel %vm3745, %v3728, 0
    %v3867 = vsel %vm3745, %v3729, 0
    %vm3869 = vcmask 1044480
    %vm3870 = vcmask 1045504
    %v3871 = vsel %vm3869, 4294967295, 65535
    %v3872 = vsel %vm3870, %v3871, 0
    %v3874 = vand.u32 %v3743, %v3872
    %3876 = vmatpush.bf16.msra.mxu0 0
    %3877 = vmatpush.bf16.msra.mxu0 0
    %3878 = vmatpush.bf16.msra.mxu0 0
    %3879 = vmatpush.bf16.msra.mxu0 0
    %3880 = vmatpush.bf16.msra.mxu0 0
    %3881 = vmatpush.bf16.msra.mxu0 0
    %3882 = vmatpush.bf16.msra.mxu0 %v3874
    %3883 = vmatpush.bf16.msra.mxu0 %v3742
    %3884 = vmatmul.bf16.gmra.mxu0 %v3747
    %v3885 = vpop.f32.mrf.mxu0
    %v3886 = vadd.f32 0.0, %v3885
    %v3887 = vpop.f32.mrf.mxu0
    %v3888 = vadd.f32 0.0, %v3887
    %3889 = vmatmul.bf16.gmra.mxu0 %v3750
    %v3890 = vpop.f32.mrf.mxu0
    %v3891 = vadd.f32 0.0, %v3890
    %v3892 = vpop.f32.mrf.mxu0
    %v3893 = vadd.f32 0.0, %v3892
    %3894 = vmatmul.bf16.gmra.mxu0 %v3753
    %v3895 = vpop.f32.mrf.mxu0
    %v3896 = vadd.f32 0.0, %v3895
    %v3897 = vpop.f32.mrf.mxu0
    %v3898 = vadd.f32 0.0, %v3897
    %3899 = vmatmul.bf16.gmra.mxu0 %v3756
    %v3900 = vpop.f32.mrf.mxu0
    %v3901 = vadd.f32 0.0, %v3900
    %v3902 = vpop.f32.mrf.mxu0
    %v3903 = vadd.f32 0.0, %v3902
    %3904 = vmatmul.bf16.gmra.mxu0 %v3759
    %v3905 = vpop.f32.mrf.mxu0
    %v3906 = vadd.f32 0.0, %v3905
    %v3907 = vpop.f32.mrf.mxu0
    %v3908 = vadd.f32 0.0, %v3907
    %3909 = vmatmul.bf16.gmra.mxu0 %v3762
    %v3910 = vpop.f32.mrf.mxu0
    %v3911 = vadd.f32 0.0, %v3910
    %v3912 = vpop.f32.mrf.mxu0
    %v3913 = vadd.f32 0.0, %v3912
    %3914 = vmatmul.bf16.gmra.mxu0 %v3765
    %v3915 = vpop.f32.mrf.mxu0
    %v3916 = vadd.f32 0.0, %v3915
    %v3917 = vpop.f32.mrf.mxu0
    %v3918 = vadd.f32 0.0, %v3917
    %3919 = vmatmul.bf16.gmra.mxu0 %v3768
    %v3920 = vpop.f32.mrf.mxu0
    %v3921 = vadd.f32 0.0, %v3920
    %v3922 = vpop.f32.mrf.mxu0
    %v3923 = vadd.f32 0.0, %v3922
    %3924 = vmatmul.bf16.gmra.mxu0 %v3771
    %v3925 = vpop.f32.mrf.mxu0
    %v3926 = vadd.f32 0.0, %v3925
    %v3927 = vpop.f32.mrf.mxu0
    %v3928 = vadd.f32 0.0, %v3927
    %3929 = vmatmul.bf16.gmra.mxu0 %v3774
    %v3930 = vpop.f32.mrf.mxu0
    %v3931 = vadd.f32 0.0, %v3930
    %v3932 = vpop.f32.mrf.mxu0
    %v3933 = vadd.f32 0.0, %v3932
    %3934 = vmatmul.bf16.gmra.mxu0 %v3777
    %v3935 = vpop.f32.mrf.mxu0
    %v3936 = vadd.f32 0.0, %v3935
    %v3937 = vpop.f32.mrf.mxu0
    %v3938 = vadd.f32 0.0, %v3937
    %3939 = vmatmul.bf16.gmra.mxu0 %v3780
    %v3940 = vpop.f32.mrf.mxu0
    %v3941 = vadd.f32 0.0, %v3940
    %v3942 = vpop.f32.mrf.mxu0
    %v3943 = vadd.f32 0.0, %v3942
    %3944 = vmatmul.bf16.gmra.mxu0 %v3783
    %v3945 = vpop.f32.mrf.mxu0
    %v3946 = vadd.f32 0.0, %v3945
    %v3947 = vpop.f32.mrf.mxu0
    %v3948 = vadd.f32 0.0, %v3947
    %3949 = vmatmul.bf16.gmra.mxu0 %v3786
    %v3950 = vpop.f32.mrf.mxu0
    %v3951 = vadd.f32 0.0, %v3950
    %v3952 = vpop.f32.mrf.mxu0
    %v3953 = vadd.f32 0.0, %v3952
    %3954 = vmatmul.bf16.gmra.mxu0 %v3789
    %v3955 = vpop.f32.mrf.mxu0
    %v3956 = vadd.f32 0.0, %v3955
    %v3957 = vpop.f32.mrf.mxu0
    %v3958 = vadd.f32 0.0, %v3957
    %3959 = vmatmul.bf16.gmra.mxu0 %v3792
    %v3960 = vpop.f32.mrf.mxu0
    %v3961 = vadd.f32 0.0, %v3960
    %v3962 = vpop.f32.mrf.mxu0
    %v3963 = vadd.f32 0.0, %v3962
    %3964 = vmatmul.bf16.gmra.mxu0 %v3795
    %v3965 = vpop.f32.mrf.mxu0
    %v3966 = vadd.f32 0.0, %v3965
    %v3967 = vpop.f32.mrf.mxu0
    %v3968 = vadd.f32 0.0, %v3967
    %3969 = vmatmul.bf16.gmra.mxu0 %v3798
    %v3970 = vpop.f32.mrf.mxu0
    %v3971 = vadd.f32 0.0, %v3970
    %v3972 = vpop.f32.mrf.mxu0
    %v3973 = vadd.f32 0.0, %v3972
    %3974 = vmatmul.bf16.gmra.mxu0 %v3801
    %v3975 = vpop.f32.mrf.mxu0
    %v3976 = vadd.f32 0.0, %v3975
    %v3977 = vpop.f32.mrf.mxu0
    %v3978 = vadd.f32 0.0, %v3977
    %3979 = vmatmul.bf16.gmra.mxu0 %v3804
    %v3980 = vpop.f32.mrf.mxu0
    %v3981 = vadd.f32 0.0, %v3980
    %v3982 = vpop.f32.mrf.mxu0
    %v3983 = vadd.f32 0.0, %v3982
    %3984 = vmatmul.bf16.gmra.mxu0 %v3807
    %v3985 = vpop.f32.mrf.mxu0
    %v3986 = vadd.f32 0.0, %v3985
    %v3987 = vpop.f32.mrf.mxu0
    %v3988 = vadd.f32 0.0, %v3987
    %3989 = vmatmul.bf16.gmra.mxu0 %v3810
    %v3990 = vpop.f32.mrf.mxu0
    %v3991 = vadd.f32 0.0, %v3990
    %v3992 = vpop.f32.mrf.mxu0
    %v3993 = vadd.f32 0.0, %v3992
    %3994 = vmatmul.bf16.gmra.mxu0 %v3813
    %v3995 = vpop.f32.mrf.mxu0
    %v3996 = vadd.f32 0.0, %v3995
    %v3997 = vpop.f32.mrf.mxu0
    %v3998 = vadd.f32 0.0, %v3997
    %3999 = vmatmul.bf16.gmra.mxu0 %v3816
    %v4000 = vpop.f32.mrf.mxu0
    %v4001 = vadd.f32 0.0, %v4000
    %v4002 = vpop.f32.mrf.mxu0
    %v4003 = vadd.f32 0.0, %v4002
    %4004 = vmatmul.bf16.gmra.mxu0 %v3819
    %v4005 = vpop.f32.mrf.mxu0
    %v4006 = vadd.f32 0.0, %v4005
    %v4007 = vpop.f32.mrf.mxu0
    %v4008 = vadd.f32 0.0, %v4007
    %4009 = vmatmul.bf16.gmra.mxu0 %v3822
    %v4010 = vpop.f32.mrf.mxu0
    %v4011 = vadd.f32 0.0, %v4010
    %v4012 = vpop.f32.mrf.mxu0
    %v4013 = vadd.f32 0.0, %v4012
    %4014 = vmatmul.bf16.gmra.mxu0 %v3825
    %v4015 = vpop.f32.mrf.mxu0
    %v4016 = vadd.f32 0.0, %v4015
    %v4017 = vpop.f32.mrf.mxu0
    %v4018 = vadd.f32 0.0, %v4017
    %4019 = vmatmul.bf16.gmra.mxu0 %v3828
    %v4020 = vpop.f32.mrf.mxu0
    %v4021 = vadd.f32 0.0, %v4020
    %v4022 = vpop.f32.mrf.mxu0
    %v4023 = vadd.f32 0.0, %v4022
    %4024 = vmatmul.bf16.gmra.mxu0 %v3831
    %v4025 = vpop.f32.mrf.mxu0
    %v4026 = vadd.f32 0.0, %v4025
    %v4027 = vpop.f32.mrf.mxu0
    %v4028 = vadd.f32 0.0, %v4027
    %4029 = vmatmul.bf16.gmra.mxu0 %v3834
    %v4030 = vpop.f32.mrf.mxu0
    %v4031 = vadd.f32 0.0, %v4030
    %v4032 = vpop.f32.mrf.mxu0
    %v4033 = vadd.f32 0.0, %v4032
    %4034 = vmatmul.bf16.gmra.mxu0 %v3837
    %v4035 = vpop.f32.mrf.mxu0
    %v4036 = vadd.f32 0.0, %v4035
    %v4037 = vpop.f32.mrf.mxu0
    %v4038 = vadd.f32 0.0, %v4037
    %4039 = vmatmul.bf16.gmra.mxu0 %v3840
    %v4040 = vpop.f32.mrf.mxu0
    %v4041 = vadd.f32 0.0, %v4040
    %v4042 = vpop.f32.mrf.mxu0
    %v4043 = vadd.f32 0.0, %v4042
    %4044 = vmatmul.bf16.gmra.mxu0 %v3843
    %v4045 = vpop.f32.mrf.mxu0
    %v4046 = vadd.f32 0.0, %v4045
    %v4047 = vpop.f32.mrf.mxu0
    %v4048 = vadd.f32 0.0, %v4047
    %4049 = vmatmul.bf16.gmra.mxu0 %v3846
    %v4050 = vpop.f32.mrf.mxu0
    %v4051 = vadd.f32 0.0, %v4050
    %v4052 = vpop.f32.mrf.mxu0
    %v4053 = vadd.f32 0.0, %v4052
    %4054 = vmatmul.bf16.gmra.mxu0 %v3849
    %v4055 = vpop.f32.mrf.mxu0
    %v4056 = vadd.f32 0.0, %v4055
    %v4057 = vpop.f32.mrf.mxu0
    %v4058 = vadd.f32 0.0, %v4057
    %4059 = vmatmul.bf16.gmra.mxu0 %v3852
    %v4060 = vpop.f32.mrf.mxu0
    %v4061 = vadd.f32 0.0, %v4060
    %v4062 = vpop.f32.mrf.mxu0
    %v4063 = vadd.f32 0.0, %v4062
    %4064 = vmatmul.bf16.gmra.mxu0 %v3855
    %v4065 = vpop.f32.mrf.mxu0
    %v4066 = vadd.f32 0.0, %v4065
    %v4067 = vpop.f32.mrf.mxu0
    %v4068 = vadd.f32 0.0, %v4067
    %4069 = vmatmul.bf16.gmra.mxu0 %v3858
    %v4070 = vpop.f32.mrf.mxu0
    %v4071 = vadd.f32 0.0, %v4070
    %v4072 = vpop.f32.mrf.mxu0
    %v4073 = vadd.f32 0.0, %v4072
    %4074 = vmatmul.bf16.gmra.mxu0 %v3861
    %v4075 = vpop.f32.mrf.mxu0
    %v4076 = vadd.f32 0.0, %v4075
    %v4077 = vpop.f32.mrf.mxu0
    %v4078 = vadd.f32 0.0, %v4077
    %4079 = vmatmul.bf16.gmra.mxu0 %v3864
    %v4080 = vpop.f32.mrf.mxu0
    %v4081 = vadd.f32 0.0, %v4080
    %v4082 = vpop.f32.mrf.mxu0
    %v4083 = vadd.f32 0.0, %v4082
    %4084 = vmatmul.bf16.gmra.mxu0 %v3867
    %v4085 = vpop.f32.mrf.mxu0
    %v4086 = vadd.f32 0.0, %v4085
    %v4087 = vpop.f32.mrf.mxu0
    %4088 = vdwg.mxu0
    %v4089 = vlaneseq
    %v4090 = vshrl.u32 %v4089, 7
    %v4091 = vadd.s32 %v4090, 8
    %v4092 = vadd.s32 %v4090, 16
    %v4093 = vadd.s32 %v4090, 24
    %v4094 = vadd.s32 %v4090, 32
    %v4095 = vadd.s32 %v4090, 40
    %v4096 = vadd.s32 %v4090, 48
    %v4097 = vadd.s32 %v4090, 56
    %v4098 = vadd.s32 %v4090, 64
    %v4099 = vadd.s32 %v4090, 72
    %v4100 = vadd.s32 %v4090, 80
    %v4101 = vadd.s32 %v4090, 88
    %v4102 = vadd.s32 %v4090, 96
    %v4103 = vadd.s32 %v4090, 104
    %v4104 = vadd.s32 %v4090, 112
    %v4105 = vadd.s32 %v4090, 120
    %v4106 = vadd.s32 %v4090, 128
    %v4107 = vadd.s32 %v4090, 136
    %v4108 = vadd.s32 %v4090, 144
    %v4109 = vadd.s32 %v4090, 152
    %v4110 = vadd.s32 %v4090, 160
    %v4111 = vadd.s32 %v4090, 168
    %v4112 = vadd.s32 %v4090, 176
    %v4113 = vadd.s32 %v4090, 184
    %v4114 = vadd.s32 %v4090, 192
    %v4115 = vadd.s32 %v4090, 200
    %v4116 = vadd.s32 %v4090, 208
    %v4117 = vadd.s32 %v4090, 216
    %v4118 = vadd.s32 %v4090, 224
    %v4119 = vadd.s32 %v4090, 232
    %v4120 = vadd.s32 %v4090, 240
    %v4121 = vadd.s32 %v4090, 248
    %v4122 = vadd.s32 %v4090, 256
    %v4123 = vadd.s32 %v4090, 264
    %v4124 = vadd.s32 %v4090, 272
    %v4125 = vadd.s32 %v4090, 280
    %v4126 = vadd.s32 %v4090, 288
    %v4127 = vadd.s32 %v4090, 296
    %v4128 = vadd.s32 %v4090, 304
    %v4129 = vadd.s32 %v4090, 312
    %v4130 = vadd.s32 %v4090, 320
    %v4131 = vadd.s32 %v4090, 328
    %v4132 = vadd.s32 %v4090, 336
    %v4133 = vadd.s32 %v4090, 344
    %v4134 = vadd.s32 %v4090, 352
    %v4135 = vadd.s32 %v4090, 360
    %v4136 = vadd.s32 %v4090, 368
    %v4137 = vadd.s32 %v4090, 376
    %v4138 = vadd.s32 %v4090, 384
    %v4139 = vadd.s32 %v4090, 392
    %v4140 = vadd.s32 %v4090, 400
    %v4141 = vadd.s32 %v4090, 408
    %v4142 = vadd.s32 %v4090, 416
    %v4143 = vadd.s32 %v4090, 424
    %v4144 = vadd.s32 %v4090, 432
    %v4145 = vadd.s32 %v4090, 440
    %v4146 = vadd.s32 %v4090, 448
    %v4147 = vadd.s32 %v4090, 456
    %v4148 = vadd.s32 %v4090, 464
    %v4149 = vadd.s32 %v4090, 472
    %v4150 = vadd.s32 %v4090, 480
    %v4151 = vadd.s32 %v4090, 488
    %v4152 = vadd.s32 %v4090, 496
    %v4153 = vadd.s32 %v4090, 504
    %v4154 = vadd.s32 %v4090, 512
    %v4155 = vadd.s32 %v4090, 520
    %v4156 = vadd.s32 %v4090, 528
    %v4157 = vadd.s32 %v4090, 536
    %v4158 = vadd.s32 %v4090, 544
    %v4159 = vadd.s32 %v4090, 552
    %v4160 = vadd.s32 %v4090, 560
    %v4161 = vadd.s32 %v4090, 568
    %v4162 = vadd.s32 %v4090, 576
    %v4163 = vadd.s32 %v4090, 584
    %v4164 = vadd.s32 %v4090, 592
    %v4165 = vadd.s32 %v4090, 600
    %v4166 = vadd.s32 %v4090, 608
    %v4167 = vadd.s32 %v4090, 616
    %v4168 = vadd.s32 %v4090, 624
    %v4169 = vadd.s32 %v4090, 632
    %v4170 = vadd.s32 %v4090, 640
    %v4171 = vcvt.s32.f32 %v4090
    %v4172 = vcvt.s32.f32 %v4091
    %v4173 = vcvt.s32.f32 %v4092
    %v4174 = vcvt.s32.f32 %v4093
    %v4175 = vcvt.s32.f32 %v4094
    %v4176 = vcvt.s32.f32 %v4095
    %v4177 = vcvt.s32.f32 %v4096
    %v4178 = vcvt.s32.f32 %v4097
    %v4179 = vcvt.s32.f32 %v4098
    %v4180 = vcvt.s32.f32 %v4099
    %v4181 = vcvt.s32.f32 %v4100
    %v4182 = vcvt.s32.f32 %v4101
    %v4183 = vcvt.s32.f32 %v4102
    %v4184 = vcvt.s32.f32 %v4103
    %v4185 = vcvt.s32.f32 %v4104
    %v4186 = vcvt.s32.f32 %v4105
    %v4187 = vcvt.s32.f32 %v4106
    %v4188 = vcvt.s32.f32 %v4107
    %v4189 = vcvt.s32.f32 %v4108
    %v4190 = vcvt.s32.f32 %v4109
    %v4191 = vcvt.s32.f32 %v4110
    %v4192 = vcvt.s32.f32 %v4111
    %v4193 = vcvt.s32.f32 %v4112
    %v4194 = vcvt.s32.f32 %v4113
    %v4195 = vcvt.s32.f32 %v4114
    %v4196 = vcvt.s32.f32 %v4115
    %v4197 = vcvt.s32.f32 %v4116
    %v4198 = vcvt.s32.f32 %v4117
    %v4199 = vcvt.s32.f32 %v4118
    %v4200 = vcvt.s32.f32 %v4119
    %v4201 = vcvt.s32.f32 %v4120
    %v4202 = vcvt.s32.f32 %v4121
    %v4203 = vcvt.s32.f32 %v4122
    %v4204 = vcvt.s32.f32 %v4123
    %v4205 = vcvt.s32.f32 %v4124
    %v4206 = vcvt.s32.f32 %v4125
    %v4207 = vcvt.s32.f32 %v4126
    %v4208 = vcvt.s32.f32 %v4127
    %v4209 = vcvt.s32.f32 %v4128
    %v4210 = vcvt.s32.f32 %v4129
    %v4211 = vcvt.s32.f32 %v4130
    %v4212 = vcvt.s32.f32 %v4131
    %v4213 = vcvt.s32.f32 %v4132
    %v4214 = vcvt.s32.f32 %v4133
    %v4215 = vcvt.s32.f32 %v4134
    %v4216 = vcvt.s32.f32 %v4135
    %v4217 = vcvt.s32.f32 %v4136
    %v4218 = vcvt.s32.f32 %v4137
    %v4219 = vcvt.s32.f32 %v4138
    %v4220 = vcvt.s32.f32 %v4139
    %v4221 = vcvt.s32.f32 %v4140
    %v4222 = vcvt.s32.f32 %v4141
    %v4223 = vcvt.s32.f32 %v4142
    %v4224 = vcvt.s32.f32 %v4143
    %v4225 = vcvt.s32.f32 %v4144
    %v4226 = vcvt.s32.f32 %v4145
    %v4227 = vcvt.s32.f32 %v4146
    %v4228 = vcvt.s32.f32 %v4147
    %v4229 = vcvt.s32.f32 %v4148
    %v4230 = vcvt.s32.f32 %v4149
    %v4231 = vcvt.s32.f32 %v4150
    %v4232 = vcvt.s32.f32 %v4151
    %v4233 = vcvt.s32.f32 %v4152
    %v4234 = vcvt.s32.f32 %v4153
    %v4235 = vcvt.s32.f32 %v4154
    %v4236 = vcvt.s32.f32 %v4155
    %v4237 = vcvt.s32.f32 %v4156
    %v4238 = vcvt.s32.f32 %v4157
    %v4239 = vcvt.s32.f32 %v4158
    %v4240 = vcvt.s32.f32 %v4159
    %v4241 = vcvt.s32.f32 %v4160
    %v4242 = vcvt.s32.f32 %v4161
    %v4243 = vcvt.s32.f32 %v4162
    %v4244 = vcvt.s32.f32 %v4163
    %v4245 = vcvt.s32.f32 %v4164
    %v4246 = vcvt.s32.f32 %v4165
    %v4247 = vcvt.s32.f32 %v4166
    %v4248 = vcvt.s32.f32 %v4167
    %v4249 = vcvt.s32.f32 %v4168
    %v4250 = vcvt.s32.f32 %v4169
    %v4251 = vcvt.s32.f32 %v4170
    %v4252 = vrcp.pop 324.0
    %v4253 = vmul.f32 324.0, %v4252
    %v4254 = vsub.f32 1.0, %v4253
    %v4255 = vmul.f32 %v4252, %v4254
    %v4256 = vadd.f32 %v4252, %v4255
    %vm4257 = vweird.f32 %v4252
    %v4258 = vsel %vm4257, %v4252, %v4256
    %v4259 = vmul.f32 %v4171, %v4258
    %v4260 = vmul.f32 %v4172, %v4258
    %v4261 = vmul.f32 %v4173, %v4258
    %v4262 = vmul.f32 %v4174, %v4258
    %v4263 = vmul.f32 %v4175, %v4258
    %v4264 = vmul.f32 %v4176, %v4258
    %v4265 = vmul.f32 %v4177, %v4258
    %v4266 = vmul.f32 %v4178, %v4258
    %v4267 = vmul.f32 %v4179, %v4258
    %v4268 = vmul.f32 %v4180, %v4258
    %v4269 = vmul.f32 %v4181, %v4258
    %v4270 = vmul.f32 %v4182, %v4258
    %v4271 = vmul.f32 %v4183, %v4258
    %v4272 = vmul.f32 %v4184, %v4258
    %v4273 = vmul.f32 %v4185, %v4258
    %v4274 = vmul.f32 %v4186, %v4258
    %v4275 = vmul.f32 %v4187, %v4258
    %v4276 = vmul.f32 %v4188, %v4258
    %v4277 = vmul.f32 %v4189, %v4258
    %v4278 = vmul.f32 %v4190, %v4258
    %v4279 = vmul.f32 %v4191, %v4258
    %v4280 = vmul.f32 %v4192, %v4258
    %v4281 = vmul.f32 %v4193, %v4258
    %v4282 = vmul.f32 %v4194, %v4258
    %v4283 = vmul.f32 %v4195, %v4258
    %v4284 = vmul.f32 %v4196, %v4258
    %v4285 = vmul.f32 %v4197, %v4258
    %v4286 = vmul.f32 %v4198, %v4258
    %v4287 = vmul.f32 %v4199, %v4258
    %v4288 = vmul.f32 %v4200, %v4258
    %v4289 = vmul.f32 %v4201, %v4258
    %v4290 = vmul.f32 %v4202, %v4258
    %v4291 = vmul.f32 %v4203, %v4258
    %v4292 = vmul.f32 %v4204, %v4258
    %v4293 = vmul.f32 %v4205, %v4258
    %v4294 = vmul.f32 %v4206, %v4258
    %v4295 = vmul.f32 %v4207, %v4258
    %v4296 = vmul.f32 %v4208, %v4258
    %v4297 = vmul.f32 %v4209, %v4258
    %v4298 = vmul.f32 %v4210, %v4258
    %v4299 = vmul.f32 %v4211, %v4258
    %v4300 = vmul.f32 %v4212, %v4258
    %v4301 = vmul.f32 %v4213, %v4258
    %v4302 = vmul.f32 %v4214, %v4258
    %v4303 = vmul.f32 %v4215, %v4258
    %v4304 = vmul.f32 %v4216, %v4258
    %v4305 = vmul.f32 %v4217, %v4258
    %v4306 = vmul.f32 %v4218, %v4258
    %v4307 = vmul.f32 %v4219, %v4258
    %v4308 = vmul.f32 %v4220, %v4258
    %v4309 = vmul.f32 %v4221, %v4258
    %v4310 = vmul.f32 %v4222, %v4258
    %v4311 = vmul.f32 %v4223, %v4258
    %v4312 = vmul.f32 %v4224, %v4258
    %v4313 = vmul.f32 %v4225, %v4258
    %v4314 = vmul.f32 %v4226, %v4258
    %v4315 = vmul.f32 %v4227, %v4258
    %v4316 = vmul.f32 %v4228, %v4258
    %v4317 = vmul.f32 %v4229, %v4258
    %v4318 = vmul.f32 %v4230, %v4258
    %v4319 = vmul.f32 %v4231, %v4258
    %v4320 = vmul.f32 %v4232, %v4258
    %v4321 = vmul.f32 %v4233, %v4258
    %v4322 = vmul.f32 %v4234, %v4258
    %v4323 = vmul.f32 %v4235, %v4258
    %v4324 = vmul.f32 %v4236, %v4258
    %v4325 = vmul.f32 %v4237, %v4258
    %v4326 = vmul.f32 %v4238, %v4258
    %v4327 = vmul.f32 %v4239, %v4258
    %v4328 = vmul.f32 %v4240, %v4258
    %v4329 = vmul.f32 %v4241, %v4258
    %v4330 = vmul.f32 %v4242, %v4258
    %v4331 = vmul.f32 %v4243, %v4258
    %v4332 = vmul.f32 %v4244, %v4258
    %v4333 = vmul.f32 %v4245, %v4258
    %v4334 = vmul.f32 %v4246, %v4258
    %v4335 = vmul.f32 %v4247, %v4258
    %v4336 = vmul.f32 %v4248, %v4258
    %v4337 = vmul.f32 %v4249, %v4258
    %v4338 = vmul.f32 %v4250, %v4258
    %v4339 = vmul.f32 %v4251, %v4258
    %v4340 = vfloor.f32 %v4259
    %v4341 = vfloor.f32 %v4260
    %v4342 = vfloor.f32 %v4261
    %v4343 = vfloor.f32 %v4262
    %v4344 = vfloor.f32 %v4263
    %v4345 = vfloor.f32 %v4264
    %v4346 = vfloor.f32 %v4265
    %v4347 = vfloor.f32 %v4266
    %v4348 = vfloor.f32 %v4267
    %v4349 = vfloor.f32 %v4268
    %v4350 = vfloor.f32 %v4269
    %v4351 = vfloor.f32 %v4270
    %v4352 = vfloor.f32 %v4271
    %v4353 = vfloor.f32 %v4272
    %v4354 = vfloor.f32 %v4273
    %v4355 = vfloor.f32 %v4274
    %v4356 = vfloor.f32 %v4275
    %v4357 = vfloor.f32 %v4276
    %v4358 = vfloor.f32 %v4277
    %v4359 = vfloor.f32 %v4278
    %v4360 = vfloor.f32 %v4279
    %v4361 = vfloor.f32 %v4280
    %v4362 = vfloor.f32 %v4281
    %v4363 = vfloor.f32 %v4282
    %v4364 = vfloor.f32 %v4283
    %v4365 = vfloor.f32 %v4284
    %v4366 = vfloor.f32 %v4285
    %v4367 = vfloor.f32 %v4286
    %v4368 = vfloor.f32 %v4287
    %v4369 = vfloor.f32 %v4288
    %v4370 = vfloor.f32 %v4289
    %v4371 = vfloor.f32 %v4290
    %v4372 = vfloor.f32 %v4291
    %v4373 = vfloor.f32 %v4292
    %v4374 = vfloor.f32 %v4293
    %v4375 = vfloor.f32 %v4294
    %v4376 = vfloor.f32 %v4295
    %v4377 = vfloor.f32 %v4296
    %v4378 = vfloor.f32 %v4297
    %v4379 = vfloor.f32 %v4298
    %v4380 = vfloor.f32 %v4299
    %v4381 = vfloor.f32 %v4300
    %v4382 = vfloor.f32 %v4301
    %v4383 = vfloor.f32 %v4302
    %v4384 = vfloor.f32 %v4303
    %v4385 = vfloor.f32 %v4304
    %v4386 = vfloor.f32 %v4305
    %v4387 = vfloor.f32 %v4306
    %v4388 = vfloor.f32 %v4307
    %v4389 = vfloor.f32 %v4308
    %v4390 = vfloor.f32 %v4309
    %v4391 = vfloor.f32 %v4310
    %v4392 = vfloor.f32 %v4311
    %v4393 = vfloor.f32 %v4312
    %v4394 = vfloor.f32 %v4313
    %v4395 = vfloor.f32 %v4314
    %v4396 = vfloor.f32 %v4315
    %v4397 = vfloor.f32 %v4316
    %v4398 = vfloor.f32 %v4317
    %v4399 = vfloor.f32 %v4318
    %v4400 = vfloor.f32 %v4319
    %v4401 = vfloor.f32 %v4320
    %v4402 = vfloor.f32 %v4321
    %v4403 = vfloor.f32 %v4322
    %v4404 = vfloor.f32 %v4323
    %v4405 = vfloor.f32 %v4324
    %v4406 = vfloor.f32 %v4325
    %v4407 = vfloor.f32 %v4326
    %v4408 = vfloor.f32 %v4327
    %v4409 = vfloor.f32 %v4328
    %v4410 = vfloor.f32 %v4329
    %v4411 = vfloor.f32 %v4330
    %v4412 = vfloor.f32 %v4331
    %v4413 = vfloor.f32 %v4332
    %v4414 = vfloor.f32 %v4333
    %v4415 = vfloor.f32 %v4334
    %v4416 = vfloor.f32 %v4335
    %v4417 = vfloor.f32 %v4336
    %v4418 = vfloor.f32 %v4337
    %v4419 = vfloor.f32 %v4338
    %v4420 = vfloor.f32 %v4339
    %v4421 = vmul.f32 %v4340, 324.0
    %v4422 = vmul.f32 %v4341, 324.0
    %v4423 = vmul.f32 %v4342, 324.0
    %v4424 = vmul.f32 %v4343, 324.0
    %v4425 = vmul.f32 %v4344, 324.0
    %v4426 = vmul.f32 %v4345, 324.0
    %v4427 = vmul.f32 %v4346, 324.0
    %v4428 = vmul.f32 %v4347, 324.0
    %v4429 = vmul.f32 %v4348, 324.0
    %v4430 = vmul.f32 %v4349, 324.0
    %v4431 = vmul.f32 %v4350, 324.0
    %v4432 = vmul.f32 %v4351, 324.0
    %v4433 = vmul.f32 %v4352, 324.0
    %v4434 = vmul.f32 %v4353, 324.0
    %v4435 = vmul.f32 %v4354, 324.0
    %v4436 = vmul.f32 %v4355, 324.0
    %v4437 = vmul.f32 %v4356, 324.0
    %v4438 = vmul.f32 %v4357, 324.0
    %v4439 = vmul.f32 %v4358, 324.0
    %v4440 = vmul.f32 %v4359, 324.0
    %v4441 = vmul.f32 %v4360, 324.0
    %v4442 = vmul.f32 %v4361, 324.0
    %v4443 = vmul.f32 %v4362, 324.0
    %v4444 = vmul.f32 %v4363, 324.0
    %v4445 = vmul.f32 %v4364, 324.0
    %v4446 = vmul.f32 %v4365, 324.0
    %v4447 = vmul.f32 %v4366, 324.0
    %v4448 = vmul.f32 %v4367, 324.0
    %v4449 = vmul.f32 %v4368, 324.0
    %v4450 = vmul.f32 %v4369, 324.0
    %v4451 = vmul.f32 %v4370, 324.0
    %v4452 = vmul.f32 %v4371, 324.0
    %v4453 = vmul.f32 %v4372, 324.0
    %v4454 = vmul.f32 %v4373, 324.0
    %v4455 = vmul.f32 %v4374, 324.0
    %v4456 = vmul.f32 %v4375, 324.0
    %v4457 = vmul.f32 %v4376, 324.0
    %v4458 = vmul.f32 %v4377, 324.0
    %v4459 = vmul.f32 %v4378, 324.0
    %v4460 = vmul.f32 %v4379, 324.0
    %v4461 = vmul.f32 %v4380, 324.0
    %v4462 = vmul.f32 %v4381, 324.0
    %v4463 = vmul.f32 %v4382, 324.0
    %v4464 = vmul.f32 %v4383, 324.0
    %v4465 = vmul.f32 %v4384, 324.0
    %v4466 = vmul.f32 %v4385, 324.0
    %v4467 = vmul.f32 %v4386, 324.0
    %v4468 = vmul.f32 %v4387, 324.0
    %v4469 = vmul.f32 %v4388, 324.0
    %v4470 = vmul.f32 %v4389, 324.0
    %v4471 = vmul.f32 %v4390, 324.0
    %v4472 = vmul.f32 %v4391, 324.0
    %v4473 = vmul.f32 %v4392, 324.0
    %v4474 = vmul.f32 %v4393, 324.0
    %v4475 = vmul.f32 %v4394, 324.0
    %v4476 = vmul.f32 %v4395, 324.0
    %v4477 = vmul.f32 %v4396, 324.0
    %v4478 = vmul.f32 %v4397, 324.0
    %v4479 = vmul.f32 %v4398, 324.0
    %v4480 = vmul.f32 %v4399, 324.0
    %v4481 = vmul.f32 %v4400, 324.0
    %v4482 = vmul.f32 %v4401, 324.0
    %v4483 = vmul.f32 %v4402, 324.0
    %v4484 = vmul.f32 %v4403, 324.0
    %v4485 = vmul.f32 %v4404, 324.0
    %v4486 = vmul.f32 %v4405, 324.0
    %v4487 = vmul.f32 %v4406, 324.0
    %v4488 = vmul.f32 %v4407, 324.0
    %v4489 = vmul.f32 %v4408, 324.0
    %v4490 = vmul.f32 %v4409, 324.0
    %v4491 = vmul.f32 %v4410, 324.0
    %v4492 = vmul.f32 %v4411, 324.0
    %v4493 = vmul.f32 %v4412, 324.0
    %v4494 = vmul.f32 %v4413, 324.0
    %v4495 = vmul.f32 %v4414, 324.0
    %v4496 = vmul.f32 %v4415, 324.0
    %v4497 = vmul.f32 %v4416, 324.0
    %v4498 = vmul.f32 %v4417, 324.0
    %v4499 = vmul.f32 %v4418, 324.0
    %v4500 = vmul.f32 %v4419, 324.0
    %v4501 = vmul.f32 %v4420, 324.0
    %v4502 = vsub.f32 %v4171, %v4421
    %v4503 = vsub.f32 %v4172, %v4422
    %v4504 = vsub.f32 %v4173, %v4423
    %v4505 = vsub.f32 %v4174, %v4424
    %v4506 = vsub.f32 %v4175, %v4425
    %v4507 = vsub.f32 %v4176, %v4426
    %v4508 = vsub.f32 %v4177, %v4427
    %v4509 = vsub.f32 %v4178, %v4428
    %v4510 = vsub.f32 %v4179, %v4429
    %v4511 = vsub.f32 %v4180, %v4430
    %v4512 = vsub.f32 %v4181, %v4431
    %v4513 = vsub.f32 %v4182, %v4432
    %v4514 = vsub.f32 %v4183, %v4433
    %v4515 = vsub.f32 %v4184, %v4434
    %v4516 = vsub.f32 %v4185, %v4435
    %v4517 = vsub.f32 %v4186, %v4436
    %v4518 = vsub.f32 %v4187, %v4437
    %v4519 = vsub.f32 %v4188, %v4438
    %v4520 = vsub.f32 %v4189, %v4439
    %v4521 = vsub.f32 %v4190, %v4440
    %v4522 = vsub.f32 %v4191, %v4441
    %v4523 = vsub.f32 %v4192, %v4442
    %v4524 = vsub.f32 %v4193, %v4443
    %v4525 = vsub.f32 %v4194, %v4444
    %v4526 = vsub.f32 %v4195, %v4445
    %v4527 = vsub.f32 %v4196, %v4446
    %v4528 = vsub.f32 %v4197, %v4447
    %v4529 = vsub.f32 %v4198, %v4448
    %v4530 = vsub.f32 %v4199, %v4449
    %v4531 = vsub.f32 %v4200, %v4450
    %v4532 = vsub.f32 %v4201, %v4451
    %v4533 = vsub.f32 %v4202, %v4452
    %v4534 = vsub.f32 %v4203, %v4453
    %v4535 = vsub.f32 %v4204, %v4454
    %v4536 = vsub.f32 %v4205, %v4455
    %v4537 = vsub.f32 %v4206, %v4456
    %v4538 = vsub.f32 %v4207, %v4457
    %v4539 = vsub.f32 %v4208, %v4458
    %v4540 = vsub.f32 %v4209, %v4459
    %v4541 = vsub.f32 %v4210, %v4460
    %v4542 = vsub.f32 %v4211, %v4461
    %v4543 = vsub.f32 %v4212, %v4462
    %v4544 = vsub.f32 %v4213, %v4463
    %v4545 = vsub.f32 %v4214, %v4464
    %v4546 = vsub.f32 %v4215, %v4465
    %v4547 = vsub.f32 %v4216, %v4466
    %v4548 = vsub.f32 %v4217, %v4467
    %v4549 = vsub.f32 %v4218, %v4468
    %v4550 = vsub.f32 %v4219, %v4469
    %v4551 = vsub.f32 %v4220, %v4470
    %v4552 = vsub.f32 %v4221, %v4471
    %v4553 = vsub.f32 %v4222, %v4472
    %v4554 = vsub.f32 %v4223, %v4473
    %v4555 = vsub.f32 %v4224, %v4474
    %v4556 = vsub.f32 %v4225, %v4475
    %v4557 = vsub.f32 %v4226, %v4476
    %v4558 = vsub.f32 %v4227, %v4477
    %v4559 = vsub.f32 %v4228, %v4478
    %v4560 = vsub.f32 %v4229, %v4479
    %v4561 = vsub.f32 %v4230, %v4480
    %v4562 = vsub.f32 %v4231, %v4481
    %v4563 = vsub.f32 %v4232, %v4482
    %v4564 = vsub.f32 %v4233, %v4483
    %v4565 = vsub.f32 %v4234, %v4484
    %v4566 = vsub.f32 %v4235, %v4485
    %v4567 = vsub.f32 %v4236, %v4486
    %v4568 = vsub.f32 %v4237, %v4487
    %v4569 = vsub.f32 %v4238, %v4488
    %v4570 = vsub.f32 %v4239, %v4489
    %v4571 = vsub.f32 %v4240, %v4490
    %v4572 = vsub.f32 %v4241, %v4491
    %v4573 = vsub.f32 %v4242, %v4492
    %v4574 = vsub.f32 %v4243, %v4493
    %v4575 = vsub.f32 %v4244, %v4494
    %v4576 = vsub.f32 %v4245, %v4495
    %v4577 = vsub.f32 %v4246, %v4496
    %v4578 = vsub.f32 %v4247, %v4497
    %v4579 = vsub.f32 %v4248, %v4498
    %v4580 = vsub.f32 %v4249, %v4499
    %v4581 = vsub.f32 %v4250, %v4500
    %v4582 = vsub.f32 %v4251, %v4501
    %v4583 = vrcp.pop 18.0
    %v4584 = vmul.f32 18.0, %v4583
    %v4585 = vsub.f32 1.0, %v4584
    %v4586 = vmul.f32 %v4583, %v4585
    %v4587 = vadd.f32 %v4583, %v4586
    %vm4588 = vweird.f32 %v4583
    %v4589 = vsel %vm4588, %v4583, %v4587
    %v4590 = vmul.f32 %v4502, %v4589
    %v4591 = vmul.f32 %v4503, %v4589
    %v4592 = vmul.f32 %v4504, %v4589
    %v4593 = vmul.f32 %v4505, %v4589
    %v4594 = vmul.f32 %v4506, %v4589
    %v4595 = vmul.f32 %v4507, %v4589
    %v4596 = vmul.f32 %v4508, %v4589
    %v4597 = vmul.f32 %v4509, %v4589
    %v4598 = vmul.f32 %v4510, %v4589
    %v4599 = vmul.f32 %v4511, %v4589
    %v4600 = vmul.f32 %v4512, %v4589
    %v4601 = vmul.f32 %v4513, %v4589
    %v4602 = vmul.f32 %v4514, %v4589
    %v4603 = vmul.f32 %v4515, %v4589
    %v4604 = vmul.f32 %v4516, %v4589
    %v4605 = vmul.f32 %v4517, %v4589
    %v4606 = vmul.f32 %v4518, %v4589
    %v4607 = vmul.f32 %v4519, %v4589
    %v4608 = vmul.f32 %v4520, %v4589
    %v4609 = vmul.f32 %v4521, %v4589
    %v4610 = vmul.f32 %v4522, %v4589
    %v4611 = vmul.f32 %v4523, %v4589
    %v4612 = vmul.f32 %v4524, %v4589
    %v4613 = vmul.f32 %v4525, %v4589
    %v4614 = vmul.f32 %v4526, %v4589
    %v4615 = vmul.f32 %v4527, %v4589
    %v4616 = vmul.f32 %v4528, %v4589
    %v4617 = vmul.f32 %v4529, %v4589
    %v4618 = vmul.f32 %v4530, %v4589
    %v4619 = vmul.f32 %v4531, %v4589
    %v4620 = vmul.f32 %v4532, %v4589
    %v4621 = vmul.f32 %v4533, %v4589
    %v4622 = vmul.f32 %v4534, %v4589
    %v4623 = vmul.f32 %v4535, %v4589
    %v4624 = vmul.f32 %v4536, %v4589
    %v4625 = vmul.f32 %v4537, %v4589
    %v4626 = vmul.f32 %v4538, %v4589
    %v4627 = vmul.f32 %v4539, %v4589
    %v4628 = vmul.f32 %v4540, %v4589
    %v4629 = vmul.f32 %v4541, %v4589
    %v4630 = vmul.f32 %v4542, %v4589
    %v4631 = vmul.f32 %v4543, %v4589
    %v4632 = vmul.f32 %v4544, %v4589
    %v4633 = vmul.f32 %v4545, %v4589
    %v4634 = vmul.f32 %v4546, %v4589
    %v4635 = vmul.f32 %v4547, %v4589
    %v4636 = vmul.f32 %v4548, %v4589
    %v4637 = vmul.f32 %v4549, %v4589
    %v4638 = vmul.f32 %v4550, %v4589
    %v4639 = vmul.f32 %v4551, %v4589
    %v4640 = vmul.f32 %v4552, %v4589
    %v4641 = vmul.f32 %v4553, %v4589
    %v4642 = vmul.f32 %v4554, %v4589
    %v4643 = vmul.f32 %v4555, %v4589
    %v4644 = vmul.f32 %v4556, %v4589
    %v4645 = vmul.f32 %v4557, %v4589
    %v4646 = vmul.f32 %v4558, %v4589
    %v4647 = vmul.f32 %v4559, %v4589
    %v4648 = vmul.f32 %v4560, %v4589
    %v4649 = vmul.f32 %v4561, %v4589
    %v4650 = vmul.f32 %v4562, %v4589
    %v4651 = vmul.f32 %v4563, %v4589
    %v4652 = vmul.f32 %v4564, %v4589
    %v4653 = vmul.f32 %v4565, %v4589
    %v4654 = vmul.f32 %v4566, %v4589
    %v4655 = vmul.f32 %v4567, %v4589
    %v4656 = vmul.f32 %v4568, %v4589
    %v4657 = vmul.f32 %v4569, %v4589
    %v4658 = vmul.f32 %v4570, %v4589
    %v4659 = vmul.f32 %v4571, %v4589
    %v4660 = vmul.f32 %v4572, %v4589
    %v4661 = vmul.f32 %v4573, %v4589
    %v4662 = vmul.f32 %v4574, %v4589
    %v4663 = vmul.f32 %v4575, %v4589
    %v4664 = vmul.f32 %v4576, %v4589
    %v4665 = vmul.f32 %v4577, %v4589
    %v4666 = vmul.f32 %v4578, %v4589
    %v4667 = vmul.f32 %v4579, %v4589
    %v4668 = vmul.f32 %v4580, %v4589
    %v4669 = vmul.f32 %v4581, %v4589
    %v4670 = vmul.f32 %v4582, %v4589
    %v4671 = vfloor.f32 %v4590
    %v4672 = vfloor.f32 %v4591
    %v4673 = vfloor.f32 %v4592
    %v4674 = vfloor.f32 %v4593
    %v4675 = vfloor.f32 %v4594
    %v4676 = vfloor.f32 %v4595
    %v4677 = vfloor.f32 %v4596
    %v4678 = vfloor.f32 %v4597
    %v4679 = vfloor.f32 %v4598
    %v4680 = vfloor.f32 %v4599
    %v4681 = vfloor.f32 %v4600
    %v4682 = vfloor.f32 %v4601
    %v4683 = vfloor.f32 %v4602
    %v4684 = vfloor.f32 %v4603
    %v4685 = vfloor.f32 %v4604
    %v4686 = vfloor.f32 %v4605
    %v4687 = vfloor.f32 %v4606
    %v4688 = vfloor.f32 %v4607
    %v4689 = vfloor.f32 %v4608
    %v4690 = vfloor.f32 %v4609
    %v4691 = vfloor.f32 %v4610
    %v4692 = vfloor.f32 %v4611
    %v4693 = vfloor.f32 %v4612
    %v4694 = vfloor.f32 %v4613
    %v4695 = vfloor.f32 %v4614
    %v4696 = vfloor.f32 %v4615
    %v4697 = vfloor.f32 %v4616
    %v4698 = vfloor.f32 %v4617
    %v4699 = vfloor.f32 %v4618
    %v4700 = vfloor.f32 %v4619
    %v4701 = vfloor.f32 %v4620
    %v4702 = vfloor.f32 %v4621
    %v4703 = vfloor.f32 %v4622
    %v4704 = vfloor.f32 %v4623
    %v4705 = vfloor.f32 %v4624
    %v4706 = vfloor.f32 %v4625
    %v4707 = vfloor.f32 %v4626
    %v4708 = vfloor.f32 %v4627
    %v4709 = vfloor.f32 %v4628
    %v4710 = vfloor.f32 %v4629
    %v4711 = vfloor.f32 %v4630
    %v4712 = vfloor.f32 %v4631
    %v4713 = vfloor.f32 %v4632
    %v4714 = vfloor.f32 %v4633
    %v4715 = vfloor.f32 %v4634
    %v4716 = vfloor.f32 %v4635
    %v4717 = vfloor.f32 %v4636
    %v4718 = vfloor.f32 %v4637
    %v4719 = vfloor.f32 %v4638
    %v4720 = vfloor.f32 %v4639
    %v4721 = vfloor.f32 %v4640
    %v4722 = vfloor.f32 %v4641
    %v4723 = vfloor.f32 %v4642
    %v4724 = vfloor.f32 %v4643
    %v4725 = vfloor.f32 %v4644
    %v4726 = vfloor.f32 %v4645
    %v4727 = vfloor.f32 %v4646
    %v4728 = vfloor.f32 %v4647
    %v4729 = vfloor.f32 %v4648
    %v4730 = vfloor.f32 %v4649
    %v4731 = vfloor.f32 %v4650
    %v4732 = vfloor.f32 %v4651
    %v4733 = vfloor.f32 %v4652
    %v4734 = vfloor.f32 %v4653
    %v4735 = vfloor.f32 %v4654
    %v4736 = vfloor.f32 %v4655
    %v4737 = vfloor.f32 %v4656
    %v4738 = vfloor.f32 %v4657
    %v4739 = vfloor.f32 %v4658
    %v4740 = vfloor.f32 %v4659
    %v4741 = vfloor.f32 %v4660
    %v4742 = vfloor.f32 %v4661
    %v4743 = vfloor.f32 %v4662
    %v4744 = vfloor.f32 %v4663
    %v4745 = vfloor.f32 %v4664
    %v4746 = vfloor.f32 %v4665
    %v4747 = vfloor.f32 %v4666
    %v4748 = vfloor.f32 %v4667
    %v4749 = vfloor.f32 %v4668
    %v4750 = vfloor.f32 %v4669
    %v4751 = vfloor.f32 %v4670
    %v4752 = vmul.f32 %v4671, 18.0
    %v4753 = vmul.f32 %v4672, 18.0
    %v4754 = vmul.f32 %v4673, 18.0
    %v4755 = vmul.f32 %v4674, 18.0
    %v4756 = vmul.f32 %v4675, 18.0
    %v4757 = vmul.f32 %v4676, 18.0
    %v4758 = vmul.f32 %v4677, 18.0
    %v4759 = vmul.f32 %v4678, 18.0
    %v4760 = vmul.f32 %v4679, 18.0
    %v4761 = vmul.f32 %v4680, 18.0
    %v4762 = vmul.f32 %v4681, 18.0
    %v4763 = vmul.f32 %v4682, 18.0
    %v4764 = vmul.f32 %v4683, 18.0
    %v4765 = vmul.f32 %v4684, 18.0
    %v4766 = vmul.f32 %v4685, 18.0
    %v4767 = vmul.f32 %v4686, 18.0
    %v4768 = vmul.f32 %v4687, 18.0
    %v4769 = vmul.f32 %v4688, 18.0
    %v4770 = vmul.f32 %v4689, 18.0
    %v4771 = vmul.f32 %v4690, 18.0
    %v4772 = vmul.f32 %v4691, 18.0
    %v4773 = vmul.f32 %v4692, 18.0
    %v4774 = vmul.f32 %v4693, 18.0
    %v4775 = vmul.f32 %v4694, 18.0
    %v4776 = vmul.f32 %v4695, 18.0
    %v4777 = vmul.f32 %v4696, 18.0
    %v4778 = vmul.f32 %v4697, 18.0
    %v4779 = vmul.f32 %v4698, 18.0
    %v4780 = vmul.f32 %v4699, 18.0
    %v4781 = vmul.f32 %v4700, 18.0
    %v4782 = vmul.f32 %v4701, 18.0
    %v4783 = vmul.f32 %v4702, 18.0
    %v4784 = vmul.f32 %v4703, 18.0
    %v4785 = vmul.f32 %v4704, 18.0
    %v4786 = vmul.f32 %v4705, 18.0
    %v4787 = vmul.f32 %v4706, 18.0
    %v4788 = vmul.f32 %v4707, 18.0
    %v4789 = vmul.f32 %v4708, 18.0
    %v4790 = vmul.f32 %v4709, 18.0
    %v4791 = vmul.f32 %v4710, 18.0
    %v4792 = vmul.f32 %v4711, 18.0
    %v4793 = vmul.f32 %v4712, 18.0
    %v4794 = vmul.f32 %v4713, 18.0
    %v4795 = vmul.f32 %v4714, 18.0
    %v4796 = vmul.f32 %v4715, 18.0
    %v4797 = vmul.f32 %v4716, 18.0
    %v4798 = vmul.f32 %v4717, 18.0
    %v4799 = vmul.f32 %v4718, 18.0
    %v4800 = vmul.f32 %v4719, 18.0
    %v4801 = vmul.f32 %v4720, 18.0
    %v4802 = vmul.f32 %v4721, 18.0
    %v4803 = vmul.f32 %v4722, 18.0
    %v4804 = vmul.f32 %v4723, 18.0
    %v4805 = vmul.f32 %v4724, 18.0
    %v4806 = vmul.f32 %v4725, 18.0
    %v4807 = vmul.f32 %v4726, 18.0
    %v4808 = vmul.f32 %v4727, 18.0
    %v4809 = vmul.f32 %v4728, 18.0
    %v4810 = vmul.f32 %v4729, 18.0
    %v4811 = vmul.f32 %v4730, 18.0
    %v4812 = vmul.f32 %v4731, 18.0
    %v4813 = vmul.f32 %v4732, 18.0
    %v4814 = vmul.f32 %v4733, 18.0
    %v4815 = vmul.f32 %v4734, 18.0
    %v4816 = vmul.f32 %v4735, 18.0
    %v4817 = vmul.f32 %v4736, 18.0
    %v4818 = vmul.f32 %v4737, 18.0
    %v4819 = vmul.f32 %v4738, 18.0
    %v4820 = vmul.f32 %v4739, 18.0
    %v4821 = vmul.f32 %v4740, 18.0
    %v4822 = vmul.f32 %v4741, 18.0
    %v4823 = vmul.f32 %v4742, 18.0
    %v4824 = vmul.f32 %v4743, 18.0
    %v4825 = vmul.f32 %v4744, 18.0
    %v4826 = vmul.f32 %v4745, 18.0
    %v4827 = vmul.f32 %v4746, 18.0
    %v4828 = vmul.f32 %v4747, 18.0
    %v4829 = vmul.f32 %v4748, 18.0
    %v4830 = vmul.f32 %v4749, 18.0
    %v4831 = vmul.f32 %v4750, 18.0
    %v4832 = vmul.f32 %v4751, 18.0
    %v4833 = vsub.f32 %v4502, %v4752
    %v4834 = vsub.f32 %v4503, %v4753
    %v4835 = vsub.f32 %v4504, %v4754
    %v4836 = vsub.f32 %v4505, %v4755
    %v4837 = vsub.f32 %v4506, %v4756
    %v4838 = vsub.f32 %v4507, %v4757
    %v4839 = vsub.f32 %v4508, %v4758
    %v4840 = vsub.f32 %v4509, %v4759
    %v4841 = vsub.f32 %v4510, %v4760
    %v4842 = vsub.f32 %v4511, %v4761
    %v4843 = vsub.f32 %v4512, %v4762
    %v4844 = vsub.f32 %v4513, %v4763
    %v4845 = vsub.f32 %v4514, %v4764
    %v4846 = vsub.f32 %v4515, %v4765
    %v4847 = vsub.f32 %v4516, %v4766
    %v4848 = vsub.f32 %v4517, %v4767
    %v4849 = vsub.f32 %v4518, %v4768
    %v4850 = vsub.f32 %v4519, %v4769
    %v4851 = vsub.f32 %v4520, %v4770
    %v4852 = vsub.f32 %v4521, %v4771
    %v4853 = vsub.f32 %v4522, %v4772
    %v4854 = vsub.f32 %v4523, %v4773
    %v4855 = vsub.f32 %v4524, %v4774
    %v4856 = vsub.f32 %v4525, %v4775
    %v4857 = vsub.f32 %v4526, %v4776
    %v4858 = vsub.f32 %v4527, %v4777
    %v4859 = vsub.f32 %v4528, %v4778
    %v4860 = vsub.f32 %v4529, %v4779
    %v4861 = vsub.f32 %v4530, %v4780
    %v4862 = vsub.f32 %v4531, %v4781
    %v4863 = vsub.f32 %v4532, %v4782
    %v4864 = vsub.f32 %v4533, %v4783
    %v4865 = vsub.f32 %v4534, %v4784
    %v4866 = vsub.f32 %v4535, %v4785
    %v4867 = vsub.f32 %v4536, %v4786
    %v4868 = vsub.f32 %v4537, %v4787
    %v4869 = vsub.f32 %v4538, %v4788
    %v4870 = vsub.f32 %v4539, %v4789
    %v4871 = vsub.f32 %v4540, %v4790
    %v4872 = vsub.f32 %v4541, %v4791
    %v4873 = vsub.f32 %v4542, %v4792
    %v4874 = vsub.f32 %v4543, %v4793
    %v4875 = vsub.f32 %v4544, %v4794
    %v4876 = vsub.f32 %v4545, %v4795
    %v4877 = vsub.f32 %v4546, %v4796
    %v4878 = vsub.f32 %v4547, %v4797
    %v4879 = vsub.f32 %v4548, %v4798
    %v4880 = vsub.f32 %v4549, %v4799
    %v4881 = vsub.f32 %v4550, %v4800
    %v4882 = vsub.f32 %v4551, %v4801
    %v4883 = vsub.f32 %v4552, %v4802
    %v4884 = vsub.f32 %v4553, %v4803
    %v4885 = vsub.f32 %v4554, %v4804
    %v4886 = vsub.f32 %v4555, %v4805
    %v4887 = vsub.f32 %v4556, %v4806
    %v4888 = vsub.f32 %v4557, %v4807
    %v4889 = vsub.f32 %v4558, %v4808
    %v4890 = vsub.f32 %v4559, %v4809
    %v4891 = vsub.f32 %v4560, %v4810
    %v4892 = vsub.f32 %v4561, %v4811
    %v4893 = vsub.f32 %v4562, %v4812
    %v4894 = vsub.f32 %v4563, %v4813
    %v4895 = vsub.f32 %v4564, %v4814
    %v4896 = vsub.f32 %v4565, %v4815
    %v4897 = vsub.f32 %v4566, %v4816
    %v4898 = vsub.f32 %v4567, %v4817
    %v4899 = vsub.f32 %v4568, %v4818
    %v4900 = vsub.f32 %v4569, %v4819
    %v4901 = vsub.f32 %v4570, %v4820
    %v4902 = vsub.f32 %v4571, %v4821
    %v4903 = vsub.f32 %v4572, %v4822
    %v4904 = vsub.f32 %v4573, %v4823
    %v4905 = vsub.f32 %v4574, %v4824
    %v4906 = vsub.f32 %v4575, %v4825
    %v4907 = vsub.f32 %v4576, %v4826
    %v4908 = vsub.f32 %v4577, %v4827
    %v4909 = vsub.f32 %v4578, %v4828
    %v4910 = vsub.f32 %v4579, %v4829
    %v4911 = vsub.f32 %v4580, %v4830
    %v4912 = vsub.f32 %v4581, %v4831
    %v4913 = vsub.f32 %v4582, %v4832
    %vm4914 = vcmp.lt.f32.partialorder %v4671, 16.0
    %vm4915 = vcmp.lt.f32.partialorder %v4672, 16.0
    %vm4916 = vcmp.lt.f32.partialorder %v4673, 16.0
    %vm4917 = vcmp.lt.f32.partialorder %v4674, 16.0
    %vm4918 = vcmp.lt.f32.partialorder %v4675, 16.0
    %vm4919 = vcmp.lt.f32.partialorder %v4676, 16.0
    %vm4920 = vcmp.lt.f32.partialorder %v4677, 16.0
    %vm4921 = vcmp.lt.f32.partialorder %v4678, 16.0
    %vm4922 = vcmp.lt.f32.partialorder %v4679, 16.0
    %vm4923 = vcmp.lt.f32.partialorder %v4680, 16.0
    %vm4924 = vcmp.lt.f32.partialorder %v4681, 16.0
    %vm4925 = vcmp.lt.f32.partialorder %v4682, 16.0
    %vm4926 = vcmp.lt.f32.partialorder %v4683, 16.0
    %vm4927 = vcmp.lt.f32.partialorder %v4684, 16.0
    %vm4928 = vcmp.lt.f32.partialorder %v4685, 16.0
    %vm4929 = vcmp.lt.f32.partialorder %v4686, 16.0
    %vm4930 = vcmp.lt.f32.partialorder %v4687, 16.0
    %vm4931 = vcmp.lt.f32.partialorder %v4688, 16.0
    %vm4932 = vcmp.lt.f32.partialorder %v4689, 16.0
    %vm4933 = vcmp.lt.f32.partialorder %v4690, 16.0
    %vm4934 = vcmp.lt.f32.partialorder %v4691, 16.0
    %vm4935 = vcmp.lt.f32.partialorder %v4692, 16.0
    %vm4936 = vcmp.lt.f32.partialorder %v4693, 16.0
    %vm4937 = vcmp.lt.f32.partialorder %v4694, 16.0
    %vm4938 = vcmp.lt.f32.partialorder %v4695, 16.0
    %vm4939 = vcmp.lt.f32.partialorder %v4696, 16.0
    %vm4940 = vcmp.lt.f32.partialorder %v4697, 16.0
    %vm4941 = vcmp.lt.f32.partialorder %v4698, 16.0
    %vm4942 = vcmp.lt.f32.partialorder %v4699, 16.0
    %vm4943 = vcmp.lt.f32.partialorder %v4700, 16.0
    %vm4944 = vcmp.lt.f32.partialorder %v4701, 16.0
    %vm4945 = vcmp.lt.f32.partialorder %v4702, 16.0
    %vm4946 = vcmp.lt.f32.partialorder %v4703, 16.0
    %vm4947 = vcmp.lt.f32.partialorder %v4704, 16.0
    %vm4948 = vcmp.lt.f32.partialorder %v4705, 16.0
    %vm4949 = vcmp.lt.f32.partialorder %v4706, 16.0
    %vm4950 = vcmp.lt.f32.partialorder %v4707, 16.0
    %vm4951 = vcmp.lt.f32.partialorder %v4708, 16.0
    %vm4952 = vcmp.lt.f32.partialorder %v4709, 16.0
    %vm4953 = vcmp.lt.f32.partialorder %v4710, 16.0
    %vm4954 = vcmp.lt.f32.partialorder %v4711, 16.0
    %vm4955 = vcmp.lt.f32.partialorder %v4712, 16.0
    %vm4956 = vcmp.lt.f32.partialorder %v4713, 16.0
    %vm4957 = vcmp.lt.f32.partialorder %v4714, 16.0
    %vm4958 = vcmp.lt.f32.partialorder %v4715, 16.0
    %vm4959 = vcmp.lt.f32.partialorder %v4716, 16.0
    %vm4960 = vcmp.lt.f32.partialorder %v4717, 16.0
    %vm4961 = vcmp.lt.f32.partialorder %v4718, 16.0
    %vm4962 = vcmp.lt.f32.partialorder %v4719, 16.0
    %vm4963 = vcmp.lt.f32.partialorder %v4720, 16.0
    %vm4964 = vcmp.lt.f32.partialorder %v4721, 16.0
    %vm4965 = vcmp.lt.f32.partialorder %v4722, 16.0
    %vm4966 = vcmp.lt.f32.partialorder %v4723, 16.0
    %vm4967 = vcmp.lt.f32.partialorder %v4724, 16.0
    %vm4968 = vcmp.lt.f32.partialorder %v4725, 16.0
    %vm4969 = vcmp.lt.f32.partialorder %v4726, 16.0
    %vm4970 = vcmp.lt.f32.partialorder %v4727, 16.0
    %vm4971 = vcmp.lt.f32.partialorder %v4728, 16.0
    %vm4972 = vcmp.lt.f32.partialorder %v4729, 16.0
    %vm4973 = vcmp.lt.f32.partialorder %v4730, 16.0
    %vm4974 = vcmp.lt.f32.partialorder %v4731, 16.0
    %vm4975 = vcmp.lt.f32.partialorder %v4732, 16.0
    %vm4976 = vcmp.lt.f32.partialorder %v4733, 16.0
    %vm4977 = vcmp.lt.f32.partialorder %v4734, 16.0
    %vm4978 = vcmp.lt.f32.partialorder %v4735, 16.0
    %vm4979 = vcmp.lt.f32.partialorder %v4736, 16.0
    %vm4980 = vcmp.lt.f32.partialorder %v4737, 16.0
    %vm4981 = vcmp.lt.f32.partialorder %v4738, 16.0
    %vm4982 = vcmp.lt.f32.partialorder %v4739, 16.0
    %vm4983 = vcmp.lt.f32.partialorder %v4740, 16.0
    %vm4984 = vcmp.lt.f32.partialorder %v4741, 16.0
    %vm4985 = vcmp.lt.f32.partialorder %v4742, 16.0
    %vm4986 = vcmp.lt.f32.partialorder %v4743, 16.0
    %vm4987 = vcmp.lt.f32.partialorder %v4744, 16.0
    %vm4988 = vcmp.lt.f32.partialorder %v4745, 16.0
    %vm4989 = vcmp.lt.f32.partialorder %v4746, 16.0
    %vm4990 = vcmp.lt.f32.partialorder %v4747, 16.0
    %vm4991 = vcmp.lt.f32.partialorder %v4748, 16.0
    %vm4992 = vcmp.lt.f32.partialorder %v4749, 16.0
    %vm4993 = vcmp.lt.f32.partialorder %v4750, 16.0
    %vm4994 = vcmp.lt.f32.partialorder %v4751, 16.0
    %vm4995 = vcmp.lt.f32.partialorder %v4833, 16.0
    %vm4996 = vcmp.lt.f32.partialorder %v4834, 16.0
    %vm4997 = vcmp.lt.f32.partialorder %v4835, 16.0
    %vm4998 = vcmp.lt.f32.partialorder %v4836, 16.0
    %vm4999 = vcmp.lt.f32.partialorder %v4837, 16.0
    %vm5000 = vcmp.lt.f32.partialorder %v4838, 16.0
    %vm5001 = vcmp.lt.f32.partialorder %v4839, 16.0
    %vm5002 = vcmp.lt.f32.partialorder %v4840, 16.0
    %vm5003 = vcmp.lt.f32.partialorder %v4841, 16.0
    %vm5004 = vcmp.lt.f32.partialorder %v4842, 16.0
    %vm5005 = vcmp.lt.f32.partialorder %v4843, 16.0
    %vm5006 = vcmp.lt.f32.partialorder %v4844, 16.0
    %vm5007 = vcmp.lt.f32.partialorder %v4845, 16.0
    %vm5008 = vcmp.lt.f32.partialorder %v4846, 16.0
    %vm5009 = vcmp.lt.f32.partialorder %v4847, 16.0
    %vm5010 = vcmp.lt.f32.partialorder %v4848, 16.0
    %vm5011 = vcmp.lt.f32.partialorder %v4849, 16.0
    %vm5012 = vcmp.lt.f32.partialorder %v4850, 16.0
    %vm5013 = vcmp.lt.f32.partialorder %v4851, 16.0
    %vm5014 = vcmp.lt.f32.partialorder %v4852, 16.0
    %vm5015 = vcmp.lt.f32.partialorder %v4853, 16.0
    %vm5016 = vcmp.lt.f32.partialorder %v4854, 16.0
    %vm5017 = vcmp.lt.f32.partialorder %v4855, 16.0
    %vm5018 = vcmp.lt.f32.partialorder %v4856, 16.0
    %vm5019 = vcmp.lt.f32.partialorder %v4857, 16.0
    %vm5020 = vcmp.lt.f32.partialorder %v4858, 16.0
    %vm5021 = vcmp.lt.f32.partialorder %v4859, 16.0
    %vm5022 = vcmp.lt.f32.partialorder %v4860, 16.0
    %vm5023 = vcmp.lt.f32.partialorder %v4861, 16.0
    %vm5024 = vcmp.lt.f32.partialorder %v4862, 16.0
    %vm5025 = vcmp.lt.f32.partialorder %v4863, 16.0
    %vm5026 = vcmp.lt.f32.partialorder %v4864, 16.0
    %vm5027 = vcmp.lt.f32.partialorder %v4865, 16.0
    %vm5028 = vcmp.lt.f32.partialorder %v4866, 16.0
    %vm5029 = vcmp.lt.f32.partialorder %v4867, 16.0
    %vm5030 = vcmp.lt.f32.partialorder %v4868, 16.0
    %vm5031 = vcmp.lt.f32.partialorder %v4869, 16.0
    %vm5032 = vcmp.lt.f32.partialorder %v4870, 16.0
    %vm5033 = vcmp.lt.f32.partialorder %v4871, 16.0
    %vm5034 = vcmp.lt.f32.partialorder %v4872, 16.0
    %vm5035 = vcmp.lt.f32.partialorder %v4873, 16.0
    %vm5036 = vcmp.lt.f32.partialorder %v4874, 16.0
    %vm5037 = vcmp.lt.f32.partialorder %v4875, 16.0
    %vm5038 = vcmp.lt.f32.partialorder %v4876, 16.0
    %vm5039 = vcmp.lt.f32.partialorder %v4877, 16.0
    %vm5040 = vcmp.lt.f32.partialorder %v4878, 16.0
    %vm5041 = vcmp.lt.f32.partialorder %v4879, 16.0
    %vm5042 = vcmp.lt.f32.partialorder %v4880, 16.0
    %vm5043 = vcmp.lt.f32.partialorder %v4881, 16.0
    %vm5044 = vcmp.lt.f32.partialorder %v4882, 16.0
    %vm5045 = vcmp.lt.f32.partialorder %v4883, 16.0
    %vm5046 = vcmp.lt.f32.partialorder %v4884, 16.0
    %vm5047 = vcmp.lt.f32.partialorder %v4885, 16.0
    %vm5048 = vcmp.lt.f32.partialorder %v4886, 16.0
    %vm5049 = vcmp.lt.f32.partialorder %v4887, 16.0
    %vm5050 = vcmp.lt.f32.partialorder %v4888, 16.0
    %vm5051 = vcmp.lt.f32.partialorder %v4889, 16.0
    %vm5052 = vcmp.lt.f32.partialorder %v4890, 16.0
    %vm5053 = vcmp.lt.f32.partialorder %v4891, 16.0
    %vm5054 = vcmp.lt.f32.partialorder %v4892, 16.0
    %vm5055 = vcmp.lt.f32.partialorder %v4893, 16.0
    %vm5056 = vcmp.lt.f32.partialorder %v4894, 16.0
    %vm5057 = vcmp.lt.f32.partialorder %v4895, 16.0
    %vm5058 = vcmp.lt.f32.partialorder %v4896, 16.0
    %vm5059 = vcmp.lt.f32.partialorder %v4897, 16.0
    %vm5060 = vcmp.lt.f32.partialorder %v4898, 16.0
    %vm5061 = vcmp.lt.f32.partialorder %v4899, 16.0
    %vm5062 = vcmp.lt.f32.partialorder %v4900, 16.0
    %vm5063 = vcmp.lt.f32.partialorder %v4901, 16.0
    %vm5064 = vcmp.lt.f32.partialorder %v4902, 16.0
    %vm5065 = vcmp.lt.f32.partialorder %v4903, 16.0
    %vm5066 = vcmp.lt.f32.partialorder %v4904, 16.0
    %vm5067 = vcmp.lt.f32.partialorder %v4905, 16.0
    %vm5068 = vcmp.lt.f32.partialorder %v4906, 16.0
    %vm5069 = vcmp.lt.f32.partialorder %v4907, 16.0
    %vm5070 = vcmp.lt.f32.partialorder %v4908, 16.0
    %vm5071 = vcmp.lt.f32.partialorder %v4909, 16.0
    %vm5072 = vcmp.lt.f32.partialorder %v4910, 16.0
    %vm5073 = vcmp.lt.f32.partialorder %v4911, 16.0
    %vm5074 = vcmp.lt.f32.partialorder %v4912, 16.0
    %vm5075 = vcmp.lt.f32.partialorder %v4913, 16.0
    %vm5076 = vmand %vm4914, %vm4995
    %vm5077 = vmand %vm4915, %vm4996
    %vm5078 = vmand %vm4916, %vm4997
    %vm5079 = vmand %vm4917, %vm4998
    %vm5080 = vmand %vm4918, %vm4999
    %vm5081 = vmand %vm4919, %vm5000
    %vm5082 = vmand %vm4920, %vm5001
    %vm5083 = vmand %vm4921, %vm5002
    %vm5084 = vmand %vm4922, %vm5003
    %vm5085 = vmand %vm4923, %vm5004
    %vm5086 = vmand %vm4924, %vm5005
    %vm5087 = vmand %vm4925, %vm5006
    %vm5088 = vmand %vm4926, %vm5007
    %vm5089 = vmand %vm4927, %vm5008
    %vm5090 = vmand %vm4928, %vm5009
    %vm5091 = vmand %vm4929, %vm5010
    %vm5092 = vmand %vm4930, %vm5011
    %vm5093 = vmand %vm4931, %vm5012
    %vm5094 = vmand %vm4932, %vm5013
    %vm5095 = vmand %vm4933, %vm5014
    %vm5096 = vmand %vm4934, %vm5015
    %vm5097 = vmand %vm4935, %vm5016
    %vm5098 = vmand %vm4936, %vm5017
    %vm5099 = vmand %vm4937, %vm5018
    %vm5100 = vmand %vm4938, %vm5019
    %vm5101 = vmand %vm4939, %vm5020
    %vm5102 = vmand %vm4940, %vm5021
    %vm5103 = vmand %vm4941, %vm5022
    %vm5104 = vmand %vm4942, %vm5023
    %vm5105 = vmand %vm4943, %vm5024
    %vm5106 = vmand %vm4944, %vm5025
    %vm5107 = vmand %vm4945, %vm5026
    %vm5108 = vmand %vm4946, %vm5027
    %vm5109 = vmand %vm4947, %vm5028
    %vm5110 = vmand %vm4948, %vm5029
    %vm5111 = vmand %vm4949, %vm5030
    %vm5112 = vmand %vm4950, %vm5031
    %vm5113 = vmand %vm4951, %vm5032
    %vm5114 = vmand %vm4952, %vm5033
    %vm5115 = vmand %vm4953, %vm5034
    %vm5116 = vmand %vm4954, %vm5035
    %vm5117 = vmand %vm4955, %vm5036
    %vm5118 = vmand %vm4956, %vm5037
    %vm5119 = vmand %vm4957, %vm5038
    %vm5120 = vmand %vm4958, %vm5039
    %vm5121 = vmand %vm4959, %vm5040
    %vm5122 = vmand %vm4960, %vm5041
    %vm5123 = vmand %vm4961, %vm5042
    %vm5124 = vmand %vm4962, %vm5043
    %vm5125 = vmand %vm4963, %vm5044
    %vm5126 = vmand %vm4964, %vm5045
    %vm5127 = vmand %vm4965, %vm5046
    %vm5128 = vmand %vm4966, %vm5047
    %vm5129 = vmand %vm4967, %vm5048
    %vm5130 = vmand %vm4968, %vm5049
    %vm5131 = vmand %vm4969, %vm5050
    %vm5132 = vmand %vm4970, %vm5051
    %vm5133 = vmand %vm4971, %vm5052
    %vm5134 = vmand %vm4972, %vm5053
    %vm5135 = vmand %vm4973, %vm5054
    %vm5136 = vmand %vm4974, %vm5055
    %vm5137 = vmand %vm4975, %vm5056
    %vm5138 = vmand %vm4976, %vm5057
    %vm5139 = vmand %vm4977, %vm5058
    %vm5140 = vmand %vm4978, %vm5059
    %vm5141 = vmand %vm4979, %vm5060
    %vm5142 = vmand %vm4980, %vm5061
    %vm5143 = vmand %vm4981, %vm5062
    %vm5144 = vmand %vm4982, %vm5063
    %vm5145 = vmand %vm4983, %vm5064
    %vm5146 = vmand %vm4984, %vm5065
    %vm5147 = vmand %vm4985, %vm5066
    %vm5148 = vmand %vm4986, %vm5067
    %vm5149 = vmand %vm4987, %vm5068
    %vm5150 = vmand %vm4988, %vm5069
    %vm5151 = vmand %vm4989, %vm5070
    %vm5152 = vmand %vm4990, %vm5071
    %vm5153 = vmand %vm4991, %vm5072
    %vm5154 = vmand %vm4992, %vm5073
    %vm5155 = vmand %vm4993, %vm5074
    %vm5156 = vmand %vm4994, %vm5075
    %v5157 = vsel %vm5076, 1, 0
    %v5158 = vsel %vm5077, 1, 0
    %v5159 = vsel %vm5078, 1, 0
    %v5160 = vsel %vm5079, 1, 0
    %v5161 = vsel %vm5080, 1, 0
    %v5162 = vsel %vm5081, 1, 0
    %v5163 = vsel %vm5082, 1, 0
    %v5164 = vsel %vm5083, 1, 0
    %v5165 = vsel %vm5084, 1, 0
    %v5166 = vsel %vm5085, 1, 0
    %v5167 = vsel %vm5086, 1, 0
    %v5168 = vsel %vm5087, 1, 0
    %v5169 = vsel %vm5088, 1, 0
    %v5170 = vsel %vm5089, 1, 0
    %v5171 = vsel %vm5090, 1, 0
    %v5172 = vsel %vm5091, 1, 0
    %v5173 = vsel %vm5092, 1, 0
    %v5174 = vsel %vm5093, 1, 0
    %v5175 = vsel %vm5094, 1, 0
    %v5176 = vsel %vm5095, 1, 0
    %v5177 = vsel %vm5096, 1, 0
    %v5178 = vsel %vm5097, 1, 0
    %v5179 = vsel %vm5098, 1, 0
    %v5180 = vsel %vm5099, 1, 0
    %v5181 = vsel %vm5100, 1, 0
    %v5182 = vsel %vm5101, 1, 0
    %v5183 = vsel %vm5102, 1, 0
    %v5184 = vsel %vm5103, 1, 0
    %v5185 = vsel %vm5104, 1, 0
    %v5186 = vsel %vm5105, 1, 0
    %v5187 = vsel %vm5106, 1, 0
    %v5188 = vsel %vm5107, 1, 0
    %v5189 = vsel %vm5108, 1, 0
    %v5190 = vsel %vm5109, 1, 0
    %v5191 = vsel %vm5110, 1, 0
    %v5192 = vsel %vm5111, 1, 0
    %v5193 = vsel %vm5112, 1, 0
    %v5194 = vsel %vm5113, 1, 0
    %v5195 = vsel %vm5114, 1, 0
    %v5196 = vsel %vm5115, 1, 0
    %v5197 = vsel %vm5116, 1, 0
    %v5198 = vsel %vm5117, 1, 0
    %v5199 = vsel %vm5118, 1, 0
    %v5200 = vsel %vm5119, 1, 0
    %v5201 = vsel %vm5120, 1, 0
    %v5202 = vsel %vm5121, 1, 0
    %v5203 = vsel %vm5122, 1, 0
    %v5204 = vsel %vm5123, 1, 0
    %v5205 = vsel %vm5124, 1, 0
    %v5206 = vsel %vm5125, 1, 0
    %v5207 = vsel %vm5126, 1, 0
    %v5208 = vsel %vm5127, 1, 0
    %v5209 = vsel %vm5128, 1, 0
    %v5210 = vsel %vm5129, 1, 0
    %v5211 = vsel %vm5130, 1, 0
    %v5212 = vsel %vm5131, 1, 0
    %v5213 = vsel %vm5132, 1, 0
    %v5214 = vsel %vm5133, 1, 0
    %v5215 = vsel %vm5134, 1, 0
    %v5216 = vsel %vm5135, 1, 0
    %v5217 = vsel %vm5136, 1, 0
    %v5218 = vsel %vm5137, 1, 0
    %v5219 = vsel %vm5138, 1, 0
    %v5220 = vsel %vm5139, 1, 0
    %v5221 = vsel %vm5140, 1, 0
    %v5222 = vsel %vm5141, 1, 0
    %v5223 = vsel %vm5142, 1, 0
    %v5224 = vsel %vm5143, 1, 0
    %v5225 = vsel %vm5144, 1, 0
    %v5226 = vsel %vm5145, 1, 0
    %v5227 = vsel %vm5146, 1, 0
    %v5228 = vsel %vm5147, 1, 0
    %v5229 = vsel %vm5148, 1, 0
    %v5230 = vsel %vm5149, 1, 0
    %v5231 = vsel %vm5150, 1, 0
    %v5232 = vsel %vm5151, 1, 0
    %v5233 = vsel %vm5152, 1, 0
    %v5234 = vsel %vm5153, 1, 0
    %v5235 = vsel %vm5154, 1, 0
    %v5236 = vsel %vm5155, 1, 0
    %v5237 = vsel %vm5156, 1, 0
    %v5238 = vcvt.s32.f32 %v5157
    %v5239 = vcvt.s32.f32 %v5158
    %v5240 = vcvt.s32.f32 %v5159
    %v5241 = vcvt.s32.f32 %v5160
    %v5242 = vcvt.s32.f32 %v5161
    %v5243 = vcvt.s32.f32 %v5162
    %v5244 = vcvt.s32.f32 %v5163
    %v5245 = vcvt.s32.f32 %v5164
    %v5246 = vcvt.s32.f32 %v5165
    %v5247 = vcvt.s32.f32 %v5166
    %v5248 = vcvt.s32.f32 %v5167
    %v5249 = vcvt.s32.f32 %v5168
    %v5250 = vcvt.s32.f32 %v5169
    %v5251 = vcvt.s32.f32 %v5170
    %v5252 = vcvt.s32.f32 %v5171
    %v5253 = vcvt.s32.f32 %v5172
    %v5254 = vcvt.s32.f32 %v5173
    %v5255 = vcvt.s32.f32 %v5174
    %v5256 = vcvt.s32.f32 %v5175
    %v5257 = vcvt.s32.f32 %v5176
    %v5258 = vcvt.s32.f32 %v5177
    %v5259 = vcvt.s32.f32 %v5178
    %v5260 = vcvt.s32.f32 %v5179
    %v5261 = vcvt.s32.f32 %v5180
    %v5262 = vcvt.s32.f32 %v5181
    %v5263 = vcvt.s32.f32 %v5182
    %v5264 = vcvt.s32.f32 %v5183
    %v5265 = vcvt.s32.f32 %v5184
    %v5266 = vcvt.s32.f32 %v5185
    %v5267 = vcvt.s32.f32 %v5186
    %v5268 = vcvt.s32.f32 %v5187
    %v5269 = vcvt.s32.f32 %v5188
    %v5270 = vcvt.s32.f32 %v5189
    %v5271 = vcvt.s32.f32 %v5190
    %v5272 = vcvt.s32.f32 %v5191
    %v5273 = vcvt.s32.f32 %v5192
    %v5274 = vcvt.s32.f32 %v5193
    %v5275 = vcvt.s32.f32 %v5194
    %v5276 = vcvt.s32.f32 %v5195
    %v5277 = vcvt.s32.f32 %v5196
    %v5278 = vcvt.s32.f32 %v5197
    %v5279 = vcvt.s32.f32 %v5198
    %v5280 = vcvt.s32.f32 %v5199
    %v5281 = vcvt.s32.f32 %v5200
    %v5282 = vcvt.s32.f32 %v5201
    %v5283 = vcvt.s32.f32 %v5202
    %v5284 = vcvt.s32.f32 %v5203
    %v5285 = vcvt.s32.f32 %v5204
    %v5286 = vcvt.s32.f32 %v5205
    %v5287 = vcvt.s32.f32 %v5206
    %v5288 = vcvt.s32.f32 %v5207
    %v5289 = vcvt.s32.f32 %v5208
    %v5290 = vcvt.s32.f32 %v5209
    %v5291 = vcvt.s32.f32 %v5210
    %v5292 = vcvt.s32.f32 %v5211
    %v5293 = vcvt.s32.f32 %v5212
    %v5294 = vcvt.s32.f32 %v5213
    %v5295 = vcvt.s32.f32 %v5214
    %v5296 = vcvt.s32.f32 %v5215
    %v5297 = vcvt.s32.f32 %v5216
    %v5298 = vcvt.s32.f32 %v5217
    %v5299 = vcvt.s32.f32 %v5218
    %v5300 = vcvt.s32.f32 %v5219
    %v5301 = vcvt.s32.f32 %v5220
    %v5302 = vcvt.s32.f32 %v5221
    %v5303 = vcvt.s32.f32 %v5222
    %v5304 = vcvt.s32.f32 %v5223
    %v5305 = vcvt.s32.f32 %v5224
    %v5306 = vcvt.s32.f32 %v5225
    %v5307 = vcvt.s32.f32 %v5226
    %v5308 = vcvt.s32.f32 %v5227
    %v5309 = vcvt.s32.f32 %v5228
    %v5310 = vcvt.s32.f32 %v5229
    %v5311 = vcvt.s32.f32 %v5230
    %v5312 = vcvt.s32.f32 %v5231
    %v5313 = vcvt.s32.f32 %v5232
    %v5314 = vcvt.s32.f32 %v5233
    %v5315 = vcvt.s32.f32 %v5234
    %v5316 = vcvt.s32.f32 %v5235
    %v5317 = vcvt.s32.f32 %v5236
    %v5318 = vcvt.s32.f32 %v5237
    %v5319 = vmul.f32 %v3886, %v5238
    %v5320 = vmul.f32 %v3888, %v5239
    %v5321 = vmul.f32 %v3891, %v5240
    %v5322 = vmul.f32 %v3893, %v5241
    %v5323 = vmul.f32 %v3896, %v5242
    %v5324 = vmul.f32 %v3898, %v5243
    %v5325 = vmul.f32 %v3901, %v5244
    %v5326 = vmul.f32 %v3903, %v5245
    %v5327 = vmul.f32 %v3906, %v5246
    %v5328 = vmul.f32 %v3908, %v5247
    %v5329 = vmul.f32 %v3911, %v5248
    %v5330 = vmul.f32 %v3913, %v5249
    %v5331 = vmul.f32 %v3916, %v5250
    %v5332 = vmul.f32 %v3918, %v5251
    %v5333 = vmul.f32 %v3921, %v5252
    %v5334 = vmul.f32 %v3923, %v5253
    %v5335 = vmul.f32 %v3926, %v5254
    %v5336 = vmul.f32 %v3928, %v5255
    %v5337 = vmul.f32 %v3931, %v5256
    %v5338 = vmul.f32 %v3933, %v5257
    %v5339 = vmul.f32 %v3936, %v5258
    %v5340 = vmul.f32 %v3938, %v5259
    %v5341 = vmul.f32 %v3941, %v5260
    %v5342 = vmul.f32 %v3943, %v5261
    %v5343 = vmul.f32 %v3946, %v5262
    %v5344 = vmul.f32 %v3948, %v5263
    %v5345 = vmul.f32 %v3951, %v5264
    %v5346 = vmul.f32 %v3953, %v5265
    %v5347 = vmul.f32 %v3956, %v5266
    %v5348 = vmul.f32 %v3958, %v5267
    %v5349 = vmul.f32 %v3961, %v5268
    %v5350 = vmul.f32 %v3963, %v5269
    %v5351 = vmul.f32 %v3966, %v5270
    %v5352 = vmul.f32 %v3968, %v5271
    %v5353 = vmul.f32 %v3971, %v5272
    %v5354 = vmul.f32 %v3973, %v5273
    %v5355 = vmul.f32 %v3976, %v5274
    %v5356 = vmul.f32 %v3978, %v5275
    %v5357 = vmul.f32 %v3981, %v5276
    %v5358 = vmul.f32 %v3983, %v5277
    %v5359 = vmul.f32 %v3986, %v5278
    %v5360 = vmul.f32 %v3988, %v5279
    %v5361 = vmul.f32 %v3991, %v5280
    %v5362 = vmul.f32 %v3993, %v5281
    %v5363 = vmul.f32 %v3996, %v5282
    %v5364 = vmul.f32 %v3998, %v5283
    %v5365 = vmul.f32 %v4001, %v5284
    %v5366 = vmul.f32 %v4003, %v5285
    %v5367 = vmul.f32 %v4006, %v5286
    %v5368 = vmul.f32 %v4008, %v5287
    %v5369 = vmul.f32 %v4011, %v5288
    %v5370 = vmul.f32 %v4013, %v5289
    %v5371 = vmul.f32 %v4016, %v5290
    %v5372 = vmul.f32 %v4018, %v5291
    %v5373 = vmul.f32 %v4021, %v5292
    %v5374 = vmul.f32 %v4023, %v5293
    %v5375 = vmul.f32 %v4026, %v5294
    %v5376 = vmul.f32 %v4028, %v5295
    %v5377 = vmul.f32 %v4031, %v5296
    %v5378 = vmul.f32 %v4033, %v5297
    %v5379 = vmul.f32 %v4036, %v5298
    %v5380 = vmul.f32 %v4038, %v5299
    %v5381 = vmul.f32 %v4041, %v5300
    %v5382 = vmul.f32 %v4043, %v5301
    %v5383 = vmul.f32 %v4046, %v5302
    %v5384 = vmul.f32 %v4048, %v5303
    %v5385 = vmul.f32 %v4051, %v5304
    %v5386 = vmul.f32 %v4053, %v5305
    %v5387 = vmul.f32 %v4056, %v5306
    %v5388 = vmul.f32 %v4058, %v5307
    %v5389 = vmul.f32 %v4061, %v5308
    %v5390 = vmul.f32 %v4063, %v5309
    %v5391 = vmul.f32 %v4066, %v5310
    %v5392 = vmul.f32 %v4068, %v5311
    %v5393 = vmul.f32 %v4071, %v5312
    %v5394 = vmul.f32 %v4073, %v5313
    %v5395 = vmul.f32 %v4076, %v5314
    %v5396 = vmul.f32 %v4078, %v5315
    %v5397 = vmul.f32 %v4081, %v5316
    %v5398 = vmul.f32 %v4083, %v5317
    %v5399 = vmul.f32 %v4086, %v5318
    %v5400 = vmul.f32 %v5319, %v3886
    %v5401 = vmul.f32 %v5320, %v3888
    %v5402 = vmul.f32 %v5321, %v3891
    %v5403 = vmul.f32 %v5322, %v3893
    %v5404 = vmul.f32 %v5323, %v3896
    %v5405 = vmul.f32 %v5324, %v3898
    %v5406 = vmul.f32 %v5325, %v3901
    %v5407 = vmul.f32 %v5326, %v3903
    %v5408 = vmul.f32 %v5327, %v3906
    %v5409 = vmul.f32 %v5328, %v3908
    %v5410 = vmul.f32 %v5329, %v3911
    %v5411 = vmul.f32 %v5330, %v3913
    %v5412 = vmul.f32 %v5331, %v3916
    %v5413 = vmul.f32 %v5332, %v3918
    %v5414 = vmul.f32 %v5333, %v3921
    %v5415 = vmul.f32 %v5334, %v3923
    %v5416 = vmul.f32 %v5335, %v3926
    %v5417 = vmul.f32 %v5336, %v3928
    %v5418 = vmul.f32 %v5337, %v3931
    %v5419 = vmul.f32 %v5338, %v3933
    %v5420 = vmul.f32 %v5339, %v3936
    %v5421 = vmul.f32 %v5340, %v3938
    %v5422 = vmul.f32 %v5341, %v3941
    %v5423 = vmul.f32 %v5342, %v3943
    %v5424 = vmul.f32 %v5343, %v3946
    %v5425 = vmul.f32 %v5344, %v3948
    %v5426 = vmul.f32 %v5345, %v3951
    %v5427 = vmul.f32 %v5346, %v3953
    %v5428 = vmul.f32 %v5347, %v3956
    %v5429 = vmul.f32 %v5348, %v3958
    %v5430 = vmul.f32 %v5349, %v3961
    %v5431 = vmul.f32 %v5350, %v3963
    %v5432 = vmul.f32 %v5351, %v3966
    %v5433 = vmul.f32 %v5352, %v3968
    %v5434 = vmul.f32 %v5353, %v3971
    %v5435 = vmul.f32 %v5354, %v3973
    %v5436 = vmul.f32 %v5355, %v3976
    %v5437 = vmul.f32 %v5356, %v3978
    %v5438 = vmul.f32 %v5357, %v3981
    %v5439 = vmul.f32 %v5358, %v3983
    %v5440 = vmul.f32 %v5359, %v3986
    %v5441 = vmul.f32 %v5360, %v3988
    %v5442 = vmul.f32 %v5361, %v3991
    %v5443 = vmul.f32 %v5362, %v3993
    %v5444 = vmul.f32 %v5363, %v3996
    %v5445 = vmul.f32 %v5364, %v3998
    %v5446 = vmul.f32 %v5365, %v4001
    %v5447 = vmul.f32 %v5366, %v4003
    %v5448 = vmul.f32 %v5367, %v4006
    %v5449 = vmul.f32 %v5368, %v4008
    %v5450 = vmul.f32 %v5369, %v4011
    %v5451 = vmul.f32 %v5370, %v4013
    %v5452 = vmul.f32 %v5371, %v4016
    %v5453 = vmul.f32 %v5372, %v4018
    %v5454 = vmul.f32 %v5373, %v4021
    %v5455 = vmul.f32 %v5374, %v4023
    %v5456 = vmul.f32 %v5375, %v4026
    %v5457 = vmul.f32 %v5376, %v4028
    %v5458 = vmul.f32 %v5377, %v4031
    %v5459 = vmul.f32 %v5378, %v4033
    %v5460 = vmul.f32 %v5379, %v4036
    %v5461 = vmul.f32 %v5380, %v4038
    %v5462 = vmul.f32 %v5381, %v4041
    %v5463 = vmul.f32 %v5382, %v4043
    %v5464 = vmul.f32 %v5383, %v4046
    %v5465 = vmul.f32 %v5384, %v4048
    %v5466 = vmul.f32 %v5385, %v4051
    %v5467 = vmul.f32 %v5386, %v4053
    %v5468 = vmul.f32 %v5387, %v4056
    %v5469 = vmul.f32 %v5388, %v4058
    %v5470 = vmul.f32 %v5389, %v4061
    %v5471 = vmul.f32 %v5390, %v4063
    %v5472 = vmul.f32 %v5391, %v4066
    %v5473 = vmul.f32 %v5392, %v4068
    %v5474 = vmul.f32 %v5393, %v4071
    %v5475 = vmul.f32 %v5394, %v4073
    %v5476 = vmul.f32 %v5395, %v4076
    %v5477 = vmul.f32 %v5396, %v4078
    %v5478 = vmul.f32 %v5397, %v4081
    %v5479 = vmul.f32 %v5398, %v4083
    %v5480 = vmul.f32 %v5399, %v4086
    %5562 = vrot.lane.b32.xlu0 %v5400, 16
    %v5563 = vpop.permute.xlu0 %5562
    %5564 = vrot.lane.b32.xlu0 %v5401, 16
    %v5565 = vpop.permute.xlu0 %5564
    %5566 = vrot.lane.b32.xlu0 %v5402, 16
    %v5567 = vpop.permute.xlu0 %5566
    %5568 = vrot.lane.b32.xlu0 %v5403, 16
    %v5569 = vpop.permute.xlu0 %5568
    %5570 = vrot.lane.b32.xlu0 %v5404, 16
    %v5571 = vpop.permute.xlu0 %5570
    %5572 = vrot.lane.b32.xlu0 %v5405, 16
    %v5573 = vpop.permute.xlu0 %5572
    %5574 = vrot.lane.b32.xlu0 %v5406, 16
    %v5575 = vpop.permute.xlu0 %5574
    %5576 = vrot.lane.b32.xlu0 %v5407, 16
    %v5577 = vpop.permute.xlu0 %5576
    %5578 = vrot.lane.b32.xlu0 %v5408, 16
    %v5579 = vpop.permute.xlu0 %5578
    %5580 = vrot.lane.b32.xlu0 %v5409, 16
    %v5581 = vpop.permute.xlu0 %5580
    %5582 = vrot.lane.b32.xlu0 %v5410, 16
    %v5583 = vpop.permute.xlu0 %5582
    %5584 = vrot.lane.b32.xlu0 %v5411, 16
    %v5585 = vpop.permute.xlu0 %5584
    %5586 = vrot.lane.b32.xlu0 %v5412, 16
    %v5587 = vpop.permute.xlu0 %5586
    %5588 = vrot.lane.b32.xlu0 %v5413, 16
    %v5589 = vpop.permute.xlu0 %5588
    %5590 = vrot.lane.b32.xlu0 %v5414, 16
    %v5591 = vpop.permute.xlu0 %5590
    %5592 = vrot.lane.b32.xlu0 %v5415, 16
    %v5593 = vpop.permute.xlu0 %5592
    %5594 = vrot.lane.b32.xlu0 %v5416, 16
    %v5595 = vpop.permute.xlu0 %5594
    %5596 = vrot.lane.b32.xlu0 %v5417, 16
    %v5597 = vpop.permute.xlu0 %5596
    %5598 = vrot.lane.b32.xlu0 %v5418, 16
    %v5599 = vpop.permute.xlu0 %5598
    %5600 = vrot.lane.b32.xlu0 %v5419, 16
    %v5601 = vpop.permute.xlu0 %5600
    %5602 = vrot.lane.b32.xlu0 %v5420, 16
    %v5603 = vpop.permute.xlu0 %5602
    %5604 = vrot.lane.b32.xlu0 %v5421, 16
    %v5605 = vpop.permute.xlu0 %5604
    %5606 = vrot.lane.b32.xlu0 %v5422, 16
    %v5607 = vpop.permute.xlu0 %5606
    %5608 = vrot.lane.b32.xlu0 %v5423, 16
    %v5609 = vpop.permute.xlu0 %5608
    %5610 = vrot.lane.b32.xlu0 %v5424, 16
    %v5611 = vpop.permute.xlu0 %5610
    %5612 = vrot.lane.b32.xlu0 %v5425, 16
    %v5613 = vpop.permute.xlu0 %5612
    %5614 = vrot.lane.b32.xlu0 %v5426, 16
    %v5615 = vpop.permute.xlu0 %5614
    %5616 = vrot.lane.b32.xlu0 %v5427, 16
    %v5617 = vpop.permute.xlu0 %5616
    %5618 = vrot.lane.b32.xlu0 %v5428, 16
    %v5619 = vpop.permute.xlu0 %5618
    %5620 = vrot.lane.b32.xlu0 %v5429, 16
    %v5621 = vpop.permute.xlu0 %5620
    %5622 = vrot.lane.b32.xlu0 %v5430, 16
    %v5623 = vpop.permute.xlu0 %5622
    %5624 = vrot.lane.b32.xlu0 %v5431, 16
    %v5625 = vpop.permute.xlu0 %5624
    %5626 = vrot.lane.b32.xlu0 %v5432, 16
    %v5627 = vpop.permute.xlu0 %5626
    %5628 = vrot.lane.b32.xlu0 %v5433, 16
    %v5629 = vpop.permute.xlu0 %5628
    %5630 = vrot.lane.b32.xlu0 %v5434, 16
    %v5631 = vpop.permute.xlu0 %5630
    %5632 = vrot.lane.b32.xlu0 %v5435, 16
    %v5633 = vpop.permute.xlu0 %5632
    %5634 = vrot.lane.b32.xlu0 %v5436, 16
    %v5635 = vpop.permute.xlu0 %5634
    %5636 = vrot.lane.b32.xlu0 %v5437, 16
    %v5637 = vpop.permute.xlu0 %5636
    %5638 = vrot.lane.b32.xlu0 %v5438, 16
    %v5639 = vpop.permute.xlu0 %5638
    %5640 = vrot.lane.b32.xlu0 %v5439, 16
    %v5641 = vpop.permute.xlu0 %5640
    %5642 = vrot.lane.b32.xlu0 %v5440, 16
    %v5643 = vpop.permute.xlu0 %5642
    %5644 = vrot.lane.b32.xlu0 %v5441, 16
    %v5645 = vpop.permute.xlu0 %5644
    %5646 = vrot.lane.b32.xlu0 %v5442, 16
    %v5647 = vpop.permute.xlu0 %5646
    %5648 = vrot.lane.b32.xlu0 %v5443, 16
    %v5649 = vpop.permute.xlu0 %5648
    %5650 = vrot.lane.b32.xlu0 %v5444, 16
    %v5651 = vpop.permute.xlu0 %5650
    %5652 = vrot.lane.b32.xlu0 %v5445, 16
    %v5653 = vpop.permute.xlu0 %5652
    %5654 = vrot.lane.b32.xlu0 %v5446, 16
    %v5655 = vpop.permute.xlu0 %5654
    %5656 = vrot.lane.b32.xlu0 %v5447, 16
    %v5657 = vpop.permute.xlu0 %5656
    %5658 = vrot.lane.b32.xlu0 %v5448, 16
    %v5659 = vpop.permute.xlu0 %5658
    %5660 = vrot.lane.b32.xlu0 %v5449, 16
    %v5661 = vpop.permute.xlu0 %5660
    %5662 = vrot.lane.b32.xlu0 %v5450, 16
    %v5663 = vpop.permute.xlu0 %5662
    %5664 = vrot.lane.b32.xlu0 %v5451, 16
    %v5665 = vpop.permute.xlu0 %5664
    %5666 = vrot.lane.b32.xlu0 %v5452, 16
    %v5667 = vpop.permute.xlu0 %5666
    %5668 = vrot.lane.b32.xlu0 %v5453, 16
    %v5669 = vpop.permute.xlu0 %5668
    %5670 = vrot.lane.b32.xlu0 %v5454, 16
    %v5671 = vpop.permute.xlu0 %5670
    %5672 = vrot.lane.b32.xlu0 %v5455, 16
    %v5673 = vpop.permute.xlu0 %5672
    %5674 = vrot.lane.b32.xlu0 %v5456, 16
    %v5675 = vpop.permute.xlu0 %5674
    %5676 = vrot.lane.b32.xlu0 %v5457, 16
    %v5677 = vpop.permute.xlu0 %5676
    %5678 = vrot.lane.b32.xlu0 %v5458, 16
    %v5679 = vpop.permute.xlu0 %5678
    %5680 = vrot.lane.b32.xlu0 %v5459, 16
    %v5681 = vpop.permute.xlu0 %5680
    %5682 = vrot.lane.b32.xlu0 %v5460, 16
    %v5683 = vpop.permute.xlu0 %5682
    %5684 = vrot.lane.b32.xlu0 %v5461, 16
    %v5685 = vpop.permute.xlu0 %5684
    %5686 = vrot.lane.b32.xlu0 %v5462, 16
    %v5687 = vpop.permute.xlu0 %5686
    %5688 = vrot.lane.b32.xlu0 %v5463, 16
    %v5689 = vpop.permute.xlu0 %5688
    %5690 = vrot.lane.b32.xlu0 %v5464, 16
    %v5691 = vpop.permute.xlu0 %5690
    %5692 = vrot.lane.b32.xlu0 %v5465, 16
    %v5693 = vpop.permute.xlu0 %5692
    %5694 = vrot.lane.b32.xlu0 %v5466, 16
    %v5695 = vpop.permute.xlu0 %5694
    %5696 = vrot.lane.b32.xlu0 %v5467, 16
    %v5697 = vpop.permute.xlu0 %5696
    %5698 = vrot.lane.b32.xlu0 %v5468, 16
    %v5699 = vpop.permute.xlu0 %5698
    %5700 = vrot.lane.b32.xlu0 %v5469, 16
    %v5701 = vpop.permute.xlu0 %5700
    %5702 = vrot.lane.b32.xlu0 %v5470, 16
    %v5703 = vpop.permute.xlu0 %5702
    %5704 = vrot.lane.b32.xlu0 %v5471, 16
    %v5705 = vpop.permute.xlu0 %5704
    %5706 = vrot.lane.b32.xlu0 %v5472, 16
    %v5707 = vpop.permute.xlu0 %5706
    %5708 = vrot.lane.b32.xlu0 %v5473, 16
    %v5709 = vpop.permute.xlu0 %5708
    %5710 = vrot.lane.b32.xlu0 %v5474, 16
    %v5711 = vpop.permute.xlu0 %5710
    %5712 = vrot.lane.b32.xlu0 %v5475, 16
    %v5713 = vpop.permute.xlu0 %5712
    %5714 = vrot.lane.b32.xlu0 %v5476, 16
    %v5715 = vpop.permute.xlu0 %5714
    %5716 = vrot.lane.b32.xlu0 %v5477, 16
    %v5717 = vpop.permute.xlu0 %5716
    %5718 = vrot.lane.b32.xlu0 %v5478, 16
    %v5719 = vpop.permute.xlu0 %5718
    %5720 = vrot.lane.b32.xlu0 %v5479, 16
    %v5721 = vpop.permute.xlu0 %5720
    %5722 = vrot.lane.b32.xlu0 %v5480, 16
    %v5723 = vpop.permute.xlu0 %5722
    %vm5805 = vcmask 130048
    %v5806 = vsel %vm5805, %v5319, %v5563
    %v5807 = vsel %vm5805, %v5320, %v5565
    %v5808 = vsel %vm5805, %v5321, %v5567
    %v5809 = vsel %vm5805, %v5322, %v5569
    %v5810 = vsel %vm5805, %v5323, %v5571
    %v5811 = vsel %vm5805, %v5324, %v5573
    %v5812 = vsel %vm5805, %v5325, %v5575
    %v5813 = vsel %vm5805, %v5326, %v5577
    %v5814 = vsel %vm5805, %v5327, %v5579
    %v5815 = vsel %vm5805, %v5328, %v5581
    %v5816 = vsel %vm5805, %v5329, %v5583
    %v5817 = vsel %vm5805, %v5330, %v5585
    %v5818 = vsel %vm5805, %v5331, %v5587
    %v5819 = vsel %vm5805, %v5332, %v5589
    %v5820 = vsel %vm5805, %v5333, %v5591
    %v5821 = vsel %vm5805, %v5334, %v5593
    %v5822 = vsel %vm5805, %v5335, %v5595
    %v5823 = vsel %vm5805, %v5336, %v5597
    %v5824 = vsel %vm5805, %v5337, %v5599
    %v5825 = vsel %vm5805, %v5338, %v5601
    %v5826 = vsel %vm5805, %v5339, %v5603
    %v5827 = vsel %vm5805, %v5340, %v5605
    %v5828 = vsel %vm5805, %v5341, %v5607
    %v5829 = vsel %vm5805, %v5342, %v5609
    %v5830 = vsel %vm5805, %v5343, %v5611
    %v5831 = vsel %vm5805, %v5344, %v5613
    %v5832 = vsel %vm5805, %v5345, %v5615
    %v5833 = vsel %vm5805, %v5346, %v5617
    %v5834 = vsel %vm5805, %v5347, %v5619
    %v5835 = vsel %vm5805, %v5348, %v5621
    %v5836 = vsel %vm5805, %v5349, %v5623
    %v5837 = vsel %vm5805, %v5350, %v5625
    %v5838 = vsel %vm5805, %v5351, %v5627
    %v5839 = vsel %vm5805, %v5352, %v5629
    %v5840 = vsel %vm5805, %v5353, %v5631
    %v5841 = vsel %vm5805, %v5354, %v5633
    %v5842 = vsel %vm5805, %v5355, %v5635
    %v5843 = vsel %vm5805, %v5356, %v5637
    %v5844 = vsel %vm5805, %v5357, %v5639
    %v5845 = vsel %vm5805, %v5358, %v5641
    %v5846 = vsel %vm5805, %v5359, %v5643
    %v5847 = vsel %vm5805, %v5360, %v5645
    %v5848 = vsel %vm5805, %v5361, %v5647
    %v5849 = vsel %vm5805, %v5362, %v5649
    %v5850 = vsel %vm5805, %v5363, %v5651
    %v5851 = vsel %vm5805, %v5364, %v5653
    %v5852 = vsel %vm5805, %v5365, %v5655
    %v5853 = vsel %vm5805, %v5366, %v5657
    %v5854 = vsel %vm5805, %v5367, %v5659
    %v5855 = vsel %vm5805, %v5368, %v5661
    %v5856 = vsel %vm5805, %v5369, %v5663
    %v5857 = vsel %vm5805, %v5370, %v5665
    %v5858 = vsel %vm5805, %v5371, %v5667
    %v5859 = vsel %vm5805, %v5372, %v5669
    %v5860 = vsel %vm5805, %v5373, %v5671
    %v5861 = vsel %vm5805, %v5374, %v5673
    %v5862 = vsel %vm5805, %v5375, %v5675
    %v5863 = vsel %vm5805, %v5376, %v5677
    %v5864 = vsel %vm5805, %v5377, %v5679
    %v5865 = vsel %vm5805, %v5378, %v5681
    %v5866 = vsel %vm5805, %v5379, %v5683
    %v5867 = vsel %vm5805, %v5380, %v5685
    %v5868 = vsel %vm5805, %v5381, %v5687
    %v5869 = vsel %vm5805, %v5382, %v5689
    %v5870 = vsel %vm5805, %v5383, %v5691
    %v5871 = vsel %vm5805, %v5384, %v5693
    %v5872 = vsel %vm5805, %v5385, %v5695
    %v5873 = vsel %vm5805, %v5386, %v5697
    %v5874 = vsel %vm5805, %v5387, %v5699
    %v5875 = vsel %vm5805, %v5388, %v5701
    %v5876 = vsel %vm5805, %v5389, %v5703
    %v5877 = vsel %vm5805, %v5390, %v5705
    %v5878 = vsel %vm5805, %v5391, %v5707
    %v5879 = vsel %vm5805, %v5392, %v5709
    %v5880 = vsel %vm5805, %v5393, %v5711
    %v5881 = vsel %vm5805, %v5394, %v5713
    %v5882 = vsel %vm5805, %v5395, %v5715
    %v5883 = vsel %vm5805, %v5396, %v5717
    %v5884 = vsel %vm5805, %v5397, %v5719
    %v5885 = vsel %vm5805, %v5398, %v5721
    %v5886 = vsel %vm5805, %v5399, %v5723
    %vm5887 = vcmask 261120
    %v5888 = vsel %vm5887, %v5806, 0.0
    %v5889 = vsel %vm5887, %v5807, 0.0
    %v5890 = vadd.f32 %v5888, %v5889
    %v5891 = vsel %vm5887, %v5808, 0.0
    %v5892 = vadd.f32 %v5890, %v5891
    %v5893 = vsel %vm5887, %v5809, 0.0
    %v5894 = vadd.f32 %v5892, %v5893
    %v5895 = vsel %vm5887, %v5810, 0.0
    %v5896 = vadd.f32 %v5894, %v5895
    %v5897 = vsel %vm5887, %v5811, 0.0
    %v5898 = vadd.f32 %v5896, %v5897
    %v5899 = vsel %vm5887, %v5812, 0.0
    %v5900 = vadd.f32 %v5898, %v5899
    %v5901 = vsel %vm5887, %v5813, 0.0
    %v5902 = vadd.f32 %v5900, %v5901
    %v5903 = vsel %vm5887, %v5814, 0.0
    %v5904 = vadd.f32 %v5902, %v5903
    %v5905 = vsel %vm5887, %v5815, 0.0
    %v5906 = vadd.f32 %v5904, %v5905
    %v5907 = vsel %vm5887, %v5816, 0.0
    %v5908 = vadd.f32 %v5906, %v5907
    %v5909 = vsel %vm5887, %v5817, 0.0
    %v5910 = vadd.f32 %v5908, %v5909
    %v5911 = vsel %vm5887, %v5818, 0.0
    %v5912 = vadd.f32 %v5910, %v5911
    %v5913 = vsel %vm5887, %v5819, 0.0
    %v5914 = vadd.f32 %v5912, %v5913
    %v5915 = vsel %vm5887, %v5820, 0.0
    %v5916 = vadd.f32 %v5914, %v5915
    %v5917 = vsel %vm5887, %v5821, 0.0
    %v5918 = vadd.f32 %v5916, %v5917
    %v5919 = vsel %vm5887, %v5822, 0.0
    %v5920 = vadd.f32 %v5918, %v5919
    %v5921 = vsel %vm5887, %v5823, 0.0
    %v5922 = vadd.f32 %v5920, %v5921
    %v5923 = vsel %vm5887, %v5824, 0.0
    %v5924 = vadd.f32 %v5922, %v5923
    %v5925 = vsel %vm5887, %v5825, 0.0
    %v5926 = vadd.f32 %v5924, %v5925
    %v5927 = vsel %vm5887, %v5826, 0.0
    %v5928 = vadd.f32 %v5926, %v5927
    %v5929 = vsel %vm5887, %v5827, 0.0
    %v5930 = vadd.f32 %v5928, %v5929
    %v5931 = vsel %vm5887, %v5828, 0.0
    %v5932 = vadd.f32 %v5930, %v5931
    %v5933 = vsel %vm5887, %v5829, 0.0
    %v5934 = vadd.f32 %v5932, %v5933
    %v5935 = vsel %vm5887, %v5830, 0.0
    %v5936 = vadd.f32 %v5934, %v5935
    %v5937 = vsel %vm5887, %v5831, 0.0
    %v5938 = vadd.f32 %v5936, %v5937
    %v5939 = vsel %vm5887, %v5832, 0.0
    %v5940 = vadd.f32 %v5938, %v5939
    %v5941 = vsel %vm5887, %v5833, 0.0
    %v5942 = vadd.f32 %v5940, %v5941
    %v5943 = vsel %vm5887, %v5834, 0.0
    %v5944 = vadd.f32 %v5942, %v5943
    %v5945 = vsel %vm5887, %v5835, 0.0
    %v5946 = vadd.f32 %v5944, %v5945
    %v5947 = vsel %vm5887, %v5836, 0.0
    %v5948 = vadd.f32 %v5946, %v5947
    %v5949 = vsel %vm5887, %v5837, 0.0
    %v5950 = vadd.f32 %v5948, %v5949
    %v5951 = vsel %vm5887, %v5838, 0.0
    %v5952 = vadd.f32 %v5950, %v5951
    %v5953 = vsel %vm5887, %v5839, 0.0
    %v5954 = vadd.f32 %v5952, %v5953
    %v5955 = vsel %vm5887, %v5840, 0.0
    %v5956 = vadd.f32 %v5954, %v5955
    %v5957 = vsel %vm5887, %v5841, 0.0
    %v5958 = vadd.f32 %v5956, %v5957
    %v5959 = vsel %vm5887, %v5842, 0.0
    %v5960 = vadd.f32 %v5958, %v5959
    %v5961 = vsel %vm5887, %v5843, 0.0
    %v5962 = vadd.f32 %v5960, %v5961
    %v5963 = vsel %vm5887, %v5844, 0.0
    %v5964 = vadd.f32 %v5962, %v5963
    %v5965 = vsel %vm5887, %v5845, 0.0
    %v5966 = vadd.f32 %v5964, %v5965
    %v5967 = vsel %vm5887, %v5846, 0.0
    %v5968 = vadd.f32 %v5966, %v5967
    %v5969 = vsel %vm5887, %v5847, 0.0
    %v5970 = vadd.f32 %v5968, %v5969
    %v5971 = vsel %vm5887, %v5848, 0.0
    %v5972 = vadd.f32 %v5970, %v5971
    %v5973 = vsel %vm5887, %v5849, 0.0
    %v5974 = vadd.f32 %v5972, %v5973
    %v5975 = vsel %vm5887, %v5850, 0.0
    %v5976 = vadd.f32 %v5974, %v5975
    %v5977 = vsel %vm5887, %v5851, 0.0
    %v5978 = vadd.f32 %v5976, %v5977
    %v5979 = vsel %vm5887, %v5852, 0.0
    %v5980 = vadd.f32 %v5978, %v5979
    %v5981 = vsel %vm5887, %v5853, 0.0
    %v5982 = vadd.f32 %v5980, %v5981
    %v5983 = vsel %vm5887, %v5854, 0.0
    %v5984 = vadd.f32 %v5982, %v5983
    %v5985 = vsel %vm5887, %v5855, 0.0
    %v5986 = vadd.f32 %v5984, %v5985
    %v5987 = vsel %vm5887, %v5856, 0.0
    %v5988 = vadd.f32 %v5986, %v5987
    %v5989 = vsel %vm5887, %v5857, 0.0
    %v5990 = vadd.f32 %v5988, %v5989
    %v5991 = vsel %vm5887, %v5858, 0.0
    %v5992 = vadd.f32 %v5990, %v5991
    %v5993 = vsel %vm5887, %v5859, 0.0
    %v5994 = vadd.f32 %v5992, %v5993
    %v5995 = vsel %vm5887, %v5860, 0.0
    %v5996 = vadd.f32 %v5994, %v5995
    %v5997 = vsel %vm5887, %v5861, 0.0
    %v5998 = vadd.f32 %v5996, %v5997
    %v5999 = vsel %vm5887, %v5862, 0.0
    %v6000 = vadd.f32 %v5998, %v5999
    %v6001 = vsel %vm5887, %v5863, 0.0
    %v6002 = vadd.f32 %v6000, %v6001
    %v6003 = vsel %vm5887, %v5864, 0.0
    %v6004 = vadd.f32 %v6002, %v6003
    %v6005 = vsel %vm5887, %v5865, 0.0
    %v6006 = vadd.f32 %v6004, %v6005
    %v6007 = vsel %vm5887, %v5866, 0.0
    %v6008 = vadd.f32 %v6006, %v6007
    %v6009 = vsel %vm5887, %v5867, 0.0
    %v6010 = vadd.f32 %v6008, %v6009
    %v6011 = vsel %vm5887, %v5868, 0.0
    %v6012 = vadd.f32 %v6010, %v6011
    %v6013 = vsel %vm5887, %v5869, 0.0
    %v6014 = vadd.f32 %v6012, %v6013
    %v6015 = vsel %vm5887, %v5870, 0.0
    %v6016 = vadd.f32 %v6014, %v6015
    %v6017 = vsel %vm5887, %v5871, 0.0
    %v6018 = vadd.f32 %v6016, %v6017
    %v6019 = vsel %vm5887, %v5872, 0.0
    %v6020 = vadd.f32 %v6018, %v6019
    %v6021 = vsel %vm5887, %v5873, 0.0
    %v6022 = vadd.f32 %v6020, %v6021
    %v6023 = vsel %vm5887, %v5874, 0.0
    %v6024 = vadd.f32 %v6022, %v6023
    %v6025 = vsel %vm5887, %v5875, 0.0
    %v6026 = vadd.f32 %v6024, %v6025
    %v6027 = vsel %vm5887, %v5876, 0.0
    %v6028 = vadd.f32 %v6026, %v6027
    %v6029 = vsel %vm5887, %v5877, 0.0
    %v6030 = vadd.f32 %v6028, %v6029
    %v6031 = vsel %vm5887, %v5878, 0.0
    %v6032 = vadd.f32 %v6030, %v6031
    %v6033 = vsel %vm5887, %v5879, 0.0
    %v6034 = vadd.f32 %v6032, %v6033
    %v6035 = vsel %vm5887, %v5880, 0.0
    %v6036 = vadd.f32 %v6034, %v6035
    %v6037 = vsel %vm5887, %v5881, 0.0
    %v6038 = vadd.f32 %v6036, %v6037
    %v6039 = vsel %vm5887, %v5882, 0.0
    %v6040 = vadd.f32 %v6038, %v6039
    %v6041 = vsel %vm5887, %v5883, 0.0
    %v6042 = vadd.f32 %v6040, %v6041
    %v6043 = vsel %vm5887, %v5884, 0.0
    %v6044 = vadd.f32 %v6042, %v6043
    %v6045 = vsel %vm5887, %v5885, 0.0
    %v6046 = vadd.f32 %v6044, %v6045
    %v6047 = vsel %vm5887, %v5886, 0.0
    %v6048 = vadd.f32 %v6046, %v6047
    %v6049 = vrot.slane %v6048, 4
    %v6050 = vadd.f32 %v6048, %v6049
    %v6051 = vrot.slane %v6050, 2
    %v6052 = vadd.f32 %v6050, %v6051
    %v6053 = vrot.slane %v6052, 1
    %v6054 = vadd.f32 %v6052, %v6053
    %v6055 = vrcp.pop 512.0
    %v6056 = vmul.f32 512.0, %v6055
    %v6057 = vsub.f32 1.0, %v6056
    %v6058 = vmul.f32 %v6055, %v6057
    %v6059 = vadd.f32 %v6055, %v6058
    %vm6060 = vweird.f32 %v6055
    %v6061 = vsel %vm6060, %v6055, %v6059
    %v6062 = vmul.f32 %v6054, %v6061
    %v6063 = vmul.f32 %v6062, %v6062
    %6065 = vrot.lane.b32.xlu0 %v6063, 16
    %v6066 = vpop.permute.xlu0 %6065
    %v6068 = vsub.f32 %v6062, %v6066
    %v6069 = vld [vmem:[%s3] sm:$0x1]
    %v6070 = vld [vmem:[%s4] sm:$0x1]
    %v6071 = vsub.f32 %v3886, %v6062
    %v6072 = vsub.f32 %v3888, %v6062
    %v6073 = vsub.f32 %v3891, %v6062
    %v6074 = vsub.f32 %v3893, %v6062
    %v6075 = vsub.f32 %v3896, %v6062
    %v6076 = vsub.f32 %v3898, %v6062
    %v6077 = vsub.f32 %v3901, %v6062
    %v6078 = vsub.f32 %v3903, %v6062
    %v6079 = vsub.f32 %v3906, %v6062
    %v6080 = vsub.f32 %v3908, %v6062
    %v6081 = vsub.f32 %v3911, %v6062
    %v6082 = vsub.f32 %v3913, %v6062
    %v6083 = vsub.f32 %v3916, %v6062
    %v6084 = vsub.f32 %v3918, %v6062
    %v6085 = vsub.f32 %v3921, %v6062
    %v6086 = vsub.f32 %v3923, %v6062
    %v6087 = vsub.f32 %v3926, %v6062
    %v6088 = vsub.f32 %v3928, %v6062
    %v6089 = vsub.f32 %v3931, %v6062
    %v6090 = vsub.f32 %v3933, %v6062
    %v6091 = vsub.f32 %v3936, %v6062
    %v6092 = vsub.f32 %v3938, %v6062
    %v6093 = vsub.f32 %v3941, %v6062
    %v6094 = vsub.f32 %v3943, %v6062
    %v6095 = vsub.f32 %v3946, %v6062
    %v6096 = vsub.f32 %v3948, %v6062
    %v6097 = vsub.f32 %v3951, %v6062
    %v6098 = vsub.f32 %v3953, %v6062
    %v6099 = vsub.f32 %v3956, %v6062
    %v6100 = vsub.f32 %v3958, %v6062
    %v6101 = vsub.f32 %v3961, %v6062
    %v6102 = vsub.f32 %v3963, %v6062
    %v6103 = vsub.f32 %v3966, %v6062
    %v6104 = vsub.f32 %v3968, %v6062
    %v6105 = vsub.f32 %v3971, %v6062
    %v6106 = vsub.f32 %v3973, %v6062
    %v6107 = vsub.f32 %v3976, %v6062
    %v6108 = vsub.f32 %v3978, %v6062
    %v6109 = vsub.f32 %v3981, %v6062
    %v6110 = vsub.f32 %v3983, %v6062
    %v6111 = vsub.f32 %v3986, %v6062
    %v6112 = vsub.f32 %v3988, %v6062
    %v6113 = vsub.f32 %v3991, %v6062
    %v6114 = vsub.f32 %v3993, %v6062
    %v6115 = vsub.f32 %v3996, %v6062
    %v6116 = vsub.f32 %v3998, %v6062
    %v6117 = vsub.f32 %v4001, %v6062
    %v6118 = vsub.f32 %v4003, %v6062
    %v6119 = vsub.f32 %v4006, %v6062
    %v6120 = vsub.f32 %v4008, %v6062
    %v6121 = vsub.f32 %v4011, %v6062
    %v6122 = vsub.f32 %v4013, %v6062
    %v6123 = vsub.f32 %v4016, %v6062
    %v6124 = vsub.f32 %v4018, %v6062
    %v6125 = vsub.f32 %v4021, %v6062
    %v6126 = vsub.f32 %v4023, %v6062
    %v6127 = vsub.f32 %v4026, %v6062
    %v6128 = vsub.f32 %v4028, %v6062
    %v6129 = vsub.f32 %v4031, %v6062
    %v6130 = vsub.f32 %v4033, %v6062
    %v6131 = vsub.f32 %v4036, %v6062
    %v6132 = vsub.f32 %v4038, %v6062
    %v6133 = vsub.f32 %v4041, %v6062
    %v6134 = vsub.f32 %v4043, %v6062
    %v6135 = vsub.f32 %v4046, %v6062
    %v6136 = vsub.f32 %v4048, %v6062
    %v6137 = vsub.f32 %v4051, %v6062
    %v6138 = vsub.f32 %v4053, %v6062
    %v6139 = vsub.f32 %v4056, %v6062
    %v6140 = vsub.f32 %v4058, %v6062
    %v6141 = vsub.f32 %v4061, %v6062
    %v6142 = vsub.f32 %v4063, %v6062
    %v6143 = vsub.f32 %v4066, %v6062
    %v6144 = vsub.f32 %v4068, %v6062
    %v6145 = vsub.f32 %v4071, %v6062
    %v6146 = vsub.f32 %v4073, %v6062
    %v6147 = vsub.f32 %v4076, %v6062
    %v6148 = vsub.f32 %v4078, %v6062
    %v6149 = vsub.f32 %v4081, %v6062
    %v6150 = vsub.f32 %v4083, %v6062
    %v6151 = vsub.f32 %v4086, %v6062
    %v6152 = vadd.f32 %v6068, 1e-05
    %v6153 = vrsqrt.pop %v6152
    %v6154 = vmul.f32 %v6153, %v6152
    %v6155 = vmul.f32 %v6154, %v6153
    %v6156 = vmul.f32 0.5, %v6155
    %v6157 = vsub.f32 1.5, %v6156
    %v6158 = vmul.f32 %v6153, %v6157
    %vm6159 = vweird.f32 %v6152
    %vm6160 = vweird.f32 %v6153
    %vm6161 = vmor %vm6159, %vm6160
    %v6162 = vsel %vm6161, %v6153, %v6158
    %6164 = vrot.lane.b32.xlu0 %v6069, 16
    %v6165 = vpop.permute.xlu0 %6164
    %v6167 = vmul.f32 %v6162, %v6165
    %v6168 = vperm.slane %v6167, 0
    %6170 = vrot.lane.b32.xlu0 %v6168, 112
    %v6171 = vpop.permute.xlu0 %6170
    %v6173 = vmul.f32 %v6071, %v6171
    %v6174 = vmul.f32 %v6072, %v6171
    %v6175 = vmul.f32 %v6073, %v6171
    %v6176 = vmul.f32 %v6074, %v6171
    %v6177 = vmul.f32 %v6075, %v6171
    %v6178 = vmul.f32 %v6076, %v6171
    %v6179 = vmul.f32 %v6077, %v6171
    %v6180 = vmul.f32 %v6078, %v6171
    %v6181 = vmul.f32 %v6079, %v6171
    %v6182 = vmul.f32 %v6080, %v6171
    %v6183 = vmul.f32 %v6081, %v6171
    %v6184 = vmul.f32 %v6082, %v6171
    %v6185 = vmul.f32 %v6083, %v6171
    %v6186 = vmul.f32 %v6084, %v6171
    %v6187 = vmul.f32 %v6085, %v6171
    %v6188 = vmul.f32 %v6086, %v6171
    %v6189 = vmul.f32 %v6087, %v6171
    %v6190 = vmul.f32 %v6088, %v6171
    %v6191 = vmul.f32 %v6089, %v6171
    %v6192 = vmul.f32 %v6090, %v6171
    %v6193 = vmul.f32 %v6091, %v6171
    %v6194 = vmul.f32 %v6092, %v6171
    %v6195 = vmul.f32 %v6093, %v6171
    %v6196 = vmul.f32 %v6094, %v6171
    %v6197 = vmul.f32 %v6095, %v6171
    %v6198 = vmul.f32 %v6096, %v6171
    %v6199 = vmul.f32 %v6097, %v6171
    %v6200 = vmul.f32 %v6098, %v6171
    %v6201 = vmul.f32 %v6099, %v6171
    %v6202 = vmul.f32 %v6100, %v6171
    %v6203 = vmul.f32 %v6101, %v6171
    %v6204 = vmul.f32 %v6102, %v6171
    %v6205 = vmul.f32 %v6103, %v6171
    %v6206 = vmul.f32 %v6104, %v6171
    %v6207 = vmul.f32 %v6105, %v6171
    %v6208 = vmul.f32 %v6106, %v6171
    %v6209 = vmul.f32 %v6107, %v6171
    %v6210 = vmul.f32 %v6108, %v6171
    %v6211 = vmul.f32 %v6109, %v6171
    %v6212 = vmul.f32 %v6110, %v6171
    %v6213 = vmul.f32 %v6111, %v6171
    %v6214 = vmul.f32 %v6112, %v6171
    %v6215 = vmul.f32 %v6113, %v6171
    %v6216 = vmul.f32 %v6114, %v6171
    %v6217 = vmul.f32 %v6115, %v6171
    %v6218 = vmul.f32 %v6116, %v6171
    %v6219 = vmul.f32 %v6117, %v6171
    %v6220 = vmul.f32 %v6118, %v6171
    %v6221 = vmul.f32 %v6119, %v6171
    %v6222 = vmul.f32 %v6120, %v6171
    %v6223 = vmul.f32 %v6121, %v6171
    %v6224 = vmul.f32 %v6122, %v6171
    %v6225 = vmul.f32 %v6123, %v6171
    %v6226 = vmul.f32 %v6124, %v6171
    %v6227 = vmul.f32 %v6125, %v6171
    %v6228 = vmul.f32 %v6126, %v6171
    %v6229 = vmul.f32 %v6127, %v6171
    %v6230 = vmul.f32 %v6128, %v6171
    %v6231 = vmul.f32 %v6129, %v6171
    %v6232 = vmul.f32 %v6130, %v6171
    %v6233 = vmul.f32 %v6131, %v6171
    %v6234 = vmul.f32 %v6132, %v6171
    %v6235 = vmul.f32 %v6133, %v6171
    %v6236 = vmul.f32 %v6134, %v6171
    %v6237 = vmul.f32 %v6135, %v6171
    %v6238 = vmul.f32 %v6136, %v6171
    %v6239 = vmul.f32 %v6137, %v6171
    %v6240 = vmul.f32 %v6138, %v6171
    %v6241 = vmul.f32 %v6139, %v6171
    %v6242 = vmul.f32 %v6140, %v6171
    %v6243 = vmul.f32 %v6141, %v6171
    %v6244 = vmul.f32 %v6142, %v6171
    %v6245 = vmul.f32 %v6143, %v6171
    %v6246 = vmul.f32 %v6144, %v6171
    %v6247 = vmul.f32 %v6145, %v6171
    %v6248 = vmul.f32 %v6146, %v6171
    %v6249 = vmul.f32 %v6147, %v6171
    %v6250 = vmul.f32 %v6148, %v6171
    %v6251 = vmul.f32 %v6149, %v6171
    %v6252 = vmul.f32 %v6150, %v6171
    %v6253 = vmul.f32 %v6151, %v6171
    %v6254 = vperm.slane %v6070, 0
    %v6255 = vadd.f32 %v6173, %v6254
    %v6256 = vadd.f32 %v6174, %v6254
    %v6257 = vadd.f32 %v6175, %v6254
    %v6258 = vadd.f32 %v6176, %v6254
    %v6259 = vadd.f32 %v6177, %v6254
    %v6260 = vadd.f32 %v6178, %v6254
    %v6261 = vadd.f32 %v6179, %v6254
    %v6262 = vadd.f32 %v6180, %v6254
    %v6263 = vadd.f32 %v6181, %v6254
    %v6264 = vadd.f32 %v6182, %v6254
    %v6265 = vadd.f32 %v6183, %v6254
    %v6266 = vadd.f32 %v6184, %v6254
    %v6267 = vadd.f32 %v6185, %v6254
    %v6268 = vadd.f32 %v6186, %v6254
    %v6269 = vadd.f32 %v6187, %v6254
    %v6270 = vadd.f32 %v6188, %v6254
    %v6271 = vadd.f32 %v6189, %v6254
    %v6272 = vadd.f32 %v6190, %v6254
    %v6273 = vadd.f32 %v6191, %v6254
    %v6274 = vadd.f32 %v6192, %v6254
    %v6275 = vadd.f32 %v6193, %v6254
    %v6276 = vadd.f32 %v6194, %v6254
    %v6277 = vadd.f32 %v6195, %v6254
    %v6278 = vadd.f32 %v6196, %v6254
    %v6279 = vadd.f32 %v6197, %v6254
    %v6280 = vadd.f32 %v6198, %v6254
    %v6281 = vadd.f32 %v6199, %v6254
    %v6282 = vadd.f32 %v6200, %v6254
    %v6283 = vadd.f32 %v6201, %v6254
    %v6284 = vadd.f32 %v6202, %v6254
    %v6285 = vadd.f32 %v6203, %v6254
    %v6286 = vadd.f32 %v6204, %v6254
    %v6287 = vadd.f32 %v6205, %v6254
    %v6288 = vadd.f32 %v6206, %v6254
    %v6289 = vadd.f32 %v6207, %v6254
    %v6290 = vadd.f32 %v6208, %v6254
    %v6291 = vadd.f32 %v6209, %v6254
    %v6292 = vadd.f32 %v6210, %v6254
    %v6293 = vadd.f32 %v6211, %v6254
    %v6294 = vadd.f32 %v6212, %v6254
    %v6295 = vadd.f32 %v6213, %v6254
    %v6296 = vadd.f32 %v6214, %v6254
    %v6297 = vadd.f32 %v6215, %v6254
    %v6298 = vadd.f32 %v6216, %v6254
    %v6299 = vadd.f32 %v6217, %v6254
    %v6300 = vadd.f32 %v6218, %v6254
    %v6301 = vadd.f32 %v6219, %v6254
    %v6302 = vadd.f32 %v6220, %v6254
    %v6303 = vadd.f32 %v6221, %v6254
    %v6304 = vadd.f32 %v6222, %v6254
    %v6305 = vadd.f32 %v6223, %v6254
    %v6306 = vadd.f32 %v6224, %v6254
    %v6307 = vadd.f32 %v6225, %v6254
    %v6308 = vadd.f32 %v6226, %v6254
    %v6309 = vadd.f32 %v6227, %v6254
    %v6310 = vadd.f32 %v6228, %v6254
    %v6311 = vadd.f32 %v6229, %v6254
    %v6312 = vadd.f32 %v6230, %v6254
    %v6313 = vadd.f32 %v6231, %v6254
    %v6314 = vadd.f32 %v6232, %v6254
    %v6315 = vadd.f32 %v6233, %v6254
    %v6316 = vadd.f32 %v6234, %v6254
    %v6317 = vadd.f32 %v6235, %v6254
    %v6318 = vadd.f32 %v6236, %v6254
    %v6319 = vadd.f32 %v6237, %v6254
    %v6320 = vadd.f32 %v6238, %v6254
    %v6321 = vadd.f32 %v6239, %v6254
    %v6322 = vadd.f32 %v6240, %v6254
    %v6323 = vadd.f32 %v6241, %v6254
    %v6324 = vadd.f32 %v6242, %v6254
    %v6325 = vadd.f32 %v6243, %v6254
    %v6326 = vadd.f32 %v6244, %v6254
    %v6327 = vadd.f32 %v6245, %v6254
    %v6328 = vadd.f32 %v6246, %v6254
    %v6329 = vadd.f32 %v6247, %v6254
    %v6330 = vadd.f32 %v6248, %v6254
    %v6331 = vadd.f32 %v6249, %v6254
    %v6332 = vadd.f32 %v6250, %v6254
    %v6333 = vadd.f32 %v6251, %v6254
    %v6334 = vadd.f32 %v6252, %v6254
    %v6335 = vadd.f32 %v6253, %v6254
    %v6336 = vmax.f32 %v6255, 0.0
    %v6337 = vmax.f32 %v6256, 0.0
    %v6338 = vmax.f32 %v6257, 0.0
    %v6339 = vmax.f32 %v6258, 0.0
    %v6340 = vmax.f32 %v6259, 0.0
    %v6341 = vmax.f32 %v6260, 0.0
    %v6342 = vmax.f32 %v6261, 0.0
    %v6343 = vmax.f32 %v6262, 0.0
    %v6344 = vmax.f32 %v6263, 0.0
    %v6345 = vmax.f32 %v6264, 0.0
    %v6346 = vmax.f32 %v6265, 0.0
    %v6347 = vmax.f32 %v6266, 0.0
    %v6348 = vmax.f32 %v6267, 0.0
    %v6349 = vmax.f32 %v6268, 0.0
    %v6350 = vmax.f32 %v6269, 0.0
    %v6351 = vmax.f32 %v6270, 0.0
    %v6352 = vmax.f32 %v6271, 0.0
    %v6353 = vmax.f32 %v6272, 0.0
    %v6354 = vmax.f32 %v6273, 0.0
    %v6355 = vmax.f32 %v6274, 0.0
    %v6356 = vmax.f32 %v6275, 0.0
    %v6357 = vmax.f32 %v6276, 0.0
    %v6358 = vmax.f32 %v6277, 0.0
    %v6359 = vmax.f32 %v6278, 0.0
    %v6360 = vmax.f32 %v6279, 0.0
    %v6361 = vmax.f32 %v6280, 0.0
    %v6362 = vmax.f32 %v6281, 0.0
    %v6363 = vmax.f32 %v6282, 0.0
    %v6364 = vmax.f32 %v6283, 0.0
    %v6365 = vmax.f32 %v6284, 0.0
    %v6366 = vmax.f32 %v6285, 0.0
    %v6367 = vmax.f32 %v6286, 0.0
    %v6368 = vmax.f32 %v6287, 0.0
    %v6369 = vmax.f32 %v6288, 0.0
    %v6370 = vmax.f32 %v6289, 0.0
    %v6371 = vmax.f32 %v6290, 0.0
    %v6372 = vmax.f32 %v6291, 0.0
    %v6373 = vmax.f32 %v6292, 0.0
    %v6374 = vmax.f32 %v6293, 0.0
    %v6375 = vmax.f32 %v6294, 0.0
    %v6376 = vmax.f32 %v6295, 0.0
    %v6377 = vmax.f32 %v6296, 0.0
    %v6378 = vmax.f32 %v6297, 0.0
    %v6379 = vmax.f32 %v6298, 0.0
    %v6380 = vmax.f32 %v6299, 0.0
    %v6381 = vmax.f32 %v6300, 0.0
    %v6382 = vmax.f32 %v6301, 0.0
    %v6383 = vmax.f32 %v6302, 0.0
    %v6384 = vmax.f32 %v6303, 0.0
    %v6385 = vmax.f32 %v6304, 0.0
    %v6386 = vmax.f32 %v6305, 0.0
    %v6387 = vmax.f32 %v6306, 0.0
    %v6388 = vmax.f32 %v6307, 0.0
    %v6389 = vmax.f32 %v6308, 0.0
    %v6390 = vmax.f32 %v6309, 0.0
    %v6391 = vmax.f32 %v6310, 0.0
    %v6392 = vmax.f32 %v6311, 0.0
    %v6393 = vmax.f32 %v6312, 0.0
    %v6394 = vmax.f32 %v6313, 0.0
    %v6395 = vmax.f32 %v6314, 0.0
    %v6396 = vmax.f32 %v6315, 0.0
    %v6397 = vmax.f32 %v6316, 0.0
    %v6398 = vmax.f32 %v6317, 0.0
    %v6399 = vmax.f32 %v6318, 0.0
    %v6400 = vmax.f32 %v6319, 0.0
    %v6401 = vmax.f32 %v6320, 0.0
    %v6402 = vmax.f32 %v6321, 0.0
    %v6403 = vmax.f32 %v6322, 0.0
    %v6404 = vmax.f32 %v6323, 0.0
    %v6405 = vmax.f32 %v6324, 0.0
    %v6406 = vmax.f32 %v6325, 0.0
    %v6407 = vmax.f32 %v6326, 0.0
    %v6408 = vmax.f32 %v6327, 0.0
    %v6409 = vmax.f32 %v6328, 0.0
    %v6410 = vmax.f32 %v6329, 0.0
    %v6411 = vmax.f32 %v6330, 0.0
    %v6412 = vmax.f32 %v6331, 0.0
    %v6413 = vmax.f32 %v6332, 0.0
    %v6414 = vmax.f32 %v6333, 0.0
    %v6415 = vmax.f32 %v6334, 0.0
    %v6416 = vmax.f32 %v6335, 0.0
    %vm6496 = vcmask 1046528
    %v6497 = vrot.slane %v6336, 1
    %v6498 = vrot.slane %v6337, 1
    %v6499 = vsel %vm6496, %v6497, %v6498
    %v6500 = vrot.slane %v6338, 1
    %v6501 = vsel %vm6496, %v6498, %v6500
    %v6502 = vrot.slane %v6339, 1
    %v6503 = vsel %vm6496, %v6500, %v6502
    %v6504 = vrot.slane %v6340, 1
    %v6505 = vsel %vm6496, %v6502, %v6504
    %v6506 = vrot.slane %v6341, 1
    %v6507 = vsel %vm6496, %v6504, %v6506
    %v6508 = vrot.slane %v6342, 1
    %v6509 = vsel %vm6496, %v6506, %v6508
    %v6510 = vrot.slane %v6343, 1
    %v6511 = vsel %vm6496, %v6508, %v6510
    %v6512 = vrot.slane %v6344, 1
    %v6513 = vsel %vm6496, %v6510, %v6512
    %v6514 = vrot.slane %v6345, 1
    %v6515 = vsel %vm6496, %v6512, %v6514
    %v6516 = vrot.slane %v6346, 1
    %v6517 = vsel %vm6496, %v6514, %v6516
    %v6518 = vrot.slane %v6347, 1
    %v6519 = vsel %vm6496, %v6516, %v6518
    %v6520 = vrot.slane %v6348, 1
    %v6521 = vsel %vm6496, %v6518, %v6520
    %v6522 = vrot.slane %v6349, 1
    %v6523 = vsel %vm6496, %v6520, %v6522
    %v6524 = vrot.slane %v6350, 1
    %v6525 = vsel %vm6496, %v6522, %v6524
    %v6526 = vrot.slane %v6351, 1
    %v6527 = vsel %vm6496, %v6524, %v6526
    %v6528 = vrot.slane %v6352, 1
    %v6529 = vsel %vm6496, %v6526, %v6528
    %v6530 = vrot.slane %v6353, 1
    %v6531 = vsel %vm6496, %v6528, %v6530
    %v6532 = vrot.slane %v6354, 1
    %v6533 = vsel %vm6496, %v6530, %v6532
    %v6534 = vrot.slane %v6355, 1
    %v6535 = vsel %vm6496, %v6532, %v6534
    %v6536 = vrot.slane %v6356, 1
    %v6537 = vsel %vm6496, %v6534, %v6536
    %v6538 = vrot.slane %v6357, 1
    %v6539 = vsel %vm6496, %v6536, %v6538
    %v6540 = vrot.slane %v6358, 1
    %v6541 = vsel %vm6496, %v6538, %v6540
    %v6542 = vrot.slane %v6359, 1
    %v6543 = vsel %vm6496, %v6540, %v6542
    %v6544 = vrot.slane %v6360, 1
    %v6545 = vsel %vm6496, %v6542, %v6544
    %v6546 = vrot.slane %v6361, 1
    %v6547 = vsel %vm6496, %v6544, %v6546
    %v6548 = vrot.slane %v6362, 1
    %v6549 = vsel %vm6496, %v6546, %v6548
    %v6550 = vrot.slane %v6363, 1
    %v6551 = vsel %vm6496, %v6548, %v6550
    %v6552 = vrot.slane %v6364, 1
    %v6553 = vsel %vm6496, %v6550, %v6552
    %v6554 = vrot.slane %v6365, 1
    %v6555 = vsel %vm6496, %v6552, %v6554
    %v6556 = vrot.slane %v6366, 1
    %v6557 = vsel %vm6496, %v6554, %v6556
    %v6558 = vrot.slane %v6367, 1
    %v6559 = vsel %vm6496, %v6556, %v6558
    %v6560 = vrot.slane %v6368, 1
    %v6561 = vsel %vm6496, %v6558, %v6560
    %v6562 = vrot.slane %v6369, 1
    %v6563 = vsel %vm6496, %v6560, %v6562
    %v6564 = vrot.slane %v6370, 1
    %v6565 = vsel %vm6496, %v6562, %v6564
    %v6566 = vrot.slane %v6371, 1
    %v6567 = vsel %vm6496, %v6564, %v6566
    %v6568 = vrot.slane %v6372, 1
    %v6569 = vsel %vm6496, %v6566, %v6568
    %v6570 = vrot.slane %v6373, 1
    %v6571 = vsel %vm6496, %v6568, %v6570
    %v6572 = vrot.slane %v6374, 1
    %v6573 = vsel %vm6496, %v6570, %v6572
    %v6574 = vrot.slane %v6375, 1
    %v6575 = vsel %vm6496, %v6572, %v6574
    %v6576 = vrot.slane %v6376, 1
    %v6577 = vsel %vm6496, %v6574, %v6576
    %v6578 = vrot.slane %v6377, 1
    %v6579 = vsel %vm6496, %v6576, %v6578
    %v6580 = vrot.slane %v6378, 1
    %v6581 = vsel %vm6496, %v6578, %v6580
    %v6582 = vrot.slane %v6379, 1
    %v6583 = vsel %vm6496, %v6580, %v6582
    %v6584 = vrot.slane %v6380, 1
    %v6585 = vsel %vm6496, %v6582, %v6584
    %v6586 = vrot.slane %v6381, 1
    %v6587 = vsel %vm6496, %v6584, %v6586
    %v6588 = vrot.slane %v6382, 1
    %v6589 = vsel %vm6496, %v6586, %v6588
    %v6590 = vrot.slane %v6383, 1
    %v6591 = vsel %vm6496, %v6588, %v6590
    %v6592 = vrot.slane %v6384, 1
    %v6593 = vsel %vm6496, %v6590, %v6592
    %v6594 = vrot.slane %v6385, 1
    %v6595 = vsel %vm6496, %v6592, %v6594
    %v6596 = vrot.slane %v6386, 1
    %v6597 = vsel %vm6496, %v6594, %v6596
    %v6598 = vrot.slane %v6387, 1
    %v6599 = vsel %vm6496, %v6596, %v6598
    %v6600 = vrot.slane %v6388, 1
    %v6601 = vsel %vm6496, %v6598, %v6600
    %v6602 = vrot.slane %v6389, 1
    %v6603 = vsel %vm6496, %v6600, %v6602
    %v6604 = vrot.slane %v6390, 1
    %v6605 = vsel %vm6496, %v6602, %v6604
    %v6606 = vrot.slane %v6391, 1
    %v6607 = vsel %vm6496, %v6604, %v6606
    %v6608 = vrot.slane %v6392, 1
    %v6609 = vsel %vm6496, %v6606, %v6608
    %v6610 = vrot.slane %v6393, 1
    %v6611 = vsel %vm6496, %v6608, %v6610
    %v6612 = vrot.slane %v6394, 1
    %v6613 = vsel %vm6496, %v6610, %v6612
    %v6614 = vrot.slane %v6395, 1
    %v6615 = vsel %vm6496, %v6612, %v6614
    %v6616 = vrot.slane %v6396, 1
    %v6617 = vsel %vm6496, %v6614, %v6616
    %v6618 = vrot.slane %v6397, 1
    %v6619 = vsel %vm6496, %v6616, %v6618
    %v6620 = vrot.slane %v6398, 1
    %v6621 = vsel %vm6496, %v6618, %v6620
    %v6622 = vrot.slane %v6399, 1
    %v6623 = vsel %vm6496, %v6620, %v6622
    %v6624 = vrot.slane %v6400, 1
    %v6625 = vsel %vm6496, %v6622, %v6624
    %v6626 = vrot.slane %v6401, 1
    %v6627 = vsel %vm6496, %v6624, %v6626
    %v6628 = vrot.slane %v6402, 1
    %v6629 = vsel %vm6496, %v6626, %v6628
    %v6630 = vrot.slane %v6403, 1
    %v6631 = vsel %vm6496, %v6628, %v6630
    %v6632 = vrot.slane %v6404, 1
    %v6633 = vsel %vm6496, %v6630, %v6632
    %v6634 = vrot.slane %v6405, 1
    %v6635 = vsel %vm6496, %v6632, %v6634
    %v6636 = vrot.slane %v6406, 1
    %v6637 = vsel %vm6496, %v6634, %v6636
    %v6638 = vrot.slane %v6407, 1
    %v6639 = vsel %vm6496, %v6636, %v6638
    %v6640 = vrot.slane %v6408, 1
    %v6641 = vsel %vm6496, %v6638, %v6640
    %v6642 = vrot.slane %v6409, 1
    %v6643 = vsel %vm6496, %v6640, %v6642
    %v6644 = vrot.slane %v6410, 1
    %v6645 = vsel %vm6496, %v6642, %v6644
    %v6646 = vrot.slane %v6411, 1
    %v6647 = vsel %vm6496, %v6644, %v6646
    %v6648 = vrot.slane %v6412, 1
    %v6649 = vsel %vm6496, %v6646, %v6648
    %v6650 = vrot.slane %v6413, 1
    %v6651 = vsel %vm6496, %v6648, %v6650
    %v6652 = vrot.slane %v6414, 1
    %v6653 = vsel %vm6496, %v6650, %v6652
    %v6733 = vmax.f32 %v6336, %v6499
    %v6734 = vmax.f32 %v6337, %v6501
    %v6735 = vmax.f32 %v6338, %v6503
    %v6736 = vmax.f32 %v6339, %v6505
    %v6737 = vmax.f32 %v6340, %v6507
    %v6738 = vmax.f32 %v6341, %v6509
    %v6739 = vmax.f32 %v6342, %v6511
    %v6740 = vmax.f32 %v6343, %v6513
    %v6741 = vmax.f32 %v6344, %v6515
    %v6742 = vmax.f32 %v6345, %v6517
    %v6743 = vmax.f32 %v6346, %v6519
    %v6744 = vmax.f32 %v6347, %v6521
    %v6745 = vmax.f32 %v6348, %v6523
    %v6746 = vmax.f32 %v6349, %v6525
    %v6747 = vmax.f32 %v6350, %v6527
    %v6748 = vmax.f32 %v6351, %v6529
    %v6749 = vmax.f32 %v6352, %v6531
    %v6750 = vmax.f32 %v6353, %v6533
    %v6751 = vmax.f32 %v6354, %v6535
    %v6752 = vmax.f32 %v6355, %v6537
    %v6753 = vmax.f32 %v6356, %v6539
    %v6754 = vmax.f32 %v6357, %v6541
    %v6755 = vmax.f32 %v6358, %v6543
    %v6756 = vmax.f32 %v6359, %v6545
    %v6757 = vmax.f32 %v6360, %v6547
    %v6758 = vmax.f32 %v6361, %v6549
    %v6759 = vmax.f32 %v6362, %v6551
    %v6760 = vmax.f32 %v6363, %v6553
    %v6761 = vmax.f32 %v6364, %v6555
    %v6762 = vmax.f32 %v6365, %v6557
    %v6763 = vmax.f32 %v6366, %v6559
    %v6764 = vmax.f32 %v6367, %v6561
    %v6765 = vmax.f32 %v6368, %v6563
    %v6766 = vmax.f32 %v6369, %v6565
    %v6767 = vmax.f32 %v6370, %v6567
    %v6768 = vmax.f32 %v6371, %v6569
    %v6769 = vmax.f32 %v6372, %v6571
    %v6770 = vmax.f32 %v6373, %v6573
    %v6771 = vmax.f32 %v6374, %v6575
    %v6772 = vmax.f32 %v6375, %v6577
    %v6773 = vmax.f32 %v6376, %v6579
    %v6774 = vmax.f32 %v6377, %v6581
    %v6775 = vmax.f32 %v6378, %v6583
    %v6776 = vmax.f32 %v6379, %v6585
    %v6777 = vmax.f32 %v6380, %v6587
    %v6778 = vmax.f32 %v6381, %v6589
    %v6779 = vmax.f32 %v6382, %v6591
    %v6780 = vmax.f32 %v6383, %v6593
    %v6781 = vmax.f32 %v6384, %v6595
    %v6782 = vmax.f32 %v6385, %v6597
    %v6783 = vmax.f32 %v6386, %v6599
    %v6784 = vmax.f32 %v6387, %v6601
    %v6785 = vmax.f32 %v6388, %v6603
    %v6786 = vmax.f32 %v6389, %v6605
    %v6787 = vmax.f32 %v6390, %v6607
    %v6788 = vmax.f32 %v6391, %v6609
    %v6789 = vmax.f32 %v6392, %v6611
    %v6790 = vmax.f32 %v6393, %v6613
    %v6791 = vmax.f32 %v6394, %v6615
    %v6792 = vmax.f32 %v6395, %v6617
    %v6793 = vmax.f32 %v6396, %v6619
    %v6794 = vmax.f32 %v6397, %v6621
    %v6795 = vmax.f32 %v6398, %v6623
    %v6796 = vmax.f32 %v6399, %v6625
    %v6797 = vmax.f32 %v6400, %v6627
    %v6798 = vmax.f32 %v6401, %v6629
    %v6799 = vmax.f32 %v6402, %v6631
    %v6800 = vmax.f32 %v6403, %v6633
    %v6801 = vmax.f32 %v6404, %v6635
    %v6802 = vmax.f32 %v6405, %v6637
    %v6803 = vmax.f32 %v6406, %v6639
    %v6804 = vmax.f32 %v6407, %v6641
    %v6805 = vmax.f32 %v6408, %v6643
    %v6806 = vmax.f32 %v6409, %v6645
    %v6807 = vmax.f32 %v6410, %v6647
    %v6808 = vmax.f32 %v6411, %v6649
    %v6809 = vmax.f32 %v6412, %v6651
    %v6810 = vmax.f32 %v6413, %v6653
    %v6811 = vmax.f32 %v6414, %v6652
    %v6814 = vrot.slane %v6415, 1
    %v6815 = vsel %vm6496, %v6652, %v6814
    %v6816 = vrot.slane %v6416, 1
    %v6817 = vsel %vm6496, %v6814, %v6816
    %v6821 = vmax.f32 %v6414, %v6815
    %v6822 = vmax.f32 %v6415, %v6817
    %v6823 = vmax.f32 %v6416, %v6816
    %v6903 = vrot.slane %v6735, 2
    %v6904 = vrot.slane %v6736, 2
    %v6905 = vsel %vm3870, %v6903, %v6904
    %v6906 = vrot.slane %v6737, 2
    %v6907 = vsel %vm3870, %v6904, %v6906
    %v6908 = vrot.slane %v6738, 2
    %v6909 = vsel %vm3870, %v6906, %v6908
    %v6910 = vrot.slane %v6739, 2
    %v6911 = vsel %vm3870, %v6908, %v6910
    %v6912 = vrot.slane %v6740, 2
    %v6913 = vsel %vm3870, %v6910, %v6912
    %v6914 = vrot.slane %v6741, 2
    %v6915 = vsel %vm3870, %v6912, %v6914
    %v6916 = vrot.slane %v6742, 2
    %v6917 = vsel %vm3870, %v6914, %v6916
    %v6918 = vrot.slane %v6743, 2
    %v6919 = vsel %vm3870, %v6916, %v6918
    %v6920 = vrot.slane %v6744, 2
    %v6921 = vsel %vm3870, %v6918, %v6920
    %v6922 = vrot.slane %v6745, 2
    %v6923 = vsel %vm3870, %v6920, %v6922
    %v6924 = vrot.slane %v6746, 2
    %v6925 = vsel %vm3870, %v6922, %v6924
    %v6926 = vrot.slane %v6747, 2
    %v6927 = vsel %vm3870, %v6924, %v6926
    %v6928 = vrot.slane %v6748, 2
    %v6929 = vsel %vm3870, %v6926, %v6928
    %v6930 = vrot.slane %v6749, 2
    %v6931 = vsel %vm3870, %v6928, %v6930
    %v6932 = vrot.slane %v6750, 2
    %v6933 = vsel %vm3870, %v6930, %v6932
    %v6934 = vrot.slane %v6751, 2
    %v6935 = vsel %vm3870, %v6932, %v6934
    %v6936 = vrot.slane %v6752, 2
    %v6937 = vsel %vm3870, %v6934, %v6936
    %v6938 = vrot.slane %v6753, 2
    %v6939 = vsel %vm3870, %v6936, %v6938
    %v6940 = vrot.slane %v6754, 2
    %v6941 = vsel %vm3870, %v6938, %v6940
    %v6942 = vrot.slane %v6755, 2
    %v6943 = vsel %vm3870, %v6940, %v6942
    %v6944 = vrot.slane %v6756, 2
    %v6945 = vsel %vm3870, %v6942, %v6944
    %v6946 = vrot.slane %v6757, 2
    %v6947 = vsel %vm3870, %v6944, %v6946
    %v6948 = vrot.slane %v6758, 2
    %v6949 = vsel %vm3870, %v6946, %v6948
    %v6950 = vrot.slane %v6759, 2
    %v6951 = vsel %vm3870, %v6948, %v6950
    %v6952 = vrot.slane %v6760, 2
    %v6953 = vsel %vm3870, %v6950, %v6952
    %v6954 = vrot.slane %v6761, 2
    %v6955 = vsel %vm3870, %v6952, %v6954
    %v6956 = vrot.slane %v6762, 2
    %v6957 = vsel %vm3870, %v6954, %v6956
    %v6958 = vrot.slane %v6763, 2
    %v6959 = vsel %vm3870, %v6956, %v6958
    %v6960 = vrot.slane %v6764, 2
    %v6961 = vsel %vm3870, %v6958, %v6960
    %v6962 = vrot.slane %v6765, 2
    %v6963 = vsel %vm3870, %v6960, %v6962
    %v6964 = vrot.slane %v6766, 2
    %v6965 = vsel %vm3870, %v6962, %v6964
    %v6966 = vrot.slane %v6767, 2
    %v6967 = vsel %vm3870, %v6964, %v6966
    %v6968 = vrot.slane %v6768, 2
    %v6969 = vsel %vm3870, %v6966, %v6968
    %v6970 = vrot.slane %v6769, 2
    %v6971 = vsel %vm3870, %v6968, %v6970
    %v6972 = vrot.slane %v6770, 2
    %v6973 = vsel %vm3870, %v6970, %v6972
    %v6974 = vrot.slane %v6771, 2
    %v6975 = vsel %vm3870, %v6972, %v6974
    %v6976 = vrot.slane %v6772, 2
    %v6977 = vsel %vm3870, %v6974, %v6976
    %v6978 = vrot.slane %v6773, 2
    %v6979 = vsel %vm3870, %v6976, %v6978
    %v6980 = vrot.slane %v6774, 2
    %v6981 = vsel %vm3870, %v6978, %v6980
    %v6982 = vrot.slane %v6775, 2
    %v6983 = vsel %vm3870, %v6980, %v6982
    %v6984 = vrot.slane %v6776, 2
    %v6985 = vsel %vm3870, %v6982, %v6984
    %v6986 = vrot.slane %v6777, 2
    %v6987 = vsel %vm3870, %v6984, %v6986
    %v6988 = vrot.slane %v6778, 2
    %v6989 = vsel %vm3870, %v6986, %v6988
    %v6990 = vrot.slane %v6779, 2
    %v6991 = vsel %vm3870, %v6988, %v6990
    %v6992 = vrot.slane %v6780, 2
    %v6993 = vsel %vm3870, %v6990, %v6992
    %v6994 = vrot.slane %v6781, 2
    %v6995 = vsel %vm3870, %v6992, %v6994
    %v6996 = vrot.slane %v6782, 2
    %v6997 = vsel %vm3870, %v6994, %v6996
    %v6998 = vrot.slane %v6783, 2
    %v6999 = vsel %vm3870, %v6996, %v6998
    %v7000 = vrot.slane %v6784, 2
    %v7001 = vsel %vm3870, %v6998, %v7000
    %v7002 = vrot.slane %v6785, 2
    %v7003 = vsel %vm3870, %v7000, %v7002
    %v7004 = vrot.slane %v6786, 2
    %v7005 = vsel %vm3870, %v7002, %v7004
    %v7006 = vrot.slane %v6787, 2
    %v7007 = vsel %vm3870, %v7004, %v7006
    %v7008 = vrot.slane %v6788, 2
    %v7009 = vsel %vm3870, %v7006, %v7008
    %v7010 = vrot.slane %v6789, 2
    %v7011 = vsel %vm3870, %v7008, %v7010
    %v7012 = vrot.slane %v6790, 2
    %v7013 = vsel %vm3870, %v7010, %v7012
    %v7014 = vrot.slane %v6791, 2
    %v7015 = vsel %vm3870, %v7012, %v7014
    %v7016 = vrot.slane %v6792, 2
    %v7017 = vsel %vm3870, %v7014, %v7016
    %v7018 = vrot.slane %v6793, 2
    %v7019 = vsel %vm3870, %v7016, %v7018
    %v7020 = vrot.slane %v6794, 2
    %v7021 = vsel %vm3870, %v7018, %v7020
    %v7022 = vrot.slane %v6795, 2
    %v7023 = vsel %vm3870, %v7020, %v7022
    %v7024 = vrot.slane %v6796, 2
    %v7025 = vsel %vm3870, %v7022, %v7024
    %v7026 = vrot.slane %v6797, 2
    %v7027 = vsel %vm3870, %v7024, %v7026
    %v7028 = vrot.slane %v6798, 2
    %v7029 = vsel %vm3870, %v7026, %v7028
    %v7030 = vrot.slane %v6799, 2
    %v7031 = vsel %vm3870, %v7028, %v7030
    %v7032 = vrot.slane %v6800, 2
    %v7033 = vsel %vm3870, %v7030, %v7032
    %v7034 = vrot.slane %v6801, 2
    %v7035 = vsel %vm3870, %v7032, %v7034
    %v7036 = vrot.slane %v6802, 2
    %v7037 = vsel %vm3870, %v7034, %v7036
    %v7038 = vrot.slane %v6803, 2
    %v7039 = vsel %vm3870, %v7036, %v7038
    %v7040 = vrot.slane %v6804, 2
    %v7041 = vsel %vm3870, %v7038, %v7040
    %v7042 = vrot.slane %v6805, 2
    %v7043 = vsel %vm3870, %v7040, %v7042
    %v7044 = vrot.slane %v6806, 2
    %v7045 = vsel %vm3870, %v7042, %v7044
    %v7046 = vrot.slane %v6807, 2
    %v7047 = vsel %vm3870, %v7044, %v7046
    %v7048 = vrot.slane %v6808, 2
    %v7049 = vsel %vm3870, %v7046, %v7048
    %v7050 = vrot.slane %v6809, 2
    %v7051 = vsel %vm3870, %v7048, %v7050
    %v7052 = vrot.slane %v6810, 2
    %v7053 = vsel %vm3870, %v7050, %v7052
    %v7054 = vrot.slane %v6821, 2
    %v7055 = vsel %vm3870, %v7052, %v7054
    %v7056 = vrot.slane %v6822, 2
    %v7057 = vsel %vm3870, %v7054, %v7056
    %v7058 = vrot.slane %v6823, 2
    %v7059 = vsel %vm3870, %v7056, %v7058
    %v7139 = vmax.f32 %v6733, %v6905
    %v7140 = vmax.f32 %v6734, %v6907
    %v7141 = vmax.f32 %v6735, %v6909
    %v7142 = vmax.f32 %v6736, %v6911
    %v7143 = vmax.f32 %v6737, %v6913
    %v7144 = vmax.f32 %v6738, %v6915
    %v7145 = vmax.f32 %v6739, %v6917
    %v7146 = vmax.f32 %v6740, %v6919
    %v7147 = vmax.f32 %v6741, %v6921
    %v7148 = vmax.f32 %v6742, %v6923
    %v7149 = vmax.f32 %v6743, %v6925
    %v7150 = vmax.f32 %v6744, %v6927
    %v7151 = vmax.f32 %v6745, %v6929
    %v7152 = vmax.f32 %v6746, %v6931
    %v7153 = vmax.f32 %v6747, %v6933
    %v7154 = vmax.f32 %v6748, %v6935
    %v7155 = vmax.f32 %v6749, %v6937
    %v7156 = vmax.f32 %v6750, %v6939
    %v7157 = vmax.f32 %v6751, %v6941
    %v7158 = vmax.f32 %v6752, %v6943
    %v7159 = vmax.f32 %v6753, %v6945
    %v7160 = vmax.f32 %v6754, %v6947
    %v7161 = vmax.f32 %v6755, %v6949
    %v7162 = vmax.f32 %v6756, %v6951
    %v7163 = vmax.f32 %v6757, %v6953
    %v7164 = vmax.f32 %v6758, %v6955
    %v7165 = vmax.f32 %v6759, %v6957
    %v7166 = vmax.f32 %v6760, %v6959
    %v7167 = vmax.f32 %v6761, %v6961
    %v7168 = vmax.f32 %v6762, %v6963
    %v7169 = vmax.f32 %v6763, %v6965
    %v7170 = vmax.f32 %v6764, %v6967
    %v7171 = vmax.f32 %v6765, %v6969
    %v7172 = vmax.f32 %v6766, %v6971
    %v7173 = vmax.f32 %v6767, %v6973
    %v7174 = vmax.f32 %v6768, %v6975
    %v7175 = vmax.f32 %v6769, %v6977
    %v7176 = vmax.f32 %v6770, %v6979
    %v7177 = vmax.f32 %v6771, %v6981
    %v7178 = vmax.f32 %v6772, %v6983
    %v7179 = vmax.f32 %v6773, %v6985
    %v7180 = vmax.f32 %v6774, %v6987
    %v7181 = vmax.f32 %v6775, %v6989
    %v7182 = vmax.f32 %v6776, %v6991
    %v7183 = vmax.f32 %v6777, %v6993
    %v7184 = vmax.f32 %v6778, %v6995
    %v7185 = vmax.f32 %v6779, %v6997
    %v7186 = vmax.f32 %v6780, %v6999
    %v7187 = vmax.f32 %v6781, %v7001
    %v7188 = vmax.f32 %v6782, %v7003
    %v7189 = vmax.f32 %v6783, %v7005
    %v7190 = vmax.f32 %v6784, %v7007
    %v7191 = vmax.f32 %v6785, %v7009
    %v7192 = vmax.f32 %v6786, %v7011
    %v7193 = vmax.f32 %v6787, %v7013
    %v7194 = vmax.f32 %v6788, %v7015
    %v7195 = vmax.f32 %v6789, %v7017
    %v7196 = vmax.f32 %v6790, %v7019
    %v7197 = vmax.f32 %v6791, %v7021
    %v7198 = vmax.f32 %v6792, %v7023
    %v7199 = vmax.f32 %v6793, %v7025
    %v7200 = vmax.f32 %v6794, %v7027
    %v7201 = vmax.f32 %v6795, %v7029
    %v7202 = vmax.f32 %v6796, %v7031
    %v7203 = vmax.f32 %v6797, %v7033
    %v7204 = vmax.f32 %v6798, %v7035
    %v7205 = vmax.f32 %v6799, %v7037
    %v7206 = vmax.f32 %v6800, %v7039
    %v7207 = vmax.f32 %v6801, %v7041
    %v7208 = vmax.f32 %v6802, %v7043
    %v7209 = vmax.f32 %v6803, %v7045
    %v7210 = vmax.f32 %v6804, %v7047
    %v7211 = vmax.f32 %v6805, %v7049
    %v7212 = vmax.f32 %v6806, %v7051
    %v7213 = vmax.f32 %v6807, %v7053
    %v7214 = vmax.f32 %v6808, %v7055
    %v7215 = vmax.f32 %v6809, %v7057
    %v7216 = vmax.f32 %v6810, %v7059
    %v7217 = vmax.f32 %v6811, %v7058
    %7218 = vst.msk [vmem:[#allocation2] sm:$0xff] %vm5805, %v7139
    %7219 = vst.msk [vmem:[#allocation2 + $0x8] sm:$0xff] %vm5805, %v7140
    %7220 = vst.msk [vmem:[#allocation2 + $0x10] sm:$0xff] %vm5805, %v7141
    %7221 = vst.msk [vmem:[#allocation2 + $0x18] sm:$0xff] %vm5805, %v7142
    %7222 = vst.msk [vmem:[#allocation2 + $0x20] sm:$0xff] %vm5805, %v7143
    %7223 = vst.msk [vmem:[#allocation2 + $0x28] sm:$0xff] %vm5805, %v7144
    %7224 = vst.msk [vmem:[#allocation2 + $0x30] sm:$0xff] %vm5805, %v7145
    %7225 = vst.msk [vmem:[#allocation2 + $0x38] sm:$0xff] %vm5805, %v7146
    %7226 = vst.msk [vmem:[#allocation2 + $0x40] sm:$0xff] %vm5805, %v7147
    %7227 = vst.msk [vmem:[#allocation2 + $0x48] sm:$0xff] %vm5805, %v7148
    %7228 = vst.msk [vmem:[#allocation2 + $0x50] sm:$0xff] %vm5805, %v7149
    %7229 = vst.msk [vmem:[#allocation2 + $0x58] sm:$0xff] %vm5805, %v7150
    %7230 = vst.msk [vmem:[#allocation2 + $0x60] sm:$0xff] %vm5805, %v7151
    %7231 = vst.msk [vmem:[#allocation2 + $0x68] sm:$0xff] %vm5805, %v7152
    %7232 = vst.msk [vmem:[#allocation2 + $0x70] sm:$0xff] %vm5805, %v7153
    %7233 = vst.msk [vmem:[#allocation2 + $0x78] sm:$0xff] %vm5805, %v7154
    %7234 = vst.msk [vmem:[#allocation2 + $0x80] sm:$0xff] %vm5805, %v7155
    %7235 = vst.msk [vmem:[#allocation2 + $0x88] sm:$0xff] %vm5805, %v7156
    %7236 = vst.msk [vmem:[#allocation2 + $0x90] sm:$0xff] %vm5805, %v7157
    %7237 = vst.msk [vmem:[#allocation2 + $0x98] sm:$0xff] %vm5805, %v7158
    %7238 = vst.msk [vmem:[#allocation2 + $0xa0] sm:$0xff] %vm5805, %v7159
    %7239 = vst.msk [vmem:[#allocation2 + $0xa8] sm:$0xff] %vm5805, %v7160
    %7240 = vst.msk [vmem:[#allocation2 + $0xb0] sm:$0xff] %vm5805, %v7161
    %7241 = vst.msk [vmem:[#allocation2 + $0xb8] sm:$0xff] %vm5805, %v7162
    %7242 = vst.msk [vmem:[#allocation2 + $0xc0] sm:$0xff] %vm5805, %v7163
    %7243 = vst.msk [vmem:[#allocation2 + $0xc8] sm:$0xff] %vm5805, %v7164
    %7244 = vst.msk [vmem:[#allocation2 + $0xd0] sm:$0xff] %vm5805, %v7165
    %7245 = vst.msk [vmem:[#allocation2 + $0xd8] sm:$0xff] %vm5805, %v7166
    %7246 = vst.msk [vmem:[#allocation2 + $0xe0] sm:$0xff] %vm5805, %v7167
    %7247 = vst.msk [vmem:[#allocation2 + $0xe8] sm:$0xff] %vm5805, %v7168
    %7248 = vst.msk [vmem:[#allocation2 + $0xf0] sm:$0xff] %vm5805, %v7169
    %7249 = vst.msk [vmem:[#allocation2 + $0xf8] sm:$0xff] %vm5805, %v7170
    %7250 = vst.msk [vmem:[#allocation2 + $0x100] sm:$0xff] %vm5805, %v7171
    %7251 = vst.msk [vmem:[#allocation2 + $0x108] sm:$0xff] %vm5805, %v7172
    %7252 = vst.msk [vmem:[#allocation2 + $0x110] sm:$0xff] %vm5805, %v7173
    %7253 = vst.msk [vmem:[#allocation2 + $0x118] sm:$0xff] %vm5805, %v7174
    %7254 = vst.msk [vmem:[#allocation2 + $0x120] sm:$0xff] %vm5805, %v7175
    %7255 = vst.msk [vmem:[#allocation2 + $0x128] sm:$0xff] %vm5805, %v7176
    %7256 = vst.msk [vmem:[#allocation2 + $0x130] sm:$0xff] %vm5805, %v7177
    %7257 = vst.msk [vmem:[#allocation2 + $0x138] sm:$0xff] %vm5805, %v7178
    %7258 = vst.msk [vmem:[#allocation2 + $0x140] sm:$0xff] %vm5805, %v7179
    %7259 = vst.msk [vmem:[#allocation2 + $0x148] sm:$0xff] %vm5805, %v7180
    %7260 = vst.msk [vmem:[#allocation2 + $0x150] sm:$0xff] %vm5805, %v7181
    %7261 = vst.msk [vmem:[#allocation2 + $0x158] sm:$0xff] %vm5805, %v7182
    %7262 = vst.msk [vmem:[#allocation2 + $0x160] sm:$0xff] %vm5805, %v7183
    %7263 = vst.msk [vmem:[#allocation2 + $0x168] sm:$0xff] %vm5805, %v7184
    %7264 = vst.msk [vmem:[#allocation2 + $0x170] sm:$0xff] %vm5805, %v7185
    %7265 = vst.msk [vmem:[#allocation2 + $0x178] sm:$0xff] %vm5805, %v7186
    %7266 = vst.msk [vmem:[#allocation2 + $0x180] sm:$0xff] %vm5805, %v7187
    %7267 = vst.msk [vmem:[#allocation2 + $0x188] sm:$0xff] %vm5805, %v7188
    %7268 = vst.msk [vmem:[#allocation2 + $0x190] sm:$0xff] %vm5805, %v7189
    %7269 = vst.msk [vmem:[#allocation2 + $0x198] sm:$0xff] %vm5805, %v7190
    %7270 = vst.msk [vmem:[#allocation2 + $0x1a0] sm:$0xff] %vm5805, %v7191
    %7271 = vst.msk [vmem:[#allocation2 + $0x1a8] sm:$0xff] %vm5805, %v7192
    %7272 = vst.msk [vmem:[#allocation2 + $0x1b0] sm:$0xff] %vm5805, %v7193
    %7273 = vst.msk [vmem:[#allocation2 + $0x1b8] sm:$0xff] %vm5805, %v7194
    %7274 = vst.msk [vmem:[#allocation2 + $0x1c0] sm:$0xff] %vm5805, %v7195
    %7275 = vst.msk [vmem:[#allocation2 + $0x1c8] sm:$0xff] %vm5805, %v7196
    %7276 = vst.msk [vmem:[#allocation2 + $0x1d0] sm:$0xff] %vm5805, %v7197
    %7277 = vst.msk [vmem:[#allocation2 + $0x1d8] sm:$0xff] %vm5805, %v7198
    %7278 = vst.msk [vmem:[#allocation2 + $0x1e0] sm:$0xff] %vm5805, %v7199
    %7279 = vst.msk [vmem:[#allocation2 + $0x1e8] sm:$0xff] %vm5805, %v7200
    %7280 = vst.msk [vmem:[#allocation2 + $0x1f0] sm:$0xff] %vm5805, %v7201
    %7281 = vst.msk [vmem:[#allocation2 + $0x1f8] sm:$0xff] %vm5805, %v7202
    %7282 = vst.msk [vmem:[#allocation2 + $0x200] sm:$0xff] %vm5805, %v7203
    %7283 = vst.msk [vmem:[#allocation2 + $0x208] sm:$0xff] %vm5805, %v7204
    %7284 = vst.msk [vmem:[#allocation2 + $0x210] sm:$0xff] %vm5805, %v7205
    %7285 = vst.msk [vmem:[#allocation2 + $0x218] sm:$0xff] %vm5805, %v7206
    %7286 = vst.msk [vmem:[#allocation2 + $0x220] sm:$0xff] %vm5805, %v7207
    %7287 = vst.msk [vmem:[#allocation2 + $0x228] sm:$0xff] %vm5805, %v7208
    %7288 = vst.msk [vmem:[#allocation2 + $0x230] sm:$0xff] %vm5805, %v7209
    %7289 = vst.msk [vmem:[#allocation2 + $0x238] sm:$0xff] %vm5805, %v7210
    %7290 = vst.msk [vmem:[#allocation2 + $0x240] sm:$0xff] %vm5805, %v7211
    %7291 = vst.msk [vmem:[#allocation2 + $0x248] sm:$0xff] %vm5805, %v7212
    %7292 = vst.msk [vmem:[#allocation2 + $0x250] sm:$0xff] %vm5805, %v7213
    %7293 = vst.msk [vmem:[#allocation2 + $0x258] sm:$0xff] %vm5805, %v7214
    %7294 = vst.msk [vmem:[#allocation2 + $0x260] sm:$0xff] %vm5805, %v7215
    %7295 = vst.msk [vmem:[#allocation2 + $0x268] sm:$0xff] %vm5805, %v7216
    %vm7296 = vcmask 126976
    %7297 = vst.msk [vmem:[#allocation2 + $0x270] sm:$0x1f] %vm7296, %v7217
    %7298 = vst.msk [vmem:[#allocation3] sm:$0xff] %vm5805, 0.0
    %7299 = vst.msk [vmem:[#allocation3 + $0x8] sm:$0xff] %vm5805, 0.0
    %7300 = vst.msk [vmem:[#allocation3 + $0x10] sm:$0xff] %vm5805, 0.0
    %7301 = vst.msk [vmem:[#allocation3 + $0x18] sm:$0xff] %vm5805, 0.0
    %7302 = vst.msk [vmem:[#allocation3 + $0x20] sm:$0xff] %vm5805, 0.0
    %7303 = vst.msk [vmem:[#allocation3 + $0x28] sm:$0xff] %vm5805, 0.0
    %7304 = vst.msk [vmem:[#allocation3 + $0x30] sm:$0xff] %vm5805, 0.0
    %7305 = vst.msk [vmem:[#allocation3 + $0x38] sm:$0xff] %vm5805, 0.0
    %7306 = vst.msk [vmem:[#allocation3 + $0x40] sm:$0xff] %vm5805, 0.0
    %7307 = vst.msk [vmem:[#allocation3 + $0x48] sm:$0xff] %vm5805, 0.0
    %7308 = vst.msk [vmem:[#allocation3 + $0x50] sm:$0xff] %vm5805, 0.0
    %7309 = vst.msk [vmem:[#allocation3 + $0x58] sm:$0xff] %vm5805, 0.0
    %7310 = vst.msk [vmem:[#allocation3 + $0x60] sm:$0xff] %vm5805, 0.0
    %7311 = vst.msk [vmem:[#allocation3 + $0x68] sm:$0xff] %vm5805, 0.0
    %7312 = vst.msk [vmem:[#allocation3 + $0x70] sm:$0xff] %vm5805, 0.0
    %7313 = vst.msk [vmem:[#allocation3 + $0x78] sm:$0xff] %vm5805, 0.0
    %7314 = vst.msk [vmem:[#allocation3 + $0x80] sm:$0xff] %vm5805, 0.0
    %7315 = vst.msk [vmem:[#allocation3 + $0x88] sm:$0xff] %vm5805, 0.0
    %7316 = vst.msk [vmem:[#allocation3 + $0x90] sm:$0xff] %vm5805, 0.0
    %7317 = vst.msk [vmem:[#allocation3 + $0x98] sm:$0xff] %vm5805, 0.0
    %7318 = vst.msk [vmem:[#allocation3 + $0xa0] sm:$0xff] %vm5805, 0.0
    %7319 = vst.msk [vmem:[#allocation3 + $0xa8] sm:$0xff] %vm5805, 0.0
    %7320 = vst.msk [vmem:[#allocation3 + $0xb0] sm:$0xff] %vm5805, 0.0
    %7321 = vst.msk [vmem:[#allocation3 + $0xb8] sm:$0xff] %vm5805, 0.0
    %7322 = vst.msk [vmem:[#allocation3 + $0xc0] sm:$0xff] %vm5805, 0.0
    %7323 = vst.msk [vmem:[#allocation3 + $0xc8] sm:$0xff] %vm5805, 0.0
    %7324 = vst.msk [vmem:[#allocation3 + $0xd0] sm:$0xff] %vm5805, 0.0
    %vm7325 = vcmask 128000
    %7326 = vst.msk [vmem:[#allocation3 + $0xd8] sm:$0x3f] %vm7325, 0.0
    %v7327 = vld [vmem:[#allocation2] ss:$2 sm:$0xff]
    %7328 = vst.msk [vmem:[#allocation3 + $0xb] sm:$0xff] %vm5805, %v7327
    %s7329 = scalar_lea.vmem [#allocation2], 36
    %v7330 = vld [vmem:[%s7329] ss:$2 sm:$0xff]
    %7331 = vst.msk [vmem:[#allocation3 + $0x15] sm:$0xff] %vm5805, %v7330
    %s7332 = scalar_lea.vmem [#allocation2], 72
    %v7333 = vld [vmem:[%s7332] ss:$2 sm:$0xff]
    %7334 = vst.msk [vmem:[#allocation3 + $0x1f] sm:$0xff] %vm5805, %v7333
    %s7335 = scalar_lea.vmem [#allocation2], 108
    %v7336 = vld [vmem:[%s7335] ss:$2 sm:$0xff]
    %7337 = vst.msk [vmem:[#allocation3 + $0x29] sm:$0xff] %vm5805, %v7336
    %s7338 = scalar_lea.vmem [#allocation2], 144
    %v7339 = vld [vmem:[%s7338] ss:$2 sm:$0xff]
    %7340 = vst.msk [vmem:[#allocation3 + $0x33] sm:$0xff] %vm5805, %v7339
    %s7341 = scalar_lea.vmem [#allocation2], 180
    %v7342 = vld [vmem:[%s7341] ss:$2 sm:$0xff]
    %7343 = vst.msk [vmem:[#allocation3 + $0x3d] sm:$0xff] %vm5805, %v7342
    %s7344 = scalar_lea.vmem [#allocation2], 216
    %v7345 = vld [vmem:[%s7344] ss:$2 sm:$0xff]
    %7346 = vst.msk [vmem:[#allocation3 + $0x47] sm:$0xff] %vm5805, %v7345
    %s7347 = scalar_lea.vmem [#allocation2], 252
    %v7348 = vld [vmem:[%s7347] ss:$2 sm:$0xff]
    %7349 = vst.msk [vmem:[#allocation3 + $0x51] sm:$0xff] %vm5805, %v7348
    %s7350 = scalar_lea.vmem [#allocation2], 324
    %v7351 = vld [vmem:[%s7350] ss:$2 sm:$0xff]
    %7352 = vst.msk [vmem:[#allocation3 + $0x6f] sm:$0xff] %vm5805, %v7351
    %s7353 = scalar_lea.vmem [#allocation2], 360
    %v7354 = vld [vmem:[%s7353] ss:$2 sm:$0xff]
    %7355 = vst.msk [vmem:[#allocation3 + $0x79] sm:$0xff] %vm5805, %v7354
    %s7356 = scalar_lea.vmem [#allocation2], 396
    %v7357 = vld [vmem:[%s7356] ss:$2 sm:$0xff]
    %7358 = vst.msk [vmem:[#allocation3 + $0x83] sm:$0xff] %vm5805, %v7357
    %s7359 = scalar_lea.vmem [#allocation2], 432
    %v7360 = vld [vmem:[%s7359] ss:$2 sm:$0xff]
    %7361 = vst.msk [vmem:[#allocation3 + $0x8d] sm:$0xff] %vm5805, %v7360
    %s7362 = scalar_lea.vmem [#allocation2], 468
    %v7363 = vld [vmem:[%s7362] ss:$2 sm:$0xff]
    %7364 = vst.msk [vmem:[#allocation3 + $0x97] sm:$0xff] %vm5805, %v7363
    %s7365 = scalar_lea.vmem [#allocation2], 504
    %v7366 = vld [vmem:[%s7365] ss:$2 sm:$0xff]
    %7367 = vst.msk [vmem:[#allocation3 + $0xa1] sm:$0xff] %vm5805, %v7366
    %s7368 = scalar_lea.vmem [#allocation2], 540
    %v7369 = vld [vmem:[%s7368] ss:$2 sm:$0xff]
    %7370 = vst.msk [vmem:[#allocation3 + $0xab] sm:$0xff] %vm5805, %v7369
    %s7371 = scalar_lea.vmem [#allocation2], 576
    %v7372 = vld [vmem:[%s7371] ss:$2 sm:$0xff]
    %7373 = vst.msk [vmem:[#allocation3 + $0xb5] sm:$0xff] %vm5805, %v7372
    %v7374 = vld [vmem:[#allocation3] sm:$0xff]
    %v7375 = vld [vmem:[#allocation3 + $0x8] sm:$0xff]
    %v7376 = vld [vmem:[#allocation3 + $0x10] sm:$0xff]
    %v7377 = vld [vmem:[#allocation3 + $0x18] sm:$0xff]
    %v7378 = vld [vmem:[#allocation3 + $0x20] sm:$0xff]
    %v7379 = vld [vmem:[#allocation3 + $0x28] sm:$0xff]
    %v7380 = vld [vmem:[#allocation3 + $0x30] sm:$0xff]
    %v7381 = vld [vmem:[#allocation3 + $0x38] sm:$0xff]
    %v7382 = vld [vmem:[#allocation3 + $0x40] sm:$0xff]
    %v7383 = vld [vmem:[#allocation3 + $0x48] sm:$0xff]
    %v7384 = vld [vmem:[#allocation3 + $0x50] sm:$0xff]
    %v7385 = vld [vmem:[#allocation3 + $0x58] sm:$0xff]
    %v7386 = vld [vmem:[#allocation3 + $0x60] sm:$0xff]
    %v7387 = vld [vmem:[#allocation3 + $0x68] sm:$0xff]
    %v7388 = vld [vmem:[#allocation3 + $0x70] sm:$0xff]
    %v7389 = vld [vmem:[#allocation3 + $0x78] sm:$0xff]
    %v7390 = vld [vmem:[#allocation3 + $0x80] sm:$0xff]
    %v7391 = vld [vmem:[#allocation3 + $0x88] sm:$0xff]
    %v7392 = vld [vmem:[#allocation3 + $0x90] sm:$0xff]
    %v7393 = vld [vmem:[#allocation3 + $0x98] sm:$0xff]
    %v7394 = vld [vmem:[#allocation3 + $0xa0] sm:$0xff]
    %v7395 = vld [vmem:[#allocation3 + $0xa8] sm:$0xff]
    %v7396 = vld [vmem:[#allocation3 + $0xb0] sm:$0xff]
    %v7397 = vld [vmem:[#allocation3 + $0xb8] sm:$0xff]
    %v7398 = vld [vmem:[#allocation3 + $0xc0] sm:$0xff]
    %v7399 = vld [vmem:[#allocation3 + $0x1] sm:$0xff]
    %v7400 = vld [vmem:[#allocation3 + $0x9] sm:$0xff]
    %v7401 = vld [vmem:[#allocation3 + $0x11] sm:$0xff]
    %v7402 = vld [vmem:[#allocation3 + $0x19] sm:$0xff]
    %v7403 = vld [vmem:[#allocation3 + $0x21] sm:$0xff]
    %v7404 = vld [vmem:[#allocation3 + $0x29] sm:$0xff]
    %v7405 = vld [vmem:[#allocation3 + $0x31] sm:$0xff]
    %v7406 = vld [vmem:[#allocation3 + $0x39] sm:$0xff]
    %v7407 = vld [vmem:[#allocation3 + $0x41] sm:$0xff]
    %v7408 = vld [vmem:[#allocation3 + $0x49] sm:$0xff]
    %v7409 = vld [vmem:[#allocation3 + $0x51] sm:$0xff]
    %v7410 = vld [vmem:[#allocation3 + $0x59] sm:$0xff]
    %v7411 = vld [vmem:[#allocation3 + $0x61] sm:$0xff]
    %v7412 = vld [vmem:[#allocation3 + $0x69] sm:$0xff]
    %v7413 = vld [vmem:[#allocation3 + $0x71] sm:$0xff]
    %v7414 = vld [vmem:[#allocation3 + $0x79] sm:$0xff]
    %v7415 = vld [vmem:[#allocation3 + $0x81] sm:$0xff]
    %v7416 = vld [vmem:[#allocation3 + $0x89] sm:$0xff]
    %v7417 = vld [vmem:[#allocation3 + $0x91] sm:$0xff]
    %v7418 = vld [vmem:[#allocation3 + $0x99] sm:$0xff]
    %v7419 = vld [vmem:[#allocation3 + $0xa1] sm:$0xff]
    %v7420 = vld [vmem:[#allocation3 + $0xa9] sm:$0xff]
    %v7421 = vld [vmem:[#allocation3 + $0xb1] sm:$0xff]
    %v7422 = vld [vmem:[#allocation3 + $0xb9] sm:$0xff]
    %v7423 = vld [vmem:[#allocation3 + $0xc1] sm:$0xff]
    %v7424 = vld [vmem:[#allocation3 + $0x2] sm:$0xff]
    %v7425 = vld [vmem:[#allocation3 + $0xa] sm:$0xff]
    %v7426 = vld [vmem:[#allocation3 + $0x12] sm:$0xff]
    %v7427 = vld [vmem:[#allocation3 + $0x1a] sm:$0xff]
    %v7428 = vld [vmem:[#allocation3 + $0x22] sm:$0xff]
    %v7429 = vld [vmem:[#allocation3 + $0x2a] sm:$0xff]
    %v7430 = vld [vmem:[#allocation3 + $0x32] sm:$0xff]
    %v7431 = vld [vmem:[#allocation3 + $0x3a] sm:$0xff]
    %v7432 = vld [vmem:[#allocation3 + $0x42] sm:$0xff]
    %v7433 = vld [vmem:[#allocation3 + $0x4a] sm:$0xff]
    %v7434 = vld [vmem:[#allocation3 + $0x52] sm:$0xff]
    %v7435 = vld [vmem:[#allocation3 + $0x5a] sm:$0xff]
    %v7436 = vld [vmem:[#allocation3 + $0x62] sm:$0xff]
    %v7437 = vld [vmem:[#allocation3 + $0x6a] sm:$0xff]
    %v7438 = vld [vmem:[#allocation3 + $0x72] sm:$0xff]
    %v7439 = vld [vmem:[#allocation3 + $0x7a] sm:$0xff]
    %v7440 = vld [vmem:[#allocation3 + $0x82] sm:$0xff]
    %v7441 = vld [vmem:[#allocation3 + $0x8a] sm:$0xff]
    %v7442 = vld [vmem:[#allocation3 + $0x92] sm:$0xff]
    %v7443 = vld [vmem:[#allocation3 + $0x9a] sm:$0xff]
    %v7444 = vld [vmem:[#allocation3 + $0xa2] sm:$0xff]
    %v7445 = vld [vmem:[#allocation3 + $0xaa] sm:$0xff]
    %v7446 = vld [vmem:[#allocation3 + $0xb2] sm:$0xff]
    %v7447 = vld [vmem:[#allocation3 + $0xba] sm:$0xff]
    %v7448 = vld [vmem:[#allocation3 + $0xc2] sm:$0xff]
    %v7449 = vld [vmem:[#allocation3 + $0xca] sm:$0xff]
    %v7450 = vld [vmem:[#allocation3 + $0xb] sm:$0xff]
    %v7451 = vld [vmem:[#allocation3 + $0x13] sm:$0xff]
    %v7452 = vld [vmem:[#allocation3 + $0x1b] sm:$0xff]
    %v7453 = vld [vmem:[#allocation3 + $0x23] sm:$0xff]
    %v7454 = vld [vmem:[#allocation3 + $0x2b] sm:$0xff]
    %v7455 = vld [vmem:[#allocation3 + $0x33] sm:$0xff]
    %v7456 = vld [vmem:[#allocation3 + $0x3b] sm:$0xff]
    %v7457 = vld [vmem:[#allocation3 + $0x43] sm:$0xff]
    %v7458 = vld [vmem:[#allocation3 + $0x4b] sm:$0xff]
    %v7459 = vld [vmem:[#allocation3 + $0x53] sm:$0xff]
    %v7460 = vld [vmem:[#allocation3 + $0x5b] sm:$0xff]
    %v7461 = vld [vmem:[#allocation3 + $0x63] sm:$0xff]
    %v7462 = vld [vmem:[#allocation3 + $0x6b] sm:$0xff]
    %v7463 = vld [vmem:[#allocation3 + $0x73] sm:$0xff]
    %v7464 = vld [vmem:[#allocation3 + $0x7b] sm:$0xff]
    %v7465 = vld [vmem:[#allocation3 + $0x83] sm:$0xff]
    %v7466 = vld [vmem:[#allocation3 + $0x8b] sm:$0xff]
    %v7467 = vld [vmem:[#allocation3 + $0x93] sm:$0xff]
    %v7468 = vld [vmem:[#allocation3 + $0x9b] sm:$0xff]
    %v7469 = vld [vmem:[#allocation3 + $0xa3] sm:$0xff]
    %v7470 = vld [vmem:[#allocation3 + $0xab] sm:$0xff]
    %v7471 = vld [vmem:[#allocation3 + $0xb3] sm:$0xff]
    %v7472 = vld [vmem:[#allocation3 + $0xbb] sm:$0xff]
    %v7473 = vld [vmem:[#allocation3 + $0xc3] sm:$0xff]
    %v7474 = vld [vmem:[#allocation3 + $0xcb] sm:$0xff]
    %v7475 = vld [vmem:[#allocation3 + $0xc] sm:$0xff]
    %v7476 = vld [vmem:[#allocation3 + $0x14] sm:$0xff]
    %v7477 = vld [vmem:[#allocation3 + $0x1c] sm:$0xff]
    %v7478 = vld [vmem:[#allocation3 + $0x24] sm:$0xff]
    %v7479 = vld [vmem:[#allocation3 + $0x2c] sm:$0xff]
    %v7480 = vld [vmem:[#allocation3 + $0x34] sm:$0xff]
    %v7481 = vld [vmem:[#allocation3 + $0x3c] sm:$0xff]
    %v7482 = vld [vmem:[#allocation3 + $0x44] sm:$0xff]
    %v7483 = vld [vmem:[#allocation3 + $0x4c] sm:$0xff]
    %v7484 = vld [vmem:[#allocation3 + $0x54] sm:$0xff]
    %v7485 = vld [vmem:[#allocation3 + $0x5c] sm:$0xff]
    %v7486 = vld [vmem:[#allocation3 + $0x64] sm:$0xff]
    %v7487 = vld [vmem:[#allocation3 + $0x6c] sm:$0xff]
    %v7488 = vld [vmem:[#allocation3 + $0x74] sm:$0xff]
    %v7489 = vld [vmem:[#allocation3 + $0x7c] sm:$0xff]
    %v7490 = vld [vmem:[#allocation3 + $0x84] sm:$0xff]
    %v7491 = vld [vmem:[#allocation3 + $0x8c] sm:$0xff]
    %v7492 = vld [vmem:[#allocation3 + $0x94] sm:$0xff]
    %v7493 = vld [vmem:[#allocation3 + $0x9c] sm:$0xff]
    %v7494 = vld [vmem:[#allocation3 + $0xa4] sm:$0xff]
    %v7495 = vld [vmem:[#allocation3 + $0xac] sm:$0xff]
    %v7496 = vld [vmem:[#allocation3 + $0xb4] sm:$0xff]
    %v7497 = vld [vmem:[#allocation3 + $0xbc] sm:$0xff]
    %v7498 = vld [vmem:[#allocation3 + $0xc4] sm:$0xff]
    %v7499 = vld [vmem:[#allocation3 + $0xcc] sm:$0xff]
    %v7500 = vld [vmem:[#allocation3 + $0xd4] sm:$0xff]
    %v7501 = vld [vmem:[#allocation3 + $0x15] sm:$0xff]
    %v7502 = vld [vmem:[#allocation3 + $0x1d] sm:$0xff]
    %v7503 = vld [vmem:[#allocation3 + $0x25] sm:$0xff]
    %v7504 = vld [vmem:[#allocation3 + $0x2d] sm:$0xff]
    %v7505 = vld [vmem:[#allocation3 + $0x35] sm:$0xff]
    %v7506 = vld [vmem:[#allocation3 + $0x3d] sm:$0xff]
    %v7507 = vld [vmem:[#allocation3 + $0x45] sm:$0xff]
    %v7508 = vld [vmem:[#allocation3 + $0x4d] sm:$0xff]
    %v7509 = vld [vmem:[#allocation3 + $0x55] sm:$0xff]
    %v7510 = vld [vmem:[#allocation3 + $0x5d] sm:$0xff]
    %v7511 = vld [vmem:[#allocation3 + $0x65] sm:$0xff]
    %v7512 = vld [vmem:[#allocation3 + $0x6d] sm:$0xff]
    %v7513 = vld [vmem:[#allocation3 + $0x75] sm:$0xff]
    %v7514 = vld [vmem:[#allocation3 + $0x7d] sm:$0xff]
    %v7515 = vld [vmem:[#allocation3 + $0x85] sm:$0xff]
    %v7516 = vld [vmem:[#allocation3 + $0x8d] sm:$0xff]
    %v7517 = vld [vmem:[#allocation3 + $0x95] sm:$0xff]
    %v7518 = vld [vmem:[#allocation3 + $0x9d] sm:$0xff]
    %v7519 = vld [vmem:[#allocation3 + $0xa5] sm:$0xff]
    %v7520 = vld [vmem:[#allocation3 + $0xad] sm:$0xff]
    %v7521 = vld [vmem:[#allocation3 + $0xb5] sm:$0xff]
    %v7522 = vld [vmem:[#allocation3 + $0xbd] sm:$0xff]
    %v7523 = vld [vmem:[#allocation3 + $0xc5] sm:$0xff]
    %v7524 = vld [vmem:[#allocation3 + $0xcd] sm:$0xff]
    %v7525 = vld [vmem:[#allocation3 + $0xd5] sm:$0xff]
    %v7526 = vld [vmem:[#allocation3 + $0x16] sm:$0xff]
    %v7527 = vld [vmem:[#allocation3 + $0x1e] sm:$0xff]
    %v7528 = vld [vmem:[#allocation3 + $0x26] sm:$0xff]
    %v7529 = vld [vmem:[#allocation3 + $0x2e] sm:$0xff]
    %v7530 = vld [vmem:[#allocation3 + $0x36] sm:$0xff]
    %v7531 = vld [vmem:[#allocation3 + $0x3e] sm:$0xff]
    %v7532 = vld [vmem:[#allocation3 + $0x46] sm:$0xff]
    %v7533 = vld [vmem:[#allocation3 + $0x4e] sm:$0xff]
    %v7534 = vld [vmem:[#allocation3 + $0x56] sm:$0xff]
    %v7535 = vld [vmem:[#allocation3 + $0x5e] sm:$0xff]
    %v7536 = vld [vmem:[#allocation3 + $0x66] sm:$0xff]
    %v7537 = vld [vmem:[#allocation3 + $0x6e] sm:$0xff]
    %v7538 = vld [vmem:[#allocation3 + $0x76] sm:$0xff]
    %v7539 = vld [vmem:[#allocation3 + $0x7e] sm:$0xff]
    %v7540 = vld [vmem:[#allocation3 + $0x86] sm:$0xff]
    %v7541 = vld [vmem:[#allocation3 + $0x8e] sm:$0xff]
    %v7542 = vld [vmem:[#allocation3 + $0x96] sm:$0xff]
    %v7543 = vld [vmem:[#allocation3 + $0x9e] sm:$0xff]
    %v7544 = vld [vmem:[#allocation3 + $0xa6] sm:$0xff]
    %v7545 = vld [vmem:[#allocation3 + $0xae] sm:$0xff]
    %v7546 = vld [vmem:[#allocation3 + $0xb6] sm:$0xff]
    %v7547 = vld [vmem:[#allocation3 + $0xbe] sm:$0xff]
    %v7548 = vld [vmem:[#allocation3 + $0xc6] sm:$0xff]
    %v7549 = vld [vmem:[#allocation3 + $0xce] sm:$0xff]
    %v7550 = vld [vmem:[#allocation3 + $0xd6] sm:$0xff]
    %7576 = vrot.lane.b32.xlu0 %v7399, 16
    %v7577 = vpop.permute.xlu0 %7576
    %7578 = vrot.lane.b32.xlu0 %v7400, 16
    %v7579 = vpop.permute.xlu0 %7578
    %7580 = vrot.lane.b32.xlu0 %v7401, 16
    %v7581 = vpop.permute.xlu0 %7580
    %7582 = vrot.lane.b32.xlu0 %v7402, 16
    %v7583 = vpop.permute.xlu0 %7582
    %7584 = vrot.lane.b32.xlu0 %v7403, 16
    %v7585 = vpop.permute.xlu0 %7584
    %7586 = vrot.lane.b32.xlu0 %v7404, 16
    %v7587 = vpop.permute.xlu0 %7586
    %7588 = vrot.lane.b32.xlu0 %v7405, 16
    %v7589 = vpop.permute.xlu0 %7588
    %7590 = vrot.lane.b32.xlu0 %v7406, 16
    %v7591 = vpop.permute.xlu0 %7590
    %7592 = vrot.lane.b32.xlu0 %v7407, 16
    %v7593 = vpop.permute.xlu0 %7592
    %7594 = vrot.lane.b32.xlu0 %v7408, 16
    %v7595 = vpop.permute.xlu0 %7594
    %7596 = vrot.lane.b32.xlu0 %v7409, 16
    %v7597 = vpop.permute.xlu0 %7596
    %7598 = vrot.lane.b32.xlu0 %v7410, 16
    %v7599 = vpop.permute.xlu0 %7598
    %7600 = vrot.lane.b32.xlu0 %v7411, 16
    %v7601 = vpop.permute.xlu0 %7600
    %7602 = vrot.lane.b32.xlu0 %v7412, 16
    %v7603 = vpop.permute.xlu0 %7602
    %7604 = vrot.lane.b32.xlu0 %v7413, 16
    %v7605 = vpop.permute.xlu0 %7604
    %7606 = vrot.lane.b32.xlu0 %v7414, 16
    %v7607 = vpop.permute.xlu0 %7606
    %7608 = vrot.lane.b32.xlu0 %v7415, 16
    %v7609 = vpop.permute.xlu0 %7608
    %7610 = vrot.lane.b32.xlu0 %v7416, 16
    %v7611 = vpop.permute.xlu0 %7610
    %7612 = vrot.lane.b32.xlu0 %v7417, 16
    %v7613 = vpop.permute.xlu0 %7612
    %7614 = vrot.lane.b32.xlu0 %v7418, 16
    %v7615 = vpop.permute.xlu0 %7614
    %7616 = vrot.lane.b32.xlu0 %v7419, 16
    %v7617 = vpop.permute.xlu0 %7616
    %7618 = vrot.lane.b32.xlu0 %v7420, 16
    %v7619 = vpop.permute.xlu0 %7618
    %7620 = vrot.lane.b32.xlu0 %v7421, 16
    %v7621 = vpop.permute.xlu0 %7620
    %7622 = vrot.lane.b32.xlu0 %v7422, 16
    %v7623 = vpop.permute.xlu0 %7622
    %7624 = vrot.lane.b32.xlu0 %v7423, 16
    %v7625 = vpop.permute.xlu0 %7624
    %7676 = vrot.lane.b32.xlu0 %v7424, 32
    %v7677 = vpop.permute.xlu0 %7676
    %7678 = vrot.lane.b32.xlu0 %v7425, 32
    %v7679 = vpop.permute.xlu0 %7678
    %7680 = vrot.lane.b32.xlu0 %v7426, 32
    %v7681 = vpop.permute.xlu0 %7680
    %7682 = vrot.lane.b32.xlu0 %v7427, 32
    %v7683 = vpop.permute.xlu0 %7682
    %7684 = vrot.lane.b32.xlu0 %v7428, 32
    %v7685 = vpop.permute.xlu0 %7684
    %7686 = vrot.lane.b32.xlu0 %v7429, 32
    %v7687 = vpop.permute.xlu0 %7686
    %7688 = vrot.lane.b32.xlu0 %v7430, 32
    %v7689 = vpop.permute.xlu0 %7688
    %7690 = vrot.lane.b32.xlu0 %v7431, 32
    %v7691 = vpop.permute.xlu0 %7690
    %7692 = vrot.lane.b32.xlu0 %v7432, 32
    %v7693 = vpop.permute.xlu0 %7692
    %7694 = vrot.lane.b32.xlu0 %v7433, 32
    %v7695 = vpop.permute.xlu0 %7694
    %7696 = vrot.lane.b32.xlu0 %v7434, 32
    %v7697 = vpop.permute.xlu0 %7696
    %7698 = vrot.lane.b32.xlu0 %v7435, 32
    %v7699 = vpop.permute.xlu0 %7698
    %7700 = vrot.lane.b32.xlu0 %v7436, 32
    %v7701 = vpop.permute.xlu0 %7700
    %7702 = vrot.lane.b32.xlu0 %v7437, 32
    %v7703 = vpop.permute.xlu0 %7702
    %7704 = vrot.lane.b32.xlu0 %v7438, 32
    %v7705 = vpop.permute.xlu0 %7704
    %7706 = vrot.lane.b32.xlu0 %v7439, 32
    %v7707 = vpop.permute.xlu0 %7706
    %7708 = vrot.lane.b32.xlu0 %v7440, 32
    %v7709 = vpop.permute.xlu0 %7708
    %7710 = vrot.lane.b32.xlu0 %v7441, 32
    %v7711 = vpop.permute.xlu0 %7710
    %7712 = vrot.lane.b32.xlu0 %v7442, 32
    %v7713 = vpop.permute.xlu0 %7712
    %7714 = vrot.lane.b32.xlu0 %v7443, 32
    %v7715 = vpop.permute.xlu0 %7714
    %7716 = vrot.lane.b32.xlu0 %v7444, 32
    %v7717 = vpop.permute.xlu0 %7716
    %7718 = vrot.lane.b32.xlu0 %v7445, 32
    %v7719 = vpop.permute.xlu0 %7718
    %7720 = vrot.lane.b32.xlu0 %v7446, 32
    %v7721 = vpop.permute.xlu0 %7720
    %7722 = vrot.lane.b32.xlu0 %v7447, 32
    %v7723 = vpop.permute.xlu0 %7722
    %7724 = vrot.lane.b32.xlu0 %v7448, 32
    %v7725 = vpop.permute.xlu0 %7724
    %7752 = vrot.lane.b32.xlu0 %v7425, 48
    %v7753 = vpop.permute.xlu0 %7752
    %7754 = vrot.lane.b32.xlu0 %v7426, 48
    %v7755 = vpop.permute.xlu0 %7754
    %7756 = vrot.lane.b32.xlu0 %v7427, 48
    %v7757 = vpop.permute.xlu0 %7756
    %7758 = vrot.lane.b32.xlu0 %v7428, 48
    %v7759 = vpop.permute.xlu0 %7758
    %7760 = vrot.lane.b32.xlu0 %v7429, 48
    %v7761 = vpop.permute.xlu0 %7760
    %7762 = vrot.lane.b32.xlu0 %v7430, 48
    %v7763 = vpop.permute.xlu0 %7762
    %7764 = vrot.lane.b32.xlu0 %v7431, 48
    %v7765 = vpop.permute.xlu0 %7764
    %7766 = vrot.lane.b32.xlu0 %v7432, 48
    %v7767 = vpop.permute.xlu0 %7766
    %7768 = vrot.lane.b32.xlu0 %v7433, 48
    %v7769 = vpop.permute.xlu0 %7768
    %7770 = vrot.lane.b32.xlu0 %v7434, 48
    %v7771 = vpop.permute.xlu0 %7770
    %7772 = vrot.lane.b32.xlu0 %v7435, 48
    %v7773 = vpop.permute.xlu0 %7772
    %7774 = vrot.lane.b32.xlu0 %v7436, 48
    %v7775 = vpop.permute.xlu0 %7774
    %7776 = vrot.lane.b32.xlu0 %v7437, 48
    %v7777 = vpop.permute.xlu0 %7776
    %7778 = vrot.lane.b32.xlu0 %v7438, 48
    %v7779 = vpop.permute.xlu0 %7778
    %7780 = vrot.lane.b32.xlu0 %v7439, 48
    %v7781 = vpop.permute.xlu0 %7780
    %7782 = vrot.lane.b32.xlu0 %v7440, 48
    %v7783 = vpop.permute.xlu0 %7782
    %7784 = vrot.lane.b32.xlu0 %v7441, 48
    %v7785 = vpop.permute.xlu0 %7784
    %7786 = vrot.lane.b32.xlu0 %v7442, 48
    %v7787 = vpop.permute.xlu0 %7786
    %7788 = vrot.lane.b32.xlu0 %v7443, 48
    %v7789 = vpop.permute.xlu0 %7788
    %7790 = vrot.lane.b32.xlu0 %v7444, 48
    %v7791 = vpop.permute.xlu0 %7790
    %7792 = vrot.lane.b32.xlu0 %v7445, 48
    %v7793 = vpop.permute.xlu0 %7792
    %7794 = vrot.lane.b32.xlu0 %v7446, 48
    %v7795 = vpop.permute.xlu0 %7794
    %7796 = vrot.lane.b32.xlu0 %v7447, 48
    %v7797 = vpop.permute.xlu0 %7796
    %7798 = vrot.lane.b32.xlu0 %v7448, 48
    %v7799 = vpop.permute.xlu0 %7798
    %7800 = vrot.lane.b32.xlu0 %v7449, 48
    %v7801 = vpop.permute.xlu0 %7800
    %7852 = vrot.lane.b32.xlu0 %v7450, 64
    %v7853 = vpop.permute.xlu0 %7852
    %7854 = vrot.lane.b32.xlu0 %v7451, 64
    %v7855 = vpop.permute.xlu0 %7854
    %7856 = vrot.lane.b32.xlu0 %v7452, 64
    %v7857 = vpop.permute.xlu0 %7856
    %7858 = vrot.lane.b32.xlu0 %v7453, 64
    %v7859 = vpop.permute.xlu0 %7858
    %7860 = vrot.lane.b32.xlu0 %v7454, 64
    %v7861 = vpop.permute.xlu0 %7860
    %7862 = vrot.lane.b32.xlu0 %v7455, 64
    %v7863 = vpop.permute.xlu0 %7862
    %7864 = vrot.lane.b32.xlu0 %v7456, 64
    %v7865 = vpop.permute.xlu0 %7864
    %7866 = vrot.lane.b32.xlu0 %v7457, 64
    %v7867 = vpop.permute.xlu0 %7866
    %7868 = vrot.lane.b32.xlu0 %v7458, 64
    %v7869 = vpop.permute.xlu0 %7868
    %7870 = vrot.lane.b32.xlu0 %v7459, 64
    %v7871 = vpop.permute.xlu0 %7870
    %7872 = vrot.lane.b32.xlu0 %v7460, 64
    %v7873 = vpop.permute.xlu0 %7872
    %7874 = vrot.lane.b32.xlu0 %v7461, 64
    %v7875 = vpop.permute.xlu0 %7874
    %7876 = vrot.lane.b32.xlu0 %v7462, 64
    %v7877 = vpop.permute.xlu0 %7876
    %7878 = vrot.lane.b32.xlu0 %v7463, 64
    %v7879 = vpop.permute.xlu0 %7878
    %7880 = vrot.lane.b32.xlu0 %v7464, 64
    %v7881 = vpop.permute.xlu0 %7880
    %7882 = vrot.lane.b32.xlu0 %v7465, 64
    %v7883 = vpop.permute.xlu0 %7882
    %7884 = vrot.lane.b32.xlu0 %v7466, 64
    %v7885 = vpop.permute.xlu0 %7884
    %7886 = vrot.lane.b32.xlu0 %v7467, 64
    %v7887 = vpop.permute.xlu0 %7886
    %7888 = vrot.lane.b32.xlu0 %v7468, 64
    %v7889 = vpop.permute.xlu0 %7888
    %7890 = vrot.lane.b32.xlu0 %v7469, 64
    %v7891 = vpop.permute.xlu0 %7890
    %7892 = vrot.lane.b32.xlu0 %v7470, 64
    %v7893 = vpop.permute.xlu0 %7892
    %7894 = vrot.lane.b32.xlu0 %v7471, 64
    %v7895 = vpop.permute.xlu0 %7894
    %7896 = vrot.lane.b32.xlu0 %v7472, 64
    %v7897 = vpop.permute.xlu0 %7896
    %7898 = vrot.lane.b32.xlu0 %v7473, 64
    %v7899 = vpop.permute.xlu0 %7898
    %7900 = vrot.lane.b32.xlu0 %v7474, 64
    %v7901 = vpop.permute.xlu0 %7900
    %7952 = vrot.lane.b32.xlu0 %v7475, 80
    %v7953 = vpop.permute.xlu0 %7952
    %7954 = vrot.lane.b32.xlu0 %v7476, 80
    %v7955 = vpop.permute.xlu0 %7954
    %7956 = vrot.lane.b32.xlu0 %v7477, 80
    %v7957 = vpop.permute.xlu0 %7956
    %7958 = vrot.lane.b32.xlu0 %v7478, 80
    %v7959 = vpop.permute.xlu0 %7958
    %7960 = vrot.lane.b32.xlu0 %v7479, 80
    %v7961 = vpop.permute.xlu0 %7960
    %7962 = vrot.lane.b32.xlu0 %v7480, 80
    %v7963 = vpop.permute.xlu0 %7962
    %7964 = vrot.lane.b32.xlu0 %v7481, 80
    %v7965 = vpop.permute.xlu0 %7964
    %7966 = vrot.lane.b32.xlu0 %v7482, 80
    %v7967 = vpop.permute.xlu0 %7966
    %7968 = vrot.lane.b32.xlu0 %v7483, 80
    %v7969 = vpop.permute.xlu0 %7968
    %7970 = vrot.lane.b32.xlu0 %v7484, 80
    %v7971 = vpop.permute.xlu0 %7970
    %7972 = vrot.lane.b32.xlu0 %v7485, 80
    %v7973 = vpop.permute.xlu0 %7972
    %7974 = vrot.lane.b32.xlu0 %v7486, 80
    %v7975 = vpop.permute.xlu0 %7974
    %7976 = vrot.lane.b32.xlu0 %v7487, 80
    %v7977 = vpop.permute.xlu0 %7976
    %7978 = vrot.lane.b32.xlu0 %v7488, 80
    %v7979 = vpop.permute.xlu0 %7978
    %7980 = vrot.lane.b32.xlu0 %v7489, 80
    %v7981 = vpop.permute.xlu0 %7980
    %7982 = vrot.lane.b32.xlu0 %v7490, 80
    %v7983 = vpop.permute.xlu0 %7982
    %7984 = vrot.lane.b32.xlu0 %v7491, 80
    %v7985 = vpop.permute.xlu0 %7984
    %7986 = vrot.lane.b32.xlu0 %v7492, 80
    %v7987 = vpop.permute.xlu0 %7986
    %7988 = vrot.lane.b32.xlu0 %v7493, 80
    %v7989 = vpop.permute.xlu0 %7988
    %7990 = vrot.lane.b32.xlu0 %v7494, 80
    %v7991 = vpop.permute.xlu0 %7990
    %7992 = vrot.lane.b32.xlu0 %v7495, 80
    %v7993 = vpop.permute.xlu0 %7992
    %7994 = vrot.lane.b32.xlu0 %v7496, 80
    %v7995 = vpop.permute.xlu0 %7994
    %7996 = vrot.lane.b32.xlu0 %v7497, 80
    %v7997 = vpop.permute.xlu0 %7996
    %7998 = vrot.lane.b32.xlu0 %v7498, 80
    %v7999 = vpop.permute.xlu0 %7998
    %8000 = vrot.lane.b32.xlu0 %v7499, 80
    %v8001 = vpop.permute.xlu0 %8000
    %8028 = vrot.lane.b32.xlu0 %v7476, 96
    %v8029 = vpop.permute.xlu0 %8028
    %8030 = vrot.lane.b32.xlu0 %v7477, 96
    %v8031 = vpop.permute.xlu0 %8030
    %8032 = vrot.lane.b32.xlu0 %v7478, 96
    %v8033 = vpop.permute.xlu0 %8032
    %8034 = vrot.lane.b32.xlu0 %v7479, 96
    %v8035 = vpop.permute.xlu0 %8034
    %8036 = vrot.lane.b32.xlu0 %v7480, 96
    %v8037 = vpop.permute.xlu0 %8036
    %8038 = vrot.lane.b32.xlu0 %v7481, 96
    %v8039 = vpop.permute.xlu0 %8038
    %8040 = vrot.lane.b32.xlu0 %v7482, 96
    %v8041 = vpop.permute.xlu0 %8040
    %8042 = vrot.lane.b32.xlu0 %v7483, 96
    %v8043 = vpop.permute.xlu0 %8042
    %8044 = vrot.lane.b32.xlu0 %v7484, 96
    %v8045 = vpop.permute.xlu0 %8044
    %8046 = vrot.lane.b32.xlu0 %v7485, 96
    %v8047 = vpop.permute.xlu0 %8046
    %8048 = vrot.lane.b32.xlu0 %v7486, 96
    %v8049 = vpop.permute.xlu0 %8048
    %8050 = vrot.lane.b32.xlu0 %v7487, 96
    %v8051 = vpop.permute.xlu0 %8050
    %8052 = vrot.lane.b32.xlu0 %v7488, 96
    %v8053 = vpop.permute.xlu0 %8052
    %8054 = vrot.lane.b32.xlu0 %v7489, 96
    %v8055 = vpop.permute.xlu0 %8054
    %8056 = vrot.lane.b32.xlu0 %v7490, 96
    %v8057 = vpop.permute.xlu0 %8056
    %8058 = vrot.lane.b32.xlu0 %v7491, 96
    %v8059 = vpop.permute.xlu0 %8058
    %8060 = vrot.lane.b32.xlu0 %v7492, 96
    %v8061 = vpop.permute.xlu0 %8060
    %8062 = vrot.lane.b32.xlu0 %v7493, 96
    %v8063 = vpop.permute.xlu0 %8062
    %8064 = vrot.lane.b32.xlu0 %v7494, 96
    %v8065 = vpop.permute.xlu0 %8064
    %8066 = vrot.lane.b32.xlu0 %v7495, 96
    %v8067 = vpop.permute.xlu0 %8066
    %8068 = vrot.lane.b32.xlu0 %v7496, 96
    %v8069 = vpop.permute.xlu0 %8068
    %8070 = vrot.lane.b32.xlu0 %v7497, 96
    %v8071 = vpop.permute.xlu0 %8070
    %8072 = vrot.lane.b32.xlu0 %v7498, 96
    %v8073 = vpop.permute.xlu0 %8072
    %8074 = vrot.lane.b32.xlu0 %v7499, 96
    %v8075 = vpop.permute.xlu0 %8074
    %8076 = vrot.lane.b32.xlu0 %v7500, 96
    %v8077 = vpop.permute.xlu0 %8076
    %8128 = vrot.lane.b32.xlu0 %v7501, 112
    %v8129 = vpop.permute.xlu0 %8128
    %8130 = vrot.lane.b32.xlu0 %v7502, 112
    %v8131 = vpop.permute.xlu0 %8130
    %8132 = vrot.lane.b32.xlu0 %v7503, 112
    %v8133 = vpop.permute.xlu0 %8132
    %8134 = vrot.lane.b32.xlu0 %v7504, 112
    %v8135 = vpop.permute.xlu0 %8134
    %8136 = vrot.lane.b32.xlu0 %v7505, 112
    %v8137 = vpop.permute.xlu0 %8136
    %8138 = vrot.lane.b32.xlu0 %v7506, 112
    %v8139 = vpop.permute.xlu0 %8138
    %8140 = vrot.lane.b32.xlu0 %v7507, 112
    %v8141 = vpop.permute.xlu0 %8140
    %8142 = vrot.lane.b32.xlu0 %v7508, 112
    %v8143 = vpop.permute.xlu0 %8142
    %8144 = vrot.lane.b32.xlu0 %v7509, 112
    %v8145 = vpop.permute.xlu0 %8144
    %8146 = vrot.lane.b32.xlu0 %v7510, 112
    %v8147 = vpop.permute.xlu0 %8146
    %8148 = vrot.lane.b32.xlu0 %v7511, 112
    %v8149 = vpop.permute.xlu0 %8148
    %8150 = vrot.lane.b32.xlu0 %v7512, 112
    %v8151 = vpop.permute.xlu0 %8150
    %8152 = vrot.lane.b32.xlu0 %v7513, 112
    %v8153 = vpop.permute.xlu0 %8152
    %8154 = vrot.lane.b32.xlu0 %v7514, 112
    %v8155 = vpop.permute.xlu0 %8154
    %8156 = vrot.lane.b32.xlu0 %v7515, 112
    %v8157 = vpop.permute.xlu0 %8156
    %8158 = vrot.lane.b32.xlu0 %v7516, 112
    %v8159 = vpop.permute.xlu0 %8158
    %8160 = vrot.lane.b32.xlu0 %v7517, 112
    %v8161 = vpop.permute.xlu0 %8160
    %8162 = vrot.lane.b32.xlu0 %v7518, 112
    %v8163 = vpop.permute.xlu0 %8162
    %8164 = vrot.lane.b32.xlu0 %v7519, 112
    %v8165 = vpop.permute.xlu0 %8164
    %8166 = vrot.lane.b32.xlu0 %v7520, 112
    %v8167 = vpop.permute.xlu0 %8166
    %8168 = vrot.lane.b32.xlu0 %v7521, 112
    %v8169 = vpop.permute.xlu0 %8168
    %8170 = vrot.lane.b32.xlu0 %v7522, 112
    %v8171 = vpop.permute.xlu0 %8170
    %8172 = vrot.lane.b32.xlu0 %v7523, 112
    %v8173 = vpop.permute.xlu0 %8172
    %8174 = vrot.lane.b32.xlu0 %v7524, 112
    %v8175 = vpop.permute.xlu0 %8174
    %8176 = vrot.lane.b32.xlu0 %v7525, 112
    %v8177 = vpop.permute.xlu0 %8176
    %v8203 = vsel %vm5805, %v7374, %v7577
    %v8204 = vsel %vm5805, %v7375, %v7579
    %v8205 = vsel %vm5805, %v7376, %v7581
    %v8206 = vsel %vm5805, %v7377, %v7583
    %v8207 = vsel %vm5805, %v7378, %v7585
    %v8208 = vsel %vm5805, %v7379, %v7587
    %v8209 = vsel %vm5805, %v7380, %v7589
    %v8210 = vsel %vm5805, %v7381, %v7591
    %v8211 = vsel %vm5805, %v7382, %v7593
    %v8212 = vsel %vm5805, %v7383, %v7595
    %v8213 = vsel %vm5805, %v7384, %v7597
    %v8214 = vsel %vm5805, %v7385, %v7599
    %v8215 = vsel %vm5805, %v7386, %v7601
    %v8216 = vsel %vm5805, %v7387, %v7603
    %v8217 = vsel %vm5805, %v7388, %v7605
    %v8218 = vsel %vm5805, %v7389, %v7607
    %v8219 = vsel %vm5805, %v7390, %v7609
    %v8220 = vsel %vm5805, %v7391, %v7611
    %v8221 = vsel %vm5805, %v7392, %v7613
    %v8222 = vsel %vm5805, %v7393, %v7615
    %v8223 = vsel %vm5805, %v7394, %v7617
    %v8224 = vsel %vm5805, %v7395, %v7619
    %v8225 = vsel %vm5805, %v7396, %v7621
    %v8226 = vsel %vm5805, %v7397, %v7623
    %v8227 = vsel %vm5805, %v7398, %v7625
    %v8228 = vsel %vm5887, %v8203, %v7677
    %v8229 = vsel %vm5887, %v8204, %v7679
    %v8230 = vsel %vm5887, %v8205, %v7681
    %v8231 = vsel %vm5887, %v8206, %v7683
    %v8232 = vsel %vm5887, %v8207, %v7685
    %v8233 = vsel %vm5887, %v8208, %v7687
    %v8234 = vsel %vm5887, %v8209, %v7689
    %v8235 = vsel %vm5887, %v8210, %v7691
    %v8236 = vsel %vm5887, %v8211, %v7693
    %v8237 = vsel %vm5887, %v8212, %v7695
    %v8238 = vsel %vm5887, %v8213, %v7697
    %v8239 = vsel %vm5887, %v8214, %v7699
    %v8240 = vsel %vm5887, %v8215, %v7701
    %v8241 = vsel %vm5887, %v8216, %v7703
    %v8242 = vsel %vm5887, %v8217, %v7705
    %v8243 = vsel %vm5887, %v8218, %v7707
    %v8244 = vsel %vm5887, %v8219, %v7709
    %v8245 = vsel %vm5887, %v8220, %v7711
    %v8246 = vsel %vm5887, %v8221, %v7713
    %v8247 = vsel %vm5887, %v8222, %v7715
    %v8248 = vsel %vm5887, %v8223, %v7717
    %v8249 = vsel %vm5887, %v8224, %v7719
    %v8250 = vsel %vm5887, %v8225, %v7721
    %v8251 = vsel %vm5887, %v8226, %v7723
    %v8252 = vsel %vm5887, %v8227, %v7725
    %vm8253 = vcmask 392192
    %v8254 = vsel %vm8253, %v8228, %v7753
    %v8255 = vsel %vm8253, %v8229, %v7755
    %v8256 = vsel %vm8253, %v8230, %v7757
    %v8257 = vsel %vm8253, %v8231, %v7759
    %v8258 = vsel %vm8253, %v8232, %v7761
    %v8259 = vsel %vm8253, %v8233, %v7763
    %v8260 = vsel %vm8253, %v8234, %v7765
    %v8261 = vsel %vm8253, %v8235, %v7767
    %v8262 = vsel %vm8253, %v8236, %v7769
    %v8263 = vsel %vm8253, %v8237, %v7771
    %v8264 = vsel %vm8253, %v8238, %v7773
    %v8265 = vsel %vm8253, %v8239, %v7775
    %v8266 = vsel %vm8253, %v8240, %v7777
    %v8267 = vsel %vm8253, %v8241, %v7779
    %v8268 = vsel %vm8253, %v8242, %v7781
    %v8269 = vsel %vm8253, %v8243, %v7783
    %v8270 = vsel %vm8253, %v8244, %v7785
    %v8271 = vsel %vm8253, %v8245, %v7787
    %v8272 = vsel %vm8253, %v8246, %v7789
    %v8273 = vsel %vm8253, %v8247, %v7791
    %v8274 = vsel %vm8253, %v8248, %v7793
    %v8275 = vsel %vm8253, %v8249, %v7795
    %v8276 = vsel %vm8253, %v8250, %v7797
    %v8277 = vsel %vm8253, %v8251, %v7799
    %v8278 = vsel %vm8253, %v8252, %v7801
    %vm8279 = vcmask 523264
    %v8280 = vsel %vm8279, %v8254, %v7853
    %v8281 = vsel %vm8279, %v8255, %v7855
    %v8282 = vsel %vm8279, %v8256, %v7857
    %v8283 = vsel %vm8279, %v8257, %v7859
    %v8284 = vsel %vm8279, %v8258, %v7861
    %v8285 = vsel %vm8279, %v8259, %v7863
    %v8286 = vsel %vm8279, %v8260, %v7865
    %v8287 = vsel %vm8279, %v8261, %v7867
    %v8288 = vsel %vm8279, %v8262, %v7869
    %v8289 = vsel %vm8279, %v8263, %v7871
    %v8290 = vsel %vm8279, %v8264, %v7873
    %v8291 = vsel %vm8279, %v8265, %v7875
    %v8292 = vsel %vm8279, %v8266, %v7877
    %v8293 = vsel %vm8279, %v8267, %v7879
    %v8294 = vsel %vm8279, %v8268, %v7881
    %v8295 = vsel %vm8279, %v8269, %v7883
    %v8296 = vsel %vm8279, %v8270, %v7885
    %v8297 = vsel %vm8279, %v8271, %v7887
    %v8298 = vsel %vm8279, %v8272, %v7889
    %v8299 = vsel %vm8279, %v8273, %v7891
    %v8300 = vsel %vm8279, %v8274, %v7893
    %v8301 = vsel %vm8279, %v8275, %v7895
    %v8302 = vsel %vm8279, %v8276, %v7897
    %v8303 = vsel %vm8279, %v8277, %v7899
    %v8304 = vsel %vm8279, %v8278, %v7901
    %vm8305 = vcmask 654336
    %v8306 = vsel %vm8305, %v8280, %v7953
    %v8307 = vsel %vm8305, %v8281, %v7955
    %v8308 = vsel %vm8305, %v8282, %v7957
    %v8309 = vsel %vm8305, %v8283, %v7959
    %v8310 = vsel %vm8305, %v8284, %v7961
    %v8311 = vsel %vm8305, %v8285, %v7963
    %v8312 = vsel %vm8305, %v8286, %v7965
    %v8313 = vsel %vm8305, %v8287, %v7967
    %v8314 = vsel %vm8305, %v8288, %v7969
    %v8315 = vsel %vm8305, %v8289, %v7971
    %v8316 = vsel %vm8305, %v8290, %v7973
    %v8317 = vsel %vm8305, %v8291, %v7975
    %v8318 = vsel %vm8305, %v8292, %v7977
    %v8319 = vsel %vm8305, %v8293, %v7979
    %v8320 = vsel %vm8305, %v8294, %v7981
    %v8321 = vsel %vm8305, %v8295, %v7983
    %v8322 = vsel %vm8305, %v8296, %v7985
    %v8323 = vsel %vm8305, %v8297, %v7987
    %v8324 = vsel %vm8305, %v8298, %v7989
    %v8325 = vsel %vm8305, %v8299, %v7991
    %v8326 = vsel %vm8305, %v8300, %v7993
    %v8327 = vsel %vm8305, %v8301, %v7995
    %v8328 = vsel %vm8305, %v8302, %v7997
    %v8329 = vsel %vm8305, %v8303, %v7999
    %v8330 = vsel %vm8305, %v8304, %v8001
    %vm8331 = vcmask 785408
    %v8332 = vsel %vm8331, %v8306, %v8029
    %v8333 = vsel %vm8331, %v8307, %v8031
    %v8334 = vsel %vm8331, %v8308, %v8033
    %v8335 = vsel %vm8331, %v8309, %v8035
    %v8336 = vsel %vm8331, %v8310, %v8037
    %v8337 = vsel %vm8331, %v8311, %v8039
    %v8338 = vsel %vm8331, %v8312, %v8041
    %v8339 = vsel %vm8331, %v8313, %v8043
    %v8340 = vsel %vm8331, %v8314, %v8045
    %v8341 = vsel %vm8331, %v8315, %v8047
    %v8342 = vsel %vm8331, %v8316, %v8049
    %v8343 = vsel %vm8331, %v8317, %v8051
    %v8344 = vsel %vm8331, %v8318, %v8053
    %v8345 = vsel %vm8331, %v8319, %v8055
    %v8346 = vsel %vm8331, %v8320, %v8057
    %v8347 = vsel %vm8331, %v8321, %v8059
    %v8348 = vsel %vm8331, %v8322, %v8061
    %v8349 = vsel %vm8331, %v8323, %v8063
    %v8350 = vsel %vm8331, %v8324, %v8065
    %v8351 = vsel %vm8331, %v8325, %v8067
    %v8352 = vsel %vm8331, %v8326, %v8069
    %v8353 = vsel %vm8331, %v8327, %v8071
    %v8354 = vsel %vm8331, %v8328, %v8073
    %v8355 = vsel %vm8331, %v8329, %v8075
    %v8356 = vsel %vm8331, %v8330, %v8077
    %vm8357 = vcmask 916480
    %v8358 = vsel %vm8357, %v8332, %v8129
    %v8359 = vsel %vm8357, %v8333, %v8131
    %v8360 = vsel %vm8357, %v8334, %v8133
    %v8361 = vsel %vm8357, %v8335, %v8135
    %v8362 = vsel %vm8357, %v8336, %v8137
    %v8363 = vsel %vm8357, %v8337, %v8139
    %v8364 = vsel %vm8357, %v8338, %v8141
    %v8365 = vsel %vm8357, %v8339, %v8143
    %v8366 = vsel %vm8357, %v8340, %v8145
    %v8367 = vsel %vm8357, %v8341, %v8147
    %v8368 = vsel %vm8357, %v8342, %v8149
    %v8369 = vsel %vm8357, %v8343, %v8151
    %v8370 = vsel %vm8357, %v8344, %v8153
    %v8371 = vsel %vm8357, %v8345, %v8155
    %v8372 = vsel %vm8357, %v8346, %v8157
    %v8373 = vsel %vm8357, %v8347, %v8159
    %v8374 = vsel %vm8357, %v8348, %v8161
    %v8375 = vsel %vm8357, %v8349, %v8163
    %v8376 = vsel %vm8357, %v8350, %v8165
    %v8377 = vsel %vm8357, %v8351, %v8167
    %v8378 = vsel %vm8357, %v8352, %v8169
    %v8379 = vsel %vm8357, %v8353, %v8171
    %v8380 = vsel %vm8357, %v8354, %v8173
    %v8381 = vsel %vm8357, %v8355, %v8175
    %v8382 = vsel %vm8357, %v8356, %v8177
    %v8383 = vpack.c.bf16 %v8359, %v8358
    %v8384 = vpack.c.bf16 %v7527, %v7526
    %v8385 = vpack.c.bf16 %v8361, %v8360
    %v8386 = vpack.c.bf16 %v7529, %v7528
    %v8387 = vpack.c.bf16 %v8363, %v8362
    %v8388 = vpack.c.bf16 %v7531, %v7530
    %v8389 = vpack.c.bf16 %v8365, %v8364
    %v8390 = vpack.c.bf16 %v7533, %v7532
    %v8391 = vpack.c.bf16 %v8367, %v8366
    %v8392 = vpack.c.bf16 %v7535, %v7534
    %v8393 = vpack.c.bf16 %v8369, %v8368
    %v8394 = vpack.c.bf16 %v7537, %v7536
    %v8395 = vpack.c.bf16 %v8371, %v8370
    %v8396 = vpack.c.bf16 %v7539, %v7538
    %v8397 = vpack.c.bf16 %v8373, %v8372
    %v8398 = vpack.c.bf16 %v7541, %v7540
    %v8399 = vpack.c.bf16 %v8375, %v8374
    %v8400 = vpack.c.bf16 %v7543, %v7542
    %v8401 = vpack.c.bf16 %v8377, %v8376
    %v8402 = vpack.c.bf16 %v7545, %v7544
    %v8403 = vpack.c.bf16 %v8379, %v8378
    %v8404 = vpack.c.bf16 %v7547, %v7546
    %v8405 = vpack.c.bf16 %v8381, %v8380
    %v8406 = vpack.c.bf16 %v7549, %v7548
    %v8407 = vpack.c.bf16 %v8382, %v8382
    %v8408 = vpack.c.bf16 %v7550, %v7550
    %v8409 = vld [vmem:[%s2] sm:$0xf]
    %v8410 = vld [vmem:[%s2 + $0x4] sm:$0xf]
    %v8411 = vld [vmem:[%s2 + $0x8] sm:$0xf]
    %v8412 = vld [vmem:[%s2 + $0xc] sm:$0xf]
    %v8413 = vld [vmem:[%s2 + $0x10] sm:$0xf]
    %v8414 = vld [vmem:[%s2 + $0x14] sm:$0xf]
    %v8415 = vld [vmem:[%s2 + $0x18] sm:$0xf]
    %v8416 = vld [vmem:[%s2 + $0x1c] sm:$0xf]
    %v8417 = vld [vmem:[%s2 + $0x20] sm:$0xf]
    %v8418 = vld [vmem:[%s2 + $0x24] sm:$0xf]
    %v8419 = vld [vmem:[%s2 + $0x28] sm:$0xf]
    %v8420 = vld [vmem:[%s2 + $0x2c] sm:$0xf]
    %v8421 = vld [vmem:[%s2 + $0x30] sm:$0xf]
    %v8422 = vld [vmem:[%s2 + $0x34] sm:$0xf]
    %v8423 = vld [vmem:[%s2 + $0x38] sm:$0xf]
    %v8424 = vld [vmem:[%s2 + $0x3c] sm:$0xf]
    %v8425 = vld [vmem:[%s2 + $0x40] sm:$0xf]
    %v8426 = vld [vmem:[%s2 + $0x44] sm:$0xf]
    %v8445 = vunpack.c.l.b16 %v8409
    %v8446 = vunpack.c.l.b16 %v8410
    %v8447 = vunpack.c.l.b16 %v8411
    %v8448 = vunpack.c.l.b16 %v8412
    %v8449 = vunpack.c.l.b16 %v8413
    %v8450 = vunpack.c.l.b16 %v8414
    %v8451 = vunpack.c.l.b16 %v8415
    %v8452 = vunpack.c.l.b16 %v8416
    %v8453 = vunpack.c.l.b16 %v8417
    %v8454 = vunpack.c.l.b16 %v8418
    %v8455 = vunpack.c.l.b16 %v8419
    %v8456 = vunpack.c.l.b16 %v8420
    %v8457 = vunpack.c.l.b16 %v8421
    %v8458 = vunpack.c.l.b16 %v8422
    %v8459 = vunpack.c.l.b16 %v8423
    %v8460 = vunpack.c.l.b16 %v8424
    %v8461 = vunpack.c.l.b16 %v8425
    %v8462 = vunpack.c.l.b16 %v8426
    %v8463 = vpack.c.b16 %v8446, %v8445
    %v8464 = vpack.c.b16 %v8448, %v8447
    %v8465 = vpack.c.b16 %v8450, %v8449
    %v8466 = vpack.c.b16 %v8452, %v8451
    %v8467 = vpack.c.b16 %v8454, %v8453
    %v8468 = vpack.c.b16 %v8456, %v8455
    %v8469 = vpack.c.b16 %v8458, %v8457
    %v8470 = vpack.c.b16 %v8460, %v8459
    %v8471 = vpack.c.b16 %v8462, %v8461
    %v8482 = vsel %vm5805, %v8384, 0
    %v8485 = vsel %vm5805, %v8386, 0
    %v8488 = vsel %vm5805, %v8388, 0
    %v8491 = vsel %vm5805, %v8390, 0
    %v8494 = vsel %vm5805, %v8392, 0
    %v8497 = vsel %vm5805, %v8394, 0
    %v8500 = vsel %vm5805, %v8396, 0
    %v8503 = vsel %vm5805, %v8398, 0
    %v8506 = vsel %vm5805, %v8400, 0
    %v8509 = vsel %vm5805, %v8402, 0
    %v8512 = vsel %vm5805, %v8404, 0
    %v8515 = vsel %vm5805, %v8406, 0
    %v8518 = vsel %vm5805, %v8408, 0
    %8520 = vmatpush.bf16.msra.mxu0 %v8470
    %8521 = vmatpush.bf16.msra.mxu0 %v8469
    %8522 = vmatpush.bf16.msra.mxu0 %v8468
    %8523 = vmatpush.bf16.msra.mxu0 %v8467
    %8524 = vmatpush.bf16.msra.mxu0 %v8466
    %8525 = vmatpush.bf16.msra.mxu0 %v8465
    %8526 = vmatpush.bf16.msra.mxu0 %v8464
    %8527 = vmatpush.bf16.msra.mxu0 %v8463
    %8528 = vmatmul.bf16.gmra.mxu0 %v8383
    %v8529 = vpop.f32.mrf.mxu0
    %v8530 = vadd.f32 0.0, %v8529
    %v8531 = vpop.f32.mrf.mxu0
    %v8532 = vadd.f32 0.0, %v8531
    %8533 = vmatmul.bf16.gmra.mxu0 %v8385
    %v8534 = vpop.f32.mrf.mxu0
    %v8535 = vadd.f32 0.0, %v8534
    %v8536 = vpop.f32.mrf.mxu0
    %v8537 = vadd.f32 0.0, %v8536
    %8538 = vmatmul.bf16.gmra.mxu0 %v8387
    %v8539 = vpop.f32.mrf.mxu0
    %v8540 = vadd.f32 0.0, %v8539
    %v8541 = vpop.f32.mrf.mxu0
    %v8542 = vadd.f32 0.0, %v8541
    %8543 = vmatmul.bf16.gmra.mxu0 %v8389
    %v8544 = vpop.f32.mrf.mxu0
    %v8545 = vadd.f32 0.0, %v8544
    %v8546 = vpop.f32.mrf.mxu0
    %v8547 = vadd.f32 0.0, %v8546
    %8548 = vmatmul.bf16.gmra.mxu0 %v8391
    %v8549 = vpop.f32.mrf.mxu0
    %v8550 = vadd.f32 0.0, %v8549
    %v8551 = vpop.f32.mrf.mxu0
    %v8552 = vadd.f32 0.0, %v8551
    %8553 = vmatmul.bf16.gmra.mxu0 %v8393
    %v8554 = vpop.f32.mrf.mxu0
    %v8555 = vadd.f32 0.0, %v8554
    %v8556 = vpop.f32.mrf.mxu0
    %v8557 = vadd.f32 0.0, %v8556
    %8558 = vmatmul.bf16.gmra.mxu0 %v8395
    %v8559 = vpop.f32.mrf.mxu0
    %v8560 = vadd.f32 0.0, %v8559
    %v8561 = vpop.f32.mrf.mxu0
    %v8562 = vadd.f32 0.0, %v8561
    %8563 = vmatmul.bf16.gmra.mxu0 %v8397
    %v8564 = vpop.f32.mrf.mxu0
    %v8565 = vadd.f32 0.0, %v8564
    %v8566 = vpop.f32.mrf.mxu0
    %v8567 = vadd.f32 0.0, %v8566
    %8568 = vmatmul.bf16.gmra.mxu0 %v8399
    %v8569 = vpop.f32.mrf.mxu0
    %v8570 = vadd.f32 0.0, %v8569
    %v8571 = vpop.f32.mrf.mxu0
    %v8572 = vadd.f32 0.0, %v8571
    %8573 = vmatmul.bf16.gmra.mxu0 %v8401
    %v8574 = vpop.f32.mrf.mxu0
    %v8575 = vadd.f32 0.0, %v8574
    %v8576 = vpop.f32.mrf.mxu0
    %v8577 = vadd.f32 0.0, %v8576
    %8578 = vmatmul.bf16.gmra.mxu0 %v8403
    %v8579 = vpop.f32.mrf.mxu0
    %v8580 = vadd.f32 0.0, %v8579
    %v8581 = vpop.f32.mrf.mxu0
    %v8582 = vadd.f32 0.0, %v8581
    %8583 = vmatmul.bf16.gmra.mxu0 %v8405
    %v8584 = vpop.f32.mrf.mxu0
    %v8585 = vadd.f32 0.0, %v8584
    %v8586 = vpop.f32.mrf.mxu0
    %v8587 = vadd.f32 0.0, %v8586
    %8588 = vmatmul.bf16.gmra.mxu0 %v8407
    %v8589 = vpop.f32.mrf.mxu0
    %v8590 = vadd.f32 0.0, %v8589
    %v8591 = vpop.f32.mrf.mxu0
    %8592 = vdwg.mxu0
    %8593 = vmatpush.bf16.msra.mxu0 0
    %8594 = vmatpush.bf16.msra.mxu0 0
    %8595 = vmatpush.bf16.msra.mxu0 0
    %8596 = vmatpush.bf16.msra.mxu0 0
    %8597 = vmatpush.bf16.msra.mxu0 0
    %8598 = vmatpush.bf16.msra.mxu0 0
    %8599 = vmatpush.bf16.msra.mxu0 0
    %8600 = vmatpush.bf16.msra.mxu0 %v8471
    %8601 = vmatmul.bf16.gmra.mxu0 %v8482
    %v8602 = vpop.f32.mrf.mxu0
    %v8603 = vadd.f32 %v8530, %v8602
    %v8604 = vpop.f32.mrf.mxu0
    %v8605 = vadd.f32 %v8532, %v8604
    %8606 = vmatmul.bf16.gmra.mxu0 %v8485
    %v8607 = vpop.f32.mrf.mxu0
    %v8608 = vadd.f32 %v8535, %v8607
    %v8609 = vpop.f32.mrf.mxu0
    %v8610 = vadd.f32 %v8537, %v8609
    %8611 = vmatmul.bf16.gmra.mxu0 %v8488
    %v8612 = vpop.f32.mrf.mxu0
    %v8613 = vadd.f32 %v8540, %v8612
    %v8614 = vpop.f32.mrf.mxu0
    %v8615 = vadd.f32 %v8542, %v8614
    %8616 = vmatmul.bf16.gmra.mxu0 %v8491
    %v8617 = vpop.f32.mrf.mxu0
    %v8618 = vadd.f32 %v8545, %v8617
    %v8619 = vpop.f32.mrf.mxu0
    %v8620 = vadd.f32 %v8547, %v8619
    %8621 = vmatmul.bf16.gmra.mxu0 %v8494
    %v8622 = vpop.f32.mrf.mxu0
    %v8623 = vadd.f32 %v8550, %v8622
    %v8624 = vpop.f32.mrf.mxu0
    %v8625 = vadd.f32 %v8552, %v8624
    %8626 = vmatmul.bf16.gmra.mxu0 %v8497
    %v8627 = vpop.f32.mrf.mxu0
    %v8628 = vadd.f32 %v8555, %v8627
    %v8629 = vpop.f32.mrf.mxu0
    %v8630 = vadd.f32 %v8557, %v8629
    %8631 = vmatmul.bf16.gmra.mxu0 %v8500
    %v8632 = vpop.f32.mrf.mxu0
    %v8633 = vadd.f32 %v8560, %v8632
    %v8634 = vpop.f32.mrf.mxu0
    %v8635 = vadd.f32 %v8562, %v8634
    %8636 = vmatmul.bf16.gmra.mxu0 %v8503
    %v8637 = vpop.f32.mrf.mxu0
    %v8638 = vadd.f32 %v8565, %v8637
    %v8639 = vpop.f32.mrf.mxu0
    %v8640 = vadd.f32 %v8567, %v8639
    %8641 = vmatmul.bf16.gmra.mxu0 %v8506
    %v8642 = vpop.f32.mrf.mxu0
    %v8643 = vadd.f32 %v8570, %v8642
    %v8644 = vpop.f32.mrf.mxu0
    %v8645 = vadd.f32 %v8572, %v8644
    %8646 = vmatmul.bf16.gmra.mxu0 %v8509
    %v8647 = vpop.f32.mrf.mxu0
    %v8648 = vadd.f32 %v8575, %v8647
    %v8649 = vpop.f32.mrf.mxu0
    %v8650 = vadd.f32 %v8577, %v8649
    %8651 = vmatmul.bf16.gmra.mxu0 %v8512
    %v8652 = vpop.f32.mrf.mxu0
    %v8653 = vadd.f32 %v8580, %v8652
    %v8654 = vpop.f32.mrf.mxu0
    %v8655 = vadd.f32 %v8582, %v8654
    %8656 = vmatmul.bf16.gmra.mxu0 %v8515
    %v8657 = vpop.f32.mrf.mxu0
    %v8658 = vadd.f32 %v8585, %v8657
    %v8659 = vpop.f32.mrf.mxu0
    %v8660 = vadd.f32 %v8587, %v8659
    %8661 = vmatmul.bf16.gmra.mxu0 %v8518
    %v8662 = vpop.f32.mrf.mxu0
    %v8663 = vadd.f32 %v8590, %v8662
    %v8664 = vpop.f32.mrf.mxu0
    %8665 = vdwg.mxu0
    %v8666 = vrcp.pop 100.0
    %v8667 = vmul.f32 100.0, %v8666
    %v8668 = vsub.f32 1.0, %v8667
    %v8669 = vmul.f32 %v8666, %v8668
    %v8670 = vadd.f32 %v8666, %v8669
    %vm8671 = vweird.f32 %v8666
    %v8672 = vsel %vm8671, %v8666, %v8670
    %v8673 = vmul.f32 %v4171, %v8672
    %v8674 = vmul.f32 %v4172, %v8672
    %v8675 = vmul.f32 %v4173, %v8672
    %v8676 = vmul.f32 %v4174, %v8672
    %v8677 = vmul.f32 %v4175, %v8672
    %v8678 = vmul.f32 %v4176, %v8672
    %v8679 = vmul.f32 %v4177, %v8672
    %v8680 = vmul.f32 %v4178, %v8672
    %v8681 = vmul.f32 %v4179, %v8672
    %v8682 = vmul.f32 %v4180, %v8672
    %v8683 = vmul.f32 %v4181, %v8672
    %v8684 = vmul.f32 %v4182, %v8672
    %v8685 = vmul.f32 %v4183, %v8672
    %v8686 = vmul.f32 %v4184, %v8672
    %v8687 = vmul.f32 %v4185, %v8672
    %v8688 = vmul.f32 %v4186, %v8672
    %v8689 = vmul.f32 %v4187, %v8672
    %v8690 = vmul.f32 %v4188, %v8672
    %v8691 = vmul.f32 %v4189, %v8672
    %v8692 = vmul.f32 %v4190, %v8672
    %v8693 = vmul.f32 %v4191, %v8672
    %v8694 = vmul.f32 %v4192, %v8672
    %v8695 = vmul.f32 %v4193, %v8672
    %v8696 = vmul.f32 %v4194, %v8672
    %v8697 = vmul.f32 %v4195, %v8672
    %v8698 = vfloor.f32 %v8673
    %v8699 = vfloor.f32 %v8674
    %v8700 = vfloor.f32 %v8675
    %v8701 = vfloor.f32 %v8676
    %v8702 = vfloor.f32 %v8677
    %v8703 = vfloor.f32 %v8678
    %v8704 = vfloor.f32 %v8679
    %v8705 = vfloor.f32 %v8680
    %v8706 = vfloor.f32 %v8681
    %v8707 = vfloor.f32 %v8682
    %v8708 = vfloor.f32 %v8683
    %v8709 = vfloor.f32 %v8684
    %v8710 = vfloor.f32 %v8685
    %v8711 = vfloor.f32 %v8686
    %v8712 = vfloor.f32 %v8687
    %v8713 = vfloor.f32 %v8688
    %v8714 = vfloor.f32 %v8689
    %v8715 = vfloor.f32 %v8690
    %v8716 = vfloor.f32 %v8691
    %v8717 = vfloor.f32 %v8692
    %v8718 = vfloor.f32 %v8693
    %v8719 = vfloor.f32 %v8694
    %v8720 = vfloor.f32 %v8695
    %v8721 = vfloor.f32 %v8696
    %v8722 = vfloor.f32 %v8697
    %v8723 = vmul.f32 %v8698, 100.0
    %v8724 = vmul.f32 %v8699, 100.0
    %v8725 = vmul.f32 %v8700, 100.0
    %v8726 = vmul.f32 %v8701, 100.0
    %v8727 = vmul.f32 %v8702, 100.0
    %v8728 = vmul.f32 %v8703, 100.0
    %v8729 = vmul.f32 %v8704, 100.0
    %v8730 = vmul.f32 %v8705, 100.0
    %v8731 = vmul.f32 %v8706, 100.0
    %v8732 = vmul.f32 %v8707, 100.0
    %v8733 = vmul.f32 %v8708, 100.0
    %v8734 = vmul.f32 %v8709, 100.0
    %v8735 = vmul.f32 %v8710, 100.0
    %v8736 = vmul.f32 %v8711, 100.0
    %v8737 = vmul.f32 %v8712, 100.0
    %v8738 = vmul.f32 %v8713, 100.0
    %v8739 = vmul.f32 %v8714, 100.0
    %v8740 = vmul.f32 %v8715, 100.0
    %v8741 = vmul.f32 %v8716, 100.0
    %v8742 = vmul.f32 %v8717, 100.0
    %v8743 = vmul.f32 %v8718, 100.0
    %v8744 = vmul.f32 %v8719, 100.0
    %v8745 = vmul.f32 %v8720, 100.0
    %v8746 = vmul.f32 %v8721, 100.0
    %v8747 = vmul.f32 %v8722, 100.0
    %v8748 = vsub.f32 %v4171, %v8723
    %v8749 = vsub.f32 %v4172, %v8724
    %v8750 = vsub.f32 %v4173, %v8725
    %v8751 = vsub.f32 %v4174, %v8726
    %v8752 = vsub.f32 %v4175, %v8727
    %v8753 = vsub.f32 %v4176, %v8728
    %v8754 = vsub.f32 %v4177, %v8729
    %v8755 = vsub.f32 %v4178, %v8730
    %v8756 = vsub.f32 %v4179, %v8731
    %v8757 = vsub.f32 %v4180, %v8732
    %v8758 = vsub.f32 %v4181, %v8733
    %v8759 = vsub.f32 %v4182, %v8734
    %v8760 = vsub.f32 %v4183, %v8735
    %v8761 = vsub.f32 %v4184, %v8736
    %v8762 = vsub.f32 %v4185, %v8737
    %v8763 = vsub.f32 %v4186, %v8738
    %v8764 = vsub.f32 %v4187, %v8739
    %v8765 = vsub.f32 %v4188, %v8740
    %v8766 = vsub.f32 %v4189, %v8741
    %v8767 = vsub.f32 %v4190, %v8742
    %v8768 = vsub.f32 %v4191, %v8743
    %v8769 = vsub.f32 %v4192, %v8744
    %v8770 = vsub.f32 %v4193, %v8745
    %v8771 = vsub.f32 %v4194, %v8746
    %v8772 = vsub.f32 %v4195, %v8747
    %v8773 = vrcp.pop 10.0
    %v8774 = vmul.f32 10.0, %v8773
    %v8775 = vsub.f32 1.0, %v8774
    %v8776 = vmul.f32 %v8773, %v8775
    %v8777 = vadd.f32 %v8773, %v8776
    %vm8778 = vweird.f32 %v8773
    %v8779 = vsel %vm8778, %v8773, %v8777
    %v8780 = vmul.f32 %v8748, %v8779
    %v8781 = vmul.f32 %v8749, %v8779
    %v8782 = vmul.f32 %v8750, %v8779
    %v8783 = vmul.f32 %v8751, %v8779
    %v8784 = vmul.f32 %v8752, %v8779
    %v8785 = vmul.f32 %v8753, %v8779
    %v8786 = vmul.f32 %v8754, %v8779
    %v8787 = vmul.f32 %v8755, %v8779
    %v8788 = vmul.f32 %v8756, %v8779
    %v8789 = vmul.f32 %v8757, %v8779
    %v8790 = vmul.f32 %v8758, %v8779
    %v8791 = vmul.f32 %v8759, %v8779
    %v8792 = vmul.f32 %v8760, %v8779
    %v8793 = vmul.f32 %v8761, %v8779
    %v8794 = vmul.f32 %v8762, %v8779
    %v8795 = vmul.f32 %v8763, %v8779
    %v8796 = vmul.f32 %v8764, %v8779
    %v8797 = vmul.f32 %v8765, %v8779
    %v8798 = vmul.f32 %v8766, %v8779
    %v8799 = vmul.f32 %v8767, %v8779
    %v8800 = vmul.f32 %v8768, %v8779
    %v8801 = vmul.f32 %v8769, %v8779
    %v8802 = vmul.f32 %v8770, %v8779
    %v8803 = vmul.f32 %v8771, %v8779
    %v8804 = vmul.f32 %v8772, %v8779
    %v8805 = vfloor.f32 %v8780
    %v8806 = vfloor.f32 %v8781
    %v8807 = vfloor.f32 %v8782
    %v8808 = vfloor.f32 %v8783
    %v8809 = vfloor.f32 %v8784
    %v8810 = vfloor.f32 %v8785
    %v8811 = vfloor.f32 %v8786
    %v8812 = vfloor.f32 %v8787
    %v8813 = vfloor.f32 %v8788
    %v8814 = vfloor.f32 %v8789
    %v8815 = vfloor.f32 %v8790
    %v8816 = vfloor.f32 %v8791
    %v8817 = vfloor.f32 %v8792
    %v8818 = vfloor.f32 %v8793
    %v8819 = vfloor.f32 %v8794
    %v8820 = vfloor.f32 %v8795
    %v8821 = vfloor.f32 %v8796
    %v8822 = vfloor.f32 %v8797
    %v8823 = vfloor.f32 %v8798
    %v8824 = vfloor.f32 %v8799
    %v8825 = vfloor.f32 %v8800
    %v8826 = vfloor.f32 %v8801
    %v8827 = vfloor.f32 %v8802
    %v8828 = vfloor.f32 %v8803
    %v8829 = vfloor.f32 %v8804
    %v8830 = vmul.f32 %v8805, 10.0
    %v8831 = vmul.f32 %v8806, 10.0
    %v8832 = vmul.f32 %v8807, 10.0
    %v8833 = vmul.f32 %v8808, 10.0
    %v8834 = vmul.f32 %v8809, 10.0
    %v8835 = vmul.f32 %v8810, 10.0
    %v8836 = vmul.f32 %v8811, 10.0
    %v8837 = vmul.f32 %v8812, 10.0
    %v8838 = vmul.f32 %v8813, 10.0
    %v8839 = vmul.f32 %v8814, 10.0
    %v8840 = vmul.f32 %v8815, 10.0
    %v8841 = vmul.f32 %v8816, 10.0
    %v8842 = vmul.f32 %v8817, 10.0
    %v8843 = vmul.f32 %v8818, 10.0
    %v8844 = vmul.f32 %v8819, 10.0
    %v8845 = vmul.f32 %v8820, 10.0
    %v8846 = vmul.f32 %v8821, 10.0
    %v8847 = vmul.f32 %v8822, 10.0
    %v8848 = vmul.f32 %v8823, 10.0
    %v8849 = vmul.f32 %v8824, 10.0
    %v8850 = vmul.f32 %v8825, 10.0
    %v8851 = vmul.f32 %v8826, 10.0
    %v8852 = vmul.f32 %v8827, 10.0
    %v8853 = vmul.f32 %v8828, 10.0
    %v8854 = vmul.f32 %v8829, 10.0
    %v8855 = vsub.f32 %v8748, %v8830
    %v8856 = vsub.f32 %v8749, %v8831
    %v8857 = vsub.f32 %v8750, %v8832
    %v8858 = vsub.f32 %v8751, %v8833
    %v8859 = vsub.f32 %v8752, %v8834
    %v8860 = vsub.f32 %v8753, %v8835
    %v8861 = vsub.f32 %v8754, %v8836
    %v8862 = vsub.f32 %v8755, %v8837
    %v8863 = vsub.f32 %v8756, %v8838
    %v8864 = vsub.f32 %v8757, %v8839
    %v8865 = vsub.f32 %v8758, %v8840
    %v8866 = vsub.f32 %v8759, %v8841
    %v8867 = vsub.f32 %v8760, %v8842
    %v8868 = vsub.f32 %v8761, %v8843
    %v8869 = vsub.f32 %v8762, %v8844
    %v8870 = vsub.f32 %v8763, %v8845
    %v8871 = vsub.f32 %v8764, %v8846
    %v8872 = vsub.f32 %v8765, %v8847
    %v8873 = vsub.f32 %v8766, %v8848
    %v8874 = vsub.f32 %v8767, %v8849
    %v8875 = vsub.f32 %v8768, %v8850
    %v8876 = vsub.f32 %v8769, %v8851
    %v8877 = vsub.f32 %v8770, %v8852
    %v8878 = vsub.f32 %v8771, %v8853
    %v8879 = vsub.f32 %v8772, %v8854
    %vm8880 = vcmp.lt.f32.partialorder %v8805, 8.0
    %vm8881 = vcmp.lt.f32.partialorder %v8806, 8.0
    %vm8882 = vcmp.lt.f32.partialorder %v8807, 8.0
    %vm8883 = vcmp.lt.f32.partialorder %v8808, 8.0
    %vm8884 = vcmp.lt.f32.partialorder %v8809, 8.0
    %vm8885 = vcmp.lt.f32.partialorder %v8810, 8.0
    %vm8886 = vcmp.lt.f32.partialorder %v8811, 8.0
    %vm8887 = vcmp.lt.f32.partialorder %v8812, 8.0
    %vm8888 = vcmp.lt.f32.partialorder %v8813, 8.0
    %vm8889 = vcmp.lt.f32.partialorder %v8814, 8.0
    %vm8890 = vcmp.lt.f32.partialorder %v8815, 8.0
    %vm8891 = vcmp.lt.f32.partialorder %v8816, 8.0
    %vm8892 = vcmp.lt.f32.partialorder %v8817, 8.0
    %vm8893 = vcmp.lt.f32.partialorder %v8818, 8.0
    %vm8894 = vcmp.lt.f32.partialorder %v8819, 8.0
    %vm8895 = vcmp.lt.f32.partialorder %v8820, 8.0
    %vm8896 = vcmp.lt.f32.partialorder %v8821, 8.0
    %vm8897 = vcmp.lt.f32.partialorder %v8822, 8.0
    %vm8898 = vcmp.lt.f32.partialorder %v8823, 8.0
    %vm8899 = vcmp.lt.f32.partialorder %v8824, 8.0
    %vm8900 = vcmp.lt.f32.partialorder %v8825, 8.0
    %vm8901 = vcmp.lt.f32.partialorder %v8826, 8.0
    %vm8902 = vcmp.lt.f32.partialorder %v8827, 8.0
    %vm8903 = vcmp.lt.f32.partialorder %v8828, 8.0
    %vm8904 = vcmp.lt.f32.partialorder %v8829, 8.0
    %vm8905 = vcmp.lt.f32.partialorder %v8855, 8.0
    %vm8906 = vcmp.lt.f32.partialorder %v8856, 8.0
    %vm8907 = vcmp.lt.f32.partialorder %v8857, 8.0
    %vm8908 = vcmp.lt.f32.partialorder %v8858, 8.0
    %vm8909 = vcmp.lt.f32.partialorder %v8859, 8.0
    %vm8910 = vcmp.lt.f32.partialorder %v8860, 8.0
    %vm8911 = vcmp.lt.f32.partialorder %v8861, 8.0
    %vm8912 = vcmp.lt.f32.partialorder %v8862, 8.0
    %vm8913 = vcmp.lt.f32.partialorder %v8863, 8.0
    %vm8914 = vcmp.lt.f32.partialorder %v8864, 8.0
    %vm8915 = vcmp.lt.f32.partialorder %v8865, 8.0
    %vm8916 = vcmp.lt.f32.partialorder %v8866, 8.0
    %vm8917 = vcmp.lt.f32.partialorder %v8867, 8.0
    %vm8918 = vcmp.lt.f32.partialorder %v8868, 8.0
    %vm8919 = vcmp.lt.f32.partialorder %v8869, 8.0
    %vm8920 = vcmp.lt.f32.partialorder %v8870, 8.0
    %vm8921 = vcmp.lt.f32.partialorder %v8871, 8.0
    %vm8922 = vcmp.lt.f32.partialorder %v8872, 8.0
    %vm8923 = vcmp.lt.f32.partialorder %v8873, 8.0
    %vm8924 = vcmp.lt.f32.partialorder %v8874, 8.0
    %vm8925 = vcmp.lt.f32.partialorder %v8875, 8.0
    %vm8926 = vcmp.lt.f32.partialorder %v8876, 8.0
    %vm8927 = vcmp.lt.f32.partialorder %v8877, 8.0
    %vm8928 = vcmp.lt.f32.partialorder %v8878, 8.0
    %vm8929 = vcmp.lt.f32.partialorder %v8879, 8.0
    %vm8930 = vmand %vm8880, %vm8905
    %vm8931 = vmand %vm8881, %vm8906
    %vm8932 = vmand %vm8882, %vm8907
    %vm8933 = vmand %vm8883, %vm8908
    %vm8934 = vmand %vm8884, %vm8909
    %vm8935 = vmand %vm8885, %vm8910
    %vm8936 = vmand %vm8886, %vm8911
    %vm8937 = vmand %vm8887, %vm8912
    %vm8938 = vmand %vm8888, %vm8913
    %vm8939 = vmand %vm8889, %vm8914
    %vm8940 = vmand %vm8890, %vm8915
    %vm8941 = vmand %vm8891, %vm8916
    %vm8942 = vmand %vm8892, %vm8917
    %vm8943 = vmand %vm8893, %vm8918
    %vm8944 = vmand %vm8894, %vm8919
    %vm8945 = vmand %vm8895, %vm8920
    %vm8946 = vmand %vm8896, %vm8921
    %vm8947 = vmand %vm8897, %vm8922
    %vm8948 = vmand %vm8898, %vm8923
    %vm8949 = vmand %vm8899, %vm8924
    %vm8950 = vmand %vm8900, %vm8925
    %vm8951 = vmand %vm8901, %vm8926
    %vm8952 = vmand %vm8902, %vm8927
    %vm8953 = vmand %vm8903, %vm8928
    %vm8954 = vmand %vm8904, %vm8929
    %v8955 = vsel %vm8930, 1, 0
    %v8956 = vsel %vm8931, 1, 0
    %v8957 = vsel %vm8932, 1, 0
    %v8958 = vsel %vm8933, 1, 0
    %v8959 = vsel %vm8934, 1, 0
    %v8960 = vsel %vm8935, 1, 0
    %v8961 = vsel %vm8936, 1, 0
    %v8962 = vsel %vm8937, 1, 0
    %v8963 = vsel %vm8938, 1, 0
    %v8964 = vsel %vm8939, 1, 0
    %v8965 = vsel %vm8940, 1, 0
    %v8966 = vsel %vm8941, 1, 0
    %v8967 = vsel %vm8942, 1, 0
    %v8968 = vsel %vm8943, 1, 0
    %v8969 = vsel %vm8944, 1, 0
    %v8970 = vsel %vm8945, 1, 0
    %v8971 = vsel %vm8946, 1, 0
    %v8972 = vsel %vm8947, 1, 0
    %v8973 = vsel %vm8948, 1, 0
    %v8974 = vsel %vm8949, 1, 0
    %v8975 = vsel %vm8950, 1, 0
    %v8976 = vsel %vm8951, 1, 0
    %v8977 = vsel %vm8952, 1, 0
    %v8978 = vsel %vm8953, 1, 0
    %v8979 = vsel %vm8954, 1, 0
    %v8980 = vcvt.s32.f32 %v8955
    %v8981 = vcvt.s32.f32 %v8956
    %v8982 = vcvt.s32.f32 %v8957
    %v8983 = vcvt.s32.f32 %v8958
    %v8984 = vcvt.s32.f32 %v8959
    %v8985 = vcvt.s32.f32 %v8960
    %v8986 = vcvt.s32.f32 %v8961
    %v8987 = vcvt.s32.f32 %v8962
    %v8988 = vcvt.s32.f32 %v8963
    %v8989 = vcvt.s32.f32 %v8964
    %v8990 = vcvt.s32.f32 %v8965
    %v8991 = vcvt.s32.f32 %v8966
    %v8992 = vcvt.s32.f32 %v8967
    %v8993 = vcvt.s32.f32 %v8968
    %v8994 = vcvt.s32.f32 %v8969
    %v8995 = vcvt.s32.f32 %v8970
    %v8996 = vcvt.s32.f32 %v8971
    %v8997 = vcvt.s32.f32 %v8972
    %v8998 = vcvt.s32.f32 %v8973
    %v8999 = vcvt.s32.f32 %v8974
    %v9000 = vcvt.s32.f32 %v8975
    %v9001 = vcvt.s32.f32 %v8976
    %v9002 = vcvt.s32.f32 %v8977
    %v9003 = vcvt.s32.f32 %v8978
    %v9004 = vcvt.s32.f32 %v8979
    %v9005 = vmul.f32 %v8603, %v8980
    %v9006 = vmul.f32 %v8605, %v8981
    %v9007 = vmul.f32 %v8608, %v8982
    %v9008 = vmul.f32 %v8610, %v8983
    %v9009 = vmul.f32 %v8613, %v8984
    %v9010 = vmul.f32 %v8615, %v8985
    %v9011 = vmul.f32 %v8618, %v8986
    %v9012 = vmul.f32 %v8620, %v8987
    %v9013 = vmul.f32 %v8623, %v8988
    %v9014 = vmul.f32 %v8625, %v8989
    %v9015 = vmul.f32 %v8628, %v8990
    %v9016 = vmul.f32 %v8630, %v8991
    %v9017 = vmul.f32 %v8633, %v8992
    %v9018 = vmul.f32 %v8635, %v8993
    %v9019 = vmul.f32 %v8638, %v8994
    %v9020 = vmul.f32 %v8640, %v8995
    %v9021 = vmul.f32 %v8643, %v8996
    %v9022 = vmul.f32 %v8645, %v8997
    %v9023 = vmul.f32 %v8648, %v8998
    %v9024 = vmul.f32 %v8650, %v8999
    %v9025 = vmul.f32 %v8653, %v9000
    %v9026 = vmul.f32 %v8655, %v9001
    %v9027 = vmul.f32 %v8658, %v9002
    %v9028 = vmul.f32 %v8660, %v9003
    %v9029 = vmul.f32 %v8663, %v9004
    %v9030 = vmul.f32 %v9005, %v8603
    %v9031 = vmul.f32 %v9006, %v8605
    %v9032 = vmul.f32 %v9007, %v8608
    %v9033 = vmul.f32 %v9008, %v8610
    %v9034 = vmul.f32 %v9009, %v8613
    %v9035 = vmul.f32 %v9010, %v8615
    %v9036 = vmul.f32 %v9011, %v8618
    %v9037 = vmul.f32 %v9012, %v8620
    %v9038 = vmul.f32 %v9013, %v8623
    %v9039 = vmul.f32 %v9014, %v8625
    %v9040 = vmul.f32 %v9015, %v8628
    %v9041 = vmul.f32 %v9016, %v8630
    %v9042 = vmul.f32 %v9017, %v8633
    %v9043 = vmul.f32 %v9018, %v8635
    %v9044 = vmul.f32 %v9019, %v8638
    %v9045 = vmul.f32 %v9020, %v8640
    %v9046 = vmul.f32 %v9021, %v8643
    %v9047 = vmul.f32 %v9022, %v8645
    %v9048 = vmul.f32 %v9023, %v8648
    %v9049 = vmul.f32 %v9024, %v8650
    %v9050 = vmul.f32 %v9025, %v8653
    %v9051 = vmul.f32 %v9026, %v8655
    %v9052 = vmul.f32 %v9027, %v8658
    %v9053 = vmul.f32 %v9028, %v8660
    %v9054 = vmul.f32 %v9029, %v8663
    %9080 = vrot.lane.b32.xlu0 %v9030, 16
    %v9081 = vpop.permute.xlu0 %9080
    %9082 = vrot.lane.b32.xlu0 %v9031, 16
    %v9083 = vpop.permute.xlu0 %9082
    %9084 = vrot.lane.b32.xlu0 %v9032, 16
    %v9085 = vpop.permute.xlu0 %9084
    %9086 = vrot.lane.b32.xlu0 %v9033, 16
    %v9087 = vpop.permute.xlu0 %9086
    %9088 = vrot.lane.b32.xlu0 %v9034, 16
    %v9089 = vpop.permute.xlu0 %9088
    %9090 = vrot.lane.b32.xlu0 %v9035, 16
    %v9091 = vpop.permute.xlu0 %9090
    %9092 = vrot.lane.b32.xlu0 %v9036, 16
    %v9093 = vpop.permute.xlu0 %9092
    %9094 = vrot.lane.b32.xlu0 %v9037, 16
    %v9095 = vpop.permute.xlu0 %9094
    %9096 = vrot.lane.b32.xlu0 %v9038, 16
    %v9097 = vpop.permute.xlu0 %9096
    %9098 = vrot.lane.b32.xlu0 %v9039, 16
    %v9099 = vpop.permute.xlu0 %9098
    %9100 = vrot.lane.b32.xlu0 %v9040, 16
    %v9101 = vpop.permute.xlu0 %9100
    %9102 = vrot.lane.b32.xlu0 %v9041, 16
    %v9103 = vpop.permute.xlu0 %9102
    %9104 = vrot.lane.b32.xlu0 %v9042, 16
    %v9105 = vpop.permute.xlu0 %9104
    %9106 = vrot.lane.b32.xlu0 %v9043, 16
    %v9107 = vpop.permute.xlu0 %9106
    %9108 = vrot.lane.b32.xlu0 %v9044, 16
    %v9109 = vpop.permute.xlu0 %9108
    %9110 = vrot.lane.b32.xlu0 %v9045, 16
    %v9111 = vpop.permute.xlu0 %9110
    %9112 = vrot.lane.b32.xlu0 %v9046, 16
    %v9113 = vpop.permute.xlu0 %9112
    %9114 = vrot.lane.b32.xlu0 %v9047, 16
    %v9115 = vpop.permute.xlu0 %9114
    %9116 = vrot.lane.b32.xlu0 %v9048, 16
    %v9117 = vpop.permute.xlu0 %9116
    %9118 = vrot.lane.b32.xlu0 %v9049, 16
    %v9119 = vpop.permute.xlu0 %9118
    %9120 = vrot.lane.b32.xlu0 %v9050, 16
    %v9121 = vpop.permute.xlu0 %9120
    %9122 = vrot.lane.b32.xlu0 %v9051, 16
    %v9123 = vpop.permute.xlu0 %9122
    %9124 = vrot.lane.b32.xlu0 %v9052, 16
    %v9125 = vpop.permute.xlu0 %9124
    %9126 = vrot.lane.b32.xlu0 %v9053, 16
    %v9127 = vpop.permute.xlu0 %9126
    %9128 = vrot.lane.b32.xlu0 %v9054, 16
    %v9129 = vpop.permute.xlu0 %9128
    %v9155 = vsel %vm5805, %v9005, %v9081
    %v9156 = vsel %vm5805, %v9006, %v9083
    %v9157 = vsel %vm5805, %v9007, %v9085
    %v9158 = vsel %vm5805, %v9008, %v9087
    %v9159 = vsel %vm5805, %v9009, %v9089
    %v9160 = vsel %vm5805, %v9010, %v9091
    %v9161 = vsel %vm5805, %v9011, %v9093
    %v9162 = vsel %vm5805, %v9012, %v9095
    %v9163 = vsel %vm5805, %v9013, %v9097
    %v9164 = vsel %vm5805, %v9014, %v9099
    %v9165 = vsel %vm5805, %v9015, %v9101
    %v9166 = vsel %vm5805, %v9016, %v9103
    %v9167 = vsel %vm5805, %v9017, %v9105
    %v9168 = vsel %vm5805, %v9018, %v9107
    %v9169 = vsel %vm5805, %v9019, %v9109
    %v9170 = vsel %vm5805, %v9020, %v9111
    %v9171 = vsel %vm5805, %v9021, %v9113
    %v9172 = vsel %vm5805, %v9022, %v9115
    %v9173 = vsel %vm5805, %v9023, %v9117
    %v9174 = vsel %vm5805, %v9024, %v9119
    %v9175 = vsel %vm5805, %v9025, %v9121
    %v9176 = vsel %vm5805, %v9026, %v9123
    %v9177 = vsel %vm5805, %v9027, %v9125
    %v9178 = vsel %vm5805, %v9028, %v9127
    %v9179 = vsel %vm5805, %v9029, %v9129
    %v9180 = vsel %vm5887, %v9155, 0.0
    %v9181 = vsel %vm5887, %v9156, 0.0
    %v9182 = vadd.f32 %v9180, %v9181
    %v9183 = vsel %vm5887, %v9157, 0.0
    %v9184 = vadd.f32 %v9182, %v9183
    %v9185 = vsel %vm5887, %v9158, 0.0
    %v9186 = vadd.f32 %v9184, %v9185
    %v9187 = vsel %vm5887, %v9159, 0.0
    %v9188 = vadd.f32 %v9186, %v9187
    %v9189 = vsel %vm5887, %v9160, 0.0
    %v9190 = vadd.f32 %v9188, %v9189
    %v9191 = vsel %vm5887, %v9161, 0.0
    %v9192 = vadd.f32 %v9190, %v9191
    %v9193 = vsel %vm5887, %v9162, 0.0
    %v9194 = vadd.f32 %v9192, %v9193
    %v9195 = vsel %vm5887, %v9163, 0.0
    %v9196 = vadd.f32 %v9194, %v9195
    %v9197 = vsel %vm5887, %v9164, 0.0
    %v9198 = vadd.f32 %v9196, %v9197
    %v9199 = vsel %vm5887, %v9165, 0.0
    %v9200 = vadd.f32 %v9198, %v9199
    %v9201 = vsel %vm5887, %v9166, 0.0
    %v9202 = vadd.f32 %v9200, %v9201
    %v9203 = vsel %vm5887, %v9167, 0.0
    %v9204 = vadd.f32 %v9202, %v9203
    %v9205 = vsel %vm5887, %v9168, 0.0
    %v9206 = vadd.f32 %v9204, %v9205
    %v9207 = vsel %vm5887, %v9169, 0.0
    %v9208 = vadd.f32 %v9206, %v9207
    %v9209 = vsel %vm5887, %v9170, 0.0
    %v9210 = vadd.f32 %v9208, %v9209
    %v9211 = vsel %vm5887, %v9171, 0.0
    %v9212 = vadd.f32 %v9210, %v9211
    %v9213 = vsel %vm5887, %v9172, 0.0
    %v9214 = vadd.f32 %v9212, %v9213
    %v9215 = vsel %vm5887, %v9173, 0.0
    %v9216 = vadd.f32 %v9214, %v9215
    %v9217 = vsel %vm5887, %v9174, 0.0
    %v9218 = vadd.f32 %v9216, %v9217
    %v9219 = vsel %vm5887, %v9175, 0.0
    %v9220 = vadd.f32 %v9218, %v9219
    %v9221 = vsel %vm5887, %v9176, 0.0
    %v9222 = vadd.f32 %v9220, %v9221
    %v9223 = vsel %vm5887, %v9177, 0.0
    %v9224 = vadd.f32 %v9222, %v9223
    %v9225 = vsel %vm5887, %v9178, 0.0
    %v9226 = vadd.f32 %v9224, %v9225
    %v9227 = vsel %vm5887, %v9179, 0.0
    %v9228 = vadd.f32 %v9226, %v9227
    %v9229 = vrot.slane %v9228, 4
    %v9230 = vadd.f32 %v9228, %v9229
    %v9231 = vrot.slane %v9230, 2
    %v9232 = vadd.f32 %v9230, %v9231
    %v9233 = vrot.slane %v9232, 1
    %v9234 = vadd.f32 %v9232, %v9233
    %v9235 = vrcp.pop 128.0
    %v9236 = vmul.f32 128.0, %v9235
    %v9237 = vsub.f32 1.0, %v9236
    %v9238 = vmul.f32 %v9235, %v9237
    %v9239 = vadd.f32 %v9235, %v9238
    %vm9240 = vweird.f32 %v9235
    %v9241 = vsel %vm9240, %v9235, %v9239
    %v9242 = vmul.f32 %v9234, %v9241
    %v9243 = vmul.f32 %v9242, %v9242
    %9245 = vrot.lane.b32.xlu0 %v9243, 16
    %v9246 = vpop.permute.xlu0 %9245
    %v9248 = vsub.f32 %v9242, %v9246
    %v9249 = vld [vmem:[%s3 + $0x1] sm:$0x1]
    %v9250 = vld [vmem:[%s4 + $0x1] sm:$0x1]
    %v9251 = vsub.f32 %v8603, %v9242
    %v9252 = vsub.f32 %v8605, %v9242
    %v9253 = vsub.f32 %v8608, %v9242
    %v9254 = vsub.f32 %v8610, %v9242
    %v9255 = vsub.f32 %v8613, %v9242
    %v9256 = vsub.f32 %v8615, %v9242
    %v9257 = vsub.f32 %v8618, %v9242
    %v9258 = vsub.f32 %v8620, %v9242
    %v9259 = vsub.f32 %v8623, %v9242
    %v9260 = vsub.f32 %v8625, %v9242
    %v9261 = vsub.f32 %v8628, %v9242
    %v9262 = vsub.f32 %v8630, %v9242
    %v9263 = vsub.f32 %v8633, %v9242
    %v9264 = vsub.f32 %v8635, %v9242
    %v9265 = vsub.f32 %v8638, %v9242
    %v9266 = vsub.f32 %v8640, %v9242
    %v9267 = vsub.f32 %v8643, %v9242
    %v9268 = vsub.f32 %v8645, %v9242
    %v9269 = vsub.f32 %v8648, %v9242
    %v9270 = vsub.f32 %v8650, %v9242
    %v9271 = vsub.f32 %v8653, %v9242
    %v9272 = vsub.f32 %v8655, %v9242
    %v9273 = vsub.f32 %v8658, %v9242
    %v9274 = vsub.f32 %v8660, %v9242
    %v9275 = vsub.f32 %v8663, %v9242
    %v9276 = vadd.f32 %v9248, 1e-05
    %v9277 = vrsqrt.pop %v9276
    %v9278 = vmul.f32 %v9277, %v9276
    %v9279 = vmul.f32 %v9278, %v9277
    %v9280 = vmul.f32 0.5, %v9279
    %v9281 = vsub.f32 1.5, %v9280
    %v9282 = vmul.f32 %v9277, %v9281
    %vm9283 = vweird.f32 %v9276
    %vm9284 = vweird.f32 %v9277
    %vm9285 = vmor %vm9283, %vm9284
    %v9286 = vsel %vm9285, %v9277, %v9282
    %9288 = vrot.lane.b32.xlu0 %v9249, 16
    %v9289 = vpop.permute.xlu0 %9288
    %v9291 = vmul.f32 %v9286, %v9289
    %v9292 = vperm.slane %v9291, 0
    %9294 = vrot.lane.b32.xlu0 %v9292, 112
    %v9295 = vpop.permute.xlu0 %9294
    %v9297 = vmul.f32 %v9251, %v9295
    %v9298 = vmul.f32 %v9252, %v9295
    %v9299 = vmul.f32 %v9253, %v9295
    %v9300 = vmul.f32 %v9254, %v9295
    %v9301 = vmul.f32 %v9255, %v9295
    %v9302 = vmul.f32 %v9256, %v9295
    %v9303 = vmul.f32 %v9257, %v9295
    %v9304 = vmul.f32 %v9258, %v9295
    %v9305 = vmul.f32 %v9259, %v9295
    %v9306 = vmul.f32 %v9260, %v9295
    %v9307 = vmul.f32 %v9261, %v9295
    %v9308 = vmul.f32 %v9262, %v9295
    %v9309 = vmul.f32 %v9263, %v9295
    %v9310 = vmul.f32 %v9264, %v9295
    %v9311 = vmul.f32 %v9265, %v9295
    %v9312 = vmul.f32 %v9266, %v9295
    %v9313 = vmul.f32 %v9267, %v9295
    %v9314 = vmul.f32 %v9268, %v9295
    %v9315 = vmul.f32 %v9269, %v9295
    %v9316 = vmul.f32 %v9270, %v9295
    %v9317 = vmul.f32 %v9271, %v9295
    %v9318 = vmul.f32 %v9272, %v9295
    %v9319 = vmul.f32 %v9273, %v9295
    %v9320 = vmul.f32 %v9274, %v9295
    %v9321 = vmul.f32 %v9275, %v9295
    %v9322 = vperm.slane %v9250, 0
    %v9323 = vadd.f32 %v9297, %v9322
    %v9324 = vadd.f32 %v9298, %v9322
    %v9325 = vadd.f32 %v9299, %v9322
    %v9326 = vadd.f32 %v9300, %v9322
    %v9327 = vadd.f32 %v9301, %v9322
    %v9328 = vadd.f32 %v9302, %v9322
    %v9329 = vadd.f32 %v9303, %v9322
    %v9330 = vadd.f32 %v9304, %v9322
    %v9331 = vadd.f32 %v9305, %v9322
    %v9332 = vadd.f32 %v9306, %v9322
    %v9333 = vadd.f32 %v9307, %v9322
    %v9334 = vadd.f32 %v9308, %v9322
    %v9335 = vadd.f32 %v9309, %v9322
    %v9336 = vadd.f32 %v9310, %v9322
    %v9337 = vadd.f32 %v9311, %v9322
    %v9338 = vadd.f32 %v9312, %v9322
    %v9339 = vadd.f32 %v9313, %v9322
    %v9340 = vadd.f32 %v9314, %v9322
    %v9341 = vadd.f32 %v9315, %v9322
    %v9342 = vadd.f32 %v9316, %v9322
    %v9343 = vadd.f32 %v9317, %v9322
    %v9344 = vadd.f32 %v9318, %v9322
    %v9345 = vadd.f32 %v9319, %v9322
    %v9346 = vadd.f32 %v9320, %v9322
    %v9347 = vadd.f32 %v9321, %v9322
    %v9348 = vmax.f32 %v9323, 0.0
    %v9349 = vmax.f32 %v9324, 0.0
    %v9350 = vmax.f32 %v9325, 0.0
    %v9351 = vmax.f32 %v9326, 0.0
    %v9352 = vmax.f32 %v9327, 0.0
    %v9353 = vmax.f32 %v9328, 0.0
    %v9354 = vmax.f32 %v9329, 0.0
    %v9355 = vmax.f32 %v9330, 0.0
    %v9356 = vmax.f32 %v9331, 0.0
    %v9357 = vmax.f32 %v9332, 0.0
    %v9358 = vmax.f32 %v9333, 0.0
    %v9359 = vmax.f32 %v9334, 0.0
    %v9360 = vmax.f32 %v9335, 0.0
    %v9361 = vmax.f32 %v9336, 0.0
    %v9362 = vmax.f32 %v9337, 0.0
    %v9363 = vmax.f32 %v9338, 0.0
    %v9364 = vmax.f32 %v9339, 0.0
    %v9365 = vmax.f32 %v9340, 0.0
    %v9366 = vmax.f32 %v9341, 0.0
    %v9367 = vmax.f32 %v9342, 0.0
    %v9368 = vmax.f32 %v9343, 0.0
    %v9369 = vmax.f32 %v9344, 0.0
    %v9370 = vmax.f32 %v9345, 0.0
    %v9371 = vmax.f32 %v9346, 0.0
    %v9372 = vmax.f32 %v9347, 0.0
    %v9397 = vrot.slane %v9348, 1
    %v9398 = vrot.slane %v9349, 1
    %v9399 = vsel %vm6496, %v9397, %v9398
    %v9400 = vrot.slane %v9350, 1
    %v9401 = vsel %vm6496, %v9398, %v9400
    %v9402 = vrot.slane %v9351, 1
    %v9403 = vsel %vm6496, %v9400, %v9402
    %v9404 = vrot.slane %v9352, 1
    %v9405 = vsel %vm6496, %v9402, %v9404
    %v9406 = vrot.slane %v9353, 1
    %v9407 = vsel %vm6496, %v9404, %v9406
    %v9408 = vrot.slane %v9354, 1
    %v9409 = vsel %vm6496, %v9406, %v9408
    %v9410 = vrot.slane %v9355, 1
    %v9411 = vsel %vm6496, %v9408, %v9410
    %v9412 = vrot.slane %v9356, 1
    %v9413 = vsel %vm6496, %v9410, %v9412
    %v9414 = vrot.slane %v9357, 1
    %v9415 = vsel %vm6496, %v9412, %v9414
    %v9416 = vrot.slane %v9358, 1
    %v9417 = vsel %vm6496, %v9414, %v9416
    %v9418 = vrot.slane %v9359, 1
    %v9419 = vsel %vm6496, %v9416, %v9418
    %v9420 = vrot.slane %v9360, 1
    %v9421 = vsel %vm6496, %v9418, %v9420
    %v9422 = vrot.slane %v9361, 1
    %v9423 = vsel %vm6496, %v9420, %v9422
    %v9424 = vrot.slane %v9362, 1
    %v9425 = vsel %vm6496, %v9422, %v9424
    %v9426 = vrot.slane %v9363, 1
    %v9427 = vsel %vm6496, %v9424, %v9426
    %v9428 = vrot.slane %v9364, 1
    %v9429 = vsel %vm6496, %v9426, %v9428
    %v9430 = vrot.slane %v9365, 1
    %v9431 = vsel %vm6496, %v9428, %v9430
    %v9432 = vrot.slane %v9366, 1
    %v9433 = vsel %vm6496, %v9430, %v9432
    %v9434 = vrot.slane %v9367, 1
    %v9435 = vsel %vm6496, %v9432, %v9434
    %v9436 = vrot.slane %v9368, 1
    %v9437 = vsel %vm6496, %v9434, %v9436
    %v9438 = vrot.slane %v9369, 1
    %v9439 = vsel %vm6496, %v9436, %v9438
    %v9440 = vrot.slane %v9370, 1
    %v9441 = vsel %vm6496, %v9438, %v9440
    %v9442 = vrot.slane %v9371, 1
    %v9443 = vsel %vm6496, %v9440, %v9442
    %v9468 = vmax.f32 %v9348, %v9399
    %v9469 = vmax.f32 %v9349, %v9401
    %v9470 = vmax.f32 %v9350, %v9403
    %v9471 = vmax.f32 %v9351, %v9405
    %v9472 = vmax.f32 %v9352, %v9407
    %v9473 = vmax.f32 %v9353, %v9409
    %v9474 = vmax.f32 %v9354, %v9411
    %v9475 = vmax.f32 %v9355, %v9413
    %v9476 = vmax.f32 %v9356, %v9415
    %v9477 = vmax.f32 %v9357, %v9417
    %v9478 = vmax.f32 %v9358, %v9419
    %v9479 = vmax.f32 %v9359, %v9421
    %v9480 = vmax.f32 %v9360, %v9423
    %v9481 = vmax.f32 %v9361, %v9425
    %v9482 = vmax.f32 %v9362, %v9427
    %v9483 = vmax.f32 %v9363, %v9429
    %v9484 = vmax.f32 %v9364, %v9431
    %v9485 = vmax.f32 %v9365, %v9433
    %v9486 = vmax.f32 %v9366, %v9435
    %v9487 = vmax.f32 %v9367, %v9437
    %v9488 = vmax.f32 %v9368, %v9439
    %v9489 = vmax.f32 %v9369, %v9441
    %v9490 = vmax.f32 %v9370, %v9443
    %v9491 = vmax.f32 %v9371, %v9442
    %v9493 = vrot.slane %v9372, 1
    %v9494 = vsel %vm6496, %v9442, %v9493
    %v9497 = vmax.f32 %v9371, %v9494
    %v9498 = vmax.f32 %v9372, %v9493
    %v9523 = vrot.slane %v9469, 2
    %v9524 = vrot.slane %v9470, 2
    %v9525 = vsel %vm3870, %v9523, %v9524
    %v9526 = vrot.slane %v9471, 2
    %v9527 = vsel %vm3870, %v9524, %v9526
    %v9528 = vrot.slane %v9472, 2
    %v9529 = vsel %vm3870, %v9526, %v9528
    %v9530 = vrot.slane %v9473, 2
    %v9531 = vsel %vm3870, %v9528, %v9530
    %v9532 = vrot.slane %v9474, 2
    %v9533 = vsel %vm3870, %v9530, %v9532
    %v9534 = vrot.slane %v9475, 2
    %v9535 = vsel %vm3870, %v9532, %v9534
    %v9536 = vrot.slane %v9476, 2
    %v9537 = vsel %vm3870, %v9534, %v9536
    %v9538 = vrot.slane %v9477, 2
    %v9539 = vsel %vm3870, %v9536, %v9538
    %v9540 = vrot.slane %v9478, 2
    %v9541 = vsel %vm3870, %v9538, %v9540
    %v9542 = vrot.slane %v9479, 2
    %v9543 = vsel %vm3870, %v9540, %v9542
    %v9544 = vrot.slane %v9480, 2
    %v9545 = vsel %vm3870, %v9542, %v9544
    %v9546 = vrot.slane %v9481, 2
    %v9547 = vsel %vm3870, %v9544, %v9546
    %v9548 = vrot.slane %v9482, 2
    %v9549 = vsel %vm3870, %v9546, %v9548
    %v9550 = vrot.slane %v9483, 2
    %v9551 = vsel %vm3870, %v9548, %v9550
    %v9552 = vrot.slane %v9484, 2
    %v9553 = vsel %vm3870, %v9550, %v9552
    %v9554 = vrot.slane %v9485, 2
    %v9555 = vsel %vm3870, %v9552, %v9554
    %v9556 = vrot.slane %v9486, 2
    %v9557 = vsel %vm3870, %v9554, %v9556
    %v9558 = vrot.slane %v9487, 2
    %v9559 = vsel %vm3870, %v9556, %v9558
    %v9560 = vrot.slane %v9488, 2
    %v9561 = vsel %vm3870, %v9558, %v9560
    %v9562 = vrot.slane %v9489, 2
    %v9563 = vsel %vm3870, %v9560, %v9562
    %v9564 = vrot.slane %v9490, 2
    %v9565 = vsel %vm3870, %v9562, %v9564
    %v9566 = vrot.slane %v9497, 2
    %v9567 = vsel %vm3870, %v9564, %v9566
    %v9568 = vrot.slane %v9498, 2
    %v9569 = vsel %vm3870, %v9566, %v9568
    %v9594 = vmax.f32 %v9468, %v9525
    %v9595 = vmax.f32 %v9469, %v9527
    %v9596 = vmax.f32 %v9470, %v9529
    %v9597 = vmax.f32 %v9471, %v9531
    %v9598 = vmax.f32 %v9472, %v9533
    %v9599 = vmax.f32 %v9473, %v9535
    %v9600 = vmax.f32 %v9474, %v9537
    %v9601 = vmax.f32 %v9475, %v9539
    %v9602 = vmax.f32 %v9476, %v9541
    %v9603 = vmax.f32 %v9477, %v9543
    %v9604 = vmax.f32 %v9478, %v9545
    %v9605 = vmax.f32 %v9479, %v9547
    %v9606 = vmax.f32 %v9480, %v9549
    %v9607 = vmax.f32 %v9481, %v9551
    %v9608 = vmax.f32 %v9482, %v9553
    %v9609 = vmax.f32 %v9483, %v9555
    %v9610 = vmax.f32 %v9484, %v9557
    %v9611 = vmax.f32 %v9485, %v9559
    %v9612 = vmax.f32 %v9486, %v9561
    %v9613 = vmax.f32 %v9487, %v9563
    %v9614 = vmax.f32 %v9488, %v9565
    %v9615 = vmax.f32 %v9489, %v9567
    %v9616 = vmax.f32 %v9490, %v9569
    %v9617 = vmax.f32 %v9491, %v9568
    %9618 = vst.msk [vmem:[#allocation4] sm:$0xff] %vm5805, %v9594
    %9619 = vst.msk [vmem:[#allocation4 + $0x8] sm:$0xff] %vm5805, %v9595
    %9620 = vst.msk [vmem:[#allocation4 + $0x10] sm:$0xff] %vm5805, %v9596
    %9621 = vst.msk [vmem:[#allocation4 + $0x18] sm:$0xff] %vm5805, %v9597
    %9622 = vst.msk [vmem:[#allocation4 + $0x20] sm:$0xff] %vm5805, %v9598
    %9623 = vst.msk [vmem:[#allocation4 + $0x28] sm:$0xff] %vm5805, %v9599
    %9624 = vst.msk [vmem:[#allocation4 + $0x30] sm:$0xff] %vm5805, %v9600
    %9625 = vst.msk [vmem:[#allocation4 + $0x38] sm:$0xff] %vm5805, %v9601
    %9626 = vst.msk [vmem:[#allocation4 + $0x40] sm:$0xff] %vm5805, %v9602
    %9627 = vst.msk [vmem:[#allocation4 + $0x48] sm:$0xff] %vm5805, %v9603
    %9628 = vst.msk [vmem:[#allocation4 + $0x50] sm:$0xff] %vm5805, %v9604
    %9629 = vst.msk [vmem:[#allocation4 + $0x58] sm:$0xff] %vm5805, %v9605
    %9630 = vst.msk [vmem:[#allocation4 + $0x60] sm:$0xff] %vm5805, %v9606
    %9631 = vst.msk [vmem:[#allocation4 + $0x68] sm:$0xff] %vm5805, %v9607
    %9632 = vst.msk [vmem:[#allocation4 + $0x70] sm:$0xff] %vm5805, %v9608
    %9633 = vst.msk [vmem:[#allocation4 + $0x78] sm:$0xff] %vm5805, %v9609
    %9634 = vst.msk [vmem:[#allocation4 + $0x80] sm:$0xff] %vm5805, %v9610
    %9635 = vst.msk [vmem:[#allocation4 + $0x88] sm:$0xff] %vm5805, %v9611
    %9636 = vst.msk [vmem:[#allocation4 + $0x90] sm:$0xff] %vm5805, %v9612
    %9637 = vst.msk [vmem:[#allocation4 + $0x98] sm:$0xff] %vm5805, %v9613
    %9638 = vst.msk [vmem:[#allocation4 + $0xa0] sm:$0xff] %vm5805, %v9614
    %9639 = vst.msk [vmem:[#allocation4 + $0xa8] sm:$0xff] %vm5805, %v9615
    %9640 = vst.msk [vmem:[#allocation4 + $0xb0] sm:$0xff] %vm5805, %v9616
    %9641 = vst.msk [vmem:[#allocation4 + $0xb8] sm:$0x1f] %vm7296, %v9617
    %9642 = vst.msk [vmem:[#allocation5] sm:$0xff] %vm5805, 0.0
    %9643 = vst.msk [vmem:[#allocation5 + $0x8] sm:$0xff] %vm5805, 0.0
    %9644 = vst.msk [vmem:[#allocation5 + $0x10] sm:$0xff] %vm5805, 0.0
    %9645 = vst.msk [vmem:[#allocation5 + $0x18] sm:$0xff] %vm5805, 0.0
    %9646 = vst.msk [vmem:[#allocation5 + $0x20] sm:$0xff] %vm5805, 0.0
    %9647 = vst.msk [vmem:[#allocation5 + $0x28] sm:$0xff] %vm5805, 0.0
    %9648 = vst.msk [vmem:[#allocation5 + $0x30] sm:$0xff] %vm5805, 0.0
    %9649 = vst.msk [vmem:[#allocation5 + $0x38] sm:$0xff] %vm5805, 0.0
    %9650 = vst.msk [vmem:[#allocation5 + $0x40] sm:$0xff] %vm5805, 0.0
    %9651 = vst.msk [vmem:[#allocation5 + $0x48] sm:$0xff] %vm5805, 0.0
    %9652 = vst.msk [vmem:[#allocation5 + $0x50] sm:$0x3f] %vm7325, 0.0
    %v9653 = vld [vmem:[#allocation4] ss:$2 sm:$0xf]
    %vm9654 = vcmask 125952
    %9655 = vst.msk [vmem:[#allocation5 + $0x7] sm:$0xf] %vm9654, %v9653
    %s9656 = scalar_lea.vmem [#allocation4], 20
    %v9657 = vld [vmem:[%s9656] ss:$2 sm:$0xf]
    %9658 = vst.msk [vmem:[#allocation5 + $0xd] sm:$0xf] %vm9654, %v9657
    %s9659 = scalar_lea.vmem [#allocation4], 40
    %v9660 = vld [vmem:[%s9659] ss:$2 sm:$0xf]
    %9661 = vst.msk [vmem:[#allocation5 + $0x13] sm:$0xf] %vm9654, %v9660
    %s9662 = scalar_lea.vmem [#allocation4], 60
    %v9663 = vld [vmem:[%s9662] ss:$2 sm:$0xf]
    %9664 = vst.msk [vmem:[#allocation5 + $0x19] sm:$0xf] %vm9654, %v9663
    %s9665 = scalar_lea.vmem [#allocation4], 100
    %v9666 = vld [vmem:[%s9665] ss:$2 sm:$0xf]
    %9667 = vst.msk [vmem:[#allocation5 + $0x2b] sm:$0xf] %vm9654, %v9666
    %s9668 = scalar_lea.vmem [#allocation4], 120
    %v9669 = vld [vmem:[%s9668] ss:$2 sm:$0xf]
    %9670 = vst.msk [vmem:[#allocation5 + $0x31] sm:$0xf] %vm9654, %v9669
    %s9671 = scalar_lea.vmem [#allocation4], 140
    %v9672 = vld [vmem:[%s9671] ss:$2 sm:$0xf]
    %9673 = vst.msk [vmem:[#allocation5 + $0x37] sm:$0xf] %vm9654, %v9672
    %s9674 = scalar_lea.vmem [#allocation4], 160
    %v9675 = vld [vmem:[%s9674] ss:$2 sm:$0xf]
    %9676 = vst.msk [vmem:[#allocation5 + $0x3d] sm:$0xf] %vm9654, %v9675
    %v9677 = vld [vmem:[#allocation5] sm:$0xff]
    %v9678 = vld [vmem:[#allocation5 + $0x8] sm:$0xff]
    %v9679 = vld [vmem:[#allocation5 + $0x10] sm:$0xff]
    %v9680 = vld [vmem:[#allocation5 + $0x18] sm:$0xff]
    %v9681 = vld [vmem:[#allocation5 + $0x20] sm:$0xff]
    %v9682 = vld [vmem:[#allocation5 + $0x28] sm:$0xff]
    %v9683 = vld [vmem:[#allocation5 + $0x30] sm:$0xff]
    %v9684 = vld [vmem:[#allocation5 + $0x38] sm:$0xff]
    %v9685 = vld [vmem:[#allocation5 + $0x40] sm:$0xff]
    %v9686 = vld [vmem:[#allocation5 + $0x1] sm:$0xff]
    %v9687 = vld [vmem:[#allocation5 + $0x9] sm:$0xff]
    %v9688 = vld [vmem:[#allocation5 + $0x11] sm:$0xff]
    %v9689 = vld [vmem:[#allocation5 + $0x19] sm:$0xff]
    %v9690 = vld [vmem:[#allocation5 + $0x21] sm:$0xff]
    %v9691 = vld [vmem:[#allocation5 + $0x29] sm:$0xff]
    %v9692 = vld [vmem:[#allocation5 + $0x31] sm:$0xff]
    %v9693 = vld [vmem:[#allocation5 + $0x39] sm:$0xff]
    %v9694 = vld [vmem:[#allocation5 + $0x41] sm:$0xff]
    %v9695 = vld [vmem:[#allocation5 + $0x2] sm:$0xff]
    %v9696 = vld [vmem:[#allocation5 + $0xa] sm:$0xff]
    %v9697 = vld [vmem:[#allocation5 + $0x12] sm:$0xff]
    %v9698 = vld [vmem:[#allocation5 + $0x1a] sm:$0xff]
    %v9699 = vld [vmem:[#allocation5 + $0x22] sm:$0xff]
    %v9700 = vld [vmem:[#allocation5 + $0x2a] sm:$0xff]
    %v9701 = vld [vmem:[#allocation5 + $0x32] sm:$0xff]
    %v9702 = vld [vmem:[#allocation5 + $0x3a] sm:$0xff]
    %v9703 = vld [vmem:[#allocation5 + $0x42] sm:$0xff]
    %v9704 = vld [vmem:[#allocation5 + $0x6] sm:$0xff]
    %v9705 = vld [vmem:[#allocation5 + $0xe] sm:$0xff]
    %v9706 = vld [vmem:[#allocation5 + $0x16] sm:$0xff]
    %v9707 = vld [vmem:[#allocation5 + $0x1e] sm:$0xff]
    %v9708 = vld [vmem:[#allocation5 + $0x26] sm:$0xff]
    %v9709 = vld [vmem:[#allocation5 + $0x2e] sm:$0xff]
    %v9710 = vld [vmem:[#allocation5 + $0x36] sm:$0xff]
    %v9711 = vld [vmem:[#allocation5 + $0x3e] sm:$0xff]
    %v9712 = vld [vmem:[#allocation5 + $0x46] sm:$0xff]
    %v9713 = vld [vmem:[#allocation5 + $0x7] sm:$0xff]
    %v9714 = vld [vmem:[#allocation5 + $0xf] sm:$0xff]
    %v9715 = vld [vmem:[#allocation5 + $0x17] sm:$0xff]
    %v9716 = vld [vmem:[#allocation5 + $0x1f] sm:$0xff]
    %v9717 = vld [vmem:[#allocation5 + $0x27] sm:$0xff]
    %v9718 = vld [vmem:[#allocation5 + $0x2f] sm:$0xff]
    %v9719 = vld [vmem:[#allocation5 + $0x37] sm:$0xff]
    %v9720 = vld [vmem:[#allocation5 + $0x3f] sm:$0xff]
    %v9721 = vld [vmem:[#allocation5 + $0x47] sm:$0xff]
    %v9722 = vld [vmem:[#allocation5 + $0x48] sm:$0xff]
    %v9723 = vld [vmem:[#allocation5 + $0xc] sm:$0xff]
    %v9724 = vld [vmem:[#allocation5 + $0x14] sm:$0xff]
    %v9725 = vld [vmem:[#allocation5 + $0x1c] sm:$0xff]
    %v9726 = vld [vmem:[#allocation5 + $0x24] sm:$0xff]
    %v9727 = vld [vmem:[#allocation5 + $0x2c] sm:$0xff]
    %v9728 = vld [vmem:[#allocation5 + $0x34] sm:$0xff]
    %v9729 = vld [vmem:[#allocation5 + $0x3c] sm:$0xff]
    %v9730 = vld [vmem:[#allocation5 + $0x44] sm:$0xff]
    %v9731 = vld [vmem:[#allocation5 + $0x4c] sm:$0xff]
    %v9732 = vld [vmem:[#allocation5 + $0xd] sm:$0xff]
    %v9733 = vld [vmem:[#allocation5 + $0x15] sm:$0xff]
    %v9734 = vld [vmem:[#allocation5 + $0x1d] sm:$0xff]
    %v9735 = vld [vmem:[#allocation5 + $0x25] sm:$0xff]
    %v9736 = vld [vmem:[#allocation5 + $0x2d] sm:$0xff]
    %v9737 = vld [vmem:[#allocation5 + $0x35] sm:$0xff]
    %v9738 = vld [vmem:[#allocation5 + $0x3d] sm:$0xff]
    %v9739 = vld [vmem:[#allocation5 + $0x45] sm:$0xff]
    %v9740 = vld [vmem:[#allocation5 + $0x4d] sm:$0xff]
    %v9741 = vld [vmem:[#allocation5 + $0x4e] sm:$0xff]
    %9751 = vrot.lane.b32.xlu0 %v9686, 16
    %v9752 = vpop.permute.xlu0 %9751
    %9753 = vrot.lane.b32.xlu0 %v9687, 16
    %v9754 = vpop.permute.xlu0 %9753
    %9755 = vrot.lane.b32.xlu0 %v9688, 16
    %v9756 = vpop.permute.xlu0 %9755
    %9757 = vrot.lane.b32.xlu0 %v9689, 16
    %v9758 = vpop.permute.xlu0 %9757
    %9759 = vrot.lane.b32.xlu0 %v9690, 16
    %v9760 = vpop.permute.xlu0 %9759
    %9761 = vrot.lane.b32.xlu0 %v9691, 16
    %v9762 = vpop.permute.xlu0 %9761
    %9763 = vrot.lane.b32.xlu0 %v9692, 16
    %v9764 = vpop.permute.xlu0 %9763
    %9765 = vrot.lane.b32.xlu0 %v9693, 16
    %v9766 = vpop.permute.xlu0 %9765
    %9767 = vrot.lane.b32.xlu0 %v9694, 16
    %v9768 = vpop.permute.xlu0 %9767
    %9787 = vrot.lane.b32.xlu0 %v9695, 32
    %v9788 = vpop.permute.xlu0 %9787
    %9789 = vrot.lane.b32.xlu0 %v9696, 32
    %v9790 = vpop.permute.xlu0 %9789
    %9791 = vrot.lane.b32.xlu0 %v9697, 32
    %v9792 = vpop.permute.xlu0 %9791
    %9793 = vrot.lane.b32.xlu0 %v9698, 32
    %v9794 = vpop.permute.xlu0 %9793
    %9795 = vrot.lane.b32.xlu0 %v9699, 32
    %v9796 = vpop.permute.xlu0 %9795
    %9797 = vrot.lane.b32.xlu0 %v9700, 32
    %v9798 = vpop.permute.xlu0 %9797
    %9799 = vrot.lane.b32.xlu0 %v9701, 32
    %v9800 = vpop.permute.xlu0 %9799
    %9801 = vrot.lane.b32.xlu0 %v9702, 32
    %v9802 = vpop.permute.xlu0 %9801
    %9803 = vrot.lane.b32.xlu0 %v9703, 32
    %v9804 = vpop.permute.xlu0 %9803
    %9823 = vrot.lane.b32.xlu0 %v9704, 48
    %v9824 = vpop.permute.xlu0 %9823
    %9825 = vrot.lane.b32.xlu0 %v9705, 48
    %v9826 = vpop.permute.xlu0 %9825
    %9827 = vrot.lane.b32.xlu0 %v9706, 48
    %v9828 = vpop.permute.xlu0 %9827
    %9829 = vrot.lane.b32.xlu0 %v9707, 48
    %v9830 = vpop.permute.xlu0 %9829
    %9831 = vrot.lane.b32.xlu0 %v9708, 48
    %v9832 = vpop.permute.xlu0 %9831
    %9833 = vrot.lane.b32.xlu0 %v9709, 48
    %v9834 = vpop.permute.xlu0 %9833
    %9835 = vrot.lane.b32.xlu0 %v9710, 48
    %v9836 = vpop.permute.xlu0 %9835
    %9837 = vrot.lane.b32.xlu0 %v9711, 48
    %v9838 = vpop.permute.xlu0 %9837
    %9839 = vrot.lane.b32.xlu0 %v9712, 48
    %v9840 = vpop.permute.xlu0 %9839
    %9859 = vrot.lane.b32.xlu0 %v9713, 64
    %v9860 = vpop.permute.xlu0 %9859
    %9861 = vrot.lane.b32.xlu0 %v9714, 64
    %v9862 = vpop.permute.xlu0 %9861
    %9863 = vrot.lane.b32.xlu0 %v9715, 64
    %v9864 = vpop.permute.xlu0 %9863
    %9865 = vrot.lane.b32.xlu0 %v9716, 64
    %v9866 = vpop.permute.xlu0 %9865
    %9867 = vrot.lane.b32.xlu0 %v9717, 64
    %v9868 = vpop.permute.xlu0 %9867
    %9869 = vrot.lane.b32.xlu0 %v9718, 64
    %v9870 = vpop.permute.xlu0 %9869
    %9871 = vrot.lane.b32.xlu0 %v9719, 64
    %v9872 = vpop.permute.xlu0 %9871
    %9873 = vrot.lane.b32.xlu0 %v9720, 64
    %v9874 = vpop.permute.xlu0 %9873
    %9875 = vrot.lane.b32.xlu0 %v9721, 64
    %v9876 = vpop.permute.xlu0 %9875
    %9895 = vrot.lane.b32.xlu0 %v9678, 80
    %v9896 = vpop.permute.xlu0 %9895
    %9897 = vrot.lane.b32.xlu0 %v9679, 80
    %v9898 = vpop.permute.xlu0 %9897
    %9899 = vrot.lane.b32.xlu0 %v9680, 80
    %v9900 = vpop.permute.xlu0 %9899
    %9901 = vrot.lane.b32.xlu0 %v9681, 80
    %v9902 = vpop.permute.xlu0 %9901
    %9903 = vrot.lane.b32.xlu0 %v9682, 80
    %v9904 = vpop.permute.xlu0 %9903
    %9905 = vrot.lane.b32.xlu0 %v9683, 80
    %v9906 = vpop.permute.xlu0 %9905
    %9907 = vrot.lane.b32.xlu0 %v9684, 80
    %v9908 = vpop.permute.xlu0 %9907
    %9909 = vrot.lane.b32.xlu0 %v9685, 80
    %v9910 = vpop.permute.xlu0 %9909
    %9911 = vrot.lane.b32.xlu0 %v9722, 80
    %v9912 = vpop.permute.xlu0 %9911
    %9931 = vrot.lane.b32.xlu0 %v9723, 96
    %v9932 = vpop.permute.xlu0 %9931
    %9933 = vrot.lane.b32.xlu0 %v9724, 96
    %v9934 = vpop.permute.xlu0 %9933
    %9935 = vrot.lane.b32.xlu0 %v9725, 96
    %v9936 = vpop.permute.xlu0 %9935
    %9937 = vrot.lane.b32.xlu0 %v9726, 96
    %v9938 = vpop.permute.xlu0 %9937
    %9939 = vrot.lane.b32.xlu0 %v9727, 96
    %v9940 = vpop.permute.xlu0 %9939
    %9941 = vrot.lane.b32.xlu0 %v9728, 96
    %v9942 = vpop.permute.xlu0 %9941
    %9943 = vrot.lane.b32.xlu0 %v9729, 96
    %v9944 = vpop.permute.xlu0 %9943
    %9945 = vrot.lane.b32.xlu0 %v9730, 96
    %v9946 = vpop.permute.xlu0 %9945
    %9947 = vrot.lane.b32.xlu0 %v9731, 96
    %v9948 = vpop.permute.xlu0 %9947
    %9967 = vrot.lane.b32.xlu0 %v9732, 112
    %v9968 = vpop.permute.xlu0 %9967
    %9969 = vrot.lane.b32.xlu0 %v9733, 112
    %v9970 = vpop.permute.xlu0 %9969
    %9971 = vrot.lane.b32.xlu0 %v9734, 112
    %v9972 = vpop.permute.xlu0 %9971
    %9973 = vrot.lane.b32.xlu0 %v9735, 112
    %v9974 = vpop.permute.xlu0 %9973
    %9975 = vrot.lane.b32.xlu0 %v9736, 112
    %v9976 = vpop.permute.xlu0 %9975
    %9977 = vrot.lane.b32.xlu0 %v9737, 112
    %v9978 = vpop.permute.xlu0 %9977
    %9979 = vrot.lane.b32.xlu0 %v9738, 112
    %v9980 = vpop.permute.xlu0 %9979
    %9981 = vrot.lane.b32.xlu0 %v9739, 112
    %v9982 = vpop.permute.xlu0 %9981
    %9983 = vrot.lane.b32.xlu0 %v9740, 112
    %v9984 = vpop.permute.xlu0 %9983
    %v9994 = vsel %vm5805, %v9677, %v9752
    %v9995 = vsel %vm5805, %v9678, %v9754
    %v9996 = vsel %vm5805, %v9679, %v9756
    %v9997 = vsel %vm5805, %v9680, %v9758
    %v9998 = vsel %vm5805, %v9681, %v9760
    %v9999 = vsel %vm5805, %v9682, %v9762
    %v10000 = vsel %vm5805, %v9683, %v9764
    %v10001 = vsel %vm5805, %v9684, %v9766
    %v10002 = vsel %vm5805, %v9685, %v9768
    %v10003 = vsel %vm5887, %v9994, %v9788
    %v10004 = vsel %vm5887, %v9995, %v9790
    %v10005 = vsel %vm5887, %v9996, %v9792
    %v10006 = vsel %vm5887, %v9997, %v9794
    %v10007 = vsel %vm5887, %v9998, %v9796
    %v10008 = vsel %vm5887, %v9999, %v9798
    %v10009 = vsel %vm5887, %v10000, %v9800
    %v10010 = vsel %vm5887, %v10001, %v9802
    %v10011 = vsel %vm5887, %v10002, %v9804
    %v10012 = vsel %vm8253, %v10003, %v9824
    %v10013 = vsel %vm8253, %v10004, %v9826
    %v10014 = vsel %vm8253, %v10005, %v9828
    %v10015 = vsel %vm8253, %v10006, %v9830
    %v10016 = vsel %vm8253, %v10007, %v9832
    %v10017 = vsel %vm8253, %v10008, %v9834
    %v10018 = vsel %vm8253, %v10009, %v9836
    %v10019 = vsel %vm8253, %v10010, %v9838
    %v10020 = vsel %vm8253, %v10011, %v9840
    %v10021 = vsel %vm8279, %v10012, %v9860
    %v10022 = vsel %vm8279, %v10013, %v9862
    %v10023 = vsel %vm8279, %v10014, %v9864
    %v10024 = vsel %vm8279, %v10015, %v9866
    %v10025 = vsel %vm8279, %v10016, %v9868
    %v10026 = vsel %vm8279, %v10017, %v9870
    %v10027 = vsel %vm8279, %v10018, %v9872
    %v10028 = vsel %vm8279, %v10019, %v9874
    %v10029 = vsel %vm8279, %v10020, %v9876
    %v10030 = vsel %vm8305, %v10021, %v9896
    %v10031 = vsel %vm8305, %v10022, %v9898
    %v10032 = vsel %vm8305, %v10023, %v9900
    %v10033 = vsel %vm8305, %v10024, %v9902
    %v10034 = vsel %vm8305, %v10025, %v9904
    %v10035 = vsel %vm8305, %v10026, %v9906
    %v10036 = vsel %vm8305, %v10027, %v9908
    %v10037 = vsel %vm8305, %v10028, %v9910
    %v10038 = vsel %vm8305, %v10029, %v9912
    %v10039 = vsel %vm8331, %v10030, %v9932
    %v10040 = vsel %vm8331, %v10031, %v9934
    %v10041 = vsel %vm8331, %v10032, %v9936
    %v10042 = vsel %vm8331, %v10033, %v9938
    %v10043 = vsel %vm8331, %v10034, %v9940
    %v10044 = vsel %vm8331, %v10035, %v9942
    %v10045 = vsel %vm8331, %v10036, %v9944
    %v10046 = vsel %vm8331, %v10037, %v9946
    %v10047 = vsel %vm8331, %v10038, %v9948
    %v10048 = vsel %vm8357, %v10039, %v9968
    %v10049 = vsel %vm8357, %v10040, %v9970
    %v10050 = vsel %vm8357, %v10041, %v9972
    %v10051 = vsel %vm8357, %v10042, %v9974
    %v10052 = vsel %vm8357, %v10043, %v9976
    %v10053 = vsel %vm8357, %v10044, %v9978
    %v10054 = vsel %vm8357, %v10045, %v9980
    %v10055 = vsel %vm8357, %v10046, %v9982
    %v10056 = vsel %vm8357, %v10047, %v9984
    %v10057 = vpack.c.bf16 %v10049, %v10048
    %v10058 = vpack.c.bf16 %v9706, %v9705
    %v10059 = vpack.c.bf16 %v10051, %v10050
    %v10060 = vpack.c.bf16 %v9708, %v9707
    %v10061 = vpack.c.bf16 %v10053, %v10052
    %v10062 = vpack.c.bf16 %v9710, %v9709
    %v10063 = vpack.c.bf16 %v10055, %v10054
    %v10064 = vpack.c.bf16 %v9712, %v9711
    %v10065 = vpack.c.bf16 %v10056, %v10056
    %v10066 = vpack.c.bf16 %v9741, %v9741
    %s10067 = scalar_lea.vmem %s2, 72
    %v10068 = vld [vmem:[%s10067] sm:$0xf]
    %v10069 = vld [vmem:[%s10067 + $0x4] sm:$0xf]
    %v10070 = vld [vmem:[%s10067 + $0x8] sm:$0xf]
    %v10071 = vld [vmem:[%s10067 + $0xc] sm:$0xf]
    %v10072 = vld [vmem:[%s10067 + $0x10] sm:$0xf]
    %v10073 = vld [vmem:[%s10067 + $0x14] sm:$0xf]
    %v10074 = vld [vmem:[%s10067 + $0x18] sm:$0xf]
    %v10075 = vld [vmem:[%s10067 + $0x1c] sm:$0xf]
    %v10076 = vld [vmem:[%s10067 + $0x20] sm:$0xf]
    %v10077 = vld [vmem:[%s10067 + $0x24] sm:$0xf]
    %v10078 = vld [vmem:[%s10067 + $0x28] sm:$0xf]
    %v10079 = vld [vmem:[%s10067 + $0x2c] sm:$0xf]
    %v10080 = vld [vmem:[%s10067 + $0x30] sm:$0xf]
    %v10081 = vld [vmem:[%s10067 + $0x34] sm:$0xf]
    %v10082 = vld [vmem:[%s10067 + $0x38] sm:$0xf]
    %v10083 = vld [vmem:[%s10067 + $0x3c] sm:$0xf]
    %v10084 = vld [vmem:[%s10067 + $0x40] sm:$0xf]
    %v10085 = vld [vmem:[%s10067 + $0x44] sm:$0xf]
    %v10104 = vunpack.c.l.b16 %v10068
    %v10105 = vunpack.c.l.b16 %v10069
    %v10106 = vunpack.c.l.b16 %v10070
    %v10107 = vunpack.c.l.b16 %v10071
    %v10108 = vunpack.c.l.b16 %v10072
    %v10109 = vunpack.c.l.b16 %v10073
    %v10110 = vunpack.c.l.b16 %v10074
    %v10111 = vunpack.c.l.b16 %v10075
    %v10112 = vunpack.c.l.b16 %v10076
    %v10113 = vunpack.c.l.b16 %v10077
    %v10114 = vunpack.c.l.b16 %v10078
    %v10115 = vunpack.c.l.b16 %v10079
    %v10116 = vunpack.c.l.b16 %v10080
    %v10117 = vunpack.c.l.b16 %v10081
    %v10118 = vunpack.c.l.b16 %v10082
    %v10119 = vunpack.c.l.b16 %v10083
    %v10120 = vunpack.c.l.b16 %v10084
    %v10121 = vunpack.c.l.b16 %v10085
    %v10122 = vpack.c.b16 %v10105, %v10104
    %v10123 = vpack.c.b16 %v10107, %v10106
    %v10124 = vpack.c.b16 %v10109, %v10108
    %v10125 = vpack.c.b16 %v10111, %v10110
    %v10126 = vpack.c.b16 %v10113, %v10112
    %v10127 = vpack.c.b16 %v10115, %v10114
    %v10128 = vpack.c.b16 %v10117, %v10116
    %v10129 = vpack.c.b16 %v10119, %v10118
    %v10130 = vpack.c.b16 %v10121, %v10120
    %v10141 = vsel %vm5805, %v10058, 0
    %v10144 = vsel %vm5805, %v10060, 0
    %v10147 = vsel %vm5805, %v10062, 0
    %v10150 = vsel %vm5805, %v10064, 0
    %v10153 = vsel %vm5805, %v10066, 0
    %10155 = vmatpush.bf16.msra.mxu0 %v10129
    %10156 = vmatpush.bf16.msra.mxu0 %v10128
    %10157 = vmatpush.bf16.msra.mxu0 %v10127
    %10158 = vmatpush.bf16.msra.mxu0 %v10126
    %10159 = vmatpush.bf16.msra.mxu0 %v10125
    %10160 = vmatpush.bf16.msra.mxu0 %v10124
    %10161 = vmatpush.bf16.msra.mxu0 %v10123
    %10162 = vmatpush.bf16.msra.mxu0 %v10122
    %10163 = vmatmul.bf16.gmra.mxu0 %v10057
    %v10164 = vpop.f32.mrf.mxu0
    %v10165 = vadd.f32 0.0, %v10164
    %v10166 = vpop.f32.mrf.mxu0
    %v10167 = vadd.f32 0.0, %v10166
    %10168 = vmatmul.bf16.gmra.mxu0 %v10059
    %v10169 = vpop.f32.mrf.mxu0
    %v10170 = vadd.f32 0.0, %v10169
    %v10171 = vpop.f32.mrf.mxu0
    %v10172 = vadd.f32 0.0, %v10171
    %10173 = vmatmul.bf16.gmra.mxu0 %v10061
    %v10174 = vpop.f32.mrf.mxu0
    %v10175 = vadd.f32 0.0, %v10174
    %v10176 = vpop.f32.mrf.mxu0
    %v10177 = vadd.f32 0.0, %v10176
    %10178 = vmatmul.bf16.gmra.mxu0 %v10063
    %v10179 = vpop.f32.mrf.mxu0
    %v10180 = vadd.f32 0.0, %v10179
    %v10181 = vpop.f32.mrf.mxu0
    %v10182 = vadd.f32 0.0, %v10181
    %10183 = vmatmul.bf16.gmra.mxu0 %v10065
    %v10184 = vpop.f32.mrf.mxu0
    %v10185 = vadd.f32 0.0, %v10184
    %v10186 = vpop.f32.mrf.mxu0
    %10187 = vdwg.mxu0
    %10188 = vmatpush.bf16.msra.mxu0 0
    %10189 = vmatpush.bf16.msra.mxu0 0
    %10190 = vmatpush.bf16.msra.mxu0 0
    %10191 = vmatpush.bf16.msra.mxu0 0
    %10192 = vmatpush.bf16.msra.mxu0 0
    %10193 = vmatpush.bf16.msra.mxu0 0
    %10194 = vmatpush.bf16.msra.mxu0 0
    %10195 = vmatpush.bf16.msra.mxu0 %v10130
    %10196 = vmatmul.bf16.gmra.mxu0 %v10141
    %v10197 = vpop.f32.mrf.mxu0
    %v10198 = vadd.f32 %v10165, %v10197
    %v10199 = vpop.f32.mrf.mxu0
    %v10200 = vadd.f32 %v10167, %v10199
    %10201 = vmatmul.bf16.gmra.mxu0 %v10144
    %v10202 = vpop.f32.mrf.mxu0
    %v10203 = vadd.f32 %v10170, %v10202
    %v10204 = vpop.f32.mrf.mxu0
    %v10205 = vadd.f32 %v10172, %v10204
    %10206 = vmatmul.bf16.gmra.mxu0 %v10147
    %v10207 = vpop.f32.mrf.mxu0
    %v10208 = vadd.f32 %v10175, %v10207
    %v10209 = vpop.f32.mrf.mxu0
    %v10210 = vadd.f32 %v10177, %v10209
    %10211 = vmatmul.bf16.gmra.mxu0 %v10150
    %v10212 = vpop.f32.mrf.mxu0
    %v10213 = vadd.f32 %v10180, %v10212
    %v10214 = vpop.f32.mrf.mxu0
    %v10215 = vadd.f32 %v10182, %v10214
    %10216 = vmatmul.bf16.gmra.mxu0 %v10153
    %v10217 = vpop.f32.mrf.mxu0
    %v10218 = vadd.f32 %v10185, %v10217
    %v10219 = vpop.f32.mrf.mxu0
    %10220 = vdwg.mxu0
    %v10221 = vrcp.pop 36.0
    %v10222 = vmul.f32 36.0, %v10221
    %v10223 = vsub.f32 1.0, %v10222
    %v10224 = vmul.f32 %v10221, %v10223
    %v10225 = vadd.f32 %v10221, %v10224
    %vm10226 = vweird.f32 %v10221
    %v10227 = vsel %vm10226, %v10221, %v10225
    %v10228 = vmul.f32 %v4171, %v10227
    %v10229 = vmul.f32 %v4172, %v10227
    %v10230 = vmul.f32 %v4173, %v10227
    %v10231 = vmul.f32 %v4174, %v10227
    %v10232 = vmul.f32 %v4175, %v10227
    %v10233 = vmul.f32 %v4176, %v10227
    %v10234 = vmul.f32 %v4177, %v10227
    %v10235 = vmul.f32 %v4178, %v10227
    %v10236 = vmul.f32 %v4179, %v10227
    %v10237 = vfloor.f32 %v10228
    %v10238 = vfloor.f32 %v10229
    %v10239 = vfloor.f32 %v10230
    %v10240 = vfloor.f32 %v10231
    %v10241 = vfloor.f32 %v10232
    %v10242 = vfloor.f32 %v10233
    %v10243 = vfloor.f32 %v10234
    %v10244 = vfloor.f32 %v10235
    %v10245 = vfloor.f32 %v10236
    %v10246 = vmul.f32 %v10237, 36.0
    %v10247 = vmul.f32 %v10238, 36.0
    %v10248 = vmul.f32 %v10239, 36.0
    %v10249 = vmul.f32 %v10240, 36.0
    %v10250 = vmul.f32 %v10241, 36.0
    %v10251 = vmul.f32 %v10242, 36.0
    %v10252 = vmul.f32 %v10243, 36.0
    %v10253 = vmul.f32 %v10244, 36.0
    %v10254 = vmul.f32 %v10245, 36.0
    %v10255 = vsub.f32 %v4171, %v10246
    %v10256 = vsub.f32 %v4172, %v10247
    %v10257 = vsub.f32 %v4173, %v10248
    %v10258 = vsub.f32 %v4174, %v10249
    %v10259 = vsub.f32 %v4175, %v10250
    %v10260 = vsub.f32 %v4176, %v10251
    %v10261 = vsub.f32 %v4177, %v10252
    %v10262 = vsub.f32 %v4178, %v10253
    %v10263 = vsub.f32 %v4179, %v10254
    %v10264 = vrcp.pop 6.0
    %v10265 = vmul.f32 6.0, %v10264
    %v10266 = vsub.f32 1.0, %v10265
    %v10267 = vmul.f32 %v10264, %v10266
    %v10268 = vadd.f32 %v10264, %v10267
    %vm10269 = vweird.f32 %v10264
    %v10270 = vsel %vm10269, %v10264, %v10268
    %v10271 = vmul.f32 %v10255, %v10270
    %v10272 = vmul.f32 %v10256, %v10270
    %v10273 = vmul.f32 %v10257, %v10270
    %v10274 = vmul.f32 %v10258, %v10270
    %v10275 = vmul.f32 %v10259, %v10270
    %v10276 = vmul.f32 %v10260, %v10270
    %v10277 = vmul.f32 %v10261, %v10270
    %v10278 = vmul.f32 %v10262, %v10270
    %v10279 = vmul.f32 %v10263, %v10270
    %v10280 = vfloor.f32 %v10271
    %v10281 = vfloor.f32 %v10272
    %v10282 = vfloor.f32 %v10273
    %v10283 = vfloor.f32 %v10274
    %v10284 = vfloor.f32 %v10275
    %v10285 = vfloor.f32 %v10276
    %v10286 = vfloor.f32 %v10277
    %v10287 = vfloor.f32 %v10278
    %v10288 = vfloor.f32 %v10279
    %v10289 = vmul.f32 %v10280, 6.0
    %v10290 = vmul.f32 %v10281, 6.0
    %v10291 = vmul.f32 %v10282, 6.0
    %v10292 = vmul.f32 %v10283, 6.0
    %v10293 = vmul.f32 %v10284, 6.0
    %v10294 = vmul.f32 %v10285, 6.0
    %v10295 = vmul.f32 %v10286, 6.0
    %v10296 = vmul.f32 %v10287, 6.0
    %v10297 = vmul.f32 %v10288, 6.0
    %v10298 = vsub.f32 %v10255, %v10289
    %v10299 = vsub.f32 %v10256, %v10290
    %v10300 = vsub.f32 %v10257, %v10291
    %v10301 = vsub.f32 %v10258, %v10292
    %v10302 = vsub.f32 %v10259, %v10293
    %v10303 = vsub.f32 %v10260, %v10294
    %v10304 = vsub.f32 %v10261, %v10295
    %v10305 = vsub.f32 %v10262, %v10296
    %v10306 = vsub.f32 %v10263, %v10297
    %vm10307 = vcmp.lt.f32.partialorder %v10280, 4.0
    %vm10308 = vcmp.lt.f32.partialorder %v10281, 4.0
    %vm10309 = vcmp.lt.f32.partialorder %v10282, 4.0
    %vm10310 = vcmp.lt.f32.partialorder %v10283, 4.0
    %vm10311 = vcmp.lt.f32.partialorder %v10284, 4.0
    %vm10312 = vcmp.lt.f32.partialorder %v10285, 4.0
    %vm10313 = vcmp.lt.f32.partialorder %v10286, 4.0
    %vm10314 = vcmp.lt.f32.partialorder %v10287, 4.0
    %vm10315 = vcmp.lt.f32.partialorder %v10288, 4.0
    %vm10316 = vcmp.lt.f32.partialorder %v10298, 4.0
    %vm10317 = vcmp.lt.f32.partialorder %v10299, 4.0
    %vm10318 = vcmp.lt.f32.partialorder %v10300, 4.0
    %vm10319 = vcmp.lt.f32.partialorder %v10301, 4.0
    %vm10320 = vcmp.lt.f32.partialorder %v10302, 4.0
    %vm10321 = vcmp.lt.f32.partialorder %v10303, 4.0
    %vm10322 = vcmp.lt.f32.partialorder %v10304, 4.0
    %vm10323 = vcmp.lt.f32.partialorder %v10305, 4.0
    %vm10324 = vcmp.lt.f32.partialorder %v10306, 4.0
    %vm10325 = vmand %vm10307, %vm10316
    %vm10326 = vmand %vm10308, %vm10317
    %vm10327 = vmand %vm10309, %vm10318
    %vm10328 = vmand %vm10310, %vm10319
    %vm10329 = vmand %vm10311, %vm10320
    %vm10330 = vmand %vm10312, %vm10321
    %vm10331 = vmand %vm10313, %vm10322
    %vm10332 = vmand %vm10314, %vm10323
    %vm10333 = vmand %vm10315, %vm10324
    %v10334 = vsel %vm10325, 1, 0
    %v10335 = vsel %vm10326, 1, 0
    %v10336 = vsel %vm10327, 1, 0
    %v10337 = vsel %vm10328, 1, 0
    %v10338 = vsel %vm10329, 1, 0
    %v10339 = vsel %vm10330, 1, 0
    %v10340 = vsel %vm10331, 1, 0
    %v10341 = vsel %vm10332, 1, 0
    %v10342 = vsel %vm10333, 1, 0
    %v10343 = vcvt.s32.f32 %v10334
    %v10344 = vcvt.s32.f32 %v10335
    %v10345 = vcvt.s32.f32 %v10336
    %v10346 = vcvt.s32.f32 %v10337
    %v10347 = vcvt.s32.f32 %v10338
    %v10348 = vcvt.s32.f32 %v10339
    %v10349 = vcvt.s32.f32 %v10340
    %v10350 = vcvt.s32.f32 %v10341
    %v10351 = vcvt.s32.f32 %v10342
    %v10352 = vmul.f32 %v10198, %v10343
    %v10353 = vmul.f32 %v10200, %v10344
    %v10354 = vmul.f32 %v10203, %v10345
    %v10355 = vmul.f32 %v10205, %v10346
    %v10356 = vmul.f32 %v10208, %v10347
    %v10357 = vmul.f32 %v10210, %v10348
    %v10358 = vmul.f32 %v10213, %v10349
    %v10359 = vmul.f32 %v10215, %v10350
    %v10360 = vmul.f32 %v10218, %v10351
    %v10361 = vmul.f32 %v10352, %v10198
    %v10362 = vmul.f32 %v10353, %v10200
    %v10363 = vmul.f32 %v10354, %v10203
    %v10364 = vmul.f32 %v10355, %v10205
    %v10365 = vmul.f32 %v10356, %v10208
    %v10366 = vmul.f32 %v10357, %v10210
    %v10367 = vmul.f32 %v10358, %v10213
    %v10368 = vmul.f32 %v10359, %v10215
    %v10369 = vmul.f32 %v10360, %v10218
    %10379 = vrot.lane.b32.xlu0 %v10361, 16
    %v10380 = vpop.permute.xlu0 %10379
    %10381 = vrot.lane.b32.xlu0 %v10362, 16
    %v10382 = vpop.permute.xlu0 %10381
    %10383 = vrot.lane.b32.xlu0 %v10363, 16
    %v10384 = vpop.permute.xlu0 %10383
    %10385 = vrot.lane.b32.xlu0 %v10364, 16
    %v10386 = vpop.permute.xlu0 %10385
    %10387 = vrot.lane.b32.xlu0 %v10365, 16
    %v10388 = vpop.permute.xlu0 %10387
    %10389 = vrot.lane.b32.xlu0 %v10366, 16
    %v10390 = vpop.permute.xlu0 %10389
    %10391 = vrot.lane.b32.xlu0 %v10367, 16
    %v10392 = vpop.permute.xlu0 %10391
    %10393 = vrot.lane.b32.xlu0 %v10368, 16
    %v10394 = vpop.permute.xlu0 %10393
    %10395 = vrot.lane.b32.xlu0 %v10369, 16
    %v10396 = vpop.permute.xlu0 %10395
    %v10406 = vsel %vm5805, %v10352, %v10380
    %v10407 = vsel %vm5805, %v10353, %v10382
    %v10408 = vsel %vm5805, %v10354, %v10384
    %v10409 = vsel %vm5805, %v10355, %v10386
    %v10410 = vsel %vm5805, %v10356, %v10388
    %v10411 = vsel %vm5805, %v10357, %v10390
    %v10412 = vsel %vm5805, %v10358, %v10392
    %v10413 = vsel %vm5805, %v10359, %v10394
    %v10414 = vsel %vm5805, %v10360, %v10396
    %v10415 = vsel %vm5887, %v10406, 0.0
    %v10416 = vsel %vm5887, %v10407, 0.0
    %v10417 = vadd.f32 %v10415, %v10416
    %v10418 = vsel %vm5887, %v10408, 0.0
    %v10419 = vadd.f32 %v10417, %v10418
    %v10420 = vsel %vm5887, %v10409, 0.0
    %v10421 = vadd.f32 %v10419, %v10420
    %v10422 = vsel %vm5887, %v10410, 0.0
    %v10423 = vadd.f32 %v10421, %v10422
    %v10424 = vsel %vm5887, %v10411, 0.0
    %v10425 = vadd.f32 %v10423, %v10424
    %v10426 = vsel %vm5887, %v10412, 0.0
    %v10427 = vadd.f32 %v10425, %v10426
    %v10428 = vsel %vm5887, %v10413, 0.0
    %v10429 = vadd.f32 %v10427, %v10428
    %v10430 = vsel %vm5887, %v10414, 0.0
    %v10431 = vadd.f32 %v10429, %v10430
    %v10432 = vrot.slane %v10431, 4
    %v10433 = vadd.f32 %v10431, %v10432
    %v10434 = vrot.slane %v10433, 2
    %v10435 = vadd.f32 %v10433, %v10434
    %v10436 = vrot.slane %v10435, 1
    %v10437 = vadd.f32 %v10435, %v10436
    %v10438 = vrcp.pop 32.0
    %v10439 = vmul.f32 32.0, %v10438
    %v10440 = vsub.f32 1.0, %v10439
    %v10441 = vmul.f32 %v10438, %v10440
    %v10442 = vadd.f32 %v10438, %v10441
    %vm10443 = vweird.f32 %v10438
    %v10444 = vsel %vm10443, %v10438, %v10442
    %v10445 = vmul.f32 %v10437, %v10444
    %v10446 = vmul.f32 %v10445, %v10445
    %10448 = vrot.lane.b32.xlu0 %v10446, 16
    %v10449 = vpop.permute.xlu0 %10448
    %v10451 = vsub.f32 %v10445, %v10449
    %v10452 = vld [vmem:[%s3 + $0x2] sm:$0x1]
    %v10453 = vld [vmem:[%s4 + $0x2] sm:$0x1]
    %v10454 = vsub.f32 %v10198, %v10445
    %v10455 = vsub.f32 %v10200, %v10445
    %v10456 = vsub.f32 %v10203, %v10445
    %v10457 = vsub.f32 %v10205, %v10445
    %v10458 = vsub.f32 %v10208, %v10445
    %v10459 = vsub.f32 %v10210, %v10445
    %v10460 = vsub.f32 %v10213, %v10445
    %v10461 = vsub.f32 %v10215, %v10445
    %v10462 = vsub.f32 %v10218, %v10445
    %v10463 = vadd.f32 %v10451, 1e-05
    %v10464 = vrsqrt.pop %v10463
    %v10465 = vmul.f32 %v10464, %v10463
    %v10466 = vmul.f32 %v10465, %v10464
    %v10467 = vmul.f32 0.5, %v10466
    %v10468 = vsub.f32 1.5, %v10467
    %v10469 = vmul.f32 %v10464, %v10468
    %vm10470 = vweird.f32 %v10463
    %vm10471 = vweird.f32 %v10464
    %vm10472 = vmor %vm10470, %vm10471
    %v10473 = vsel %vm10472, %v10464, %v10469
    %10475 = vrot.lane.b32.xlu0 %v10452, 16
    %v10476 = vpop.permute.xlu0 %10475
    %v10478 = vmul.f32 %v10473, %v10476
    %v10479 = vperm.slane %v10478, 0
    %10481 = vrot.lane.b32.xlu0 %v10479, 112
    %v10482 = vpop.permute.xlu0 %10481
    %v10484 = vmul.f32 %v10454, %v10482
    %v10485 = vmul.f32 %v10455, %v10482
    %v10486 = vmul.f32 %v10456, %v10482
    %v10487 = vmul.f32 %v10457, %v10482
    %v10488 = vmul.f32 %v10458, %v10482
    %v10489 = vmul.f32 %v10459, %v10482
    %v10490 = vmul.f32 %v10460, %v10482
    %v10491 = vmul.f32 %v10461, %v10482
    %v10492 = vmul.f32 %v10462, %v10482
    %v10493 = vperm.slane %v10453, 0
    %v10494 = vadd.f32 %v10484, %v10493
    %v10495 = vadd.f32 %v10485, %v10493
    %v10496 = vadd.f32 %v10486, %v10493
    %v10497 = vadd.f32 %v10487, %v10493
    %v10498 = vadd.f32 %v10488, %v10493
    %v10499 = vadd.f32 %v10489, %v10493
    %v10500 = vadd.f32 %v10490, %v10493
    %v10501 = vadd.f32 %v10491, %v10493
    %v10502 = vadd.f32 %v10492, %v10493
    %v10503 = vmax.f32 %v10494, 0.0
    %v10504 = vmax.f32 %v10495, 0.0
    %v10505 = vmax.f32 %v10496, 0.0
    %v10506 = vmax.f32 %v10497, 0.0
    %v10507 = vmax.f32 %v10498, 0.0
    %v10508 = vmax.f32 %v10499, 0.0
    %v10509 = vmax.f32 %v10500, 0.0
    %v10510 = vmax.f32 %v10501, 0.0
    %v10511 = vmax.f32 %v10502, 0.0
    %v10521 = vrot.slane %v10503, 1
    %v10522 = vrot.slane %v10504, 1
    %v10523 = vsel %vm6496, %v10521, %v10522
    %v10524 = vrot.slane %v10505, 1
    %v10525 = vsel %vm6496, %v10522, %v10524
    %v10526 = vrot.slane %v10506, 1
    %v10527 = vsel %vm6496, %v10524, %v10526
    %v10528 = vrot.slane %v10507, 1
    %v10529 = vsel %vm6496, %v10526, %v10528
    %v10530 = vrot.slane %v10508, 1
    %v10531 = vsel %vm6496, %v10528, %v10530
    %v10532 = vrot.slane %v10509, 1
    %v10533 = vsel %vm6496, %v10530, %v10532
    %v10534 = vrot.slane %v10510, 1
    %v10535 = vsel %vm6496, %v10532, %v10534
    %v10536 = vrot.slane %v10511, 1
    %v10537 = vsel %vm6496, %v10534, %v10536
    %v10547 = vmax.f32 %v10503, %v10523
    %v10548 = vmax.f32 %v10504, %v10525
    %v10549 = vmax.f32 %v10505, %v10527
    %v10550 = vmax.f32 %v10506, %v10529
    %v10551 = vmax.f32 %v10507, %v10531
    %v10552 = vmax.f32 %v10508, %v10533
    %v10553 = vmax.f32 %v10509, %v10535
    %v10554 = vmax.f32 %v10510, %v10537
    %v10555 = vmax.f32 %v10511, %v10536
    %vm10565 = vcmask 1041408
    %v10566 = vrot.slane %v10547, 6
    %v10567 = vrot.slane %v10548, 6
    %v10568 = vsel %vm10565, %v10566, %v10567
    %v10569 = vrot.slane %v10549, 6
    %v10570 = vsel %vm10565, %v10567, %v10569
    %v10571 = vrot.slane %v10550, 6
    %v10572 = vsel %vm10565, %v10569, %v10571
    %v10573 = vrot.slane %v10551, 6
    %v10574 = vsel %vm10565, %v10571, %v10573
    %v10575 = vrot.slane %v10552, 6
    %v10576 = vsel %vm10565, %v10573, %v10575
    %v10577 = vrot.slane %v10553, 6
    %v10578 = vsel %vm10565, %v10575, %v10577
    %v10579 = vrot.slane %v10554, 6
    %v10580 = vsel %vm10565, %v10577, %v10579
    %v10581 = vrot.slane %v10555, 6
    %v10582 = vsel %vm10565, %v10579, %v10581
    %v10592 = vmax.f32 %v10547, %v10568
    %v10593 = vmax.f32 %v10548, %v10570
    %v10594 = vmax.f32 %v10549, %v10572
    %v10595 = vmax.f32 %v10550, %v10574
    %v10596 = vmax.f32 %v10551, %v10576
    %v10597 = vmax.f32 %v10552, %v10578
    %v10598 = vmax.f32 %v10553, %v10580
    %v10599 = vmax.f32 %v10554, %v10582
    %v10600 = vmax.f32 %v10555, %v10581
    %10601 = vst.msk [vmem:[#allocation6] sm:$0xff] %vm5805, %v10592
    %10602 = vst.msk [vmem:[#allocation6 + $0x8] sm:$0xff] %vm5805, %v10593
    %10603 = vst.msk [vmem:[#allocation6 + $0x10] sm:$0xff] %vm5805, %v10594
    %10604 = vst.msk [vmem:[#allocation6 + $0x18] sm:$0xff] %vm5805, %v10595
    %10605 = vst.msk [vmem:[#allocation6 + $0x20] sm:$0xff] %vm5805, %v10596
    %10606 = vst.msk [vmem:[#allocation6 + $0x28] sm:$0xff] %vm5805, %v10597
    %10607 = vst.msk [vmem:[#allocation6 + $0x30] sm:$0xff] %vm5805, %v10598
    %10608 = vst.msk [vmem:[#allocation6 + $0x38] sm:$0xff] %vm5805, %v10599
    %vm10609 = vcmask 122880
    %10610 = vst.msk [vmem:[#allocation6 + $0x40] sm:$0x1] %vm10609, %v10600
    %10611 = vst.msk [vmem:[#allocation7] sm:$0xff] %vm5805, 0.0
    %10612 = vst.msk [vmem:[#allocation7 + $0x8] sm:$0xff] %vm5805, 0.0
    %10613 = vst.msk [vmem:[#allocation7 + $0x10] sm:$0xff] %vm5805, 0.0
    %10614 = vst.msk [vmem:[#allocation7 + $0x18] sm:$0xff] %vm5805, 0.0
    %10615 = vst.msk [vmem:[#allocation7 + $0x20] sm:$0xff] %vm5805, 0.0
    %vm10616 = vcmask 123904
    %10617 = vst.msk [vmem:[#allocation7 + $0x28] sm:$0x3] %vm10616, 0.0
    %v10618 = vld [vmem:[#allocation6] ss:$2 sm:$0x3]
    %10619 = vst.msk [vmem:[#allocation7 + $0x5] sm:$0x3] %vm10616, %v10618
    %s10620 = scalar_lea.vmem [#allocation6], 12
    %v10621 = vld [vmem:[%s10620] ss:$2 sm:$0x3]
    %10622 = vst.msk [vmem:[#allocation7 + $0x9] sm:$0x3] %vm10616, %v10621
    %s10623 = scalar_lea.vmem [#allocation6], 36
    %v10624 = vld [vmem:[%s10623] ss:$2 sm:$0x3]
    %10625 = vst.msk [vmem:[#allocation7 + $0x15] sm:$0x3] %vm10616, %v10624
    %s10626 = scalar_lea.vmem [#allocation6], 48
    %v10627 = vld [vmem:[%s10626] ss:$2 sm:$0x3]
    %10628 = vst.msk [vmem:[#allocation7 + $0x19] sm:$0x3] %vm10616, %v10627
    %v10629 = vld [vmem:[#allocation7] sm:$0xff]
    %v10630 = vld [vmem:[#allocation7 + $0x8] sm:$0xff]
    %v10631 = vld [vmem:[#allocation7 + $0x10] sm:$0xff]
    %v10632 = vld [vmem:[#allocation7 + $0x18] sm:$0xff]
    %v10633 = vld [vmem:[#allocation7 + $0x1] sm:$0xff]
    %v10634 = vld [vmem:[#allocation7 + $0x9] sm:$0xff]
    %v10635 = vld [vmem:[#allocation7 + $0x11] sm:$0xff]
    %v10636 = vld [vmem:[#allocation7 + $0x19] sm:$0xff]
    %v10637 = vld [vmem:[#allocation7 + $0x2] sm:$0xff]
    %v10638 = vld [vmem:[#allocation7 + $0xa] sm:$0xff]
    %v10639 = vld [vmem:[#allocation7 + $0x12] sm:$0xff]
    %v10640 = vld [vmem:[#allocation7 + $0x1a] sm:$0xff]
    %v10641 = vld [vmem:[#allocation7 + $0x4] sm:$0xff]
    %v10642 = vld [vmem:[#allocation7 + $0xc] sm:$0xff]
    %v10643 = vld [vmem:[#allocation7 + $0x14] sm:$0xff]
    %v10644 = vld [vmem:[#allocation7 + $0x1c] sm:$0xff]
    %v10645 = vld [vmem:[#allocation7 + $0x5] sm:$0xff]
    %v10646 = vld [vmem:[#allocation7 + $0xd] sm:$0xff]
    %v10647 = vld [vmem:[#allocation7 + $0x15] sm:$0xff]
    %v10648 = vld [vmem:[#allocation7 + $0x1d] sm:$0xff]
    %v10649 = vld [vmem:[#allocation7 + $0x6] sm:$0xff]
    %v10650 = vld [vmem:[#allocation7 + $0xe] sm:$0xff]
    %v10651 = vld [vmem:[#allocation7 + $0x16] sm:$0xff]
    %v10652 = vld [vmem:[#allocation7 + $0x1e] sm:$0xff]
    %v10653 = vld [vmem:[#allocation7 + $0x20] sm:$0xff]
    %v10654 = vld [vmem:[#allocation7 + $0x21] sm:$0xff]
    %v10655 = vld [vmem:[#allocation7 + $0x22] sm:$0xff]
    %10660 = vrot.lane.b32.xlu0 %v10633, 16
    %v10661 = vpop.permute.xlu0 %10660
    %10662 = vrot.lane.b32.xlu0 %v10634, 16
    %v10663 = vpop.permute.xlu0 %10662
    %10664 = vrot.lane.b32.xlu0 %v10635, 16
    %v10665 = vpop.permute.xlu0 %10664
    %10666 = vrot.lane.b32.xlu0 %v10636, 16
    %v10667 = vpop.permute.xlu0 %10666
    %10676 = vrot.lane.b32.xlu0 %v10637, 32
    %v10677 = vpop.permute.xlu0 %10676
    %10678 = vrot.lane.b32.xlu0 %v10638, 32
    %v10679 = vpop.permute.xlu0 %10678
    %10680 = vrot.lane.b32.xlu0 %v10639, 32
    %v10681 = vpop.permute.xlu0 %10680
    %10682 = vrot.lane.b32.xlu0 %v10640, 32
    %v10683 = vpop.permute.xlu0 %10682
    %10692 = vrot.lane.b32.xlu0 %v10641, 48
    %v10693 = vpop.permute.xlu0 %10692
    %10694 = vrot.lane.b32.xlu0 %v10642, 48
    %v10695 = vpop.permute.xlu0 %10694
    %10696 = vrot.lane.b32.xlu0 %v10643, 48
    %v10697 = vpop.permute.xlu0 %10696
    %10698 = vrot.lane.b32.xlu0 %v10644, 48
    %v10699 = vpop.permute.xlu0 %10698
    %10708 = vrot.lane.b32.xlu0 %v10645, 64
    %v10709 = vpop.permute.xlu0 %10708
    %10710 = vrot.lane.b32.xlu0 %v10646, 64
    %v10711 = vpop.permute.xlu0 %10710
    %10712 = vrot.lane.b32.xlu0 %v10647, 64
    %v10713 = vpop.permute.xlu0 %10712
    %10714 = vrot.lane.b32.xlu0 %v10648, 64
    %v10715 = vpop.permute.xlu0 %10714
    %10724 = vrot.lane.b32.xlu0 %v10649, 80
    %v10725 = vpop.permute.xlu0 %10724
    %10726 = vrot.lane.b32.xlu0 %v10650, 80
    %v10727 = vpop.permute.xlu0 %10726
    %10728 = vrot.lane.b32.xlu0 %v10651, 80
    %v10729 = vpop.permute.xlu0 %10728
    %10730 = vrot.lane.b32.xlu0 %v10652, 80
    %v10731 = vpop.permute.xlu0 %10730
    %10740 = vrot.lane.b32.xlu0 %v10630, 96
    %v10741 = vpop.permute.xlu0 %10740
    %10742 = vrot.lane.b32.xlu0 %v10631, 96
    %v10743 = vpop.permute.xlu0 %10742
    %10744 = vrot.lane.b32.xlu0 %v10632, 96
    %v10745 = vpop.permute.xlu0 %10744
    %10746 = vrot.lane.b32.xlu0 %v10653, 96
    %v10747 = vpop.permute.xlu0 %10746
    %10753 = vrot.lane.b32.xlu0 %v10634, 112
    %v10754 = vpop.permute.xlu0 %10753
    %10755 = vrot.lane.b32.xlu0 %v10635, 112
    %v10756 = vpop.permute.xlu0 %10755
    %10757 = vrot.lane.b32.xlu0 %v10636, 112
    %v10758 = vpop.permute.xlu0 %10757
    %10759 = vrot.lane.b32.xlu0 %v10654, 112
    %v10760 = vpop.permute.xlu0 %10759
    %v10765 = vsel %vm5805, %v10629, %v10661
    %v10766 = vsel %vm5805, %v10630, %v10663
    %v10767 = vsel %vm5805, %v10631, %v10665
    %v10768 = vsel %vm5805, %v10632, %v10667
    %v10769 = vsel %vm5887, %v10765, %v10677
    %v10770 = vsel %vm5887, %v10766, %v10679
    %v10771 = vsel %vm5887, %v10767, %v10681
    %v10772 = vsel %vm5887, %v10768, %v10683
    %v10773 = vsel %vm8253, %v10769, %v10693
    %v10774 = vsel %vm8253, %v10770, %v10695
    %v10775 = vsel %vm8253, %v10771, %v10697
    %v10776 = vsel %vm8253, %v10772, %v10699
    %v10777 = vsel %vm8279, %v10773, %v10709
    %v10778 = vsel %vm8279, %v10774, %v10711
    %v10779 = vsel %vm8279, %v10775, %v10713
    %v10780 = vsel %vm8279, %v10776, %v10715
    %v10781 = vsel %vm8305, %v10777, %v10725
    %v10782 = vsel %vm8305, %v10778, %v10727
    %v10783 = vsel %vm8305, %v10779, %v10729
    %v10784 = vsel %vm8305, %v10780, %v10731
    %v10785 = vsel %vm8331, %v10781, %v10741
    %v10786 = vsel %vm8331, %v10782, %v10743
    %v10787 = vsel %vm8331, %v10783, %v10745
    %v10788 = vsel %vm8331, %v10784, %v10747
    %v10789 = vsel %vm8357, %v10785, %v10754
    %v10790 = vsel %vm8357, %v10786, %v10756
    %v10791 = vsel %vm8357, %v10787, %v10758
    %v10792 = vsel %vm8357, %v10788, %v10760
    %v10793 = vpack.c.bf16 %v10790, %v10789
    %v10794 = vpack.c.bf16 %v10639, %v10638
    %v10795 = vpack.c.bf16 %v10792, %v10791
    %v10796 = vpack.c.bf16 %v10655, %v10640
    %s10797 = scalar_lea.vmem %s2, 144
    %v10798 = vld [vmem:[%s10797] sm:$0xf]
    %v10799 = vld [vmem:[%s10797 + $0x4] sm:$0xf]
    %v10800 = vld [vmem:[%s10797 + $0x8] sm:$0xf]
    %v10801 = vld [vmem:[%s10797 + $0xc] sm:$0xf]
    %v10802 = vld [vmem:[%s10797 + $0x10] sm:$0xf]
    %v10803 = vld [vmem:[%s10797 + $0x14] sm:$0xf]
    %v10804 = vld [vmem:[%s10797 + $0x18] sm:$0xf]
    %v10805 = vld [vmem:[%s10797 + $0x1c] sm:$0xf]
    %v10806 = vld [vmem:[%s10797 + $0x20] sm:$0xf]
    %v10807 = vld [vmem:[%s10797 + $0x24] sm:$0xf]
    %v10808 = vld [vmem:[%s10797 + $0x28] sm:$0xf]
    %v10809 = vld [vmem:[%s10797 + $0x2c] sm:$0xf]
    %v10810 = vld [vmem:[%s10797 + $0x30] sm:$0xf]
    %v10811 = vld [vmem:[%s10797 + $0x34] sm:$0xf]
    %v10812 = vld [vmem:[%s10797 + $0x38] sm:$0xf]
    %v10813 = vld [vmem:[%s10797 + $0x3c] sm:$0xf]
    %v10814 = vld [vmem:[%s10797 + $0x40] sm:$0xf]
    %v10815 = vld [vmem:[%s10797 + $0x44] sm:$0xf]
    %v10834 = vunpack.c.l.b16 %v10798
    %v10835 = vunpack.c.l.b16 %v10799
    %v10836 = vunpack.c.l.b16 %v10800
    %v10837 = vunpack.c.l.b16 %v10801
    %v10838 = vunpack.c.l.b16 %v10802
    %v10839 = vunpack.c.l.b16 %v10803
    %v10840 = vunpack.c.l.b16 %v10804
    %v10841 = vunpack.c.l.b16 %v10805
    %v10842 = vunpack.c.l.b16 %v10806
    %v10843 = vunpack.c.l.b16 %v10807
    %v10844 = vunpack.c.l.b16 %v10808
    %v10845 = vunpack.c.l.b16 %v10809
    %v10846 = vunpack.c.l.b16 %v10810
    %v10847 = vunpack.c.l.b16 %v10811
    %v10848 = vunpack.c.l.b16 %v10812
    %v10849 = vunpack.c.l.b16 %v10813
    %v10850 = vunpack.c.l.b16 %v10814
    %v10851 = vunpack.c.l.b16 %v10815
    %v10852 = vpack.c.b16 %v10835, %v10834
    %v10853 = vpack.c.b16 %v10837, %v10836
    %v10854 = vpack.c.b16 %v10839, %v10838
    %v10855 = vpack.c.b16 %v10841, %v10840
    %v10856 = vpack.c.b16 %v10843, %v10842
    %v10857 = vpack.c.b16 %v10845, %v10844
    %v10858 = vpack.c.b16 %v10847, %v10846
    %v10859 = vpack.c.b16 %v10849, %v10848
    %v10860 = vpack.c.b16 %v10851, %v10850
    %v10871 = vsel %vm5805, %v10794, 0
    %v10874 = vsel %vm5805, %v10796, 0
    %10876 = vmatpush.bf16.msra.mxu0 %v10859
    %10877 = vmatpush.bf16.msra.mxu0 %v10858
    %10878 = vmatpush.bf16.msra.mxu0 %v10857
    %10879 = vmatpush.bf16.msra.mxu0 %v10856
    %10880 = vmatpush.bf16.msra.mxu0 %v10855
    %10881 = vmatpush.bf16.msra.mxu0 %v10854
    %10882 = vmatpush.bf16.msra.mxu0 %v10853
    %10883 = vmatpush.bf16.msra.mxu0 %v10852
    %10884 = vmatmul.bf16.gmra.mxu0 %v10793
    %v10885 = vpop.f32.mrf.mxu0
    %v10886 = vadd.f32 0.0, %v10885
    %v10887 = vpop.f32.mrf.mxu0
    %v10888 = vadd.f32 0.0, %v10887
    %10889 = vmatmul.bf16.gmra.mxu0 %v10795
    %v10890 = vpop.f32.mrf.mxu0
    %v10891 = vadd.f32 0.0, %v10890
    %v10892 = vpop.f32.mrf.mxu0
    %v10893 = vadd.f32 0.0, %v10892
    %10894 = vdwg.mxu0
    %10895 = vmatpush.bf16.msra.mxu0 0
    %10896 = vmatpush.bf16.msra.mxu0 0
    %10897 = vmatpush.bf16.msra.mxu0 0
    %10898 = vmatpush.bf16.msra.mxu0 0
    %10899 = vmatpush.bf16.msra.mxu0 0
    %10900 = vmatpush.bf16.msra.mxu0 0
    %10901 = vmatpush.bf16.msra.mxu0 0
    %10902 = vmatpush.bf16.msra.mxu0 %v10860
    %10903 = vmatmul.bf16.gmra.mxu0 %v10871
    %v10904 = vpop.f32.mrf.mxu0
    %v10905 = vadd.f32 %v10886, %v10904
    %v10906 = vpop.f32.mrf.mxu0
    %v10907 = vadd.f32 %v10888, %v10906
    %10908 = vmatmul.bf16.gmra.mxu0 %v10874
    %v10909 = vpop.f32.mrf.mxu0
    %v10910 = vadd.f32 %v10891, %v10909
    %v10911 = vpop.f32.mrf.mxu0
    %v10912 = vadd.f32 %v10893, %v10911
    %10913 = vdwg.mxu0
    %v10914 = vrcp.pop 16.0
    %v10915 = vmul.f32 16.0, %v10914
    %v10916 = vsub.f32 1.0, %v10915
    %v10917 = vmul.f32 %v10914, %v10916
    %v10918 = vadd.f32 %v10914, %v10917
    %vm10919 = vweird.f32 %v10914
    %v10920 = vsel %vm10919, %v10914, %v10918
    %v10921 = vmul.f32 %v4171, %v10920
    %v10922 = vmul.f32 %v4172, %v10920
    %v10923 = vmul.f32 %v4173, %v10920
    %v10924 = vmul.f32 %v4174, %v10920
    %v10925 = vfloor.f32 %v10921
    %v10926 = vfloor.f32 %v10922
    %v10927 = vfloor.f32 %v10923
    %v10928 = vfloor.f32 %v10924
    %v10929 = vmul.f32 %v10925, 16.0
    %v10930 = vmul.f32 %v10926, 16.0
    %v10931 = vmul.f32 %v10927, 16.0
    %v10932 = vmul.f32 %v10928, 16.0
    %v10933 = vsub.f32 %v4171, %v10929
    %v10934 = vsub.f32 %v4172, %v10930
    %v10935 = vsub.f32 %v4173, %v10931
    %v10936 = vsub.f32 %v4174, %v10932
    %v10937 = vrcp.pop 4.0
    %v10938 = vmul.f32 4.0, %v10937
    %v10939 = vsub.f32 1.0, %v10938
    %v10940 = vmul.f32 %v10937, %v10939
    %v10941 = vadd.f32 %v10937, %v10940
    %vm10942 = vweird.f32 %v10937
    %v10943 = vsel %vm10942, %v10937, %v10941
    %v10944 = vmul.f32 %v10933, %v10943
    %v10945 = vmul.f32 %v10934, %v10943
    %v10946 = vmul.f32 %v10935, %v10943
    %v10947 = vmul.f32 %v10936, %v10943
    %v10948 = vfloor.f32 %v10944
    %v10949 = vfloor.f32 %v10945
    %v10950 = vfloor.f32 %v10946
    %v10951 = vfloor.f32 %v10947
    %v10952 = vmul.f32 %v10948, 4.0
    %v10953 = vmul.f32 %v10949, 4.0
    %v10954 = vmul.f32 %v10950, 4.0
    %v10955 = vmul.f32 %v10951, 4.0
    %v10956 = vsub.f32 %v10933, %v10952
    %v10957 = vsub.f32 %v10934, %v10953
    %v10958 = vsub.f32 %v10935, %v10954
    %v10959 = vsub.f32 %v10936, %v10955
    %vm10960 = vcmp.lt.f32.partialorder %v10948, 2.0
    %vm10961 = vcmp.lt.f32.partialorder %v10949, 2.0
    %vm10962 = vcmp.lt.f32.partialorder %v10950, 2.0
    %vm10963 = vcmp.lt.f32.partialorder %v10951, 2.0
    %vm10964 = vcmp.lt.f32.partialorder %v10956, 2.0
    %vm10965 = vcmp.lt.f32.partialorder %v10957, 2.0
    %vm10966 = vcmp.lt.f32.partialorder %v10958, 2.0
    %vm10967 = vcmp.lt.f32.partialorder %v10959, 2.0
    %vm10968 = vmand %vm10960, %vm10964
    %vm10969 = vmand %vm10961, %vm10965
    %vm10970 = vmand %vm10962, %vm10966
    %vm10971 = vmand %vm10963, %vm10967
    %v10972 = vsel %vm10968, 1, 0
    %v10973 = vsel %vm10969, 1, 0
    %v10974 = vsel %vm10970, 1, 0
    %v10975 = vsel %vm10971, 1, 0
    %v10976 = vcvt.s32.f32 %v10972
    %v10977 = vcvt.s32.f32 %v10973
    %v10978 = vcvt.s32.f32 %v10974
    %v10979 = vcvt.s32.f32 %v10975
    %v10980 = vmul.f32 %v10905, %v10976
    %v10981 = vmul.f32 %v10907, %v10977
    %v10982 = vmul.f32 %v10910, %v10978
    %v10983 = vmul.f32 %v10912, %v10979
    %v10984 = vmul.f32 %v10980, %v10905
    %v10985 = vmul.f32 %v10981, %v10907
    %v10986 = vmul.f32 %v10982, %v10910
    %v10987 = vmul.f32 %v10983, %v10912
    %10992 = vrot.lane.b32.xlu0 %v10984, 16
    %v10993 = vpop.permute.xlu0 %10992
    %10994 = vrot.lane.b32.xlu0 %v10985, 16
    %v10995 = vpop.permute.xlu0 %10994
    %10996 = vrot.lane.b32.xlu0 %v10986, 16
    %v10997 = vpop.permute.xlu0 %10996
    %10998 = vrot.lane.b32.xlu0 %v10987, 16
    %v10999 = vpop.permute.xlu0 %10998
    %v11004 = vsel %vm5805, %v10980, %v10993
    %v11005 = vsel %vm5805, %v10981, %v10995
    %v11006 = vsel %vm5805, %v10982, %v10997
    %v11007 = vsel %vm5805, %v10983, %v10999
    %v11008 = vsel %vm5887, %v11004, 0.0
    %v11009 = vsel %vm5887, %v11005, 0.0
    %v11010 = vadd.f32 %v11008, %v11009
    %v11011 = vsel %vm5887, %v11006, 0.0
    %v11012 = vadd.f32 %v11010, %v11011
    %v11013 = vsel %vm5887, %v11007, 0.0
    %v11014 = vadd.f32 %v11012, %v11013
    %v11015 = vrot.slane %v11014, 4
    %v11016 = vadd.f32 %v11014, %v11015
    %v11017 = vrot.slane %v11016, 2
    %v11018 = vadd.f32 %v11016, %v11017
    %v11019 = vrot.slane %v11018, 1
    %v11020 = vadd.f32 %v11018, %v11019
    %v11021 = vrcp.pop 8.0
    %v11022 = vmul.f32 8.0, %v11021
    %v11023 = vsub.f32 1.0, %v11022
    %v11024 = vmul.f32 %v11021, %v11023
    %v11025 = vadd.f32 %v11021, %v11024
    %vm11026 = vweird.f32 %v11021
    %v11027 = vsel %vm11026, %v11021, %v11025
    %v11028 = vmul.f32 %v11020, %v11027
    %v11029 = vmul.f32 %v11028, %v11028
    %11031 = vrot.lane.b32.xlu0 %v11029, 16
    %v11032 = vpop.permute.xlu0 %11031
    %v11034 = vsub.f32 %v11028, %v11032
    %v11035 = vld [vmem:[%s3 + $0x3] sm:$0x1]
    %v11036 = vld [vmem:[%s4 + $0x3] sm:$0x1]
    %v11037 = vsub.f32 %v10905, %v11028
    %v11038 = vsub.f32 %v10907, %v11028
    %v11039 = vsub.f32 %v10910, %v11028
    %v11040 = vsub.f32 %v10912, %v11028
    %v11041 = vadd.f32 %v11034, 1e-05
    %v11042 = vrsqrt.pop %v11041
    %v11043 = vmul.f32 %v11042, %v11041
    %v11044 = vmul.f32 %v11043, %v11042
    %v11045 = vmul.f32 0.5, %v11044
    %v11046 = vsub.f32 1.5, %v11045
    %v11047 = vmul.f32 %v11042, %v11046
    %vm11048 = vweird.f32 %v11041
    %vm11049 = vweird.f32 %v11042
    %vm11050 = vmor %vm11048, %vm11049
    %v11051 = vsel %vm11050, %v11042, %v11047
    %11053 = vrot.lane.b32.xlu0 %v11035, 16
    %v11054 = vpop.permute.xlu0 %11053
    %v11056 = vmul.f32 %v11051, %v11054
    %v11057 = vperm.slane %v11056, 0
    %11059 = vrot.lane.b32.xlu0 %v11057, 112
    %v11060 = vpop.permute.xlu0 %11059
    %v11062 = vmul.f32 %v11037, %v11060
    %v11063 = vmul.f32 %v11038, %v11060
    %v11064 = vmul.f32 %v11039, %v11060
    %v11065 = vmul.f32 %v11040, %v11060
    %v11066 = vperm.slane %v11036, 0
    %v11067 = vadd.f32 %v11062, %v11066
    %v11068 = vadd.f32 %v11063, %v11066
    %v11069 = vadd.f32 %v11064, %v11066
    %v11070 = vadd.f32 %v11065, %v11066
    %v11071 = vmax.f32 %v11067, 0.0
    %v11072 = vmax.f32 %v11068, 0.0
    %v11073 = vmax.f32 %v11069, 0.0
    %v11074 = vmax.f32 %v11070, 0.0
    %v11079 = vrot.slane %v11071, 1
    %v11080 = vrot.slane %v11072, 1
    %v11081 = vsel %vm6496, %v11079, %v11080
    %v11082 = vrot.slane %v11073, 1
    %v11083 = vrot.slane %v11074, 1
    %v11084 = vsel %vm6496, %v11082, %v11083
    %v11087 = vmax.f32 %v11071, %v11081
    %v11088 = vmax.f32 %v11073, %v11084
    %v11089 = vsel %vm6496, %v11080, %v11082
    %v11092 = vmax.f32 %v11072, %v11089
    %v11093 = vmax.f32 %v11074, %v11083
    %vm11098 = vcmask 1043456
    %v11099 = vrot.slane %v11087, 4
    %v11100 = vrot.slane %v11092, 4
    %v11101 = vsel %vm11098, %v11099, %v11100
    %v11102 = vrot.slane %v11088, 4
    %v11103 = vrot.slane %v11093, 4
    %v11104 = vsel %vm11098, %v11102, %v11103
    %v11107 = vmax.f32 %v11087, %v11101
    %v11108 = vmax.f32 %v11088, %v11104
    %v11110 = vrot.slane %v11108, 7
    %vm11112 = vcmask 1040384
    %v11113 = vsel %vm11112, %v11107, %v11110
    %v11114 = vld [vmem:[%s5] sm:$0xff]
    %v11115 = vld [vmem:[%s5 + $0x8] sm:$0xff]
    %v11116 = vld [vmem:[%s6] sm:$0x1]
    %v11118 = vperm.slane %v11116, 0
    %v11121 = vsel %vm5805, %v11113, 0
    %11123 = vmatpush.msra.mxu0 0.0
    %11124 = vmatpush.msra.mxu0 0.0
    %11125 = vmatpush.msra.mxu0 0.0
    %11126 = vmatpush.msra.mxu0 0.0
    %11127 = vmatpush.msra.mxu0 0.0
    %11128 = vmatpush.msra.mxu0 0.0
    %11129 = vmatpush.msra.mxu0 0.0
    %11130 = vmatpush.msra.mxu0 0.0
    %11131 = vmatpush.msra.mxu0 0.0
    %11132 = vmatpush.msra.mxu0 0.0
    %11133 = vmatpush.msra.mxu0 0.0
    %11134 = vmatpush.msra.mxu0 0.0
    %11135 = vmatpush.msra.mxu0 0.0
    %11136 = vmatpush.msra.mxu0 0.0
    %11137 = vmatpush.msra.mxu0 %v11115
    %11138 = vmatpush.msra.mxu0 %v11114
    %11139 = vmatmul.f32.gmra.mxu0 %v11121
    %v11140 = vpop.f32.mrf.mxu0
    %v11141 = vadd.f32 %v11118, %v11140
    %11142 = vdwg.mxu0
    %vm11143 = vcmask 33792
    %11144 = vst.msk [vmem:[#allocation8] sm:$0x3] %vm11143, %v11141
    // Predicated region
    $region30: #{baseline_train_forward.1} parent=1 // pred_check
      _
    $region31: #{baseline_train_forward.1} parent=1 // pred_check_branch
      %11146 = sbr.rel (0) target = $region33
    $region32: #{baseline_train_forward.1} parent=1 // pred_region
      %11148 = vsyncadd [#allocation9], 0
      %s11150 = sshll.u32 [#allocation8], 4
      %s11151 = int_to_ptr.vmem [resolvable:$true] %s11150
      %s11152 = sshll.u32 %s7, 4
      %s11153 = int_to_ptr.hbm [resolvable:$true] %s11152
      %11155 = dma.vmem_to_hbm [thread:$0]  %s11151, 32, %s11153, [#allocation9]
    $region33: #{baseline_train_forward.1} parent=1 // pred_fallthru
      _
    // Predicated region
    $region34: #{baseline_train_forward.1} parent=1 // pred_check
      _
    $region35: #{baseline_train_forward.1} parent=1 // pred_check_branch
      %11157 = sbr.rel (0) target = $region37
    $region36: #{baseline_train_forward.1} parent=1 // pred_region
      %11159 = dma.done [#allocation9], 32
    $region37: #{baseline_train_forward.1} parent=1 // pred_fallthru
      _
    %11160 = vsyncpa [#allocation9], 1

</llo_original>
